<compile_context>
chip_gen: v7x
topology: tpu7x:2x2x1
jax: 0.10.0
libtpu: 0.0.40
codegen_flags: <defaults>
</compile_context>

<pallas_src>
import functools

import jax
import jax.numpy as jnp
from jax.experimental import pallas as pl
from jax.experimental.pallas import tpu as pltpu

N_EMBD = 384
HIDDEN = 4 * N_EMBD          # 1536
TK = 512                     # hidden-dim chunk (3 chunks of 512 = 4 lanes * 128)
assert HIDDEN % TK == 0


def ffn_kernel(x_ref, w1_ref, b1_ref, w2_ref, b2_ref, o_ref, acc_ref):
  """One (tm, C) row tile of  y = ReLU(x @ W1 + b1) @ W2 + b2  (Dropout = id)."""
  x = x_ref[...].astype(jnp.bfloat16)                 # (tm, C) bf16 MXU operand

  # Statically unrolled loop over the 1536-wide hidden dim in TK chunks.
  # Each chunk: matmul1 -> bias+ReLU (f32, VPU) -> bf16 -> matmul2 partial,
  # accumulated in an f32 VMEM scratch (never materializes the full h).
  for k in range(HIDDEN // TK):
    lo = k * TK
    h = jnp.dot(x, w1_ref[:, lo:lo + TK],             # (tm, TK), f32 acc on MXU
                preferred_element_type=jnp.float32)
    h = jnp.maximum(h + b1_ref[:, lo:lo + TK], 0.0)   # bias + ReLU in f32
    part = jnp.dot(h.astype(jnp.bfloat16), w2_ref[lo:lo + TK, :],
                   preferred_element_type=jnp.float32)  # (tm, C)
    if k == 0:
      acc_ref[...] = part + b2_ref[...]
    else:
      acc_ref[...] += part

  # nn.Dropout(0.2): identity in eval / inference mode.
  o_ref[...] = acc_ref[...].astype(o_ref.dtype)


def _pick_tm(M, block_m):
  """Row-tile size: 128-aligned (full MXU passes on v5e) and, when possible,
  an exact divisor of M (skips the pad + slice HBM round trip)."""
  for tm in (block_m, 512, 384, 256, 128):
    if 0 < tm <= min(block_m, M) and M % tm == 0:
      return tm
  if M < 128:                                   # tiny input: one sublane-aligned step
    return -(-M // 8) * 8
  return -(-min(block_m, M) // 128) * 128       # ceil to 128; caller pads the tail


@functools.partial(jax.jit, static_argnames=("block_m",))
def feedforward(x, params, *, block_m=256):
  B, T, C = x.shape
  assert C == N_EMBD
  # Weights must already be bf16 (see prepare_params).  Casting here would be
  # a separate per-call XLA op: a full extra HBM round trip of the weights.
  w1, b1, w2, b2 = params["w1"], params["b1"], params["w2"], params["b2"]
  assert w1.dtype == jnp.bfloat16 and w2.dtype == jnp.bfloat16

  M = B * T
  x2 = x.reshape(M, C)
  tm = _pick_tm(M, block_m)
  Mp = pl.cdiv(M, tm) * tm
  if Mp != M:
    # TODO(synk): a masked final tile would avoid this extra HBM copy for ragged M.
    x2 = jnp.pad(x2, ((0, Mp - M), (0, 0)))

  out = pl.pallas_call(
      ffn_kernel,
      out_shape=jax.ShapeDtypeStruct((Mp, C), x.dtype),
      grid=(Mp // tm,),
      in_specs=[
          # Activations: row-tiled, default double-buffering hides the DMA.
          pl.BlockSpec((tm, C), lambda i: (i, 0)),
          # Weights / biases: constant index_map -> single buffer (no dead
          # second pipeline buffer; saves ~2.4 MB VMEM per core on v7x).
          pl.BlockSpec((C, HIDDEN), lambda i: (0, 0),
                       pipeline_mode=pl.Buffered(1)),
          pl.BlockSpec((1, HIDDEN), lambda i: (0, 0),
                       pipeline_mode=pl.Buffered(1)),
          pl.BlockSpec((HIDDEN, C), lambda i: (0, 0),
                       pipeline_mode=pl.Buffered(1)),
          pl.BlockSpec((1, C), lambda i: (0, 0),
                       pipeline_mode=pl.Buffered(1)),
      ],
      out_specs=pl.BlockSpec((tm, C), lambda i: (i, 0)),   # 384 lanes = 3x128, lane-dense
      scratch_shapes=[pltpu.VMEM((tm, N_EMBD), jnp.float32)],  # f32 y accumulator
      compiler_params=pltpu.CompilerParams(
          dimension_semantics=("parallel",),     # shard row tiles across TCs (v7x)
          # 32 MiB is safe on every generation (v7x: 64 MiB physical / core).
          # On v5e/v6e (128 MiB VMEM) raise to 64-96 MiB together with
          # block_m=512-1024 when M grows, to amortize per-step overhead.
          vmem_limit_bytes=32 * 1024 * 1024,
      ),
  )(x2, w1, b1, w2, b2)

  if Mp != M:
    out = out[:M]
  return out.reshape(B, T, C)


def init_params(key):
  """Deterministic synthetic f32 master parameters (shapes from __init__)."""
  k1, k2, k3 = jax.random.split(key, 3)
  s = 0.02
  return {
      # Linear(n_embd, 4*n_embd): weight stored as (in, out) = (C, 4C).
      "w1": s * jax.random.normal(k1, (N_EMBD, HIDDEN), jnp.float32),
      "b1": s * jax.random.normal(k2, (1, HIDDEN), jnp.float32),
      # Linear(4*n_embd, n_embd): weight stored as (in, out) = (4C, C).
      "w2": s * jax.random.normal(k3, (HIDDEN, N_EMBD), jnp.float32),
      "b2": jnp.zeros((1, N_EMBD), jnp.float32),
  }


def prepare_params(params):
  """One-time (outside jit) conversion of matmul weights to bf16.

  Intentional accuracy tradeoff: bf16 MXU operands with f32 accumulation.
  Biases stay f32.
  # TODO(synk): on v7x the weights could be shipped as fp8 with per-channel
  # scales folded into the bias/epilogue to halve weight HBM traffic again.
  """
  return {
      "w1": params["w1"].astype(jnp.bfloat16),
      "b1": params["b1"].astype(jnp.float32),
      "w2": params["w2"].astype(jnp.bfloat16),
      "b2": params["b2"].astype(jnp.float32),
  }


def reference_feedforward(x, p):
  """Pure-JAX f32 reference mirroring the PyTorch forward (eval mode)."""
  h = jnp.maximum(x @ p["w1"] + p["b1"][0], 0.0)
  return h @ p["w2"] + p["b2"][0]


if __name__ == "__main__":
  key = jax.random.PRNGKey(0)
  kx, kp = jax.random.split(key)

  B, T = 4, 128                      # M = 512 rows -> two 256-row grid steps
  x = jax.random.normal(kx, (B, T, N_EMBD), jnp.float32)

  master = init_params(kp)           # f32 "PyTorch" parameters (reference)
  params = prepare_params(master)    # bf16 weights, converted ONCE outside jit

  out = jax.block_until_ready(feedforward(x, params))
  ref = reference_feedforward(x, master)

  assert out.shape == (B, T, N_EMBD)
  # bf16 matmul operands with f32 accumulation: small, bounded deviation
  # from the all-f32 reference (documented accuracy tradeoff).
  assert jnp.allclose(out, ref, atol=2e-2, rtol=2e-2), "mismatch vs reference"

  print("KERNEL_OK")
</pallas_src>

<mosaic_0001>
module attributes {stable_mosaic.version = 11 : i64} {
  func.func @ffn_kernel(%arg0: i32, %arg1: memref<256x384xf32, #tpu.memory_space<vmem>>, %arg2: memref<384x1536xbf16, #tpu.memory_space<vmem>>, %arg3: memref<1x1536xf32, #tpu.memory_space<vmem>>, %arg4: memref<1536x384xbf16, #tpu.memory_space<vmem>>, %arg5: memref<1x384xf32, #tpu.memory_space<vmem>>, %arg6: memref<256x384xf32, #tpu.memory_space<vmem>>, %arg7: memref<256x384xf32, #tpu.memory_space<vmem>>) attributes {dimension_semantics = [#tpu.dimension_semantics<parallel>], iteration_bounds = array<i64: 2>, scalar_prefetch = 0 : i64, scratch_operands = 1 : i64, tpu.core_type = #tpu.core_type<tc>, window_params = [{transform_indices = @transform_0, window_bounds = array<i64: 256, 384>}, {pipeline_mode = #tpu.pipeline_mode<synchronous>, transform_indices = @transform_1, window_bounds = array<i64: 384, 1536>}, {pipeline_mode = #tpu.pipeline_mode<synchronous>, transform_indices = @transform_2, window_bounds = array<i64: 1, 1536>}, {pipeline_mode = #tpu.pipeline_mode<synchronous>, transform_indices = @transform_3, window_bounds = array<i64: 1536, 384>}, {pipeline_mode = #tpu.pipeline_mode<synchronous>, transform_indices = @transform_4, window_bounds = array<i64: 1, 384>}, {transform_indices = @transform_5, window_bounds = array<i64: 256, 384>}]} {
    %c0 = arith.constant 0 : index
    %c0_0 = arith.constant 0 : index
    %0 = vector.load %arg1[%c0, %c0_0] : memref<256x384xf32, #tpu.memory_space<vmem>>, vector<256x384xf32>
    %1 = arith.truncf %0 : vector<256x384xf32> to vector<256x384xbf16>
    %c0_1 = arith.constant 0 : index
    %c0_2 = arith.constant 0 : index
    %2 = vector.load %arg2[%c0_1, %c0_2] : memref<384x1536xbf16, #tpu.memory_space<vmem>>, vector<384x512xbf16>
    %cst = arith.constant dense<0.000000e+00> : vector<256x512xf32>
    %3 = tpu.matmul %1, %2, %cst {dimension_numbers = #tpu.dot_dimension_numbers<[1], [0], [0], [1], [0, 0, 1, 1], [], []>} : vector<256x384xbf16>, vector<384x512xbf16>, vector<256x512xf32> -> vector<256x512xf32>
    %c0_3 = arith.constant 0 : index
    %c0_4 = arith.constant 0 : index
    %4 = vector.load %arg3[%c0_3, %c0_4] : memref<1x1536xf32, #tpu.memory_space<vmem>>, vector<1x512xf32>
    %5 = vector.broadcast %4 : vector<1x512xf32> to vector<256x512xf32>
    %6 = arith.addf %3, %5 : vector<256x512xf32>
    %cst_5 = arith.constant 0.000000e+00 : f32
    %7 = vector.broadcast %cst_5 : f32 to vector<256x512xf32>
    %8 = arith.maximumf %6, %7 : vector<256x512xf32>
    %9 = arith.truncf %8 : vector<256x512xf32> to vector<256x512xbf16>
    %c0_6 = arith.constant 0 : index
    %c0_7 = arith.constant 0 : index
    %10 = vector.load %arg4[%c0_6, %c0_7] : memref<1536x384xbf16, #tpu.memory_space<vmem>>, vector<512x384xbf16>
    %cst_8 = arith.constant dense<0.000000e+00> : vector<256x384xf32>
    %11 = tpu.matmul %9, %10, %cst_8 {dimension_numbers = #tpu.dot_dimension_numbers<[1], [0], [0], [1], [0, 0, 1, 1], [], []>} : vector<256x512xbf16>, vector<512x384xbf16>, vector<256x384xf32> -> vector<256x384xf32>
    %c0_9 = arith.constant 0 : index
    %c0_10 = arith.constant 0 : index
    %12 = vector.load %arg5[%c0_9, %c0_10] : memref<1x384xf32, #tpu.memory_space<vmem>>, vector<1x384xf32>
    %13 = vector.broadcast %12 : vector<1x384xf32> to vector<256x384xf32>
    %14 = arith.addf %11, %13 : vector<256x384xf32>
    %c0_11 = arith.constant 0 : index
    %c0_12 = arith.constant 0 : index
    %15 = vector.load %arg7[%c0_11, %c0_12] : memref<256x384xf32, #tpu.memory_space<vmem>>, vector<256x384xf32>
    tpu.vector_store %arg7[%c0_11, %c0_12], %14 {strides = array<i32>} : memref<256x384xf32, #tpu.memory_space<vmem>>, vector<256x384xf32>,
    %c0_13 = arith.constant 0 : index
    %c512 = arith.constant 512 : index
    %16 = vector.load %arg2[%c0_13, %c512] : memref<384x1536xbf16, #tpu.memory_space<vmem>>, vector<384x512xbf16>
    %cst_14 = arith.constant dense<0.000000e+00> : vector<256x512xf32>
    %17 = tpu.matmul %1, %16, %cst_14 {dimension_numbers = #tpu.dot_dimension_numbers<[1], [0], [0], [1], [0, 0, 1, 1], [], []>} : vector<256x384xbf16>, vector<384x512xbf16>, vector<256x512xf32> -> vector<256x512xf32>
    %c0_15 = arith.constant 0 : index
    %c512_16 = arith.constant 512 : index
    %18 = vector.load %arg3[%c0_15, %c512_16] : memref<1x1536xf32, #tpu.memory_space<vmem>>, vector<1x512xf32>
    %19 = vector.broadcast %18 : vector<1x512xf32> to vector<256x512xf32>
    %20 = arith.addf %17, %19 : vector<256x512xf32>
    %cst_17 = arith.constant 0.000000e+00 : f32
    %21 = vector.broadcast %cst_17 : f32 to vector<256x512xf32>
    %22 = arith.maximumf %20, %21 : vector<256x512xf32>
    %23 = arith.truncf %22 : vector<256x512xf32> to vector<256x512xbf16>
    %c512_18 = arith.constant 512 : index
    %c0_19 = arith.constant 0 : index
    %24 = vector.load %arg4[%c512_18, %c0_19] : memref<1536x384xbf16, #tpu.memory_space<vmem>>, vector<512x384xbf16>
    %cst_20 = arith.constant dense<0.000000e+00> : vector<256x384xf32>
    %25 = tpu.matmul %23, %24, %cst_20 {dimension_numbers = #tpu.dot_dimension_numbers<[1], [0], [0], [1], [0, 0, 1, 1], [], []>} : vector<256x512xbf16>, vector<512x384xbf16>, vector<256x384xf32> -> vector<256x384xf32>
    %c0_21 = arith.constant 0 : index
    %c0_22 = arith.constant 0 : index
    %26 = vector.load %arg7[%c0_21, %c0_22] : memref<256x384xf32, #tpu.memory_space<vmem>>, vector<256x384xf32>
    %27 = arith.addf %26, %25 : vector<256x384xf32>
    %c0_23 = arith.constant 0 : index
    %c0_24 = arith.constant 0 : index
    %28 = vector.load %arg7[%c0_23, %c0_24] : memref<256x384xf32, #tpu.memory_space<vmem>>, vector<256x384xf32>
    tpu.vector_store %arg7[%c0_23, %c0_24], %27 {strides = array<i32>} : memref<256x384xf32, #tpu.memory_space<vmem>>, vector<256x384xf32>,
    %c0_25 = arith.constant 0 : index
    %c1024 = arith.constant 1024 : index
    %29 = vector.load %arg2[%c0_25, %c1024] : memref<384x1536xbf16, #tpu.memory_space<vmem>>, vector<384x512xbf16>
    %cst_26 = arith.constant dense<0.000000e+00> : vector<256x512xf32>
    %30 = tpu.matmul %1, %29, %cst_26 {dimension_numbers = #tpu.dot_dimension_numbers<[1], [0], [0], [1], [0, 0, 1, 1], [], []>} : vector<256x384xbf16>, vector<384x512xbf16>, vector<256x512xf32> -> vector<256x512xf32>
    %c0_27 = arith.constant 0 : index
    %c1024_28 = arith.constant 1024 : index
    %31 = vector.load %arg3[%c0_27, %c1024_28] : memref<1x1536xf32, #tpu.memory_space<vmem>>, vector<1x512xf32>
    %32 = vector.broadcast %31 : vector<1x512xf32> to vector<256x512xf32>
    %33 = arith.addf %30, %32 : vector<256x512xf32>
    %cst_29 = arith.constant 0.000000e+00 : f32
    %34 = vector.broadcast %cst_29 : f32 to vector<256x512xf32>
    %35 = arith.maximumf %33, %34 : vector<256x512xf32>
    %36 = arith.truncf %35 : vector<256x512xf32> to vector<256x512xbf16>
    %c1024_30 = arith.constant 1024 : index
    %c0_31 = arith.constant 0 : index
    %37 = vector.load %arg4[%c1024_30, %c0_31] : memref<1536x384xbf16, #tpu.memory_space<vmem>>, vector<512x384xbf16>
    %cst_32 = arith.constant dense<0.000000e+00> : vector<256x384xf32>
    %38 = tpu.matmul %36, %37, %cst_32 {dimension_numbers = #tpu.dot_dimension_numbers<[1], [0], [0], [1], [0, 0, 1, 1], [], []>} : vector<256x512xbf16>, vector<512x384xbf16>, vector<256x384xf32> -> vector<256x384xf32>
    %c0_33 = arith.constant 0 : index
    %c0_34 = arith.constant 0 : index
    %39 = vector.load %arg7[%c0_33, %c0_34] : memref<256x384xf32, #tpu.memory_space<vmem>>, vector<256x384xf32>
    %40 = arith.addf %39, %38 : vector<256x384xf32>
    %c0_35 = arith.constant 0 : index
    %c0_36 = arith.constant 0 : index
    %41 = vector.load %arg7[%c0_35, %c0_36] : memref<256x384xf32, #tpu.memory_space<vmem>>, vector<256x384xf32>
    tpu.vector_store %arg7[%c0_35, %c0_36], %40 {strides = array<i32>} : memref<256x384xf32, #tpu.memory_space<vmem>>, vector<256x384xf32>,
    %c0_37 = arith.constant 0 : index
    %c0_38 = arith.constant 0 : index
    %42 = vector.load %arg7[%c0_37, %c0_38] : memref<256x384xf32, #tpu.memory_space<vmem>>, vector<256x384xf32>
    %c0_39 = arith.constant 0 : index
    %c0_40 = arith.constant 0 : index
    %43 = vector.load %arg6[%c0_39, %c0_40] : memref<256x384xf32, #tpu.memory_space<vmem>>, vector<256x384xf32>
    tpu.vector_store %arg6[%c0_39, %c0_40], %42 {strides = array<i32>} : memref<256x384xf32, #tpu.memory_space<vmem>>, vector<256x384xf32>,
    return
  }
  func.func @transform_0(%arg0: i32) -> (i32, i32) {
    %c0_i32 = arith.constant 0 : i32
    %c0_i32_0 = arith.constant 0 : i32
    return %arg0, %c0_i32 : i32, i32
  }
  func.func @transform_1(%arg0: i32) -> (i32, i32) {
    %c0_i32 = arith.constant 0 : i32
    %c0_i32_0 = arith.constant 0 : i32
    %c0_i32_1 = arith.constant 0 : i32
    return %c0_i32, %c0_i32_0 : i32, i32
  }
  func.func @transform_2(%arg0: i32) -> (i32, i32) {
    %c0_i32 = arith.constant 0 : i32
    %c0_i32_0 = arith.constant 0 : i32
    %c0_i32_1 = arith.constant 0 : i32
    return %c0_i32, %c0_i32_0 : i32, i32
  }
  func.func @transform_3(%arg0: i32) -> (i32, i32) {
    %c0_i32 = arith.constant 0 : i32
    %c0_i32_0 = arith.constant 0 : i32
    %c0_i32_1 = arith.constant 0 : i32
    return %c0_i32, %c0_i32_0 : i32, i32
  }
  func.func @transform_4(%arg0: i32) -> (i32, i32) {
    %c0_i32 = arith.constant 0 : i32
    %c0_i32_0 = arith.constant 0 : i32
    %c0_i32_1 = arith.constant 0 : i32
    return %c0_i32, %c0_i32_0 : i32, i32
  }
  func.func @transform_5(%arg0: i32) -> (i32, i32) {
    %c0_i32 = arith.constant 0 : i32
    %c0_i32_0 = arith.constant 0 : i32
    return %arg0, %c0_i32 : i32, i32
  }
}

</mosaic_0001>

<llo_original>
// kernel: feedforward.1
$region0: #{feedforward.1}
  #allocation0 [shape = 'u32[]', space=smem, size = 0x4, offset = 0x4, fixed_abs, tag = 'smem constant byte address 0x4 - core index']
  #allocation1 [shape = 'u32[144,128]{1,0:T(1,128)}', space=vmem, size = 0x12000, scoped, tag = 'internal scratch']
  #allocation2 [shape = 'f32[256,384]{1,0:T(8,128)}', space=vmem, size = 0x60000, scoped, tag = 'scratch operand']
  %s0 = inlined_call_operand.hbm [shape: f32[512,384], index: 0, kind: input, shape index: {}]
  %s1 = inlined_call_operand.hbm [shape: bf16[384,1536], index: 1, kind: input, shape index: {}]
  %s2 = inlined_call_operand.hbm [shape: f32[1,1536], index: 2, kind: input, shape index: {}]
  %s3 = inlined_call_operand.hbm [shape: bf16[1536,384], index: 3, kind: input, shape index: {}]
  %s4 = inlined_call_operand.hbm [shape: f32[1,384], index: 4, kind: input, shape index: {}]
  %s5 = inlined_call_operand.hbm [shape: f32[512,384], index: 5, kind: output, shape index: {}]
  %s6 = sld [smem:[#allocation0]]
  $region73: #{feedforward.1} parent=0
    _
  %s8 = ssub.s32 1, %s6
  %s9 = scalar_select 0, %s8, %s6
  $region1: #{feedforward.1} parent=0
    #allocation3 [shape = 'u8[786432]{0}', space=vmem, size = 0xc0000, scoped, tag = 'input window, operand 0']
    #allocation4 [shape = 's32[2]{0}', space=sflag, size = 0x8, scoped, tag = 'scoped memory for feedforward.1']
    #allocation5 [shape = 's32[2]{0}', space=sflag, size = 0x8, scoped, tag = 'scoped memory for feedforward.1']
    #allocation6 [shape = 'u8[1179648]{0}', space=vmem, size = 0x120000, scoped, tag = 'input window, operand 1, single buffered']
    #allocation7 [shape = 's32[1]{0}', space=sflag, size = 0x4, scoped, tag = 'scoped memory for feedforward.1']
    #allocation8 [shape = 'u8[6144]{0}', space=vmem, size = 0x1800, scoped, tag = 'input window, operand 2, single buffered']
    #allocation9 [shape = 'u8[1179648]{0}', space=vmem, size = 0x120000, scoped, tag = 'input window, operand 3, single buffered']
    #allocation10 [shape = 's32[1]{0}', space=sflag, size = 0x4, scoped, tag = 'scoped memory for feedforward.1']
    #allocation11 [shape = 'u8[1536]{0}', space=vmem, size = 0x800, scoped, tag = 'input window, operand 4, single buffered']
    #allocation12 [shape = 'u8[786432]{0}', space=vmem, size = 0xc0000, scoped, tag = 'output window, operand 0']
    %10 = vsyncpa [#allocation4], 0
    %s11 = scalar_lea.sflag [#allocation4], 1
    %12 = vsyncpa %s11, 0
    %13 = vsyncpa [#allocation7], 0
    %14 = vsyncpa [#allocation10], 0
    %15 = vsyncpa [#allocation5], 0
    %s16 = scalar_lea.sflag [#allocation5], 1
    %17 = vsyncpa %s16, 0
    loop: start=0, step=1, limit=4
    $region2: #{feedforward.1} parent=1 // loop_pre_header
      _
    $region3: #{feedforward.1} parent=1 // loop_header
      %s19 = sphi 0, %s23
      %p20 = scmp.ge.s32.totalorder %s19, 4
      %s29 = sphi 0, %s31
      %s32 = sphi 0, %s29
      %s33 = sphi 0, %s32
      %s49 = sphi 0, %s33
      %s53 = sphi 0, %s53
      %s55 = sphi 0, %s53
      %s56 = sphi 0, %s55
      %s70 = sphi 0, %s56
      %s74 = sphi 0, %s74
      %s76 = sphi 0, %s74
      %s77 = sphi 0, %s76
      %s91 = sphi 0, %s77
      %s95 = sphi 0, %s95
      %s97 = sphi 0, %s95
      %s98 = sphi 0, %s97
      %s112 = sphi 0, %s98
      %s116 = sphi 0, %s116
      %s118 = sphi 0, %s116
      %s119 = sphi 0, %s118
      %s133 = sphi 0, %s119
      %s139 = sphi 0, %s141
      %s142 = sphi 0, %s139
      %s143 = sphi 0, %s142
      %s159 = sphi 0, %s143
    $region4: #{feedforward.1} parent=1 // loop_header_branch
      %22 = sbr.rel (%p20) target = $region8
    $region5: #{feedforward.1} parent=1 // loop_body
      %s24 = ssub.s32 %s19, 1
      %s25 = ssub.s32 %s19, 2
      %s26 = sadd.s32 %s19, 1
      %s27 = ssub.s32 %s19, %s26
      %p28 = scmp.eq.s32.totalorder %s27, 0
      %s30 = sadd.s32 %s29, 1
      %s31 = scalar_select %p28, %s29, %s30
      %p34 = pneg %p28
      %p35 = scmp.eq.s32.totalorder %s19, 1
      %p36 = por %p34, %p35
      %p37 = scmp.ne.s32.totalorder %s29, %s32
      %p38 = scmp.eq.s32.totalorder %s19, 0
      %p39 = por %p37, %p38
      %p40 = scmp.ne.s32.totalorder %s29, %s32
      %p41 = scmp.eq.s32.totalorder %s24, 1
      %p42 = por %p40, %p41
      %p43 = scmp.ne.s32.totalorder %s32, %s33
      %p44 = scmp.eq.s32.totalorder %s24, 0
      %p45 = por %p43, %p44
      %p46 = scmp.ne.s32.totalorder %s32, %s33
      %p47 = scmp.eq.s32.totalorder %s25, 1
      %p48 = por %p46, %p47
      %p50 = scmp.ne.s32.totalorder %s33, %s49
      %p51 = scmp.eq.s32.totalorder %s25, 0
      %p52 = por %p50, %p51
      %s54 = sadd.s32 %s53, 1
      %p57 = scmp.eq.s32.totalorder %s19, 1
      %p58 = scmp.ne.s32.totalorder %s53, %s55
      %p59 = scmp.eq.s32.totalorder %s19, 0
      %p60 = por %p58, %p59
      %p61 = scmp.ne.s32.totalorder %s53, %s55
      %p62 = scmp.eq.s32.totalorder %s24, 1
      %p63 = por %p61, %p62
      %p64 = scmp.ne.s32.totalorder %s55, %s56
      %p65 = scmp.eq.s32.totalorder %s24, 0
      %p66 = por %p64, %p65
      %p67 = scmp.ne.s32.totalorder %s55, %s56
      %p68 = scmp.eq.s32.totalorder %s25, 1
      %p69 = por %p67, %p68
      %p71 = scmp.ne.s32.totalorder %s56, %s70
      %p72 = scmp.eq.s32.totalorder %s25, 0
      %p73 = por %p71, %p72
      %s75 = sadd.s32 %s74, 1
      %p78 = scmp.eq.s32.totalorder %s19, 1
      %p79 = scmp.ne.s32.totalorder %s74, %s76
      %p80 = scmp.eq.s32.totalorder %s19, 0
      %p81 = por %p79, %p80
      %p82 = scmp.ne.s32.totalorder %s74, %s76
      %p83 = scmp.eq.s32.totalorder %s24, 1
      %p84 = por %p82, %p83
      %p85 = scmp.ne.s32.totalorder %s76, %s77
      %p86 = scmp.eq.s32.totalorder %s24, 0
      %p87 = por %p85, %p86
      %p88 = scmp.ne.s32.totalorder %s76, %s77
      %p89 = scmp.eq.s32.totalorder %s25, 1
      %p90 = por %p88, %p89
      %p92 = scmp.ne.s32.totalorder %s77, %s91
      %p93 = scmp.eq.s32.totalorder %s25, 0
      %p94 = por %p92, %p93
      %s96 = sadd.s32 %s95, 1
      %p99 = scmp.eq.s32.totalorder %s19, 1
      %p100 = scmp.ne.s32.totalorder %s95, %s97
      %p101 = scmp.eq.s32.totalorder %s19, 0
      %p102 = por %p100, %p101
      %p103 = scmp.ne.s32.totalorder %s95, %s97
      %p104 = scmp.eq.s32.totalorder %s24, 1
      %p105 = por %p103, %p104
      %p106 = scmp.ne.s32.totalorder %s97, %s98
      %p107 = scmp.eq.s32.totalorder %s24, 0
      %p108 = por %p106, %p107
      %p109 = scmp.ne.s32.totalorder %s97, %s98
      %p110 = scmp.eq.s32.totalorder %s25, 1
      %p111 = por %p109, %p110
      %p113 = scmp.ne.s32.totalorder %s98, %s112
      %p114 = scmp.eq.s32.totalorder %s25, 0
      %p115 = por %p113, %p114
      %s117 = sadd.s32 %s116, 1
      %p120 = scmp.eq.s32.totalorder %s19, 1
      %p121 = scmp.ne.s32.totalorder %s116, %s118
      %p122 = scmp.eq.s32.totalorder %s19, 0
      %p123 = por %p121, %p122
      %p124 = scmp.ne.s32.totalorder %s116, %s118
      %p125 = scmp.eq.s32.totalorder %s24, 1
      %p126 = por %p124, %p125
      %p127 = scmp.ne.s32.totalorder %s118, %s119
      %p128 = scmp.eq.s32.totalorder %s24, 0
      %p129 = por %p127, %p128
      %p130 = scmp.ne.s32.totalorder %s118, %s119
      %p131 = scmp.eq.s32.totalorder %s25, 1
      %p132 = por %p130, %p131
      %p134 = scmp.ne.s32.totalorder %s119, %s133
      %p135 = scmp.eq.s32.totalorder %s25, 0
      %p136 = por %p134, %p135
      %s137 = ssub.s32 %s19, %s26
      %p138 = scmp.eq.s32.totalorder %s137, 0
      %s140 = sadd.s32 %s139, 1
      %s141 = scalar_select %p138, %s139, %s140
      %p144 = pneg %p138
      %p145 = scmp.eq.s32.totalorder %s19, 1
      %p146 = por %p144, %p145
      %p147 = scmp.ne.s32.totalorder %s139, %s142
      %p148 = scmp.eq.s32.totalorder %s19, 0
      %p149 = por %p147, %p148
      %p150 = scmp.ne.s32.totalorder %s139, %s142
      %p151 = scmp.eq.s32.totalorder %s24, 1
      %p152 = por %p150, %p151
      %p153 = scmp.ne.s32.totalorder %s142, %s143
      %p154 = scmp.eq.s32.totalorder %s24, 0
      %p155 = por %p153, %p154
      %p156 = scmp.ne.s32.totalorder %s142, %s143
      %p157 = scmp.eq.s32.totalorder %s25, 1
      %p158 = por %p156, %p157
      %p160 = scmp.ne.s32.totalorder %s143, %s159
      %p161 = scmp.eq.s32.totalorder %s25, 0
      %p162 = por %p160, %p161
      %p163 = scmp.le.s32.totalorder 1, %s19
      %p164 = scmp.lt.s32.totalorder %s19, 3
      %p165 = pnand %p163, %p164
      %p166 = pneg %p165
      // Predicated region
      $region9: #{feedforward.1} parent=5 // pred_check
        _
      $region10: #{feedforward.1} parent=5 // pred_check_branch
        %168 = sbr.rel (%p165) target = $region12
      $region11: #{feedforward.1} parent=5 // pred_region
        %s169 = ssub.s32 %s19, 1
        // Predicated region
        $region13: #{feedforward.1} parent=11 // pred_check
          %p170 = pneg %p66
        $region14: #{feedforward.1} parent=11 // pred_check_branch
          %172 = sbr.rel (%p170) target = $region16
        $region15: #{feedforward.1} parent=11 // pred_region
          %s174 = ssub.s32 36864, 36864
          %175 = vsyncadd [#allocation7], %s174
          %s176 = sshll.u32 [#allocation6], 4
          %s177 = int_to_ptr.vmem [resolvable:$true] %s176
          %182 = dma.hbm_to_vmem [thread:$0]  %s1, 36864, %s177, [#allocation7], 768, 768, 48
        $region16: #{feedforward.1} parent=11 // pred_fallthru
          _
        // Predicated region
        $region17: #{feedforward.1} parent=11 // pred_check
          %p183 = pneg %p87
        $region18: #{feedforward.1} parent=11 // pred_check_branch
          %185 = sbr.rel (%p183) target = $region20
        $region19: #{feedforward.1} parent=11 // pred_region
          %s187 = ssub.s32 192, 192
          %188 = vsyncadd [#allocation7], %s187
          %s190 = sshll.u32 [#allocation8], 4
          %s191 = int_to_ptr.vmem [resolvable:$true] %s190
          %193 = dma.hbm_to_vmem [thread:$0]  %s2, 192, %s191, [#allocation7]
        $region20: #{feedforward.1} parent=11 // pred_fallthru
          _
        // Predicated region
        $region21: #{feedforward.1} parent=11 // pred_check
          %p194 = pneg %p108
        $region22: #{feedforward.1} parent=11 // pred_check_branch
          %196 = sbr.rel (%p194) target = $region24
        $region23: #{feedforward.1} parent=11 // pred_region
          %s198 = ssub.s32 36864, 36864
          %199 = vsyncadd [#allocation10], %s198
          %s200 = sshll.u32 [#allocation9], 4
          %s201 = int_to_ptr.vmem [resolvable:$true] %s200
          %206 = dma.hbm_to_vmem [thread:$0]  %s3, 36864, %s201, [#allocation10], 192, 192, 12
        $region24: #{feedforward.1} parent=11 // pred_fallthru
          _
        // Predicated region
        $region25: #{feedforward.1} parent=11 // pred_check
          %p207 = pneg %p129
        $region26: #{feedforward.1} parent=11 // pred_check_branch
          %209 = sbr.rel (%p207) target = $region28
        $region27: #{feedforward.1} parent=11 // pred_region
          %s211 = ssub.s32 48, 48
          %212 = vsyncadd [#allocation10], %s211
          %s214 = sshll.u32 [#allocation11], 4
          %s215 = int_to_ptr.vmem [resolvable:$true] %s214
          %217 = dma.hbm_to_vmem [thread:$0]  %s4, 48, %s215, [#allocation10]
        $region28: #{feedforward.1} parent=11 // pred_fallthru
          _
      $region12: #{feedforward.1} parent=5 // pred_fallthru
        _
      %p218 = scmp.lt.s32.totalorder %s19, 2
      // Predicated region
      $region29: #{feedforward.1} parent=5 // pred_check
        %p219 = pneg %p218
      $region30: #{feedforward.1} parent=5 // pred_check_branch
        %221 = sbr.rel (%p219) target = $region32
      $region31: #{feedforward.1} parent=5 // pred_region
        // Predicated region
        $region33: #{feedforward.1} parent=31 // pred_check
          %p222 = pneg %p39
        $region34: #{feedforward.1} parent=31 // pred_check_branch
          %224 = sbr.rel (%p222) target = $region36
        $region35: #{feedforward.1} parent=31 // pred_region
          %s225 = sand.u32 %s29, 1
          %s226 = scalar_lea.sflag [#allocation4], %s225
          %s227 = sand.u32 %s29, 1
          %s228 = smul.addr %s227, 768
          %s229 = scalar_lea.vmem [#allocation3], %s228
          %s230 = smul.u32 32, %s19
          %s232 = ssub.s32 12288, 12288
          %233 = vsyncadd %s226, %s232
          %s234 = smul.addr %s230, 3
          %s235 = smul.addr %s234, 128
          %s236 = scalar_lea.hbm %s0, %s235
          %s237 = sshll.u32 %s229, 4
          %s238 = int_to_ptr.vmem [resolvable:$true] %s237
          %243 = dma.hbm_to_vmem [thread:$0]  %s236, 12288, %s238, %s226, 384, 384, 24
        $region36: #{feedforward.1} parent=31 // pred_fallthru
          _
      $region32: #{feedforward.1} parent=5 // pred_fallthru
        _
      %p244 = scmp.le.s32.totalorder 1, %s19
      %p245 = scmp.lt.s32.totalorder %s19, 3
      %p246 = pnand %p244, %p245
      %p247 = pneg %p246
      // Predicated region
      $region37: #{feedforward.1} parent=5 // pred_check
        _
      $region38: #{feedforward.1} parent=5 // pred_check_branch
        %249 = sbr.rel (%p246) target = $region40
      $region39: #{feedforward.1} parent=5 // pred_region
        %s250 = ssub.s32 %s19, 1
        %s251 = sand.u32 %s32, 1
        %s252 = scalar_lea.sflag [#allocation4], %s251
        %s253 = sand.u32 %s32, 1
        %s254 = smul.addr %s253, 768
        %s255 = scalar_lea.vmem [#allocation3], %s254
        // Predicated region
        $region41: #{feedforward.1} parent=39 // pred_check
          %p256 = pneg %p45
        $region42: #{feedforward.1} parent=39 // pred_check_branch
          %258 = sbr.rel (%p256) target = $region44
        $region43: #{feedforward.1} parent=39 // pred_region
          %259 = dma.done %s252, 12288
        $region44: #{feedforward.1} parent=39 // pred_fallthru
          _
        // Predicated region
        $region45: #{feedforward.1} parent=39 // pred_check
          %p260 = pneg %p66
        $region46: #{feedforward.1} parent=39 // pred_check_branch
          %262 = sbr.rel (%p260) target = $region48
        $region47: #{feedforward.1} parent=39 // pred_region
          %263 = dma.done [#allocation7], 36864
        $region48: #{feedforward.1} parent=39 // pred_fallthru
          _
        // Predicated region
        $region49: #{feedforward.1} parent=39 // pred_check
          %p264 = pneg %p87
        $region50: #{feedforward.1} parent=39 // pred_check_branch
          %266 = sbr.rel (%p264) target = $region52
        $region51: #{feedforward.1} parent=39 // pred_region
          %267 = dma.done [#allocation7], 192
        $region52: #{feedforward.1} parent=39 // pred_fallthru
          _
        // Predicated region
        $region53: #{feedforward.1} parent=39 // pred_check
          %p268 = pneg %p108
        $region54: #{feedforward.1} parent=39 // pred_check_branch
          %270 = sbr.rel (%p268) target = $region56
        $region55: #{feedforward.1} parent=39 // pred_region
          %271 = dma.done [#allocation10], 36864
        $region56: #{feedforward.1} parent=39 // pred_fallthru
          _
        // Predicated region
        $region57: #{feedforward.1} parent=39 // pred_check
          %p272 = pneg %p129
        $region58: #{feedforward.1} parent=39 // pred_check_branch
          %274 = sbr.rel (%p272) target = $region60
        $region59: #{feedforward.1} parent=39 // pred_region
          %275 = dma.done [#allocation10], 48
        $region60: #{feedforward.1} parent=39 // pred_fallthru
          _
        %s276 = sand.u32 %s32, 1
        %s277 = scalar_lea.sflag [#allocation4], %s276
        %s278 = sand.u32 %s32, 1
        %s279 = smul.addr %s278, 768
        %s280 = scalar_lea.vmem [#allocation3], %s279
        %p281 = pneg %p45
        %p282 = pneg %p42
        %p283 = pneg %p66
        %p284 = pneg %p63
        %p285 = pneg %p87
        %p286 = pneg %p84
        %p287 = pneg %p108
        %p288 = pneg %p105
        %p289 = pneg %p129
        %p290 = pneg %p126
        %p291 = pneg %p155
        %p292 = pneg %p152
        %s293 = sand.u32 %s142, 1
        %s294 = scalar_lea.sflag [#allocation5], %s293
        %s295 = sand.u32 %s142, 1
        %s296 = smul.addr %s295, 768
        %s297 = scalar_lea.vmem [#allocation12], %s296
        %s298 = smul.u32 32, %s24
        %s299 = smul.u32 32, %s24
        %v301 = vld [vmem:[%s255] sm:$0xff]
        %v302 = vld [vmem:[%s255 + $0x8] sm:$0xff]
        %v303 = vld [vmem:[%s255 + $0x10] sm:$0xff]
        %v304 = vld [vmem:[%s255 + $0x18] sm:$0xff]
        %v305 = vld [vmem:[%s255 + $0x20] sm:$0xff]
        %v306 = vld [vmem:[%s255 + $0x28] sm:$0xff]
        %v307 = vld [vmem:[%s255 + $0x30] sm:$0xff]
        %v308 = vld [vmem:[%s255 + $0x38] sm:$0xff]
        %v309 = vld [vmem:[%s255 + $0x40] sm:$0xff]
        %v310 = vld [vmem:[%s255 + $0x48] sm:$0xff]
        %v311 = vld [vmem:[%s255 + $0x50] sm:$0xff]
        %v312 = vld [vmem:[%s255 + $0x58] sm:$0xff]
        %v313 = vld [vmem:[%s255 + $0x60] sm:$0xff]
        %v314 = vld [vmem:[%s255 + $0x68] sm:$0xff]
        %v315 = vld [vmem:[%s255 + $0x70] sm:$0xff]
        %v316 = vld [vmem:[%s255 + $0x78] sm:$0xff]
        %v317 = vld [vmem:[%s255 + $0x80] sm:$0xff]
        %v318 = vld [vmem:[%s255 + $0x88] sm:$0xff]
        %v319 = vld [vmem:[%s255 + $0x90] sm:$0xff]
        %v320 = vld [vmem:[%s255 + $0x98] sm:$0xff]
        %v321 = vld [vmem:[%s255 + $0xa0] sm:$0xff]
        %v322 = vld [vmem:[%s255 + $0xa8] sm:$0xff]
        %v323 = vld [vmem:[%s255 + $0xb0] sm:$0xff]
        %v324 = vld [vmem:[%s255 + $0xb8] sm:$0xff]
        %v325 = vld [vmem:[%s255 + $0xc0] sm:$0xff]
        %v326 = vld [vmem:[%s255 + $0xc8] sm:$0xff]
        %v327 = vld [vmem:[%s255 + $0xd0] sm:$0xff]
        %v328 = vld [vmem:[%s255 + $0xd8] sm:$0xff]
        %v329 = vld [vmem:[%s255 + $0xe0] sm:$0xff]
        %v330 = vld [vmem:[%s255 + $0xe8] sm:$0xff]
        %v331 = vld [vmem:[%s255 + $0xf0] sm:$0xff]
        %v332 = vld [vmem:[%s255 + $0xf8] sm:$0xff]
        %v333 = vld [vmem:[%s255 + $0x100] sm:$0xff]
        %v334 = vld [vmem:[%s255 + $0x108] sm:$0xff]
        %v335 = vld [vmem:[%s255 + $0x110] sm:$0xff]
        %v336 = vld [vmem:[%s255 + $0x118] sm:$0xff]
        %v337 = vld [vmem:[%s255 + $0x120] sm:$0xff]
        %v338 = vld [vmem:[%s255 + $0x128] sm:$0xff]
        %v339 = vld [vmem:[%s255 + $0x130] sm:$0xff]
        %v340 = vld [vmem:[%s255 + $0x138] sm:$0xff]
        %v341 = vld [vmem:[%s255 + $0x140] sm:$0xff]
        %v342 = vld [vmem:[%s255 + $0x148] sm:$0xff]
        %v343 = vld [vmem:[%s255 + $0x150] sm:$0xff]
        %v344 = vld [vmem:[%s255 + $0x158] sm:$0xff]
        %v345 = vld [vmem:[%s255 + $0x160] sm:$0xff]
        %v346 = vld [vmem:[%s255 + $0x168] sm:$0xff]
        %v347 = vld [vmem:[%s255 + $0x170] sm:$0xff]
        %v348 = vld [vmem:[%s255 + $0x178] sm:$0xff]
        %v349 = vld [vmem:[%s255 + $0x180] sm:$0xff]
        %v350 = vld [vmem:[%s255 + $0x188] sm:$0xff]
        %v351 = vld [vmem:[%s255 + $0x190] sm:$0xff]
        %v352 = vld [vmem:[%s255 + $0x198] sm:$0xff]
        %v353 = vld [vmem:[%s255 + $0x1a0] sm:$0xff]
        %v354 = vld [vmem:[%s255 + $0x1a8] sm:$0xff]
        %v355 = vld [vmem:[%s255 + $0x1b0] sm:$0xff]
        %v356 = vld [vmem:[%s255 + $0x1b8] sm:$0xff]
        %v357 = vld [vmem:[%s255 + $0x1c0] sm:$0xff]
        %v358 = vld [vmem:[%s255 + $0x1c8] sm:$0xff]
        %v359 = vld [vmem:[%s255 + $0x1d0] sm:$0xff]
        %v360 = vld [vmem:[%s255 + $0x1d8] sm:$0xff]
        %v361 = vld [vmem:[%s255 + $0x1e0] sm:$0xff]
        %v362 = vld [vmem:[%s255 + $0x1e8] sm:$0xff]
        %v363 = vld [vmem:[%s255 + $0x1f0] sm:$0xff]
        %v364 = vld [vmem:[%s255 + $0x1f8] sm:$0xff]
        %v365 = vld [vmem:[%s255 + $0x200] sm:$0xff]
        %v366 = vld [vmem:[%s255 + $0x208] sm:$0xff]
        %v367 = vld [vmem:[%s255 + $0x210] sm:$0xff]
        %v368 = vld [vmem:[%s255 + $0x218] sm:$0xff]
        %v369 = vld [vmem:[%s255 + $0x220] sm:$0xff]
        %v370 = vld [vmem:[%s255 + $0x228] sm:$0xff]
        %v371 = vld [vmem:[%s255 + $0x230] sm:$0xff]
        %v372 = vld [vmem:[%s255 + $0x238] sm:$0xff]
        %v373 = vld [vmem:[%s255 + $0x240] sm:$0xff]
        %v374 = vld [vmem:[%s255 + $0x248] sm:$0xff]
        %v375 = vld [vmem:[%s255 + $0x250] sm:$0xff]
        %v376 = vld [vmem:[%s255 + $0x258] sm:$0xff]
        %v377 = vld [vmem:[%s255 + $0x260] sm:$0xff]
        %v378 = vld [vmem:[%s255 + $0x268] sm:$0xff]
        %v379 = vld [vmem:[%s255 + $0x270] sm:$0xff]
        %v380 = vld [vmem:[%s255 + $0x278] sm:$0xff]
        %v381 = vld [vmem:[%s255 + $0x280] sm:$0xff]
        %v382 = vld [vmem:[%s255 + $0x288] sm:$0xff]
        %v383 = vld [vmem:[%s255 + $0x290] sm:$0xff]
        %v384 = vld [vmem:[%s255 + $0x298] sm:$0xff]
        %v385 = vld [vmem:[%s255 + $0x2a0] sm:$0xff]
        %v386 = vld [vmem:[%s255 + $0x2a8] sm:$0xff]
        %v387 = vld [vmem:[%s255 + $0x2b0] sm:$0xff]
        %v388 = vld [vmem:[%s255 + $0x2b8] sm:$0xff]
        %v389 = vld [vmem:[%s255 + $0x2c0] sm:$0xff]
        %v390 = vld [vmem:[%s255 + $0x2c8] sm:$0xff]
        %v391 = vld [vmem:[%s255 + $0x2d0] sm:$0xff]
        %v392 = vld [vmem:[%s255 + $0x2d8] sm:$0xff]
        %v393 = vld [vmem:[%s255 + $0x2e0] sm:$0xff]
        %v394 = vld [vmem:[%s255 + $0x2e8] sm:$0xff]
        %v395 = vld [vmem:[%s255 + $0x2f0] sm:$0xff]
        %v396 = vld [vmem:[%s255 + $0x2f8] sm:$0xff]
        %v397 = vpack.c.bf16 %v304, %v301
        %v398 = vpack.c.bf16 %v305, %v302
        %v399 = vpack.c.bf16 %v306, %v303
        %v400 = vpack.c.bf16 %v310, %v307
        %v401 = vpack.c.bf16 %v311, %v308
        %v402 = vpack.c.bf16 %v312, %v309
        %v403 = vpack.c.bf16 %v316, %v313
        %v404 = vpack.c.bf16 %v317, %v314
        %v405 = vpack.c.bf16 %v318, %v315
        %v406 = vpack.c.bf16 %v322, %v319
        %v407 = vpack.c.bf16 %v323, %v320
        %v408 = vpack.c.bf16 %v324, %v321
        %v409 = vpack.c.bf16 %v328, %v325
        %v410 = vpack.c.bf16 %v329, %v326
        %v411 = vpack.c.bf16 %v330, %v327
        %v412 = vpack.c.bf16 %v334, %v331
        %v413 = vpack.c.bf16 %v335, %v332
        %v414 = vpack.c.bf16 %v336, %v333
        %v415 = vpack.c.bf16 %v340, %v337
        %v416 = vpack.c.bf16 %v341, %v338
        %v417 = vpack.c.bf16 %v342, %v339
        %v418 = vpack.c.bf16 %v346, %v343
        %v419 = vpack.c.bf16 %v347, %v344
        %v420 = vpack.c.bf16 %v348, %v345
        %v421 = vpack.c.bf16 %v352, %v349
        %v422 = vpack.c.bf16 %v353, %v350
        %v423 = vpack.c.bf16 %v354, %v351
        %v424 = vpack.c.bf16 %v358, %v355
        %v425 = vpack.c.bf16 %v359, %v356
        %v426 = vpack.c.bf16 %v360, %v357
        %v427 = vpack.c.bf16 %v364, %v361
        %v428 = vpack.c.bf16 %v365, %v362
        %v429 = vpack.c.bf16 %v366, %v363
        %v430 = vpack.c.bf16 %v370, %v367
        %v431 = vpack.c.bf16 %v371, %v368
        %v432 = vpack.c.bf16 %v372, %v369
        %v433 = vpack.c.bf16 %v376, %v373
        %v434 = vpack.c.bf16 %v377, %v374
        %v435 = vpack.c.bf16 %v378, %v375
        %v436 = vpack.c.bf16 %v382, %v379
        %v437 = vpack.c.bf16 %v383, %v380
        %v438 = vpack.c.bf16 %v384, %v381
        %v439 = vpack.c.bf16 %v388, %v385
        %v440 = vpack.c.bf16 %v389, %v386
        %v441 = vpack.c.bf16 %v390, %v387
        %v442 = vpack.c.bf16 %v394, %v391
        %v443 = vpack.c.bf16 %v395, %v392
        %v444 = vpack.c.bf16 %v396, %v393
        %v445 = vld [vmem:[#allocation6] sm:$0xff]
        %v446 = vld [vmem:[#allocation6 + $0x8] sm:$0xff]
        %v447 = vld [vmem:[#allocation6 + $0x30] sm:$0xff]
        %v448 = vld [vmem:[#allocation6 + $0x38] sm:$0xff]
        %v449 = vld [vmem:[#allocation6 + $0x60] sm:$0xff]
        %v450 = vld [vmem:[#allocation6 + $0x68] sm:$0xff]
        %v451 = vld [vmem:[#allocation6 + $0x90] sm:$0xff]
        %v452 = vld [vmem:[#allocation6 + $0x98] sm:$0xff]
        %v453 = vld [vmem:[#allocation6 + $0xc0] sm:$0xff]
        %v454 = vld [vmem:[#allocation6 + $0xc8] sm:$0xff]
        %v455 = vld [vmem:[#allocation6 + $0xf0] sm:$0xff]
        %v456 = vld [vmem:[#allocation6 + $0xf8] sm:$0xff]
        %v457 = vld [vmem:[#allocation6 + $0x120] sm:$0xff]
        %v458 = vld [vmem:[#allocation6 + $0x128] sm:$0xff]
        %v459 = vld [vmem:[#allocation6 + $0x150] sm:$0xff]
        %v460 = vld [vmem:[#allocation6 + $0x158] sm:$0xff]
        %v461 = vld [vmem:[#allocation6 + $0x180] sm:$0xff]
        %v462 = vld [vmem:[#allocation6 + $0x188] sm:$0xff]
        %v463 = vld [vmem:[#allocation6 + $0x1b0] sm:$0xff]
        %v464 = vld [vmem:[#allocation6 + $0x1b8] sm:$0xff]
        %v465 = vld [vmem:[#allocation6 + $0x1e0] sm:$0xff]
        %v466 = vld [vmem:[#allocation6 + $0x1e8] sm:$0xff]
        %v467 = vld [vmem:[#allocation6 + $0x210] sm:$0xff]
        %v468 = vld [vmem:[#allocation6 + $0x218] sm:$0xff]
        %v469 = vld [vmem:[#allocation6 + $0x240] sm:$0xff]
        %v470 = vld [vmem:[#allocation6 + $0x248] sm:$0xff]
        %v471 = vld [vmem:[#allocation6 + $0x270] sm:$0xff]
        %v472 = vld [vmem:[#allocation6 + $0x278] sm:$0xff]
        %v473 = vld [vmem:[#allocation6 + $0x2a0] sm:$0xff]
        %v474 = vld [vmem:[#allocation6 + $0x2a8] sm:$0xff]
        %v475 = vld [vmem:[#allocation6 + $0x2d0] sm:$0xff]
        %v476 = vld [vmem:[#allocation6 + $0x2d8] sm:$0xff]
        %v477 = vld [vmem:[#allocation6 + $0x300] sm:$0xff]
        %v478 = vld [vmem:[#allocation6 + $0x308] sm:$0xff]
        %v479 = vld [vmem:[#allocation6 + $0x330] sm:$0xff]
        %v480 = vld [vmem:[#allocation6 + $0x338] sm:$0xff]
        %v481 = vld [vmem:[#allocation6 + $0x360] sm:$0xff]
        %v482 = vld [vmem:[#allocation6 + $0x368] sm:$0xff]
        %v483 = vld [vmem:[#allocation6 + $0x390] sm:$0xff]
        %v484 = vld [vmem:[#allocation6 + $0x398] sm:$0xff]
        %v485 = vld [vmem:[#allocation6 + $0x3c0] sm:$0xff]
        %v486 = vld [vmem:[#allocation6 + $0x3c8] sm:$0xff]
        %v487 = vld [vmem:[#allocation6 + $0x3f0] sm:$0xff]
        %v488 = vld [vmem:[#allocation6 + $0x3f8] sm:$0xff]
        %v489 = vld [vmem:[#allocation6 + $0x420] sm:$0xff]
        %v490 = vld [vmem:[#allocation6 + $0x428] sm:$0xff]
        %v491 = vld [vmem:[#allocation6 + $0x450] sm:$0xff]
        %v492 = vld [vmem:[#allocation6 + $0x458] sm:$0xff]
        %v493 = vld [vmem:[#allocation6 + $0x480] sm:$0xff]
        %v494 = vld [vmem:[#allocation6 + $0x488] sm:$0xff]
        %v495 = vld [vmem:[#allocation6 + $0x4b0] sm:$0xff]
        %v496 = vld [vmem:[#allocation6 + $0x4b8] sm:$0xff]
        %v497 = vld [vmem:[#allocation6 + $0x4e0] sm:$0xff]
        %v498 = vld [vmem:[#allocation6 + $0x4e8] sm:$0xff]
        %v499 = vld [vmem:[#allocation6 + $0x510] sm:$0xff]
        %v500 = vld [vmem:[#allocation6 + $0x518] sm:$0xff]
        %v501 = vld [vmem:[#allocation6 + $0x540] sm:$0xff]
        %v502 = vld [vmem:[#allocation6 + $0x548] sm:$0xff]
        %v503 = vld [vmem:[#allocation6 + $0x570] sm:$0xff]
        %v504 = vld [vmem:[#allocation6 + $0x578] sm:$0xff]
        %v505 = vld [vmem:[#allocation6 + $0x5a0] sm:$0xff]
        %v506 = vld [vmem:[#allocation6 + $0x5a8] sm:$0xff]
        %v507 = vld [vmem:[#allocation6 + $0x5d0] sm:$0xff]
        %v508 = vld [vmem:[#allocation6 + $0x5d8] sm:$0xff]
        %v509 = vld [vmem:[#allocation6 + $0x600] sm:$0xff]
        %v510 = vld [vmem:[#allocation6 + $0x608] sm:$0xff]
        %v511 = vld [vmem:[#allocation6 + $0x630] sm:$0xff]
        %v512 = vld [vmem:[#allocation6 + $0x638] sm:$0xff]
        %v513 = vld [vmem:[#allocation6 + $0x660] sm:$0xff]
        %v514 = vld [vmem:[#allocation6 + $0x668] sm:$0xff]
        %v515 = vld [vmem:[#allocation6 + $0x690] sm:$0xff]
        %v516 = vld [vmem:[#allocation6 + $0x698] sm:$0xff]
        %v517 = vld [vmem:[#allocation6 + $0x6c0] sm:$0xff]
        %v518 = vld [vmem:[#allocation6 + $0x6c8] sm:$0xff]
        %v519 = vld [vmem:[#allocation6 + $0x6f0] sm:$0xff]
        %v520 = vld [vmem:[#allocation6 + $0x6f8] sm:$0xff]
        %v521 = vld [vmem:[#allocation6 + $0x720] sm:$0xff]
        %v522 = vld [vmem:[#allocation6 + $0x728] sm:$0xff]
        %v523 = vld [vmem:[#allocation6 + $0x750] sm:$0xff]
        %v524 = vld [vmem:[#allocation6 + $0x758] sm:$0xff]
        %v525 = vld [vmem:[#allocation6 + $0x780] sm:$0xff]
        %v526 = vld [vmem:[#allocation6 + $0x788] sm:$0xff]
        %v527 = vld [vmem:[#allocation6 + $0x7b0] sm:$0xff]
        %v528 = vld [vmem:[#allocation6 + $0x7b8] sm:$0xff]
        %v529 = vld [vmem:[#allocation6 + $0x7e0] sm:$0xff]
        %v530 = vld [vmem:[#allocation6 + $0x7e8] sm:$0xff]
        %v531 = vld [vmem:[#allocation6 + $0x810] sm:$0xff]
        %v532 = vld [vmem:[#allocation6 + $0x818] sm:$0xff]
        %v533 = vld [vmem:[#allocation6 + $0x840] sm:$0xff]
        %v534 = vld [vmem:[#allocation6 + $0x848] sm:$0xff]
        %v535 = vld [vmem:[#allocation6 + $0x870] sm:$0xff]
        %v536 = vld [vmem:[#allocation6 + $0x878] sm:$0xff]
        %v537 = vld [vmem:[#allocation6 + $0x8a0] sm:$0xff]
        %v538 = vld [vmem:[#allocation6 + $0x8a8] sm:$0xff]
        %v539 = vld [vmem:[#allocation6 + $0x8d0] sm:$0xff]
        %v540 = vld [vmem:[#allocation6 + $0x8d8] sm:$0xff]
        %v541 = vld [vmem:[#allocation8] sm:$0xf]
        %v543 = vlaneseq
        %v544 = vshrl.u32 %v543, 7
        %v545 = vsub.s32 0, %v544
        %v546 = vrot.slane %v541, %v545
        %v547 = vlaneseq
        %v548 = vshrl.u32 %v547, 7
        %v549 = vsub.s32 1, %v548
        %v550 = vrot.slane %v541, %v549
        %v551 = vlaneseq
        %v552 = vshrl.u32 %v551, 7
        %v553 = vsub.s32 2, %v552
        %v554 = vrot.slane %v541, %v553
        %v555 = vlaneseq
        %v556 = vshrl.u32 %v555, 7
        %v557 = vsub.s32 3, %v556
        %v558 = vrot.slane %v541, %v557
        %v659 = vunpack.c.l.b16 %v445
        %v660 = vunpack.c.h.b16 %v445
        %v661 = vunpack.c.l.b16 %v446
        %v662 = vunpack.c.h.b16 %v446
        %v663 = vunpack.c.l.b16 %v447
        %v664 = vunpack.c.h.b16 %v447
        %v665 = vunpack.c.l.b16 %v448
        %v666 = vunpack.c.h.b16 %v448
        %v667 = vunpack.c.l.b16 %v449
        %v668 = vunpack.c.h.b16 %v449
        %v669 = vunpack.c.l.b16 %v450
        %v670 = vunpack.c.h.b16 %v450
        %v671 = vunpack.c.l.b16 %v451
        %v672 = vunpack.c.h.b16 %v451
        %v673 = vunpack.c.l.b16 %v452
        %v674 = vunpack.c.h.b16 %v452
        %v675 = vunpack.c.l.b16 %v453
        %v676 = vunpack.c.h.b16 %v453
        %v677 = vunpack.c.l.b16 %v454
        %v678 = vunpack.c.h.b16 %v454
        %v679 = vunpack.c.l.b16 %v455
        %v680 = vunpack.c.h.b16 %v455
        %v681 = vunpack.c.l.b16 %v456
        %v682 = vunpack.c.h.b16 %v456
        %v683 = vunpack.c.l.b16 %v457
        %v684 = vunpack.c.h.b16 %v457
        %v685 = vunpack.c.l.b16 %v458
        %v686 = vunpack.c.h.b16 %v458
        %v687 = vunpack.c.l.b16 %v459
        %v688 = vunpack.c.h.b16 %v459
        %v689 = vunpack.c.l.b16 %v460
        %v690 = vunpack.c.h.b16 %v460
        %v691 = vunpack.c.l.b16 %v461
        %v692 = vunpack.c.h.b16 %v461
        %v693 = vunpack.c.l.b16 %v462
        %v694 = vunpack.c.h.b16 %v462
        %v695 = vunpack.c.l.b16 %v463
        %v696 = vunpack.c.h.b16 %v463
        %v697 = vunpack.c.l.b16 %v464
        %v698 = vunpack.c.h.b16 %v464
        %v699 = vunpack.c.l.b16 %v465
        %v700 = vunpack.c.h.b16 %v465
        %v701 = vunpack.c.l.b16 %v466
        %v702 = vunpack.c.h.b16 %v466
        %v703 = vunpack.c.l.b16 %v467
        %v704 = vunpack.c.h.b16 %v467
        %v705 = vunpack.c.l.b16 %v468
        %v706 = vunpack.c.h.b16 %v468
        %v707 = vunpack.c.l.b16 %v469
        %v708 = vunpack.c.h.b16 %v469
        %v709 = vunpack.c.l.b16 %v470
        %v710 = vunpack.c.h.b16 %v470
        %v711 = vunpack.c.l.b16 %v471
        %v712 = vunpack.c.h.b16 %v471
        %v713 = vunpack.c.l.b16 %v472
        %v714 = vunpack.c.h.b16 %v472
        %v715 = vunpack.c.l.b16 %v473
        %v716 = vunpack.c.h.b16 %v473
        %v717 = vunpack.c.l.b16 %v474
        %v718 = vunpack.c.h.b16 %v474
        %v719 = vunpack.c.l.b16 %v475
        %v720 = vunpack.c.h.b16 %v475
        %v721 = vunpack.c.l.b16 %v476
        %v722 = vunpack.c.h.b16 %v476
        %v723 = vunpack.c.l.b16 %v477
        %v724 = vunpack.c.h.b16 %v477
        %v725 = vunpack.c.l.b16 %v478
        %v726 = vunpack.c.h.b16 %v478
        %v727 = vunpack.c.l.b16 %v479
        %v728 = vunpack.c.h.b16 %v479
        %v729 = vunpack.c.l.b16 %v480
        %v730 = vunpack.c.h.b16 %v480
        %v731 = vunpack.c.l.b16 %v481
        %v732 = vunpack.c.h.b16 %v481
        %v733 = vunpack.c.l.b16 %v482
        %v734 = vunpack.c.h.b16 %v482
        %v735 = vunpack.c.l.b16 %v483
        %v736 = vunpack.c.h.b16 %v483
        %v737 = vunpack.c.l.b16 %v484
        %v738 = vunpack.c.h.b16 %v484
        %v739 = vunpack.c.l.b16 %v485
        %v740 = vunpack.c.h.b16 %v485
        %v741 = vunpack.c.l.b16 %v486
        %v742 = vunpack.c.h.b16 %v486
        %v743 = vunpack.c.l.b16 %v487
        %v744 = vunpack.c.h.b16 %v487
        %v745 = vunpack.c.l.b16 %v488
        %v746 = vunpack.c.h.b16 %v488
        %v747 = vunpack.c.l.b16 %v489
        %v748 = vunpack.c.h.b16 %v489
        %v749 = vunpack.c.l.b16 %v490
        %v750 = vunpack.c.h.b16 %v490
        %v751 = vunpack.c.l.b16 %v491
        %v752 = vunpack.c.h.b16 %v491
        %v753 = vunpack.c.l.b16 %v492
        %v754 = vunpack.c.h.b16 %v492
        %v755 = vunpack.c.l.b16 %v493
        %v756 = vunpack.c.h.b16 %v493
        %v757 = vunpack.c.l.b16 %v494
        %v758 = vunpack.c.h.b16 %v494
        %v759 = vunpack.c.l.b16 %v495
        %v760 = vunpack.c.h.b16 %v495
        %v761 = vunpack.c.l.b16 %v496
        %v762 = vunpack.c.h.b16 %v496
        %v763 = vunpack.c.l.b16 %v497
        %v764 = vunpack.c.h.b16 %v497
        %v765 = vunpack.c.l.b16 %v498
        %v766 = vunpack.c.h.b16 %v498
        %v767 = vunpack.c.l.b16 %v499
        %v768 = vunpack.c.h.b16 %v499
        %v769 = vunpack.c.l.b16 %v500
        %v770 = vunpack.c.h.b16 %v500
        %v771 = vunpack.c.l.b16 %v501
        %v772 = vunpack.c.h.b16 %v501
        %v773 = vunpack.c.l.b16 %v502
        %v774 = vunpack.c.h.b16 %v502
        %v775 = vunpack.c.l.b16 %v503
        %v776 = vunpack.c.h.b16 %v503
        %v777 = vunpack.c.l.b16 %v504
        %v778 = vunpack.c.h.b16 %v504
        %v779 = vunpack.c.l.b16 %v505
        %v780 = vunpack.c.h.b16 %v505
        %v781 = vunpack.c.l.b16 %v506
        %v782 = vunpack.c.h.b16 %v506
        %v783 = vunpack.c.l.b16 %v507
        %v784 = vunpack.c.h.b16 %v507
        %v785 = vunpack.c.l.b16 %v508
        %v786 = vunpack.c.h.b16 %v508
        %v787 = vunpack.c.l.b16 %v509
        %v788 = vunpack.c.h.b16 %v509
        %v789 = vunpack.c.l.b16 %v510
        %v790 = vunpack.c.h.b16 %v510
        %v791 = vunpack.c.l.b16 %v511
        %v792 = vunpack.c.h.b16 %v511
        %v793 = vunpack.c.l.b16 %v512
        %v794 = vunpack.c.h.b16 %v512
        %v795 = vunpack.c.l.b16 %v513
        %v796 = vunpack.c.h.b16 %v513
        %v797 = vunpack.c.l.b16 %v514
        %v798 = vunpack.c.h.b16 %v514
        %v799 = vunpack.c.l.b16 %v515
        %v800 = vunpack.c.h.b16 %v515
        %v801 = vunpack.c.l.b16 %v516
        %v802 = vunpack.c.h.b16 %v516
        %v803 = vunpack.c.l.b16 %v517
        %v804 = vunpack.c.h.b16 %v517
        %v805 = vunpack.c.l.b16 %v518
        %v806 = vunpack.c.h.b16 %v518
        %v807 = vunpack.c.l.b16 %v519
        %v808 = vunpack.c.h.b16 %v519
        %v809 = vunpack.c.l.b16 %v520
        %v810 = vunpack.c.h.b16 %v520
        %v811 = vunpack.c.l.b16 %v521
        %v812 = vunpack.c.h.b16 %v521
        %v813 = vunpack.c.l.b16 %v522
        %v814 = vunpack.c.h.b16 %v522
        %v815 = vunpack.c.l.b16 %v523
        %v816 = vunpack.c.h.b16 %v523
        %v817 = vunpack.c.l.b16 %v524
        %v818 = vunpack.c.h.b16 %v524
        %v819 = vunpack.c.l.b16 %v525
        %v820 = vunpack.c.h.b16 %v525
        %v821 = vunpack.c.l.b16 %v526
        %v822 = vunpack.c.h.b16 %v526
        %v823 = vunpack.c.l.b16 %v527
        %v824 = vunpack.c.h.b16 %v527
        %v825 = vunpack.c.l.b16 %v528
        %v826 = vunpack.c.h.b16 %v528
        %v827 = vunpack.c.l.b16 %v529
        %v828 = vunpack.c.h.b16 %v529
        %v829 = vunpack.c.l.b16 %v530
        %v830 = vunpack.c.h.b16 %v530
        %v831 = vunpack.c.l.b16 %v531
        %v832 = vunpack.c.h.b16 %v531
        %v833 = vunpack.c.l.b16 %v532
        %v834 = vunpack.c.h.b16 %v532
        %v835 = vunpack.c.l.b16 %v533
        %v836 = vunpack.c.h.b16 %v533
        %v837 = vunpack.c.l.b16 %v534
        %v838 = vunpack.c.h.b16 %v534
        %v839 = vunpack.c.l.b16 %v535
        %v840 = vunpack.c.h.b16 %v535
        %v841 = vunpack.c.l.b16 %v536
        %v842 = vunpack.c.h.b16 %v536
        %v843 = vunpack.c.l.b16 %v537
        %v844 = vunpack.c.h.b16 %v537
        %v845 = vunpack.c.l.b16 %v538
        %v846 = vunpack.c.h.b16 %v538
        %v847 = vunpack.c.l.b16 %v539
        %v848 = vunpack.c.h.b16 %v539
        %v849 = vunpack.c.l.b16 %v540
        %v850 = vunpack.c.h.b16 %v540
        %v851 = vpack.c.b16 %v663, %v659
        %v852 = vpack.c.b16 %v664, %v660
        %v853 = vpack.c.b16 %v665, %v661
        %v854 = vpack.c.b16 %v666, %v662
        %v855 = vpack.c.b16 %v671, %v667
        %v856 = vpack.c.b16 %v672, %v668
        %v857 = vpack.c.b16 %v673, %v669
        %v858 = vpack.c.b16 %v674, %v670
        %v859 = vpack.c.b16 %v679, %v675
        %v860 = vpack.c.b16 %v680, %v676
        %v861 = vpack.c.b16 %v681, %v677
        %v862 = vpack.c.b16 %v682, %v678
        %v863 = vpack.c.b16 %v687, %v683
        %v864 = vpack.c.b16 %v688, %v684
        %v865 = vpack.c.b16 %v689, %v685
        %v866 = vpack.c.b16 %v690, %v686
        %v867 = vpack.c.b16 %v695, %v691
        %v868 = vpack.c.b16 %v696, %v692
        %v869 = vpack.c.b16 %v697, %v693
        %v870 = vpack.c.b16 %v698, %v694
        %v871 = vpack.c.b16 %v703, %v699
        %v872 = vpack.c.b16 %v704, %v700
        %v873 = vpack.c.b16 %v705, %v701
        %v874 = vpack.c.b16 %v706, %v702
        %v875 = vpack.c.b16 %v711, %v707
        %v876 = vpack.c.b16 %v712, %v708
        %v877 = vpack.c.b16 %v713, %v709
        %v878 = vpack.c.b16 %v714, %v710
        %v879 = vpack.c.b16 %v719, %v715
        %v880 = vpack.c.b16 %v720, %v716
        %v881 = vpack.c.b16 %v721, %v717
        %v882 = vpack.c.b16 %v722, %v718
        %v883 = vpack.c.b16 %v727, %v723
        %v884 = vpack.c.b16 %v728, %v724
        %v885 = vpack.c.b16 %v729, %v725
        %v886 = vpack.c.b16 %v730, %v726
        %v887 = vpack.c.b16 %v735, %v731
        %v888 = vpack.c.b16 %v736, %v732
        %v889 = vpack.c.b16 %v737, %v733
        %v890 = vpack.c.b16 %v738, %v734
        %v891 = vpack.c.b16 %v743, %v739
        %v892 = vpack.c.b16 %v744, %v740
        %v893 = vpack.c.b16 %v745, %v741
        %v894 = vpack.c.b16 %v746, %v742
        %v895 = vpack.c.b16 %v751, %v747
        %v896 = vpack.c.b16 %v752, %v748
        %v897 = vpack.c.b16 %v753, %v749
        %v898 = vpack.c.b16 %v754, %v750
        %v899 = vpack.c.b16 %v759, %v755
        %v900 = vpack.c.b16 %v760, %v756
        %v901 = vpack.c.b16 %v761, %v757
        %v902 = vpack.c.b16 %v762, %v758
        %v903 = vpack.c.b16 %v767, %v763
        %v904 = vpack.c.b16 %v768, %v764
        %v905 = vpack.c.b16 %v769, %v765
        %v906 = vpack.c.b16 %v770, %v766
        %v907 = vpack.c.b16 %v775, %v771
        %v908 = vpack.c.b16 %v776, %v772
        %v909 = vpack.c.b16 %v777, %v773
        %v910 = vpack.c.b16 %v778, %v774
        %v911 = vpack.c.b16 %v783, %v779
        %v912 = vpack.c.b16 %v784, %v780
        %v913 = vpack.c.b16 %v785, %v781
        %v914 = vpack.c.b16 %v786, %v782
        %v915 = vpack.c.b16 %v791, %v787
        %v916 = vpack.c.b16 %v792, %v788
        %v917 = vpack.c.b16 %v793, %v789
        %v918 = vpack.c.b16 %v794, %v790
        %v919 = vpack.c.b16 %v799, %v795
        %v920 = vpack.c.b16 %v800, %v796
        %v921 = vpack.c.b16 %v801, %v797
        %v922 = vpack.c.b16 %v802, %v798
        %v923 = vpack.c.b16 %v807, %v803
        %v924 = vpack.c.b16 %v808, %v804
        %v925 = vpack.c.b16 %v809, %v805
        %v926 = vpack.c.b16 %v810, %v806
        %v927 = vpack.c.b16 %v815, %v811
        %v928 = vpack.c.b16 %v816, %v812
        %v929 = vpack.c.b16 %v817, %v813
        %v930 = vpack.c.b16 %v818, %v814
        %v931 = vpack.c.b16 %v823, %v819
        %v932 = vpack.c.b16 %v824, %v820
        %v933 = vpack.c.b16 %v825, %v821
        %v934 = vpack.c.b16 %v826, %v822
        %v935 = vpack.c.b16 %v831, %v827
        %v936 = vpack.c.b16 %v832, %v828
        %v937 = vpack.c.b16 %v833, %v829
        %v938 = vpack.c.b16 %v834, %v830
        %v939 = vpack.c.b16 %v839, %v835
        %v940 = vpack.c.b16 %v840, %v836
        %v941 = vpack.c.b16 %v841, %v837
        %v942 = vpack.c.b16 %v842, %v838
        %v943 = vpack.c.b16 %v847, %v843
        %v944 = vpack.c.b16 %v848, %v844
        %v945 = vpack.c.b16 %v849, %v845
        %v946 = vpack.c.b16 %v850, %v846
        %1043 = vmatprep.subr.bf16.mxu0 %v852
        %1044 = vmatpush1.bf16.msra.mxu0 %v851
        %1045 = vmatprep.subr.bf16.mxu0 %v856
        %1046 = vmatpush1.bf16.msra.mxu0 %v855
        %1047 = vmatprep.subr.bf16.mxu0 %v860
        %1048 = vmatpush1.bf16.msra.mxu0 %v859
        %1049 = vmatprep.subr.bf16.mxu0 %v864
        %1050 = vmatpush1.bf16.msra.mxu0 %v863
        %1051 = vmatprep.subr.bf16.mxu0 %v868
        %1052 = vmatpush1.bf16.msra.mxu0 %v867
        %1053 = vmatprep.subr.bf16.mxu0 %v872
        %1054 = vmatpush1.bf16.msra.mxu0 %v871
        %1055 = vmatprep.subr.bf16.mxu0 %v876
        %1056 = vmatpush1.bf16.msra.mxu0 %v875
        %1057 = vmatprep.subr.bf16.mxu0 %v880
        %1058 = vmatpush1.bf16.msra.mxu0 %v879
        %1059 = vmatprep.subr.bf16.mxu0 %v884
        %1060 = vmatpush1.bf16.msra.mxu0 %v883
        %1061 = vmatprep.subr.bf16.mxu0 %v888
        %1062 = vmatpush1.bf16.msra.mxu0 %v887
        %1063 = vmatprep.subr.bf16.mxu0 %v892
        %1064 = vmatpush1.bf16.msra.mxu0 %v891
        %1065 = vmatprep.subr.bf16.mxu0 %v896
        %1066 = vmatpush1.bf16.msra.mxu0 %v895
        %1067 = vmatprep.subr.bf16.mxu0 %v900
        %1068 = vmatpush1.bf16.msra.mxu0 %v899
        %1069 = vmatprep.subr.bf16.mxu0 %v904
        %1070 = vmatpush1.bf16.msra.mxu0 %v903
        %1071 = vmatprep.subr.bf16.mxu0 %v908
        %1072 = vmatpush1.bf16.msra.mxu0 %v907
        %1073 = vmatprep.subr.bf16.mxu0 %v912
        %1074 = vmatpush1.bf16.msra.mxu0 %v911
        %1075 = vmatprep.mubr.bf16.mxu0 %v398
        %1076 = vmatmul.mubr.bf16.gmra.mrb[0].mxu0 %v397
        %v1077 = vpop.f32.mrb[0].mxu0
        %v1078 = vadd.f32 %v546, %v1077
        %v1079 = vpop.f32.mrb[0].mxu0
        %v1080 = vadd.f32 %v550, %v1079
        %v1081 = vpop.f32.mrb[0].mxu0
        %v1082 = vadd.f32 %v546, %v1081
        %v1083 = vpop.f32.mrb[0].mxu0
        %v1084 = vadd.f32 %v550, %v1083
        %1085 = vmatprep.mubr.bf16.mxu0 %v401
        %1086 = vmatmul.mubr.bf16.gmra.mrb[0].mxu0 %v400
        %v1087 = vpop.f32.mrb[0].mxu0
        %v1088 = vadd.f32 %v546, %v1087
        %v1089 = vpop.f32.mrb[0].mxu0
        %v1090 = vadd.f32 %v550, %v1089
        %v1091 = vpop.f32.mrb[0].mxu0
        %v1092 = vadd.f32 %v546, %v1091
        %v1093 = vpop.f32.mrb[0].mxu0
        %v1094 = vadd.f32 %v550, %v1093
        %1095 = vmatprep.mubr.bf16.mxu0 %v404
        %1096 = vmatmul.mubr.bf16.gmra.mrb[0].mxu0 %v403
        %v1097 = vpop.f32.mrb[0].mxu0
        %v1098 = vadd.f32 %v546, %v1097
        %v1099 = vpop.f32.mrb[0].mxu0
        %v1100 = vadd.f32 %v550, %v1099
        %v1101 = vpop.f32.mrb[0].mxu0
        %v1102 = vadd.f32 %v546, %v1101
        %v1103 = vpop.f32.mrb[0].mxu0
        %v1104 = vadd.f32 %v550, %v1103
        %1105 = vmatprep.mubr.bf16.mxu0 %v407
        %1106 = vmatmul.mubr.bf16.gmra.mrb[0].mxu0 %v406
        %v1107 = vpop.f32.mrb[0].mxu0
        %v1108 = vadd.f32 %v546, %v1107
        %v1109 = vpop.f32.mrb[0].mxu0
        %v1110 = vadd.f32 %v550, %v1109
        %v1111 = vpop.f32.mrb[0].mxu0
        %v1112 = vadd.f32 %v546, %v1111
        %v1113 = vpop.f32.mrb[0].mxu0
        %v1114 = vadd.f32 %v550, %v1113
        %1115 = vmatprep.mubr.bf16.mxu0 %v410
        %1116 = vmatmul.mubr.bf16.gmra.mrb[0].mxu0 %v409
        %v1117 = vpop.f32.mrb[0].mxu0
        %v1118 = vadd.f32 %v546, %v1117
        %v1119 = vpop.f32.mrb[0].mxu0
        %v1120 = vadd.f32 %v550, %v1119
        %v1121 = vpop.f32.mrb[0].mxu0
        %v1122 = vadd.f32 %v546, %v1121
        %v1123 = vpop.f32.mrb[0].mxu0
        %v1124 = vadd.f32 %v550, %v1123
        %1125 = vmatprep.mubr.bf16.mxu0 %v413
        %1126 = vmatmul.mubr.bf16.gmra.mrb[0].mxu0 %v412
        %v1127 = vpop.f32.mrb[0].mxu0
        %v1128 = vadd.f32 %v546, %v1127
        %v1129 = vpop.f32.mrb[0].mxu0
        %v1130 = vadd.f32 %v550, %v1129
        %v1131 = vpop.f32.mrb[0].mxu0
        %v1132 = vadd.f32 %v546, %v1131
        %v1133 = vpop.f32.mrb[0].mxu0
        %v1134 = vadd.f32 %v550, %v1133
        %1135 = vmatprep.mubr.bf16.mxu0 %v416
        %1136 = vmatmul.mubr.bf16.gmra.mrb[0].mxu0 %v415
        %v1137 = vpop.f32.mrb[0].mxu0
        %v1138 = vadd.f32 %v546, %v1137
        %v1139 = vpop.f32.mrb[0].mxu0
        %v1140 = vadd.f32 %v550, %v1139
        %v1141 = vpop.f32.mrb[0].mxu0
        %v1142 = vadd.f32 %v546, %v1141
        %v1143 = vpop.f32.mrb[0].mxu0
        %v1144 = vadd.f32 %v550, %v1143
        %1145 = vmatprep.mubr.bf16.mxu0 %v419
        %1146 = vmatmul.mubr.bf16.gmra.mrb[0].mxu0 %v418
        %v1147 = vpop.f32.mrb[0].mxu0
        %v1148 = vadd.f32 %v546, %v1147
        %v1149 = vpop.f32.mrb[0].mxu0
        %v1150 = vadd.f32 %v550, %v1149
        %v1151 = vpop.f32.mrb[0].mxu0
        %v1152 = vadd.f32 %v546, %v1151
        %v1153 = vpop.f32.mrb[0].mxu0
        %v1154 = vadd.f32 %v550, %v1153
        %1155 = vmatprep.mubr.bf16.mxu0 %v422
        %1156 = vmatmul.mubr.bf16.gmra.mrb[0].mxu0 %v421
        %v1157 = vpop.f32.mrb[0].mxu0
        %v1158 = vadd.f32 %v546, %v1157
        %v1159 = vpop.f32.mrb[0].mxu0
        %v1160 = vadd.f32 %v550, %v1159
        %v1161 = vpop.f32.mrb[0].mxu0
        %v1162 = vadd.f32 %v546, %v1161
        %v1163 = vpop.f32.mrb[0].mxu0
        %v1164 = vadd.f32 %v550, %v1163
        %1165 = vmatprep.mubr.bf16.mxu0 %v425
        %1166 = vmatmul.mubr.bf16.gmra.mrb[0].mxu0 %v424
        %v1167 = vpop.f32.mrb[0].mxu0
        %v1168 = vadd.f32 %v546, %v1167
        %v1169 = vpop.f32.mrb[0].mxu0
        %v1170 = vadd.f32 %v550, %v1169
        %v1171 = vpop.f32.mrb[0].mxu0
        %v1172 = vadd.f32 %v546, %v1171
        %v1173 = vpop.f32.mrb[0].mxu0
        %v1174 = vadd.f32 %v550, %v1173
        %1175 = vmatprep.mubr.bf16.mxu0 %v428
        %1176 = vmatmul.mubr.bf16.gmra.mrb[0].mxu0 %v427
        %v1177 = vpop.f32.mrb[0].mxu0
        %v1178 = vadd.f32 %v546, %v1177
        %v1179 = vpop.f32.mrb[0].mxu0
        %v1180 = vadd.f32 %v550, %v1179
        %v1181 = vpop.f32.mrb[0].mxu0
        %v1182 = vadd.f32 %v546, %v1181
        %v1183 = vpop.f32.mrb[0].mxu0
        %v1184 = vadd.f32 %v550, %v1183
        %1185 = vmatprep.mubr.bf16.mxu0 %v431
        %1186 = vmatmul.mubr.bf16.gmra.mrb[0].mxu0 %v430
        %v1187 = vpop.f32.mrb[0].mxu0
        %v1188 = vadd.f32 %v546, %v1187
        %v1189 = vpop.f32.mrb[0].mxu0
        %v1190 = vadd.f32 %v550, %v1189
        %v1191 = vpop.f32.mrb[0].mxu0
        %v1192 = vadd.f32 %v546, %v1191
        %v1193 = vpop.f32.mrb[0].mxu0
        %v1194 = vadd.f32 %v550, %v1193
        %1195 = vmatprep.mubr.bf16.mxu0 %v434
        %1196 = vmatmul.mubr.bf16.gmra.mrb[0].mxu0 %v433
        %v1197 = vpop.f32.mrb[0].mxu0
        %v1198 = vadd.f32 %v546, %v1197
        %v1199 = vpop.f32.mrb[0].mxu0
        %v1200 = vadd.f32 %v550, %v1199
        %v1201 = vpop.f32.mrb[0].mxu0
        %v1202 = vadd.f32 %v546, %v1201
        %v1203 = vpop.f32.mrb[0].mxu0
        %v1204 = vadd.f32 %v550, %v1203
        %1205 = vmatprep.mubr.bf16.mxu0 %v437
        %1206 = vmatmul.mubr.bf16.gmra.mrb[0].mxu0 %v436
        %v1207 = vpop.f32.mrb[0].mxu0
        %v1208 = vadd.f32 %v546, %v1207
        %v1209 = vpop.f32.mrb[0].mxu0
        %v1210 = vadd.f32 %v550, %v1209
        %v1211 = vpop.f32.mrb[0].mxu0
        %v1212 = vadd.f32 %v546, %v1211
        %v1213 = vpop.f32.mrb[0].mxu0
        %v1214 = vadd.f32 %v550, %v1213
        %1215 = vmatprep.mubr.bf16.mxu0 %v440
        %1216 = vmatmul.mubr.bf16.gmra.mrb[0].mxu0 %v439
        %v1217 = vpop.f32.mrb[0].mxu0
        %v1218 = vadd.f32 %v546, %v1217
        %v1219 = vpop.f32.mrb[0].mxu0
        %v1220 = vadd.f32 %v550, %v1219
        %v1221 = vpop.f32.mrb[0].mxu0
        %v1222 = vadd.f32 %v546, %v1221
        %v1223 = vpop.f32.mrb[0].mxu0
        %v1224 = vadd.f32 %v550, %v1223
        %1225 = vmatprep.mubr.bf16.mxu0 %v443
        %1226 = vmatmul.mubr.bf16.gmra.mrb[0].mxu0 %v442
        %v1227 = vpop.f32.mrb[0].mxu0
        %v1228 = vadd.f32 %v546, %v1227
        %v1229 = vpop.f32.mrb[0].mxu0
        %v1230 = vadd.f32 %v550, %v1229
        %v1231 = vpop.f32.mrb[0].mxu0
        %v1232 = vadd.f32 %v546, %v1231
        %v1233 = vpop.f32.mrb[0].mxu0
        %v1234 = vadd.f32 %v550, %v1233
        %1235 = vdwg.mxu0
        %1236 = vmatprep.subr.bf16.mxu0 %v916
        %1237 = vmatpush1.bf16.msra.mxu0 %v915
        %1238 = vmatprep.subr.bf16.mxu0 %v920
        %1239 = vmatpush1.bf16.msra.mxu0 %v919
        %1240 = vmatprep.subr.bf16.mxu0 %v924
        %1241 = vmatpush1.bf16.msra.mxu0 %v923
        %1242 = vmatprep.subr.bf16.mxu0 %v928
        %1243 = vmatpush1.bf16.msra.mxu0 %v927
        %1244 = vmatprep.subr.bf16.mxu0 %v932
        %1245 = vmatpush1.bf16.msra.mxu0 %v931
        %1246 = vmatprep.subr.bf16.mxu0 %v936
        %1247 = vmatpush1.bf16.msra.mxu0 %v935
        %1248 = vmatprep.subr.bf16.mxu0 %v940
        %1249 = vmatpush1.bf16.msra.mxu0 %v939
        %1250 = vmatprep.subr.bf16.mxu0 %v944
        %1251 = vmatpush1.bf16.msra.mxu0 %v943
        %1252 = vmatprep.subr.bf16.mxu0 0
        %1253 = vmatpush1.bf16.msra.mxu0 0
        %1254 = vmatprep.subr.bf16.mxu0 0
        %1255 = vmatpush1.bf16.msra.mxu0 0
        %1256 = vmatprep.subr.bf16.mxu0 0
        %1257 = vmatpush1.bf16.msra.mxu0 0
        %1258 = vmatprep.subr.bf16.mxu0 0
        %1259 = vmatpush1.bf16.msra.mxu0 0
        %1260 = vmatprep.subr.bf16.mxu0 0
        %1261 = vmatpush1.bf16.msra.mxu0 0
        %1262 = vmatprep.subr.bf16.mxu0 0
        %1263 = vmatpush1.bf16.msra.mxu0 0
        %1264 = vmatprep.subr.bf16.mxu0 0
        %1265 = vmatpush1.bf16.msra.mxu0 0
        %1266 = vmatprep.subr.bf16.mxu0 0
        %1267 = vmatpush1.bf16.msra.mxu0 0
        %1268 = vmatprep.mubr.bf16.mxu0 0
        %1269 = vmatmul.mubr.bf16.gmra.mrb[0].mxu0 %v399
        %v1270 = vpop.f32.mrb[0].mxu0
        %v1271 = vadd.f32 %v1078, %v1270
        %v1272 = vpop.f32.mrb[0].mxu0
        %v1273 = vadd.f32 %v1080, %v1272
        %v1274 = vpop.f32.mrb[0].mxu0
        %v1275 = vadd.f32 %v1082, %v1274
        %v1276 = vpop.f32.mrb[0].mxu0
        %v1277 = vadd.f32 %v1084, %v1276
        %1278 = vmatprep.mubr.bf16.mxu0 0
        %1279 = vmatmul.mubr.bf16.gmra.mrb[0].mxu0 %v402
        %v1280 = vpop.f32.mrb[0].mxu0
        %v1281 = vadd.f32 %v1088, %v1280
        %v1282 = vpop.f32.mrb[0].mxu0
        %v1283 = vadd.f32 %v1090, %v1282
        %v1284 = vpop.f32.mrb[0].mxu0
        %v1285 = vadd.f32 %v1092, %v1284
        %v1286 = vpop.f32.mrb[0].mxu0
        %v1287 = vadd.f32 %v1094, %v1286
        %1288 = vmatprep.mubr.bf16.mxu0 0
        %1289 = vmatmul.mubr.bf16.gmra.mrb[0].mxu0 %v405
        %v1290 = vpop.f32.mrb[0].mxu0
        %v1291 = vadd.f32 %v1098, %v1290
        %v1292 = vpop.f32.mrb[0].mxu0
        %v1293 = vadd.f32 %v1100, %v1292
        %v1294 = vpop.f32.mrb[0].mxu0
        %v1295 = vadd.f32 %v1102, %v1294
        %v1296 = vpop.f32.mrb[0].mxu0
        %v1297 = vadd.f32 %v1104, %v1296
        %1298 = vmatprep.mubr.bf16.mxu0 0
        %1299 = vmatmul.mubr.bf16.gmra.mrb[0].mxu0 %v408
        %v1300 = vpop.f32.mrb[0].mxu0
        %v1301 = vadd.f32 %v1108, %v1300
        %v1302 = vpop.f32.mrb[0].mxu0
        %v1303 = vadd.f32 %v1110, %v1302
        %v1304 = vpop.f32.mrb[0].mxu0
        %v1305 = vadd.f32 %v1112, %v1304
        %v1306 = vpop.f32.mrb[0].mxu0
        %v1307 = vadd.f32 %v1114, %v1306
        %1308 = vmatprep.mubr.bf16.mxu0 0
        %1309 = vmatmul.mubr.bf16.gmra.mrb[0].mxu0 %v411
        %v1310 = vpop.f32.mrb[0].mxu0
        %v1311 = vadd.f32 %v1118, %v1310
        %v1312 = vpop.f32.mrb[0].mxu0
        %v1313 = vadd.f32 %v1120, %v1312
        %v1314 = vpop.f32.mrb[0].mxu0
        %v1315 = vadd.f32 %v1122, %v1314
        %v1316 = vpop.f32.mrb[0].mxu0
        %v1317 = vadd.f32 %v1124, %v1316
        %1318 = vmatprep.mubr.bf16.mxu0 0
        %1319 = vmatmul.mubr.bf16.gmra.mrb[0].mxu0 %v414
        %v1320 = vpop.f32.mrb[0].mxu0
        %v1321 = vadd.f32 %v1128, %v1320
        %v1322 = vpop.f32.mrb[0].mxu0
        %v1323 = vadd.f32 %v1130, %v1322
        %v1324 = vpop.f32.mrb[0].mxu0
        %v1325 = vadd.f32 %v1132, %v1324
        %v1326 = vpop.f32.mrb[0].mxu0
        %v1327 = vadd.f32 %v1134, %v1326
        %1328 = vmatprep.mubr.bf16.mxu0 0
        %1329 = vmatmul.mubr.bf16.gmra.mrb[0].mxu0 %v417
        %v1330 = vpop.f32.mrb[0].mxu0
        %v1331 = vadd.f32 %v1138, %v1330
        %v1332 = vpop.f32.mrb[0].mxu0
        %v1333 = vadd.f32 %v1140, %v1332
        %v1334 = vpop.f32.mrb[0].mxu0
        %v1335 = vadd.f32 %v1142, %v1334
        %v1336 = vpop.f32.mrb[0].mxu0
        %v1337 = vadd.f32 %v1144, %v1336
        %1338 = vmatprep.mubr.bf16.mxu0 0
        %1339 = vmatmul.mubr.bf16.gmra.mrb[0].mxu0 %v420
        %v1340 = vpop.f32.mrb[0].mxu0
        %v1341 = vadd.f32 %v1148, %v1340
        %v1342 = vpop.f32.mrb[0].mxu0
        %v1343 = vadd.f32 %v1150, %v1342
        %v1344 = vpop.f32.mrb[0].mxu0
        %v1345 = vadd.f32 %v1152, %v1344
        %v1346 = vpop.f32.mrb[0].mxu0
        %v1347 = vadd.f32 %v1154, %v1346
        %1348 = vmatprep.mubr.bf16.mxu0 0
        %1349 = vmatmul.mubr.bf16.gmra.mrb[0].mxu0 %v423
        %v1350 = vpop.f32.mrb[0].mxu0
        %v1351 = vadd.f32 %v1158, %v1350
        %v1352 = vpop.f32.mrb[0].mxu0
        %v1353 = vadd.f32 %v1160, %v1352
        %v1354 = vpop.f32.mrb[0].mxu0
        %v1355 = vadd.f32 %v1162, %v1354
        %v1356 = vpop.f32.mrb[0].mxu0
        %v1357 = vadd.f32 %v1164, %v1356
        %1358 = vmatprep.mubr.bf16.mxu0 0
        %1359 = vmatmul.mubr.bf16.gmra.mrb[0].mxu0 %v426
        %v1360 = vpop.f32.mrb[0].mxu0
        %v1361 = vadd.f32 %v1168, %v1360
        %v1362 = vpop.f32.mrb[0].mxu0
        %v1363 = vadd.f32 %v1170, %v1362
        %v1364 = vpop.f32.mrb[0].mxu0
        %v1365 = vadd.f32 %v1172, %v1364
        %v1366 = vpop.f32.mrb[0].mxu0
        %v1367 = vadd.f32 %v1174, %v1366
        %1368 = vmatprep.mubr.bf16.mxu0 0
        %1369 = vmatmul.mubr.bf16.gmra.mrb[0].mxu0 %v429
        %v1370 = vpop.f32.mrb[0].mxu0
        %v1371 = vadd.f32 %v1178, %v1370
        %v1372 = vpop.f32.mrb[0].mxu0
        %v1373 = vadd.f32 %v1180, %v1372
        %v1374 = vpop.f32.mrb[0].mxu0
        %v1375 = vadd.f32 %v1182, %v1374
        %v1376 = vpop.f32.mrb[0].mxu0
        %v1377 = vadd.f32 %v1184, %v1376
        %1378 = vmatprep.mubr.bf16.mxu0 0
        %1379 = vmatmul.mubr.bf16.gmra.mrb[0].mxu0 %v432
        %v1380 = vpop.f32.mrb[0].mxu0
        %v1381 = vadd.f32 %v1188, %v1380
        %v1382 = vpop.f32.mrb[0].mxu0
        %v1383 = vadd.f32 %v1190, %v1382
        %v1384 = vpop.f32.mrb[0].mxu0
        %v1385 = vadd.f32 %v1192, %v1384
        %v1386 = vpop.f32.mrb[0].mxu0
        %v1387 = vadd.f32 %v1194, %v1386
        %1388 = vmatprep.mubr.bf16.mxu0 0
        %1389 = vmatmul.mubr.bf16.gmra.mrb[0].mxu0 %v435
        %v1390 = vpop.f32.mrb[0].mxu0
        %v1391 = vadd.f32 %v1198, %v1390
        %v1392 = vpop.f32.mrb[0].mxu0
        %v1393 = vadd.f32 %v1200, %v1392
        %v1394 = vpop.f32.mrb[0].mxu0
        %v1395 = vadd.f32 %v1202, %v1394
        %v1396 = vpop.f32.mrb[0].mxu0
        %v1397 = vadd.f32 %v1204, %v1396
        %1398 = vmatprep.mubr.bf16.mxu0 0
        %1399 = vmatmul.mubr.bf16.gmra.mrb[0].mxu0 %v438
        %v1400 = vpop.f32.mrb[0].mxu0
        %v1401 = vadd.f32 %v1208, %v1400
        %v1402 = vpop.f32.mrb[0].mxu0
        %v1403 = vadd.f32 %v1210, %v1402
        %v1404 = vpop.f32.mrb[0].mxu0
        %v1405 = vadd.f32 %v1212, %v1404
        %v1406 = vpop.f32.mrb[0].mxu0
        %v1407 = vadd.f32 %v1214, %v1406
        %1408 = vmatprep.mubr.bf16.mxu0 0
        %1409 = vmatmul.mubr.bf16.gmra.mrb[0].mxu0 %v441
        %v1410 = vpop.f32.mrb[0].mxu0
        %v1411 = vadd.f32 %v1218, %v1410
        %v1412 = vpop.f32.mrb[0].mxu0
        %v1413 = vadd.f32 %v1220, %v1412
        %v1414 = vpop.f32.mrb[0].mxu0
        %v1415 = vadd.f32 %v1222, %v1414
        %v1416 = vpop.f32.mrb[0].mxu0
        %v1417 = vadd.f32 %v1224, %v1416
        %1418 = vmatprep.mubr.bf16.mxu0 0
        %1419 = vmatmul.mubr.bf16.gmra.mrb[0].mxu0 %v444
        %v1420 = vpop.f32.mrb[0].mxu0
        %v1421 = vadd.f32 %v1228, %v1420
        %v1422 = vpop.f32.mrb[0].mxu0
        %v1423 = vadd.f32 %v1230, %v1422
        %v1424 = vpop.f32.mrb[0].mxu0
        %v1425 = vadd.f32 %v1232, %v1424
        %v1426 = vpop.f32.mrb[0].mxu0
        %v1427 = vadd.f32 %v1234, %v1426
        %1428 = vdwg.mxu0
        %1429 = vmatprep.subr.bf16.mxu0 %v854
        %1430 = vmatpush1.bf16.msra.mxu0 %v853
        %1431 = vmatprep.subr.bf16.mxu0 %v858
        %1432 = vmatpush1.bf16.msra.mxu0 %v857
        %1433 = vmatprep.subr.bf16.mxu0 %v862
        %1434 = vmatpush1.bf16.msra.mxu0 %v861
        %1435 = vmatprep.subr.bf16.mxu0 %v866
        %1436 = vmatpush1.bf16.msra.mxu0 %v865
        %1437 = vmatprep.subr.bf16.mxu0 %v870
        %1438 = vmatpush1.bf16.msra.mxu0 %v869
        %1439 = vmatprep.subr.bf16.mxu0 %v874
        %1440 = vmatpush1.bf16.msra.mxu0 %v873
        %1441 = vmatprep.subr.bf16.mxu0 %v878
        %1442 = vmatpush1.bf16.msra.mxu0 %v877
        %1443 = vmatprep.subr.bf16.mxu0 %v882
        %1444 = vmatpush1.bf16.msra.mxu0 %v881
        %1445 = vmatprep.subr.bf16.mxu0 %v886
        %1446 = vmatpush1.bf16.msra.mxu0 %v885
        %1447 = vmatprep.subr.bf16.mxu0 %v890
        %1448 = vmatpush1.bf16.msra.mxu0 %v889
        %1449 = vmatprep.subr.bf16.mxu0 %v894
        %1450 = vmatpush1.bf16.msra.mxu0 %v893
        %1451 = vmatprep.subr.bf16.mxu0 %v898
        %1452 = vmatpush1.bf16.msra.mxu0 %v897
        %1453 = vmatprep.subr.bf16.mxu0 %v902
        %1454 = vmatpush1.bf16.msra.mxu0 %v901
        %1455 = vmatprep.subr.bf16.mxu0 %v906
        %1456 = vmatpush1.bf16.msra.mxu0 %v905
        %1457 = vmatprep.subr.bf16.mxu0 %v910
        %1458 = vmatpush1.bf16.msra.mxu0 %v909
        %1459 = vmatprep.subr.bf16.mxu0 %v914
        %1460 = vmatpush1.bf16.msra.mxu0 %v913
        %1461 = vmatprep.mubr.bf16.mxu0 %v398
        %1462 = vmatmul.mubr.bf16.gmra.mrb[0].mxu0 %v397
        %v1463 = vpop.f32.mrb[0].mxu0
        %v1464 = vadd.f32 %v554, %v1463
        %v1465 = vpop.f32.mrb[0].mxu0
        %v1466 = vadd.f32 %v558, %v1465
        %v1467 = vpop.f32.mrb[0].mxu0
        %v1468 = vadd.f32 %v554, %v1467
        %v1469 = vpop.f32.mrb[0].mxu0
        %v1470 = vadd.f32 %v558, %v1469
        %1471 = vmatprep.mubr.bf16.mxu0 %v401
        %1472 = vmatmul.mubr.bf16.gmra.mrb[0].mxu0 %v400
        %v1473 = vpop.f32.mrb[0].mxu0
        %v1474 = vadd.f32 %v554, %v1473
        %v1475 = vpop.f32.mrb[0].mxu0
        %v1476 = vadd.f32 %v558, %v1475
        %v1477 = vpop.f32.mrb[0].mxu0
        %v1478 = vadd.f32 %v554, %v1477
        %v1479 = vpop.f32.mrb[0].mxu0
        %v1480 = vadd.f32 %v558, %v1479
        %1481 = vmatprep.mubr.bf16.mxu0 %v404
        %1482 = vmatmul.mubr.bf16.gmra.mrb[0].mxu0 %v403
        %v1483 = vpop.f32.mrb[0].mxu0
        %v1484 = vadd.f32 %v554, %v1483
        %v1485 = vpop.f32.mrb[0].mxu0
        %v1486 = vadd.f32 %v558, %v1485
        %v1487 = vpop.f32.mrb[0].mxu0
        %v1488 = vadd.f32 %v554, %v1487
        %v1489 = vpop.f32.mrb[0].mxu0
        %v1490 = vadd.f32 %v558, %v1489
        %1491 = vmatprep.mubr.bf16.mxu0 %v407
        %1492 = vmatmul.mubr.bf16.gmra.mrb[0].mxu0 %v406
        %v1493 = vpop.f32.mrb[0].mxu0
        %v1494 = vadd.f32 %v554, %v1493
        %v1495 = vpop.f32.mrb[0].mxu0
        %v1496 = vadd.f32 %v558, %v1495
        %v1497 = vpop.f32.mrb[0].mxu0
        %v1498 = vadd.f32 %v554, %v1497
        %v1499 = vpop.f32.mrb[0].mxu0
        %v1500 = vadd.f32 %v558, %v1499
        %1501 = vmatprep.mubr.bf16.mxu0 %v410
        %1502 = vmatmul.mubr.bf16.gmra.mrb[0].mxu0 %v409
        %v1503 = vpop.f32.mrb[0].mxu0
        %v1504 = vadd.f32 %v554, %v1503
        %v1505 = vpop.f32.mrb[0].mxu0
        %v1506 = vadd.f32 %v558, %v1505
        %v1507 = vpop.f32.mrb[0].mxu0
        %v1508 = vadd.f32 %v554, %v1507
        %v1509 = vpop.f32.mrb[0].mxu0
        %v1510 = vadd.f32 %v558, %v1509
        %1511 = vmatprep.mubr.bf16.mxu0 %v413
        %1512 = vmatmul.mubr.bf16.gmra.mrb[0].mxu0 %v412
        %v1513 = vpop.f32.mrb[0].mxu0
        %v1514 = vadd.f32 %v554, %v1513
        %v1515 = vpop.f32.mrb[0].mxu0
        %v1516 = vadd.f32 %v558, %v1515
        %v1517 = vpop.f32.mrb[0].mxu0
        %v1518 = vadd.f32 %v554, %v1517
        %v1519 = vpop.f32.mrb[0].mxu0
        %v1520 = vadd.f32 %v558, %v1519
        %1521 = vmatprep.mubr.bf16.mxu0 %v416
        %1522 = vmatmul.mubr.bf16.gmra.mrb[0].mxu0 %v415
        %v1523 = vpop.f32.mrb[0].mxu0
        %v1524 = vadd.f32 %v554, %v1523
        %v1525 = vpop.f32.mrb[0].mxu0
        %v1526 = vadd.f32 %v558, %v1525
        %v1527 = vpop.f32.mrb[0].mxu0
        %v1528 = vadd.f32 %v554, %v1527
        %v1529 = vpop.f32.mrb[0].mxu0
        %v1530 = vadd.f32 %v558, %v1529
        %1531 = vmatprep.mubr.bf16.mxu0 %v419
        %1532 = vmatmul.mubr.bf16.gmra.mrb[0].mxu0 %v418
        %v1533 = vpop.f32.mrb[0].mxu0
        %v1534 = vadd.f32 %v554, %v1533
        %v1535 = vpop.f32.mrb[0].mxu0
        %v1536 = vadd.f32 %v558, %v1535
        %v1537 = vpop.f32.mrb[0].mxu0
        %v1538 = vadd.f32 %v554, %v1537
        %v1539 = vpop.f32.mrb[0].mxu0
        %v1540 = vadd.f32 %v558, %v1539
        %1541 = vmatprep.mubr.bf16.mxu0 %v422
        %1542 = vmatmul.mubr.bf16.gmra.mrb[0].mxu0 %v421
        %v1543 = vpop.f32.mrb[0].mxu0
        %v1544 = vadd.f32 %v554, %v1543
        %v1545 = vpop.f32.mrb[0].mxu0
        %v1546 = vadd.f32 %v558, %v1545
        %v1547 = vpop.f32.mrb[0].mxu0
        %v1548 = vadd.f32 %v554, %v1547
        %v1549 = vpop.f32.mrb[0].mxu0
        %v1550 = vadd.f32 %v558, %v1549
        %1551 = vmatprep.mubr.bf16.mxu0 %v425
        %1552 = vmatmul.mubr.bf16.gmra.mrb[0].mxu0 %v424
        %v1553 = vpop.f32.mrb[0].mxu0
        %v1554 = vadd.f32 %v554, %v1553
        %v1555 = vpop.f32.mrb[0].mxu0
        %v1556 = vadd.f32 %v558, %v1555
        %v1557 = vpop.f32.mrb[0].mxu0
        %v1558 = vadd.f32 %v554, %v1557
        %v1559 = vpop.f32.mrb[0].mxu0
        %v1560 = vadd.f32 %v558, %v1559
        %1561 = vmatprep.mubr.bf16.mxu0 %v428
        %1562 = vmatmul.mubr.bf16.gmra.mrb[0].mxu0 %v427
        %v1563 = vpop.f32.mrb[0].mxu0
        %v1564 = vadd.f32 %v554, %v1563
        %v1565 = vpop.f32.mrb[0].mxu0
        %v1566 = vadd.f32 %v558, %v1565
        %v1567 = vpop.f32.mrb[0].mxu0
        %v1568 = vadd.f32 %v554, %v1567
        %v1569 = vpop.f32.mrb[0].mxu0
        %v1570 = vadd.f32 %v558, %v1569
        %1571 = vmatprep.mubr.bf16.mxu0 %v431
        %1572 = vmatmul.mubr.bf16.gmra.mrb[0].mxu0 %v430
        %v1573 = vpop.f32.mrb[0].mxu0
        %v1574 = vadd.f32 %v554, %v1573
        %v1575 = vpop.f32.mrb[0].mxu0
        %v1576 = vadd.f32 %v558, %v1575
        %v1577 = vpop.f32.mrb[0].mxu0
        %v1578 = vadd.f32 %v554, %v1577
        %v1579 = vpop.f32.mrb[0].mxu0
        %v1580 = vadd.f32 %v558, %v1579
        %1581 = vmatprep.mubr.bf16.mxu0 %v434
        %1582 = vmatmul.mubr.bf16.gmra.mrb[0].mxu0 %v433
        %v1583 = vpop.f32.mrb[0].mxu0
        %v1584 = vadd.f32 %v554, %v1583
        %v1585 = vpop.f32.mrb[0].mxu0
        %v1586 = vadd.f32 %v558, %v1585
        %v1587 = vpop.f32.mrb[0].mxu0
        %v1588 = vadd.f32 %v554, %v1587
        %v1589 = vpop.f32.mrb[0].mxu0
        %v1590 = vadd.f32 %v558, %v1589
        %1591 = vmatprep.mubr.bf16.mxu0 %v437
        %1592 = vmatmul.mubr.bf16.gmra.mrb[0].mxu0 %v436
        %v1593 = vpop.f32.mrb[0].mxu0
        %v1594 = vadd.f32 %v554, %v1593
        %v1595 = vpop.f32.mrb[0].mxu0
        %v1596 = vadd.f32 %v558, %v1595
        %v1597 = vpop.f32.mrb[0].mxu0
        %v1598 = vadd.f32 %v554, %v1597
        %v1599 = vpop.f32.mrb[0].mxu0
        %v1600 = vadd.f32 %v558, %v1599
        %1601 = vmatprep.mubr.bf16.mxu0 %v440
        %1602 = vmatmul.mubr.bf16.gmra.mrb[0].mxu0 %v439
        %v1603 = vpop.f32.mrb[0].mxu0
        %v1604 = vadd.f32 %v554, %v1603
        %v1605 = vpop.f32.mrb[0].mxu0
        %v1606 = vadd.f32 %v558, %v1605
        %v1607 = vpop.f32.mrb[0].mxu0
        %v1608 = vadd.f32 %v554, %v1607
        %v1609 = vpop.f32.mrb[0].mxu0
        %v1610 = vadd.f32 %v558, %v1609
        %1611 = vmatprep.mubr.bf16.mxu0 %v443
        %1612 = vmatmul.mubr.bf16.gmra.mrb[0].mxu0 %v442
        %v1613 = vpop.f32.mrb[0].mxu0
        %v1614 = vadd.f32 %v554, %v1613
        %v1615 = vpop.f32.mrb[0].mxu0
        %v1616 = vadd.f32 %v558, %v1615
        %v1617 = vpop.f32.mrb[0].mxu0
        %v1618 = vadd.f32 %v554, %v1617
        %v1619 = vpop.f32.mrb[0].mxu0
        %v1620 = vadd.f32 %v558, %v1619
        %1621 = vdwg.mxu0
        %1622 = vmatprep.subr.bf16.mxu0 %v918
        %1623 = vmatpush1.bf16.msra.mxu0 %v917
        %1624 = vmatprep.subr.bf16.mxu0 %v922
        %1625 = vmatpush1.bf16.msra.mxu0 %v921
        %1626 = vmatprep.subr.bf16.mxu0 %v926
        %1627 = vmatpush1.bf16.msra.mxu0 %v925
        %1628 = vmatprep.subr.bf16.mxu0 %v930
        %1629 = vmatpush1.bf16.msra.mxu0 %v929
        %1630 = vmatprep.subr.bf16.mxu0 %v934
        %1631 = vmatpush1.bf16.msra.mxu0 %v933
        %1632 = vmatprep.subr.bf16.mxu0 %v938
        %1633 = vmatpush1.bf16.msra.mxu0 %v937
        %1634 = vmatprep.subr.bf16.mxu0 %v942
        %1635 = vmatpush1.bf16.msra.mxu0 %v941
        %1636 = vmatprep.subr.bf16.mxu0 %v946
        %1637 = vmatpush1.bf16.msra.mxu0 %v945
        %1638 = vmatprep.subr.bf16.mxu0 0
        %1639 = vmatpush1.bf16.msra.mxu0 0
        %1640 = vmatprep.subr.bf16.mxu0 0
        %1641 = vmatpush1.bf16.msra.mxu0 0
        %1642 = vmatprep.subr.bf16.mxu0 0
        %1643 = vmatpush1.bf16.msra.mxu0 0
        %1644 = vmatprep.subr.bf16.mxu0 0
        %1645 = vmatpush1.bf16.msra.mxu0 0
        %1646 = vmatprep.subr.bf16.mxu0 0
        %1647 = vmatpush1.bf16.msra.mxu0 0
        %1648 = vmatprep.subr.bf16.mxu0 0
        %1649 = vmatpush1.bf16.msra.mxu0 0
        %1650 = vmatprep.subr.bf16.mxu0 0
        %1651 = vmatpush1.bf16.msra.mxu0 0
        %1652 = vmatprep.subr.bf16.mxu0 0
        %1653 = vmatpush1.bf16.msra.mxu0 0
        %1654 = vmatprep.mubr.bf16.mxu0 0
        %1655 = vmatmul.mubr.bf16.gmra.mrb[0].mxu0 %v399
        %v1656 = vpop.f32.mrb[0].mxu0
        %v1657 = vadd.f32 %v1464, %v1656
        %v1658 = vpop.f32.mrb[0].mxu0
        %v1659 = vadd.f32 %v1466, %v1658
        %v1660 = vpop.f32.mrb[0].mxu0
        %v1661 = vadd.f32 %v1468, %v1660
        %v1662 = vpop.f32.mrb[0].mxu0
        %v1663 = vadd.f32 %v1470, %v1662
        %1664 = vmatprep.mubr.bf16.mxu0 0
        %1665 = vmatmul.mubr.bf16.gmra.mrb[0].mxu0 %v402
        %v1666 = vpop.f32.mrb[0].mxu0
        %v1667 = vadd.f32 %v1474, %v1666
        %v1668 = vpop.f32.mrb[0].mxu0
        %v1669 = vadd.f32 %v1476, %v1668
        %v1670 = vpop.f32.mrb[0].mxu0
        %v1671 = vadd.f32 %v1478, %v1670
        %v1672 = vpop.f32.mrb[0].mxu0
        %v1673 = vadd.f32 %v1480, %v1672
        %1674 = vmatprep.mubr.bf16.mxu0 0
        %1675 = vmatmul.mubr.bf16.gmra.mrb[0].mxu0 %v405
        %v1676 = vpop.f32.mrb[0].mxu0
        %v1677 = vadd.f32 %v1484, %v1676
        %v1678 = vpop.f32.mrb[0].mxu0
        %v1679 = vadd.f32 %v1486, %v1678
        %v1680 = vpop.f32.mrb[0].mxu0
        %v1681 = vadd.f32 %v1488, %v1680
        %v1682 = vpop.f32.mrb[0].mxu0
        %v1683 = vadd.f32 %v1490, %v1682
        %1684 = vmatprep.mubr.bf16.mxu0 0
        %1685 = vmatmul.mubr.bf16.gmra.mrb[0].mxu0 %v408
        %v1686 = vpop.f32.mrb[0].mxu0
        %v1687 = vadd.f32 %v1494, %v1686
        %v1688 = vpop.f32.mrb[0].mxu0
        %v1689 = vadd.f32 %v1496, %v1688
        %v1690 = vpop.f32.mrb[0].mxu0
        %v1691 = vadd.f32 %v1498, %v1690
        %v1692 = vpop.f32.mrb[0].mxu0
        %v1693 = vadd.f32 %v1500, %v1692
        %1694 = vmatprep.mubr.bf16.mxu0 0
        %1695 = vmatmul.mubr.bf16.gmra.mrb[0].mxu0 %v411
        %v1696 = vpop.f32.mrb[0].mxu0
        %v1697 = vadd.f32 %v1504, %v1696
        %v1698 = vpop.f32.mrb[0].mxu0
        %v1699 = vadd.f32 %v1506, %v1698
        %v1700 = vpop.f32.mrb[0].mxu0
        %v1701 = vadd.f32 %v1508, %v1700
        %v1702 = vpop.f32.mrb[0].mxu0
        %v1703 = vadd.f32 %v1510, %v1702
        %1704 = vmatprep.mubr.bf16.mxu0 0
        %1705 = vmatmul.mubr.bf16.gmra.mrb[0].mxu0 %v414
        %v1706 = vpop.f32.mrb[0].mxu0
        %v1707 = vadd.f32 %v1514, %v1706
        %v1708 = vpop.f32.mrb[0].mxu0
        %v1709 = vadd.f32 %v1516, %v1708
        %v1710 = vpop.f32.mrb[0].mxu0
        %v1711 = vadd.f32 %v1518, %v1710
        %v1712 = vpop.f32.mrb[0].mxu0
        %v1713 = vadd.f32 %v1520, %v1712
        %1714 = vmatprep.mubr.bf16.mxu0 0
        %1715 = vmatmul.mubr.bf16.gmra.mrb[0].mxu0 %v417
        %v1716 = vpop.f32.mrb[0].mxu0
        %v1717 = vadd.f32 %v1524, %v1716
        %v1718 = vpop.f32.mrb[0].mxu0
        %v1719 = vadd.f32 %v1526, %v1718
        %v1720 = vpop.f32.mrb[0].mxu0
        %v1721 = vadd.f32 %v1528, %v1720
        %v1722 = vpop.f32.mrb[0].mxu0
        %v1723 = vadd.f32 %v1530, %v1722
        %1724 = vmatprep.mubr.bf16.mxu0 0
        %1725 = vmatmul.mubr.bf16.gmra.mrb[0].mxu0 %v420
        %v1726 = vpop.f32.mrb[0].mxu0
        %v1727 = vadd.f32 %v1534, %v1726
        %v1728 = vpop.f32.mrb[0].mxu0
        %v1729 = vadd.f32 %v1536, %v1728
        %v1730 = vpop.f32.mrb[0].mxu0
        %v1731 = vadd.f32 %v1538, %v1730
        %v1732 = vpop.f32.mrb[0].mxu0
        %v1733 = vadd.f32 %v1540, %v1732
        %1734 = vmatprep.mubr.bf16.mxu0 0
        %1735 = vmatmul.mubr.bf16.gmra.mrb[0].mxu0 %v423
        %v1736 = vpop.f32.mrb[0].mxu0
        %v1737 = vadd.f32 %v1544, %v1736
        %v1738 = vpop.f32.mrb[0].mxu0
        %v1739 = vadd.f32 %v1546, %v1738
        %v1740 = vpop.f32.mrb[0].mxu0
        %v1741 = vadd.f32 %v1548, %v1740
        %v1742 = vpop.f32.mrb[0].mxu0
        %v1743 = vadd.f32 %v1550, %v1742
        %1744 = vmatprep.mubr.bf16.mxu0 0
        %1745 = vmatmul.mubr.bf16.gmra.mrb[0].mxu0 %v426
        %v1746 = vpop.f32.mrb[0].mxu0
        %v1747 = vadd.f32 %v1554, %v1746
        %v1748 = vpop.f32.mrb[0].mxu0
        %v1749 = vadd.f32 %v1556, %v1748
        %v1750 = vpop.f32.mrb[0].mxu0
        %v1751 = vadd.f32 %v1558, %v1750
        %v1752 = vpop.f32.mrb[0].mxu0
        %v1753 = vadd.f32 %v1560, %v1752
        %1754 = vmatprep.mubr.bf16.mxu0 0
        %1755 = vmatmul.mubr.bf16.gmra.mrb[0].mxu0 %v429
        %v1756 = vpop.f32.mrb[0].mxu0
        %v1757 = vadd.f32 %v1564, %v1756
        %v1758 = vpop.f32.mrb[0].mxu0
        %v1759 = vadd.f32 %v1566, %v1758
        %v1760 = vpop.f32.mrb[0].mxu0
        %v1761 = vadd.f32 %v1568, %v1760
        %v1762 = vpop.f32.mrb[0].mxu0
        %v1763 = vadd.f32 %v1570, %v1762
        %1764 = vmatprep.mubr.bf16.mxu0 0
        %1765 = vmatmul.mubr.bf16.gmra.mrb[0].mxu0 %v432
        %v1766 = vpop.f32.mrb[0].mxu0
        %v1767 = vadd.f32 %v1574, %v1766
        %v1768 = vpop.f32.mrb[0].mxu0
        %v1769 = vadd.f32 %v1576, %v1768
        %v1770 = vpop.f32.mrb[0].mxu0
        %v1771 = vadd.f32 %v1578, %v1770
        %v1772 = vpop.f32.mrb[0].mxu0
        %v1773 = vadd.f32 %v1580, %v1772
        %1774 = vmatprep.mubr.bf16.mxu0 0
        %1775 = vmatmul.mubr.bf16.gmra.mrb[0].mxu0 %v435
        %v1776 = vpop.f32.mrb[0].mxu0
        %v1777 = vadd.f32 %v1584, %v1776
        %v1778 = vpop.f32.mrb[0].mxu0
        %v1779 = vadd.f32 %v1586, %v1778
        %v1780 = vpop.f32.mrb[0].mxu0
        %v1781 = vadd.f32 %v1588, %v1780
        %v1782 = vpop.f32.mrb[0].mxu0
        %v1783 = vadd.f32 %v1590, %v1782
        %1784 = vmatprep.mubr.bf16.mxu0 0
        %1785 = vmatmul.mubr.bf16.gmra.mrb[0].mxu0 %v438
        %v1786 = vpop.f32.mrb[0].mxu0
        %v1787 = vadd.f32 %v1594, %v1786
        %v1788 = vpop.f32.mrb[0].mxu0
        %v1789 = vadd.f32 %v1596, %v1788
        %v1790 = vpop.f32.mrb[0].mxu0
        %v1791 = vadd.f32 %v1598, %v1790
        %v1792 = vpop.f32.mrb[0].mxu0
        %v1793 = vadd.f32 %v1600, %v1792
        %1794 = vmatprep.mubr.bf16.mxu0 0
        %1795 = vmatmul.mubr.bf16.gmra.mrb[0].mxu0 %v441
        %v1796 = vpop.f32.mrb[0].mxu0
        %v1797 = vadd.f32 %v1604, %v1796
        %v1798 = vpop.f32.mrb[0].mxu0
        %v1799 = vadd.f32 %v1606, %v1798
        %v1800 = vpop.f32.mrb[0].mxu0
        %v1801 = vadd.f32 %v1608, %v1800
        %v1802 = vpop.f32.mrb[0].mxu0
        %v1803 = vadd.f32 %v1610, %v1802
        %1804 = vmatprep.mubr.bf16.mxu0 0
        %1805 = vmatmul.mubr.bf16.gmra.mrb[0].mxu0 %v444
        %v1806 = vpop.f32.mrb[0].mxu0
        %v1807 = vadd.f32 %v1614, %v1806
        %v1808 = vpop.f32.mrb[0].mxu0
        %v1809 = vadd.f32 %v1616, %v1808
        %v1810 = vpop.f32.mrb[0].mxu0
        %v1811 = vadd.f32 %v1618, %v1810
        %v1812 = vpop.f32.mrb[0].mxu0
        %v1813 = vadd.f32 %v1620, %v1812
        %1814 = vdwg.mxu0
        %v1815 = vmax.f32 %v1271, 0.0
        %v1816 = vmax.f32 %v1273, 0.0
        %v1817 = vmax.f32 %v1657, 0.0
        %v1818 = vmax.f32 %v1659, 0.0
        %v1819 = vmax.f32 %v1275, 0.0
        %v1820 = vmax.f32 %v1277, 0.0
        %v1821 = vmax.f32 %v1661, 0.0
        %v1822 = vmax.f32 %v1663, 0.0
        %v1823 = vmax.f32 %v1281, 0.0
        %v1824 = vmax.f32 %v1283, 0.0
        %v1825 = vmax.f32 %v1667, 0.0
        %v1826 = vmax.f32 %v1669, 0.0
        %v1827 = vmax.f32 %v1285, 0.0
        %v1828 = vmax.f32 %v1287, 0.0
        %v1829 = vmax.f32 %v1671, 0.0
        %v1830 = vmax.f32 %v1673, 0.0
        %v1831 = vmax.f32 %v1291, 0.0
        %v1832 = vmax.f32 %v1293, 0.0
        %v1833 = vmax.f32 %v1677, 0.0
        %v1834 = vmax.f32 %v1679, 0.0
        %v1835 = vmax.f32 %v1295, 0.0
        %v1836 = vmax.f32 %v1297, 0.0
        %v1837 = vmax.f32 %v1681, 0.0
        %v1838 = vmax.f32 %v1683, 0.0
        %v1839 = vmax.f32 %v1301, 0.0
        %v1840 = vmax.f32 %v1303, 0.0
        %v1841 = vmax.f32 %v1687, 0.0
        %v1842 = vmax.f32 %v1689, 0.0
        %v1843 = vmax.f32 %v1305, 0.0
        %v1844 = vmax.f32 %v1307, 0.0
        %v1845 = vmax.f32 %v1691, 0.0
        %v1846 = vmax.f32 %v1693, 0.0
        %v1847 = vmax.f32 %v1311, 0.0
        %v1848 = vmax.f32 %v1313, 0.0
        %v1849 = vmax.f32 %v1697, 0.0
        %v1850 = vmax.f32 %v1699, 0.0
        %v1851 = vmax.f32 %v1315, 0.0
        %v1852 = vmax.f32 %v1317, 0.0
        %v1853 = vmax.f32 %v1701, 0.0
        %v1854 = vmax.f32 %v1703, 0.0
        %v1855 = vmax.f32 %v1321, 0.0
        %v1856 = vmax.f32 %v1323, 0.0
        %v1857 = vmax.f32 %v1707, 0.0
        %v1858 = vmax.f32 %v1709, 0.0
        %v1859 = vmax.f32 %v1325, 0.0
        %v1860 = vmax.f32 %v1327, 0.0
        %v1861 = vmax.f32 %v1711, 0.0
        %v1862 = vmax.f32 %v1713, 0.0
        %v1863 = vmax.f32 %v1331, 0.0
        %v1864 = vmax.f32 %v1333, 0.0
        %v1865 = vmax.f32 %v1717, 0.0
        %v1866 = vmax.f32 %v1719, 0.0
        %v1867 = vmax.f32 %v1335, 0.0
        %v1868 = vmax.f32 %v1337, 0.0
        %v1869 = vmax.f32 %v1721, 0.0
        %v1870 = vmax.f32 %v1723, 0.0
        %v1871 = vmax.f32 %v1341, 0.0
        %v1872 = vmax.f32 %v1343, 0.0
        %v1873 = vmax.f32 %v1727, 0.0
        %v1874 = vmax.f32 %v1729, 0.0
        %v1875 = vmax.f32 %v1345, 0.0
        %v1876 = vmax.f32 %v1347, 0.0
        %v1877 = vmax.f32 %v1731, 0.0
        %v1878 = vmax.f32 %v1733, 0.0
        %v1879 = vmax.f32 %v1351, 0.0
        %v1880 = vmax.f32 %v1353, 0.0
        %v1881 = vmax.f32 %v1737, 0.0
        %v1882 = vmax.f32 %v1739, 0.0
        %v1883 = vmax.f32 %v1355, 0.0
        %v1884 = vmax.f32 %v1357, 0.0
        %v1885 = vmax.f32 %v1741, 0.0
        %v1886 = vmax.f32 %v1743, 0.0
        %v1887 = vmax.f32 %v1361, 0.0
        %v1888 = vmax.f32 %v1363, 0.0
        %v1889 = vmax.f32 %v1747, 0.0
        %v1890 = vmax.f32 %v1749, 0.0
        %v1891 = vmax.f32 %v1365, 0.0
        %v1892 = vmax.f32 %v1367, 0.0
        %v1893 = vmax.f32 %v1751, 0.0
        %v1894 = vmax.f32 %v1753, 0.0
        %v1895 = vmax.f32 %v1371, 0.0
        %v1896 = vmax.f32 %v1373, 0.0
        %v1897 = vmax.f32 %v1757, 0.0
        %v1898 = vmax.f32 %v1759, 0.0
        %v1899 = vmax.f32 %v1375, 0.0
        %v1900 = vmax.f32 %v1377, 0.0
        %v1901 = vmax.f32 %v1761, 0.0
        %v1902 = vmax.f32 %v1763, 0.0
        %v1903 = vmax.f32 %v1381, 0.0
        %v1904 = vmax.f32 %v1383, 0.0
        %v1905 = vmax.f32 %v1767, 0.0
        %v1906 = vmax.f32 %v1769, 0.0
        %v1907 = vmax.f32 %v1385, 0.0
        %v1908 = vmax.f32 %v1387, 0.0
        %v1909 = vmax.f32 %v1771, 0.0
        %v1910 = vmax.f32 %v1773, 0.0
        %v1911 = vmax.f32 %v1391, 0.0
        %v1912 = vmax.f32 %v1393, 0.0
        %v1913 = vmax.f32 %v1777, 0.0
        %v1914 = vmax.f32 %v1779, 0.0
        %v1915 = vmax.f32 %v1395, 0.0
        %v1916 = vmax.f32 %v1397, 0.0
        %v1917 = vmax.f32 %v1781, 0.0
        %v1918 = vmax.f32 %v1783, 0.0
        %v1919 = vmax.f32 %v1401, 0.0
        %v1920 = vmax.f32 %v1403, 0.0
        %v1921 = vmax.f32 %v1787, 0.0
        %v1922 = vmax.f32 %v1789, 0.0
        %v1923 = vmax.f32 %v1405, 0.0
        %v1924 = vmax.f32 %v1407, 0.0
        %v1925 = vmax.f32 %v1791, 0.0
        %v1926 = vmax.f32 %v1793, 0.0
        %v1927 = vmax.f32 %v1411, 0.0
        %v1928 = vmax.f32 %v1413, 0.0
        %v1929 = vmax.f32 %v1797, 0.0
        %v1930 = vmax.f32 %v1799, 0.0
        %v1931 = vmax.f32 %v1415, 0.0
        %v1932 = vmax.f32 %v1417, 0.0
        %v1933 = vmax.f32 %v1801, 0.0
        %v1934 = vmax.f32 %v1803, 0.0
        %v1935 = vmax.f32 %v1421, 0.0
        %v1936 = vmax.f32 %v1423, 0.0
        %v1937 = vmax.f32 %v1807, 0.0
        %v1938 = vmax.f32 %v1809, 0.0
        %v1939 = vmax.f32 %v1425, 0.0
        %v1940 = vmax.f32 %v1427, 0.0
        %v1941 = vmax.f32 %v1811, 0.0
        %v1942 = vmax.f32 %v1813, 0.0
        %v1943 = vpack.c.bf16 %v1819, %v1815
        %v1944 = vpack.c.bf16 %v1820, %v1816
        %v1945 = vpack.c.bf16 %v1821, %v1817
        %v1946 = vpack.c.bf16 %v1822, %v1818
        %v1947 = vpack.c.bf16 %v1827, %v1823
        %v1948 = vpack.c.bf16 %v1828, %v1824
        %v1949 = vpack.c.bf16 %v1829, %v1825
        %v1950 = vpack.c.bf16 %v1830, %v1826
        %v1951 = vpack.c.bf16 %v1835, %v1831
        %v1952 = vpack.c.bf16 %v1836, %v1832
        %v1953 = vpack.c.bf16 %v1837, %v1833
        %v1954 = vpack.c.bf16 %v1838, %v1834
        %v1955 = vpack.c.bf16 %v1843, %v1839
        %v1956 = vpack.c.bf16 %v1844, %v1840
        %v1957 = vpack.c.bf16 %v1845, %v1841
        %v1958 = vpack.c.bf16 %v1846, %v1842
        %v1959 = vpack.c.bf16 %v1851, %v1847
        %v1960 = vpack.c.bf16 %v1852, %v1848
        %v1961 = vpack.c.bf16 %v1853, %v1849
        %v1962 = vpack.c.bf16 %v1854, %v1850
        %v1963 = vpack.c.bf16 %v1859, %v1855
        %v1964 = vpack.c.bf16 %v1860, %v1856
        %v1965 = vpack.c.bf16 %v1861, %v1857
        %v1966 = vpack.c.bf16 %v1862, %v1858
        %v1967 = vpack.c.bf16 %v1867, %v1863
        %v1968 = vpack.c.bf16 %v1868, %v1864
        %v1969 = vpack.c.bf16 %v1869, %v1865
        %v1970 = vpack.c.bf16 %v1870, %v1866
        %v1971 = vpack.c.bf16 %v1875, %v1871
        %v1972 = vpack.c.bf16 %v1876, %v1872
        %v1973 = vpack.c.bf16 %v1877, %v1873
        %v1974 = vpack.c.bf16 %v1878, %v1874
        %v1975 = vpack.c.bf16 %v1883, %v1879
        %v1976 = vpack.c.bf16 %v1884, %v1880
        %v1977 = vpack.c.bf16 %v1885, %v1881
        %v1978 = vpack.c.bf16 %v1886, %v1882
        %v1979 = vpack.c.bf16 %v1891, %v1887
        %v1980 = vpack.c.bf16 %v1892, %v1888
        %v1981 = vpack.c.bf16 %v1893, %v1889
        %v1982 = vpack.c.bf16 %v1894, %v1890
        %v1983 = vpack.c.bf16 %v1899, %v1895
        %v1984 = vpack.c.bf16 %v1900, %v1896
        %v1985 = vpack.c.bf16 %v1901, %v1897
        %v1986 = vpack.c.bf16 %v1902, %v1898
        %v1987 = vpack.c.bf16 %v1907, %v1903
        %v1988 = vpack.c.bf16 %v1908, %v1904
        %v1989 = vpack.c.bf16 %v1909, %v1905
        %v1990 = vpack.c.bf16 %v1910, %v1906
        %v1991 = vpack.c.bf16 %v1915, %v1911
        %v1992 = vpack.c.bf16 %v1916, %v1912
        %v1993 = vpack.c.bf16 %v1917, %v1913
        %v1994 = vpack.c.bf16 %v1918, %v1914
        %v1995 = vpack.c.bf16 %v1923, %v1919
        %v1996 = vpack.c.bf16 %v1924, %v1920
        %v1997 = vpack.c.bf16 %v1925, %v1921
        %v1998 = vpack.c.bf16 %v1926, %v1922
        %v1999 = vpack.c.bf16 %v1931, %v1927
        %v2000 = vpack.c.bf16 %v1932, %v1928
        %v2001 = vpack.c.bf16 %v1933, %v1929
        %v2002 = vpack.c.bf16 %v1934, %v1930
        %v2003 = vpack.c.bf16 %v1939, %v1935
        %v2004 = vpack.c.bf16 %v1940, %v1936
        %v2005 = vpack.c.bf16 %v1941, %v1937
        %v2006 = vpack.c.bf16 %v1942, %v1938
        %v2007 = vld [vmem:[#allocation9] sm:$0xff]
        %v2008 = vld [vmem:[#allocation9 + $0x8] sm:$0xf]
        %v2009 = vld [vmem:[#allocation9 + $0xc] sm:$0xff]
        %v2010 = vld [vmem:[#allocation9 + $0x14] sm:$0xf]
        %v2011 = vld [vmem:[#allocation9 + $0x18] sm:$0xff]
        %v2012 = vld [vmem:[#allocation9 + $0x20] sm:$0xf]
        %v2013 = vld [vmem:[#allocation9 + $0x24] sm:$0xff]
        %v2014 = vld [vmem:[#allocation9 + $0x2c] sm:$0xf]
        %v2015 = vld [vmem:[#allocation9 + $0x30] sm:$0xff]
        %v2016 = vld [vmem:[#allocation9 + $0x38] sm:$0xf]
        %v2017 = vld [vmem:[#allocation9 + $0x3c] sm:$0xff]
        %v2018 = vld [vmem:[#allocation9 + $0x44] sm:$0xf]
        %v2019 = vld [vmem:[#allocation9 + $0x48] sm:$0xff]
        %v2020 = vld [vmem:[#allocation9 + $0x50] sm:$0xf]
        %v2021 = vld [vmem:[#allocation9 + $0x54] sm:$0xff]
        %v2022 = vld [vmem:[#allocation9 + $0x5c] sm:$0xf]
        %v2023 = vld [vmem:[#allocation9 + $0x60] sm:$0xff]
        %v2024 = vld [vmem:[#allocation9 + $0x68] sm:$0xf]
        %v2025 = vld [vmem:[#allocation9 + $0x6c] sm:$0xff]
        %v2026 = vld [vmem:[#allocation9 + $0x74] sm:$0xf]
        %v2027 = vld [vmem:[#allocation9 + $0x78] sm:$0xff]
        %v2028 = vld [vmem:[#allocation9 + $0x80] sm:$0xf]
        %v2029 = vld [vmem:[#allocation9 + $0x84] sm:$0xff]
        %v2030 = vld [vmem:[#allocation9 + $0x8c] sm:$0xf]
        %v2031 = vld [vmem:[#allocation9 + $0x90] sm:$0xff]
        %v2032 = vld [vmem:[#allocation9 + $0x98] sm:$0xf]
        %v2033 = vld [vmem:[#allocation9 + $0x9c] sm:$0xff]
        %v2034 = vld [vmem:[#allocation9 + $0xa4] sm:$0xf]
        %v2035 = vld [vmem:[#allocation9 + $0xa8] sm:$0xff]
        %v2036 = vld [vmem:[#allocation9 + $0xb0] sm:$0xf]
        %v2037 = vld [vmem:[#allocation9 + $0xb4] sm:$0xff]
        %v2038 = vld [vmem:[#allocation9 + $0xbc] sm:$0xf]
        %v2039 = vld [vmem:[#allocation9 + $0xc0] sm:$0xff]
        %v2040 = vld [vmem:[#allocation9 + $0xc8] sm:$0xf]
        %v2041 = vld [vmem:[#allocation9 + $0xcc] sm:$0xff]
        %v2042 = vld [vmem:[#allocation9 + $0xd4] sm:$0xf]
        %v2043 = vld [vmem:[#allocation9 + $0xd8] sm:$0xff]
        %v2044 = vld [vmem:[#allocation9 + $0xe0] sm:$0xf]
        %v2045 = vld [vmem:[#allocation9 + $0xe4] sm:$0xff]
        %v2046 = vld [vmem:[#allocation9 + $0xec] sm:$0xf]
        %v2047 = vld [vmem:[#allocation9 + $0xf0] sm:$0xff]
        %v2048 = vld [vmem:[#allocation9 + $0xf8] sm:$0xf]
        %v2049 = vld [vmem:[#allocation9 + $0xfc] sm:$0xff]
        %v2050 = vld [vmem:[#allocation9 + $0x104] sm:$0xf]
        %v2051 = vld [vmem:[#allocation9 + $0x108] sm:$0xff]
        %v2052 = vld [vmem:[#allocation9 + $0x110] sm:$0xf]
        %v2053 = vld [vmem:[#allocation9 + $0x114] sm:$0xff]
        %v2054 = vld [vmem:[#allocation9 + $0x11c] sm:$0xf]
        %v2055 = vld [vmem:[#allocation9 + $0x120] sm:$0xff]
        %v2056 = vld [vmem:[#allocation9 + $0x128] sm:$0xf]
        %v2057 = vld [vmem:[#allocation9 + $0x12c] sm:$0xff]
        %v2058 = vld [vmem:[#allocation9 + $0x134] sm:$0xf]
        %v2059 = vld [vmem:[#allocation9 + $0x138] sm:$0xff]
        %v2060 = vld [vmem:[#allocation9 + $0x140] sm:$0xf]
        %v2061 = vld [vmem:[#allocation9 + $0x144] sm:$0xff]
        %v2062 = vld [vmem:[#allocation9 + $0x14c] sm:$0xf]
        %v2063 = vld [vmem:[#allocation9 + $0x150] sm:$0xff]
        %v2064 = vld [vmem:[#allocation9 + $0x158] sm:$0xf]
        %v2065 = vld [vmem:[#allocation9 + $0x15c] sm:$0xff]
        %v2066 = vld [vmem:[#allocation9 + $0x164] sm:$0xf]
        %v2067 = vld [vmem:[#allocation9 + $0x168] sm:$0xff]
        %v2068 = vld [vmem:[#allocation9 + $0x170] sm:$0xf]
        %v2069 = vld [vmem:[#allocation9 + $0x174] sm:$0xff]
        %v2070 = vld [vmem:[#allocation9 + $0x17c] sm:$0xf]
        %v2071 = vld [vmem:[#allocation9 + $0x180] sm:$0xff]
        %v2072 = vld [vmem:[#allocation9 + $0x188] sm:$0xf]
        %v2073 = vld [vmem:[#allocation9 + $0x18c] sm:$0xff]
        %v2074 = vld [vmem:[#allocation9 + $0x194] sm:$0xf]
        %v2075 = vld [vmem:[#allocation9 + $0x198] sm:$0xff]
        %v2076 = vld [vmem:[#allocation9 + $0x1a0] sm:$0xf]
        %v2077 = vld [vmem:[#allocation9 + $0x1a4] sm:$0xff]
        %v2078 = vld [vmem:[#allocation9 + $0x1ac] sm:$0xf]
        %v2079 = vld [vmem:[#allocation9 + $0x1b0] sm:$0xff]
        %v2080 = vld [vmem:[#allocation9 + $0x1b8] sm:$0xf]
        %v2081 = vld [vmem:[#allocation9 + $0x1bc] sm:$0xff]
        %v2082 = vld [vmem:[#allocation9 + $0x1c4] sm:$0xf]
        %v2083 = vld [vmem:[#allocation9 + $0x1c8] sm:$0xff]
        %v2084 = vld [vmem:[#allocation9 + $0x1d0] sm:$0xf]
        %v2085 = vld [vmem:[#allocation9 + $0x1d4] sm:$0xff]
        %v2086 = vld [vmem:[#allocation9 + $0x1dc] sm:$0xf]
        %v2087 = vld [vmem:[#allocation9 + $0x1e0] sm:$0xff]
        %v2088 = vld [vmem:[#allocation9 + $0x1e8] sm:$0xf]
        %v2089 = vld [vmem:[#allocation9 + $0x1ec] sm:$0xff]
        %v2090 = vld [vmem:[#allocation9 + $0x1f4] sm:$0xf]
        %v2091 = vld [vmem:[#allocation9 + $0x1f8] sm:$0xff]
        %v2092 = vld [vmem:[#allocation9 + $0x200] sm:$0xf]
        %v2093 = vld [vmem:[#allocation9 + $0x204] sm:$0xff]
        %v2094 = vld [vmem:[#allocation9 + $0x20c] sm:$0xf]
        %v2095 = vld [vmem:[#allocation9 + $0x210] sm:$0xff]
        %v2096 = vld [vmem:[#allocation9 + $0x218] sm:$0xf]
        %v2097 = vld [vmem:[#allocation9 + $0x21c] sm:$0xff]
        %v2098 = vld [vmem:[#allocation9 + $0x224] sm:$0xf]
        %v2099 = vld [vmem:[#allocation9 + $0x228] sm:$0xff]
        %v2100 = vld [vmem:[#allocation9 + $0x230] sm:$0xf]
        %v2101 = vld [vmem:[#allocation9 + $0x234] sm:$0xff]
        %v2102 = vld [vmem:[#allocation9 + $0x23c] sm:$0xf]
        %v2103 = vld [vmem:[#allocation9 + $0x240] sm:$0xff]
        %v2104 = vld [vmem:[#allocation9 + $0x248] sm:$0xf]
        %v2105 = vld [vmem:[#allocation9 + $0x24c] sm:$0xff]
        %v2106 = vld [vmem:[#allocation9 + $0x254] sm:$0xf]
        %v2107 = vld [vmem:[#allocation9 + $0x258] sm:$0xff]
        %v2108 = vld [vmem:[#allocation9 + $0x260] sm:$0xf]
        %v2109 = vld [vmem:[#allocation9 + $0x264] sm:$0xff]
        %v2110 = vld [vmem:[#allocation9 + $0x26c] sm:$0xf]
        %v2111 = vld [vmem:[#allocation9 + $0x270] sm:$0xff]
        %v2112 = vld [vmem:[#allocation9 + $0x278] sm:$0xf]
        %v2113 = vld [vmem:[#allocation9 + $0x27c] sm:$0xff]
        %v2114 = vld [vmem:[#allocation9 + $0x284] sm:$0xf]
        %v2115 = vld [vmem:[#allocation9 + $0x288] sm:$0xff]
        %v2116 = vld [vmem:[#allocation9 + $0x290] sm:$0xf]
        %v2117 = vld [vmem:[#allocation9 + $0x294] sm:$0xff]
        %v2118 = vld [vmem:[#allocation9 + $0x29c] sm:$0xf]
        %v2119 = vld [vmem:[#allocation9 + $0x2a0] sm:$0xff]
        %v2120 = vld [vmem:[#allocation9 + $0x2a8] sm:$0xf]
        %v2121 = vld [vmem:[#allocation9 + $0x2ac] sm:$0xff]
        %v2122 = vld [vmem:[#allocation9 + $0x2b4] sm:$0xf]
        %v2123 = vld [vmem:[#allocation9 + $0x2b8] sm:$0xff]
        %v2124 = vld [vmem:[#allocation9 + $0x2c0] sm:$0xf]
        %v2125 = vld [vmem:[#allocation9 + $0x2c4] sm:$0xff]
        %v2126 = vld [vmem:[#allocation9 + $0x2cc] sm:$0xf]
        %v2127 = vld [vmem:[#allocation9 + $0x2d0] sm:$0xff]
        %v2128 = vld [vmem:[#allocation9 + $0x2d8] sm:$0xf]
        %v2129 = vld [vmem:[#allocation9 + $0x2dc] sm:$0xff]
        %v2130 = vld [vmem:[#allocation9 + $0x2e4] sm:$0xf]
        %v2131 = vld [vmem:[#allocation9 + $0x2e8] sm:$0xff]
        %v2132 = vld [vmem:[#allocation9 + $0x2f0] sm:$0xf]
        %v2133 = vld [vmem:[#allocation9 + $0x2f4] sm:$0xff]
        %v2134 = vld [vmem:[#allocation9 + $0x2fc] sm:$0xf]
        %v2135 = vld [vmem:[#allocation11] sm:$0x7]
        %v2137 = vlaneseq
        %v2138 = vshrl.u32 %v2137, 7
        %v2139 = vsub.s32 0, %v2138
        %v2140 = vrot.slane %v2135, %v2139
        %v2141 = vlaneseq
        %v2142 = vshrl.u32 %v2141, 7
        %v2143 = vsub.s32 1, %v2142
        %v2144 = vrot.slane %v2135, %v2143
        %v2145 = vlaneseq
        %v2146 = vshrl.u32 %v2145, 7
        %v2147 = vsub.s32 2, %v2146
        %v2148 = vrot.slane %v2135, %v2147
        %v2280 = vunpack.c.l.b16 %v2007
        %v2281 = vunpack.c.h.b16 %v2007
        %v2282 = vunpack.c.l.b16 %v2008
        %v2283 = vunpack.c.l.b16 %v2009
        %v2284 = vunpack.c.h.b16 %v2009
        %v2285 = vunpack.c.l.b16 %v2010
        %v2286 = vunpack.c.l.b16 %v2011
        %v2287 = vunpack.c.h.b16 %v2011
        %v2288 = vunpack.c.l.b16 %v2012
        %v2289 = vunpack.c.l.b16 %v2013
        %v2290 = vunpack.c.h.b16 %v2013
        %v2291 = vunpack.c.l.b16 %v2014
        %v2292 = vunpack.c.l.b16 %v2015
        %v2293 = vunpack.c.h.b16 %v2015
        %v2294 = vunpack.c.l.b16 %v2016
        %v2295 = vunpack.c.l.b16 %v2017
        %v2296 = vunpack.c.h.b16 %v2017
        %v2297 = vunpack.c.l.b16 %v2018
        %v2298 = vunpack.c.l.b16 %v2019
        %v2299 = vunpack.c.h.b16 %v2019
        %v2300 = vunpack.c.l.b16 %v2020
        %v2301 = vunpack.c.l.b16 %v2021
        %v2302 = vunpack.c.h.b16 %v2021
        %v2303 = vunpack.c.l.b16 %v2022
        %v2304 = vunpack.c.l.b16 %v2023
        %v2305 = vunpack.c.h.b16 %v2023
        %v2306 = vunpack.c.l.b16 %v2024
        %v2307 = vunpack.c.l.b16 %v2025
        %v2308 = vunpack.c.h.b16 %v2025
        %v2309 = vunpack.c.l.b16 %v2026
        %v2310 = vunpack.c.l.b16 %v2027
        %v2311 = vunpack.c.h.b16 %v2027
        %v2312 = vunpack.c.l.b16 %v2028
        %v2313 = vunpack.c.l.b16 %v2029
        %v2314 = vunpack.c.h.b16 %v2029
        %v2315 = vunpack.c.l.b16 %v2030
        %v2316 = vunpack.c.l.b16 %v2031
        %v2317 = vunpack.c.h.b16 %v2031
        %v2318 = vunpack.c.l.b16 %v2032
        %v2319 = vunpack.c.l.b16 %v2033
        %v2320 = vunpack.c.h.b16 %v2033
        %v2321 = vunpack.c.l.b16 %v2034
        %v2322 = vunpack.c.l.b16 %v2035
        %v2323 = vunpack.c.h.b16 %v2035
        %v2324 = vunpack.c.l.b16 %v2036
        %v2325 = vunpack.c.l.b16 %v2037
        %v2326 = vunpack.c.h.b16 %v2037
        %v2327 = vunpack.c.l.b16 %v2038
        %v2328 = vunpack.c.l.b16 %v2039
        %v2329 = vunpack.c.h.b16 %v2039
        %v2330 = vunpack.c.l.b16 %v2040
        %v2331 = vunpack.c.l.b16 %v2041
        %v2332 = vunpack.c.h.b16 %v2041
        %v2333 = vunpack.c.l.b16 %v2042
        %v2334 = vunpack.c.l.b16 %v2043
        %v2335 = vunpack.c.h.b16 %v2043
        %v2336 = vunpack.c.l.b16 %v2044
        %v2337 = vunpack.c.l.b16 %v2045
        %v2338 = vunpack.c.h.b16 %v2045
        %v2339 = vunpack.c.l.b16 %v2046
        %v2340 = vunpack.c.l.b16 %v2047
        %v2341 = vunpack.c.h.b16 %v2047
        %v2342 = vunpack.c.l.b16 %v2048
        %v2343 = vunpack.c.l.b16 %v2049
        %v2344 = vunpack.c.h.b16 %v2049
        %v2345 = vunpack.c.l.b16 %v2050
        %v2346 = vunpack.c.l.b16 %v2051
        %v2347 = vunpack.c.h.b16 %v2051
        %v2348 = vunpack.c.l.b16 %v2052
        %v2349 = vunpack.c.l.b16 %v2053
        %v2350 = vunpack.c.h.b16 %v2053
        %v2351 = vunpack.c.l.b16 %v2054
        %v2352 = vunpack.c.l.b16 %v2055
        %v2353 = vunpack.c.h.b16 %v2055
        %v2354 = vunpack.c.l.b16 %v2056
        %v2355 = vunpack.c.l.b16 %v2057
        %v2356 = vunpack.c.h.b16 %v2057
        %v2357 = vunpack.c.l.b16 %v2058
        %v2358 = vunpack.c.l.b16 %v2059
        %v2359 = vunpack.c.h.b16 %v2059
        %v2360 = vunpack.c.l.b16 %v2060
        %v2361 = vunpack.c.l.b16 %v2061
        %v2362 = vunpack.c.h.b16 %v2061
        %v2363 = vunpack.c.l.b16 %v2062
        %v2364 = vunpack.c.l.b16 %v2063
        %v2365 = vunpack.c.h.b16 %v2063
        %v2366 = vunpack.c.l.b16 %v2064
        %v2367 = vunpack.c.l.b16 %v2065
        %v2368 = vunpack.c.h.b16 %v2065
        %v2369 = vunpack.c.l.b16 %v2066
        %v2370 = vunpack.c.l.b16 %v2067
        %v2371 = vunpack.c.h.b16 %v2067
        %v2372 = vunpack.c.l.b16 %v2068
        %v2373 = vunpack.c.l.b16 %v2069
        %v2374 = vunpack.c.h.b16 %v2069
        %v2375 = vunpack.c.l.b16 %v2070
        %v2376 = vunpack.c.l.b16 %v2071
        %v2377 = vunpack.c.h.b16 %v2071
        %v2378 = vunpack.c.l.b16 %v2072
        %v2379 = vunpack.c.l.b16 %v2073
        %v2380 = vunpack.c.h.b16 %v2073
        %v2381 = vunpack.c.l.b16 %v2074
        %v2382 = vunpack.c.l.b16 %v2075
        %v2383 = vunpack.c.h.b16 %v2075
        %v2384 = vunpack.c.l.b16 %v2076
        %v2385 = vunpack.c.l.b16 %v2077
        %v2386 = vunpack.c.h.b16 %v2077
        %v2387 = vunpack.c.l.b16 %v2078
        %v2388 = vunpack.c.l.b16 %v2079
        %v2389 = vunpack.c.h.b16 %v2079
        %v2390 = vunpack.c.l.b16 %v2080
        %v2391 = vunpack.c.l.b16 %v2081
        %v2392 = vunpack.c.h.b16 %v2081
        %v2393 = vunpack.c.l.b16 %v2082
        %v2394 = vunpack.c.l.b16 %v2083
        %v2395 = vunpack.c.h.b16 %v2083
        %v2396 = vunpack.c.l.b16 %v2084
        %v2397 = vunpack.c.l.b16 %v2085
        %v2398 = vunpack.c.h.b16 %v2085
        %v2399 = vunpack.c.l.b16 %v2086
        %v2400 = vunpack.c.l.b16 %v2087
        %v2401 = vunpack.c.h.b16 %v2087
        %v2402 = vunpack.c.l.b16 %v2088
        %v2403 = vunpack.c.l.b16 %v2089
        %v2404 = vunpack.c.h.b16 %v2089
        %v2405 = vunpack.c.l.b16 %v2090
        %v2406 = vunpack.c.l.b16 %v2091
        %v2407 = vunpack.c.h.b16 %v2091
        %v2408 = vunpack.c.l.b16 %v2092
        %v2409 = vunpack.c.l.b16 %v2093
        %v2410 = vunpack.c.h.b16 %v2093
        %v2411 = vunpack.c.l.b16 %v2094
        %v2412 = vunpack.c.l.b16 %v2095
        %v2413 = vunpack.c.h.b16 %v2095
        %v2414 = vunpack.c.l.b16 %v2096
        %v2415 = vunpack.c.l.b16 %v2097
        %v2416 = vunpack.c.h.b16 %v2097
        %v2417 = vunpack.c.l.b16 %v2098
        %v2418 = vunpack.c.l.b16 %v2099
        %v2419 = vunpack.c.h.b16 %v2099
        %v2420 = vunpack.c.l.b16 %v2100
        %v2421 = vunpack.c.l.b16 %v2101
        %v2422 = vunpack.c.h.b16 %v2101
        %v2423 = vunpack.c.l.b16 %v2102
        %v2424 = vunpack.c.l.b16 %v2103
        %v2425 = vunpack.c.h.b16 %v2103
        %v2426 = vunpack.c.l.b16 %v2104
        %v2427 = vunpack.c.l.b16 %v2105
        %v2428 = vunpack.c.h.b16 %v2105
        %v2429 = vunpack.c.l.b16 %v2106
        %v2430 = vunpack.c.l.b16 %v2107
        %v2431 = vunpack.c.h.b16 %v2107
        %v2432 = vunpack.c.l.b16 %v2108
        %v2433 = vunpack.c.l.b16 %v2109
        %v2434 = vunpack.c.h.b16 %v2109
        %v2435 = vunpack.c.l.b16 %v2110
        %v2436 = vunpack.c.l.b16 %v2111
        %v2437 = vunpack.c.h.b16 %v2111
        %v2438 = vunpack.c.l.b16 %v2112
        %v2439 = vunpack.c.l.b16 %v2113
        %v2440 = vunpack.c.h.b16 %v2113
        %v2441 = vunpack.c.l.b16 %v2114
        %v2442 = vunpack.c.l.b16 %v2115
        %v2443 = vunpack.c.h.b16 %v2115
        %v2444 = vunpack.c.l.b16 %v2116
        %v2445 = vunpack.c.l.b16 %v2117
        %v2446 = vunpack.c.h.b16 %v2117
        %v2447 = vunpack.c.l.b16 %v2118
        %v2448 = vunpack.c.l.b16 %v2119
        %v2449 = vunpack.c.h.b16 %v2119
        %v2450 = vunpack.c.l.b16 %v2120
        %v2451 = vunpack.c.l.b16 %v2121
        %v2452 = vunpack.c.h.b16 %v2121
        %v2453 = vunpack.c.l.b16 %v2122
        %v2454 = vunpack.c.l.b16 %v2123
        %v2455 = vunpack.c.h.b16 %v2123
        %v2456 = vunpack.c.l.b16 %v2124
        %v2457 = vunpack.c.l.b16 %v2125
        %v2458 = vunpack.c.h.b16 %v2125
        %v2459 = vunpack.c.l.b16 %v2126
        %v2460 = vunpack.c.l.b16 %v2127
        %v2461 = vunpack.c.h.b16 %v2127
        %v2462 = vunpack.c.l.b16 %v2128
        %v2463 = vunpack.c.l.b16 %v2129
        %v2464 = vunpack.c.h.b16 %v2129
        %v2465 = vunpack.c.l.b16 %v2130
        %v2466 = vunpack.c.l.b16 %v2131
        %v2467 = vunpack.c.h.b16 %v2131
        %v2468 = vunpack.c.l.b16 %v2132
        %v2469 = vunpack.c.l.b16 %v2133
        %v2470 = vunpack.c.h.b16 %v2133
        %v2471 = vunpack.c.l.b16 %v2134
        %v2472 = vpack.c.b16 %v2283, %v2280
        %v2473 = vpack.c.b16 %v2284, %v2281
        %v2474 = vpack.c.b16 %v2285, %v2282
        %v2475 = vpack.c.b16 %v2289, %v2286
        %v2476 = vpack.c.b16 %v2290, %v2287
        %v2477 = vpack.c.b16 %v2291, %v2288
        %v2478 = vpack.c.b16 %v2295, %v2292
        %v2479 = vpack.c.b16 %v2296, %v2293
        %v2480 = vpack.c.b16 %v2297, %v2294
        %v2481 = vpack.c.b16 %v2301, %v2298
        %v2482 = vpack.c.b16 %v2302, %v2299
        %v2483 = vpack.c.b16 %v2303, %v2300
        %v2484 = vpack.c.b16 %v2307, %v2304
        %v2485 = vpack.c.b16 %v2308, %v2305
        %v2486 = vpack.c.b16 %v2309, %v2306
        %v2487 = vpack.c.b16 %v2313, %v2310
        %v2488 = vpack.c.b16 %v2314, %v2311
        %v2489 = vpack.c.b16 %v2315, %v2312
        %v2490 = vpack.c.b16 %v2319, %v2316
        %v2491 = vpack.c.b16 %v2320, %v2317
        %v2492 = vpack.c.b16 %v2321, %v2318
        %v2493 = vpack.c.b16 %v2325, %v2322
        %v2494 = vpack.c.b16 %v2326, %v2323
        %v2495 = vpack.c.b16 %v2327, %v2324
        %v2496 = vpack.c.b16 %v2331, %v2328
        %v2497 = vpack.c.b16 %v2332, %v2329
        %v2498 = vpack.c.b16 %v2333, %v2330
        %v2499 = vpack.c.b16 %v2337, %v2334
        %v2500 = vpack.c.b16 %v2338, %v2335
        %v2501 = vpack.c.b16 %v2339, %v2336
        %v2502 = vpack.c.b16 %v2343, %v2340
        %v2503 = vpack.c.b16 %v2344, %v2341
        %v2504 = vpack.c.b16 %v2345, %v2342
        %v2505 = vpack.c.b16 %v2349, %v2346
        %v2506 = vpack.c.b16 %v2350, %v2347
        %v2507 = vpack.c.b16 %v2351, %v2348
        %v2508 = vpack.c.b16 %v2355, %v2352
        %v2509 = vpack.c.b16 %v2356, %v2353
        %v2510 = vpack.c.b16 %v2357, %v2354
        %v2511 = vpack.c.b16 %v2361, %v2358
        %v2512 = vpack.c.b16 %v2362, %v2359
        %v2513 = vpack.c.b16 %v2363, %v2360
        %v2514 = vpack.c.b16 %v2367, %v2364
        %v2515 = vpack.c.b16 %v2368, %v2365
        %v2516 = vpack.c.b16 %v2369, %v2366
        %v2517 = vpack.c.b16 %v2373, %v2370
        %v2518 = vpack.c.b16 %v2374, %v2371
        %v2519 = vpack.c.b16 %v2375, %v2372
        %v2520 = vpack.c.b16 %v2379, %v2376
        %v2521 = vpack.c.b16 %v2380, %v2377
        %v2522 = vpack.c.b16 %v2381, %v2378
        %v2523 = vpack.c.b16 %v2385, %v2382
        %v2524 = vpack.c.b16 %v2386, %v2383
        %v2525 = vpack.c.b16 %v2387, %v2384
        %v2526 = vpack.c.b16 %v2391, %v2388
        %v2527 = vpack.c.b16 %v2392, %v2389
        %v2528 = vpack.c.b16 %v2393, %v2390
        %v2529 = vpack.c.b16 %v2397, %v2394
        %v2530 = vpack.c.b16 %v2398, %v2395
        %v2531 = vpack.c.b16 %v2399, %v2396
        %v2532 = vpack.c.b16 %v2403, %v2400
        %v2533 = vpack.c.b16 %v2404, %v2401
        %v2534 = vpack.c.b16 %v2405, %v2402
        %v2535 = vpack.c.b16 %v2409, %v2406
        %v2536 = vpack.c.b16 %v2410, %v2407
        %v2537 = vpack.c.b16 %v2411, %v2408
        %v2538 = vpack.c.b16 %v2415, %v2412
        %v2539 = vpack.c.b16 %v2416, %v2413
        %v2540 = vpack.c.b16 %v2417, %v2414
        %v2541 = vpack.c.b16 %v2421, %v2418
        %v2542 = vpack.c.b16 %v2422, %v2419
        %v2543 = vpack.c.b16 %v2423, %v2420
        %v2544 = vpack.c.b16 %v2427, %v2424
        %v2545 = vpack.c.b16 %v2428, %v2425
        %v2546 = vpack.c.b16 %v2429, %v2426
        %v2547 = vpack.c.b16 %v2433, %v2430
        %v2548 = vpack.c.b16 %v2434, %v2431
        %v2549 = vpack.c.b16 %v2435, %v2432
        %v2550 = vpack.c.b16 %v2439, %v2436
        %v2551 = vpack.c.b16 %v2440, %v2437
        %v2552 = vpack.c.b16 %v2441, %v2438
        %v2553 = vpack.c.b16 %v2445, %v2442
        %v2554 = vpack.c.b16 %v2446, %v2443
        %v2555 = vpack.c.b16 %v2447, %v2444
        %v2556 = vpack.c.b16 %v2451, %v2448
        %v2557 = vpack.c.b16 %v2452, %v2449
        %v2558 = vpack.c.b16 %v2453, %v2450
        %v2559 = vpack.c.b16 %v2457, %v2454
        %v2560 = vpack.c.b16 %v2458, %v2455
        %v2561 = vpack.c.b16 %v2459, %v2456
        %v2562 = vpack.c.b16 %v2463, %v2460
        %v2563 = vpack.c.b16 %v2464, %v2461
        %v2564 = vpack.c.b16 %v2465, %v2462
        %v2565 = vpack.c.b16 %v2469, %v2466
        %v2566 = vpack.c.b16 %v2470, %v2467
        %v2567 = vpack.c.b16 %v2471, %v2468
        %2664 = vmatprep.subr.bf16.mxu0 %v2473
        %2665 = vmatpush1.bf16.msra.mxu0 %v2472
        %2666 = vmatprep.subr.bf16.mxu0 %v2476
        %2667 = vmatpush1.bf16.msra.mxu0 %v2475
        %2668 = vmatprep.subr.bf16.mxu0 %v2479
        %2669 = vmatpush1.bf16.msra.mxu0 %v2478
        %2670 = vmatprep.subr.bf16.mxu0 %v2482
        %2671 = vmatpush1.bf16.msra.mxu0 %v2481
        %2672 = vmatprep.subr.bf16.mxu0 %v2485
        %2673 = vmatpush1.bf16.msra.mxu0 %v2484
        %2674 = vmatprep.subr.bf16.mxu0 %v2488
        %2675 = vmatpush1.bf16.msra.mxu0 %v2487
        %2676 = vmatprep.subr.bf16.mxu0 %v2491
        %2677 = vmatpush1.bf16.msra.mxu0 %v2490
        %2678 = vmatprep.subr.bf16.mxu0 %v2494
        %2679 = vmatpush1.bf16.msra.mxu0 %v2493
        %2680 = vmatprep.subr.bf16.mxu0 %v2497
        %2681 = vmatpush1.bf16.msra.mxu0 %v2496
        %2682 = vmatprep.subr.bf16.mxu0 %v2500
        %2683 = vmatpush1.bf16.msra.mxu0 %v2499
        %2684 = vmatprep.subr.bf16.mxu0 %v2503
        %2685 = vmatpush1.bf16.msra.mxu0 %v2502
        %2686 = vmatprep.subr.bf16.mxu0 %v2506
        %2687 = vmatpush1.bf16.msra.mxu0 %v2505
        %2688 = vmatprep.subr.bf16.mxu0 %v2509
        %2689 = vmatpush1.bf16.msra.mxu0 %v2508
        %2690 = vmatprep.subr.bf16.mxu0 %v2512
        %2691 = vmatpush1.bf16.msra.mxu0 %v2511
        %2692 = vmatprep.subr.bf16.mxu0 %v2515
        %2693 = vmatpush1.bf16.msra.mxu0 %v2514
        %2694 = vmatprep.subr.bf16.mxu0 %v2518
        %2695 = vmatpush1.bf16.msra.mxu0 %v2517
        %2696 = vmatprep.mubr.bf16.mxu0 %v1944
        %2697 = vmatmul.mubr.bf16.gmra.mrb[0].mxu0 %v1943
        %v2698 = vpop.f32.mrb[0].mxu0
        %v2699 = vadd.f32 %v2140, %v2698
        %v2700 = vpop.f32.mrb[0].mxu0
        %v2701 = vadd.f32 %v2144, %v2700
        %v2702 = vpop.f32.mrb[0].mxu0
        %v2703 = vadd.f32 %v2140, %v2702
        %v2704 = vpop.f32.mrb[0].mxu0
        %v2705 = vadd.f32 %v2144, %v2704
        %2706 = vmatprep.mubr.bf16.mxu0 %v1948
        %2707 = vmatmul.mubr.bf16.gmra.mrb[0].mxu0 %v1947
        %v2708 = vpop.f32.mrb[0].mxu0
        %v2709 = vadd.f32 %v2140, %v2708
        %v2710 = vpop.f32.mrb[0].mxu0
        %v2711 = vadd.f32 %v2144, %v2710
        %v2712 = vpop.f32.mrb[0].mxu0
        %v2713 = vadd.f32 %v2140, %v2712
        %v2714 = vpop.f32.mrb[0].mxu0
        %v2715 = vadd.f32 %v2144, %v2714
        %2716 = vmatprep.mubr.bf16.mxu0 %v1952
        %2717 = vmatmul.mubr.bf16.gmra.mrb[0].mxu0 %v1951
        %v2718 = vpop.f32.mrb[0].mxu0
        %v2719 = vadd.f32 %v2140, %v2718
        %v2720 = vpop.f32.mrb[0].mxu0
        %v2721 = vadd.f32 %v2144, %v2720
        %v2722 = vpop.f32.mrb[0].mxu0
        %v2723 = vadd.f32 %v2140, %v2722
        %v2724 = vpop.f32.mrb[0].mxu0
        %v2725 = vadd.f32 %v2144, %v2724
        %2726 = vmatprep.mubr.bf16.mxu0 %v1956
        %2727 = vmatmul.mubr.bf16.gmra.mrb[0].mxu0 %v1955
        %v2728 = vpop.f32.mrb[0].mxu0
        %v2729 = vadd.f32 %v2140, %v2728
        %v2730 = vpop.f32.mrb[0].mxu0
        %v2731 = vadd.f32 %v2144, %v2730
        %v2732 = vpop.f32.mrb[0].mxu0
        %v2733 = vadd.f32 %v2140, %v2732
        %v2734 = vpop.f32.mrb[0].mxu0
        %v2735 = vadd.f32 %v2144, %v2734
        %2736 = vmatprep.mubr.bf16.mxu0 %v1960
        %2737 = vmatmul.mubr.bf16.gmra.mrb[0].mxu0 %v1959
        %v2738 = vpop.f32.mrb[0].mxu0
        %v2739 = vadd.f32 %v2140, %v2738
        %v2740 = vpop.f32.mrb[0].mxu0
        %v2741 = vadd.f32 %v2144, %v2740
        %v2742 = vpop.f32.mrb[0].mxu0
        %v2743 = vadd.f32 %v2140, %v2742
        %v2744 = vpop.f32.mrb[0].mxu0
        %v2745 = vadd.f32 %v2144, %v2744
        %2746 = vmatprep.mubr.bf16.mxu0 %v1964
        %2747 = vmatmul.mubr.bf16.gmra.mrb[0].mxu0 %v1963
        %v2748 = vpop.f32.mrb[0].mxu0
        %v2749 = vadd.f32 %v2140, %v2748
        %v2750 = vpop.f32.mrb[0].mxu0
        %v2751 = vadd.f32 %v2144, %v2750
        %v2752 = vpop.f32.mrb[0].mxu0
        %v2753 = vadd.f32 %v2140, %v2752
        %v2754 = vpop.f32.mrb[0].mxu0
        %v2755 = vadd.f32 %v2144, %v2754
        %2756 = vmatprep.mubr.bf16.mxu0 %v1968
        %2757 = vmatmul.mubr.bf16.gmra.mrb[0].mxu0 %v1967
        %v2758 = vpop.f32.mrb[0].mxu0
        %v2759 = vadd.f32 %v2140, %v2758
        %v2760 = vpop.f32.mrb[0].mxu0
        %v2761 = vadd.f32 %v2144, %v2760
        %v2762 = vpop.f32.mrb[0].mxu0
        %v2763 = vadd.f32 %v2140, %v2762
        %v2764 = vpop.f32.mrb[0].mxu0
        %v2765 = vadd.f32 %v2144, %v2764
        %2766 = vmatprep.mubr.bf16.mxu0 %v1972
        %2767 = vmatmul.mubr.bf16.gmra.mrb[0].mxu0 %v1971
        %v2768 = vpop.f32.mrb[0].mxu0
        %v2769 = vadd.f32 %v2140, %v2768
        %v2770 = vpop.f32.mrb[0].mxu0
        %v2771 = vadd.f32 %v2144, %v2770
        %v2772 = vpop.f32.mrb[0].mxu0
        %v2773 = vadd.f32 %v2140, %v2772
        %v2774 = vpop.f32.mrb[0].mxu0
        %v2775 = vadd.f32 %v2144, %v2774
        %2776 = vmatprep.mubr.bf16.mxu0 %v1976
        %2777 = vmatmul.mubr.bf16.gmra.mrb[0].mxu0 %v1975
        %v2778 = vpop.f32.mrb[0].mxu0
        %v2779 = vadd.f32 %v2140, %v2778
        %v2780 = vpop.f32.mrb[0].mxu0
        %v2781 = vadd.f32 %v2144, %v2780
        %v2782 = vpop.f32.mrb[0].mxu0
        %v2783 = vadd.f32 %v2140, %v2782
        %v2784 = vpop.f32.mrb[0].mxu0
        %v2785 = vadd.f32 %v2144, %v2784
        %2786 = vmatprep.mubr.bf16.mxu0 %v1980
        %2787 = vmatmul.mubr.bf16.gmra.mrb[0].mxu0 %v1979
        %v2788 = vpop.f32.mrb[0].mxu0
        %v2789 = vadd.f32 %v2140, %v2788
        %v2790 = vpop.f32.mrb[0].mxu0
        %v2791 = vadd.f32 %v2144, %v2790
        %v2792 = vpop.f32.mrb[0].mxu0
        %v2793 = vadd.f32 %v2140, %v2792
        %v2794 = vpop.f32.mrb[0].mxu0
        %v2795 = vadd.f32 %v2144, %v2794
        %2796 = vmatprep.mubr.bf16.mxu0 %v1984
        %2797 = vmatmul.mubr.bf16.gmra.mrb[0].mxu0 %v1983
        %v2798 = vpop.f32.mrb[0].mxu0
        %v2799 = vadd.f32 %v2140, %v2798
        %v2800 = vpop.f32.mrb[0].mxu0
        %v2801 = vadd.f32 %v2144, %v2800
        %v2802 = vpop.f32.mrb[0].mxu0
        %v2803 = vadd.f32 %v2140, %v2802
        %v2804 = vpop.f32.mrb[0].mxu0
        %v2805 = vadd.f32 %v2144, %v2804
        %2806 = vmatprep.mubr.bf16.mxu0 %v1988
        %2807 = vmatmul.mubr.bf16.gmra.mrb[0].mxu0 %v1987
        %v2808 = vpop.f32.mrb[0].mxu0
        %v2809 = vadd.f32 %v2140, %v2808
        %v2810 = vpop.f32.mrb[0].mxu0
        %v2811 = vadd.f32 %v2144, %v2810
        %v2812 = vpop.f32.mrb[0].mxu0
        %v2813 = vadd.f32 %v2140, %v2812
        %v2814 = vpop.f32.mrb[0].mxu0
        %v2815 = vadd.f32 %v2144, %v2814
        %2816 = vmatprep.mubr.bf16.mxu0 %v1992
        %2817 = vmatmul.mubr.bf16.gmra.mrb[0].mxu0 %v1991
        %v2818 = vpop.f32.mrb[0].mxu0
        %v2819 = vadd.f32 %v2140, %v2818
        %v2820 = vpop.f32.mrb[0].mxu0
        %v2821 = vadd.f32 %v2144, %v2820
        %v2822 = vpop.f32.mrb[0].mxu0
        %v2823 = vadd.f32 %v2140, %v2822
        %v2824 = vpop.f32.mrb[0].mxu0
        %v2825 = vadd.f32 %v2144, %v2824
        %2826 = vmatprep.mubr.bf16.mxu0 %v1996
        %2827 = vmatmul.mubr.bf16.gmra.mrb[0].mxu0 %v1995
        %v2828 = vpop.f32.mrb[0].mxu0
        %v2829 = vadd.f32 %v2140, %v2828
        %v2830 = vpop.f32.mrb[0].mxu0
        %v2831 = vadd.f32 %v2144, %v2830
        %v2832 = vpop.f32.mrb[0].mxu0
        %v2833 = vadd.f32 %v2140, %v2832
        %v2834 = vpop.f32.mrb[0].mxu0
        %v2835 = vadd.f32 %v2144, %v2834
        %2836 = vmatprep.mubr.bf16.mxu0 %v2000
        %2837 = vmatmul.mubr.bf16.gmra.mrb[0].mxu0 %v1999
        %v2838 = vpop.f32.mrb[0].mxu0
        %v2839 = vadd.f32 %v2140, %v2838
        %v2840 = vpop.f32.mrb[0].mxu0
        %v2841 = vadd.f32 %v2144, %v2840
        %v2842 = vpop.f32.mrb[0].mxu0
        %v2843 = vadd.f32 %v2140, %v2842
        %v2844 = vpop.f32.mrb[0].mxu0
        %v2845 = vadd.f32 %v2144, %v2844
        %2846 = vmatprep.mubr.bf16.mxu0 %v2004
        %2847 = vmatmul.mubr.bf16.gmra.mrb[0].mxu0 %v2003
        %v2848 = vpop.f32.mrb[0].mxu0
        %v2849 = vadd.f32 %v2140, %v2848
        %v2850 = vpop.f32.mrb[0].mxu0
        %v2851 = vadd.f32 %v2144, %v2850
        %v2852 = vpop.f32.mrb[0].mxu0
        %v2853 = vadd.f32 %v2140, %v2852
        %v2854 = vpop.f32.mrb[0].mxu0
        %v2855 = vadd.f32 %v2144, %v2854
        %2856 = vdwg.mxu0
        %2857 = vmatprep.subr.bf16.mxu0 %v2521
        %2858 = vmatpush1.bf16.msra.mxu0 %v2520
        %2859 = vmatprep.subr.bf16.mxu0 %v2524
        %2860 = vmatpush1.bf16.msra.mxu0 %v2523
        %2861 = vmatprep.subr.bf16.mxu0 %v2527
        %2862 = vmatpush1.bf16.msra.mxu0 %v2526
        %2863 = vmatprep.subr.bf16.mxu0 %v2530
        %2864 = vmatpush1.bf16.msra.mxu0 %v2529
        %2865 = vmatprep.subr.bf16.mxu0 %v2533
        %2866 = vmatpush1.bf16.msra.mxu0 %v2532
        %2867 = vmatprep.subr.bf16.mxu0 %v2536
        %2868 = vmatpush1.bf16.msra.mxu0 %v2535
        %2869 = vmatprep.subr.bf16.mxu0 %v2539
        %2870 = vmatpush1.bf16.msra.mxu0 %v2538
        %2871 = vmatprep.subr.bf16.mxu0 %v2542
        %2872 = vmatpush1.bf16.msra.mxu0 %v2541
        %2873 = vmatprep.subr.bf16.mxu0 %v2545
        %2874 = vmatpush1.bf16.msra.mxu0 %v2544
        %2875 = vmatprep.subr.bf16.mxu0 %v2548
        %2876 = vmatpush1.bf16.msra.mxu0 %v2547
        %2877 = vmatprep.subr.bf16.mxu0 %v2551
        %2878 = vmatpush1.bf16.msra.mxu0 %v2550
        %2879 = vmatprep.subr.bf16.mxu0 %v2554
        %2880 = vmatpush1.bf16.msra.mxu0 %v2553
        %2881 = vmatprep.subr.bf16.mxu0 %v2557
        %2882 = vmatpush1.bf16.msra.mxu0 %v2556
        %2883 = vmatprep.subr.bf16.mxu0 %v2560
        %2884 = vmatpush1.bf16.msra.mxu0 %v2559
        %2885 = vmatprep.subr.bf16.mxu0 %v2563
        %2886 = vmatpush1.bf16.msra.mxu0 %v2562
        %2887 = vmatprep.subr.bf16.mxu0 %v2566
        %2888 = vmatpush1.bf16.msra.mxu0 %v2565
        %2889 = vmatprep.mubr.bf16.mxu0 %v1946
        %2890 = vmatmul.mubr.bf16.gmra.mrb[0].mxu0 %v1945
        %v2891 = vpop.f32.mrb[0].mxu0
        %v2892 = vadd.f32 %v2699, %v2891
        %v2893 = vpop.f32.mrb[0].mxu0
        %v2894 = vadd.f32 %v2701, %v2893
        %v2895 = vpop.f32.mrb[0].mxu0
        %v2896 = vadd.f32 %v2703, %v2895
        %v2897 = vpop.f32.mrb[0].mxu0
        %v2898 = vadd.f32 %v2705, %v2897
        %2899 = vmatprep.mubr.bf16.mxu0 %v1950
        %2900 = vmatmul.mubr.bf16.gmra.mrb[0].mxu0 %v1949
        %v2901 = vpop.f32.mrb[0].mxu0
        %v2902 = vadd.f32 %v2709, %v2901
        %v2903 = vpop.f32.mrb[0].mxu0
        %v2904 = vadd.f32 %v2711, %v2903
        %v2905 = vpop.f32.mrb[0].mxu0
        %v2906 = vadd.f32 %v2713, %v2905
        %v2907 = vpop.f32.mrb[0].mxu0
        %v2908 = vadd.f32 %v2715, %v2907
        %2909 = vmatprep.mubr.bf16.mxu0 %v1954
        %2910 = vmatmul.mubr.bf16.gmra.mrb[0].mxu0 %v1953
        %v2911 = vpop.f32.mrb[0].mxu0
        %v2912 = vadd.f32 %v2719, %v2911
        %v2913 = vpop.f32.mrb[0].mxu0
        %v2914 = vadd.f32 %v2721, %v2913
        %v2915 = vpop.f32.mrb[0].mxu0
        %v2916 = vadd.f32 %v2723, %v2915
        %v2917 = vpop.f32.mrb[0].mxu0
        %v2918 = vadd.f32 %v2725, %v2917
        %2919 = vmatprep.mubr.bf16.mxu0 %v1958
        %2920 = vmatmul.mubr.bf16.gmra.mrb[0].mxu0 %v1957
        %v2921 = vpop.f32.mrb[0].mxu0
        %v2922 = vadd.f32 %v2729, %v2921
        %v2923 = vpop.f32.mrb[0].mxu0
        %v2924 = vadd.f32 %v2731, %v2923
        %v2925 = vpop.f32.mrb[0].mxu0
        %v2926 = vadd.f32 %v2733, %v2925
        %v2927 = vpop.f32.mrb[0].mxu0
        %v2928 = vadd.f32 %v2735, %v2927
        %2929 = vmatprep.mubr.bf16.mxu0 %v1962
        %2930 = vmatmul.mubr.bf16.gmra.mrb[0].mxu0 %v1961
        %v2931 = vpop.f32.mrb[0].mxu0
        %v2932 = vadd.f32 %v2739, %v2931
        %v2933 = vpop.f32.mrb[0].mxu0
        %v2934 = vadd.f32 %v2741, %v2933
        %v2935 = vpop.f32.mrb[0].mxu0
        %v2936 = vadd.f32 %v2743, %v2935
        %v2937 = vpop.f32.mrb[0].mxu0
        %v2938 = vadd.f32 %v2745, %v2937
        %2939 = vmatprep.mubr.bf16.mxu0 %v1966
        %2940 = vmatmul.mubr.bf16.gmra.mrb[0].mxu0 %v1965
        %v2941 = vpop.f32.mrb[0].mxu0
        %v2942 = vadd.f32 %v2749, %v2941
        %v2943 = vpop.f32.mrb[0].mxu0
        %v2944 = vadd.f32 %v2751, %v2943
        %v2945 = vpop.f32.mrb[0].mxu0
        %v2946 = vadd.f32 %v2753, %v2945
        %v2947 = vpop.f32.mrb[0].mxu0
        %v2948 = vadd.f32 %v2755, %v2947
        %2949 = vmatprep.mubr.bf16.mxu0 %v1970
        %2950 = vmatmul.mubr.bf16.gmra.mrb[0].mxu0 %v1969
        %v2951 = vpop.f32.mrb[0].mxu0
        %v2952 = vadd.f32 %v2759, %v2951
        %v2953 = vpop.f32.mrb[0].mxu0
        %v2954 = vadd.f32 %v2761, %v2953
        %v2955 = vpop.f32.mrb[0].mxu0
        %v2956 = vadd.f32 %v2763, %v2955
        %v2957 = vpop.f32.mrb[0].mxu0
        %v2958 = vadd.f32 %v2765, %v2957
        %2959 = vmatprep.mubr.bf16.mxu0 %v1974
        %2960 = vmatmul.mubr.bf16.gmra.mrb[0].mxu0 %v1973
        %v2961 = vpop.f32.mrb[0].mxu0
        %v2962 = vadd.f32 %v2769, %v2961
        %v2963 = vpop.f32.mrb[0].mxu0
        %v2964 = vadd.f32 %v2771, %v2963
        %v2965 = vpop.f32.mrb[0].mxu0
        %v2966 = vadd.f32 %v2773, %v2965
        %v2967 = vpop.f32.mrb[0].mxu0
        %v2968 = vadd.f32 %v2775, %v2967
        %2969 = vmatprep.mubr.bf16.mxu0 %v1978
        %2970 = vmatmul.mubr.bf16.gmra.mrb[0].mxu0 %v1977
        %v2971 = vpop.f32.mrb[0].mxu0
        %v2972 = vadd.f32 %v2779, %v2971
        %v2973 = vpop.f32.mrb[0].mxu0
        %v2974 = vadd.f32 %v2781, %v2973
        %v2975 = vpop.f32.mrb[0].mxu0
        %v2976 = vadd.f32 %v2783, %v2975
        %v2977 = vpop.f32.mrb[0].mxu0
        %v2978 = vadd.f32 %v2785, %v2977
        %2979 = vmatprep.mubr.bf16.mxu0 %v1982
        %2980 = vmatmul.mubr.bf16.gmra.mrb[0].mxu0 %v1981
        %v2981 = vpop.f32.mrb[0].mxu0
        %v2982 = vadd.f32 %v2789, %v2981
        %v2983 = vpop.f32.mrb[0].mxu0
        %v2984 = vadd.f32 %v2791, %v2983
        %v2985 = vpop.f32.mrb[0].mxu0
        %v2986 = vadd.f32 %v2793, %v2985
        %v2987 = vpop.f32.mrb[0].mxu0
        %v2988 = vadd.f32 %v2795, %v2987
        %2989 = vmatprep.mubr.bf16.mxu0 %v1986
        %2990 = vmatmul.mubr.bf16.gmra.mrb[0].mxu0 %v1985
        %v2991 = vpop.f32.mrb[0].mxu0
        %v2992 = vadd.f32 %v2799, %v2991
        %v2993 = vpop.f32.mrb[0].mxu0
        %v2994 = vadd.f32 %v2801, %v2993
        %v2995 = vpop.f32.mrb[0].mxu0
        %v2996 = vadd.f32 %v2803, %v2995
        %v2997 = vpop.f32.mrb[0].mxu0
        %v2998 = vadd.f32 %v2805, %v2997
        %2999 = vmatprep.mubr.bf16.mxu0 %v1990
        %3000 = vmatmul.mubr.bf16.gmra.mrb[0].mxu0 %v1989
        %v3001 = vpop.f32.mrb[0].mxu0
        %v3002 = vadd.f32 %v2809, %v3001
        %v3003 = vpop.f32.mrb[0].mxu0
        %v3004 = vadd.f32 %v2811, %v3003
        %v3005 = vpop.f32.mrb[0].mxu0
        %v3006 = vadd.f32 %v2813, %v3005
        %v3007 = vpop.f32.mrb[0].mxu0
        %v3008 = vadd.f32 %v2815, %v3007
        %3009 = vmatprep.mubr.bf16.mxu0 %v1994
        %3010 = vmatmul.mubr.bf16.gmra.mrb[0].mxu0 %v1993
        %v3011 = vpop.f32.mrb[0].mxu0
        %v3012 = vadd.f32 %v2819, %v3011
        %v3013 = vpop.f32.mrb[0].mxu0
        %v3014 = vadd.f32 %v2821, %v3013
        %v3015 = vpop.f32.mrb[0].mxu0
        %v3016 = vadd.f32 %v2823, %v3015
        %v3017 = vpop.f32.mrb[0].mxu0
        %v3018 = vadd.f32 %v2825, %v3017
        %3019 = vmatprep.mubr.bf16.mxu0 %v1998
        %3020 = vmatmul.mubr.bf16.gmra.mrb[0].mxu0 %v1997
        %v3021 = vpop.f32.mrb[0].mxu0
        %v3022 = vadd.f32 %v2829, %v3021
        %v3023 = vpop.f32.mrb[0].mxu0
        %v3024 = vadd.f32 %v2831, %v3023
        %v3025 = vpop.f32.mrb[0].mxu0
        %v3026 = vadd.f32 %v2833, %v3025
        %v3027 = vpop.f32.mrb[0].mxu0
        %v3028 = vadd.f32 %v2835, %v3027
        %3029 = vmatprep.mubr.bf16.mxu0 %v2002
        %3030 = vmatmul.mubr.bf16.gmra.mrb[0].mxu0 %v2001
        %v3031 = vpop.f32.mrb[0].mxu0
        %v3032 = vadd.f32 %v2839, %v3031
        %v3033 = vpop.f32.mrb[0].mxu0
        %v3034 = vadd.f32 %v2841, %v3033
        %v3035 = vpop.f32.mrb[0].mxu0
        %v3036 = vadd.f32 %v2843, %v3035
        %v3037 = vpop.f32.mrb[0].mxu0
        %v3038 = vadd.f32 %v2845, %v3037
        %3039 = vmatprep.mubr.bf16.mxu0 %v2006
        %3040 = vmatmul.mubr.bf16.gmra.mrb[0].mxu0 %v2005
        %v3041 = vpop.f32.mrb[0].mxu0
        %v3042 = vadd.f32 %v2849, %v3041
        %v3043 = vpop.f32.mrb[0].mxu0
        %v3044 = vadd.f32 %v2851, %v3043
        %v3045 = vpop.f32.mrb[0].mxu0
        %v3046 = vadd.f32 %v2853, %v3045
        %v3047 = vpop.f32.mrb[0].mxu0
        %v3048 = vadd.f32 %v2855, %v3047
        %3049 = vdwg.mxu0
        %3050 = vmatprep.subr.bf16.mxu0 0
        %3051 = vmatpush1.bf16.msra.mxu0 %v2474
        %3052 = vmatprep.subr.bf16.mxu0 0
        %3053 = vmatpush1.bf16.msra.mxu0 %v2477
        %3054 = vmatprep.subr.bf16.mxu0 0
        %3055 = vmatpush1.bf16.msra.mxu0 %v2480
        %3056 = vmatprep.subr.bf16.mxu0 0
        %3057 = vmatpush1.bf16.msra.mxu0 %v2483
        %3058 = vmatprep.subr.bf16.mxu0 0
        %3059 = vmatpush1.bf16.msra.mxu0 %v2486
        %3060 = vmatprep.subr.bf16.mxu0 0
        %3061 = vmatpush1.bf16.msra.mxu0 %v2489
        %3062 = vmatprep.subr.bf16.mxu0 0
        %3063 = vmatpush1.bf16.msra.mxu0 %v2492
        %3064 = vmatprep.subr.bf16.mxu0 0
        %3065 = vmatpush1.bf16.msra.mxu0 %v2495
        %3066 = vmatprep.subr.bf16.mxu0 0
        %3067 = vmatpush1.bf16.msra.mxu0 %v2498
        %3068 = vmatprep.subr.bf16.mxu0 0
        %3069 = vmatpush1.bf16.msra.mxu0 %v2501
        %3070 = vmatprep.subr.bf16.mxu0 0
        %3071 = vmatpush1.bf16.msra.mxu0 %v2504
        %3072 = vmatprep.subr.bf16.mxu0 0
        %3073 = vmatpush1.bf16.msra.mxu0 %v2507
        %3074 = vmatprep.subr.bf16.mxu0 0
        %3075 = vmatpush1.bf16.msra.mxu0 %v2510
        %3076 = vmatprep.subr.bf16.mxu0 0
        %3077 = vmatpush1.bf16.msra.mxu0 %v2513
        %3078 = vmatprep.subr.bf16.mxu0 0
        %3079 = vmatpush1.bf16.msra.mxu0 %v2516
        %3080 = vmatprep.subr.bf16.mxu0 0
        %3081 = vmatpush1.bf16.msra.mxu0 %v2519
        %3082 = vmatprep.mubr.bf16.mxu0 %v1944
        %3083 = vmatmul.mubr.bf16.gmra.mrb[0].mxu0 %v1943
        %v3084 = vpop.f32.mrb[0].mxu0
        %v3085 = vadd.f32 %v2148, %v3084
        %v3086 = vpop.f32.mrb[0].mxu0
        %v3087 = vpop.f32.mrb[0].mxu0
        %v3088 = vadd.f32 %v2148, %v3087
        %v3089 = vpop.f32.mrb[0].mxu0
        %3090 = vmatprep.mubr.bf16.mxu0 %v1948
        %3091 = vmatmul.mubr.bf16.gmra.mrb[0].mxu0 %v1947
        %v3092 = vpop.f32.mrb[0].mxu0
        %v3093 = vadd.f32 %v2148, %v3092
        %v3094 = vpop.f32.mrb[0].mxu0
        %v3095 = vpop.f32.mrb[0].mxu0
        %v3096 = vadd.f32 %v2148, %v3095
        %v3097 = vpop.f32.mrb[0].mxu0
        %3098 = vmatprep.mubr.bf16.mxu0 %v1952
        %3099 = vmatmul.mubr.bf16.gmra.mrb[0].mxu0 %v1951
        %v3100 = vpop.f32.mrb[0].mxu0
        %v3101 = vadd.f32 %v2148, %v3100
        %v3102 = vpop.f32.mrb[0].mxu0
        %v3103 = vpop.f32.mrb[0].mxu0
        %v3104 = vadd.f32 %v2148, %v3103
        %v3105 = vpop.f32.mrb[0].mxu0
        %3106 = vmatprep.mubr.bf16.mxu0 %v1956
        %3107 = vmatmul.mubr.bf16.gmra.mrb[0].mxu0 %v1955
        %v3108 = vpop.f32.mrb[0].mxu0
        %v3109 = vadd.f32 %v2148, %v3108
        %v3110 = vpop.f32.mrb[0].mxu0
        %v3111 = vpop.f32.mrb[0].mxu0
        %v3112 = vadd.f32 %v2148, %v3111
        %v3113 = vpop.f32.mrb[0].mxu0
        %3114 = vmatprep.mubr.bf16.mxu0 %v1960
        %3115 = vmatmul.mubr.bf16.gmra.mrb[0].mxu0 %v1959
        %v3116 = vpop.f32.mrb[0].mxu0
        %v3117 = vadd.f32 %v2148, %v3116
        %v3118 = vpop.f32.mrb[0].mxu0
        %v3119 = vpop.f32.mrb[0].mxu0
        %v3120 = vadd.f32 %v2148, %v3119
        %v3121 = vpop.f32.mrb[0].mxu0
        %3122 = vmatprep.mubr.bf16.mxu0 %v1964
        %3123 = vmatmul.mubr.bf16.gmra.mrb[0].mxu0 %v1963
        %v3124 = vpop.f32.mrb[0].mxu0
        %v3125 = vadd.f32 %v2148, %v3124
        %v3126 = vpop.f32.mrb[0].mxu0
        %v3127 = vpop.f32.mrb[0].mxu0
        %v3128 = vadd.f32 %v2148, %v3127
        %v3129 = vpop.f32.mrb[0].mxu0
        %3130 = vmatprep.mubr.bf16.mxu0 %v1968
        %3131 = vmatmul.mubr.bf16.gmra.mrb[0].mxu0 %v1967
        %v3132 = vpop.f32.mrb[0].mxu0
        %v3133 = vadd.f32 %v2148, %v3132
        %v3134 = vpop.f32.mrb[0].mxu0
        %v3135 = vpop.f32.mrb[0].mxu0
        %v3136 = vadd.f32 %v2148, %v3135
        %v3137 = vpop.f32.mrb[0].mxu0
        %3138 = vmatprep.mubr.bf16.mxu0 %v1972
        %3139 = vmatmul.mubr.bf16.gmra.mrb[0].mxu0 %v1971
        %v3140 = vpop.f32.mrb[0].mxu0
        %v3141 = vadd.f32 %v2148, %v3140
        %v3142 = vpop.f32.mrb[0].mxu0
        %v3143 = vpop.f32.mrb[0].mxu0
        %v3144 = vadd.f32 %v2148, %v3143
        %v3145 = vpop.f32.mrb[0].mxu0
        %3146 = vmatprep.mubr.bf16.mxu0 %v1976
        %3147 = vmatmul.mubr.bf16.gmra.mrb[0].mxu0 %v1975
        %v3148 = vpop.f32.mrb[0].mxu0
        %v3149 = vadd.f32 %v2148, %v3148
        %v3150 = vpop.f32.mrb[0].mxu0
        %v3151 = vpop.f32.mrb[0].mxu0
        %v3152 = vadd.f32 %v2148, %v3151
        %v3153 = vpop.f32.mrb[0].mxu0
        %3154 = vmatprep.mubr.bf16.mxu0 %v1980
        %3155 = vmatmul.mubr.bf16.gmra.mrb[0].mxu0 %v1979
        %v3156 = vpop.f32.mrb[0].mxu0
        %v3157 = vadd.f32 %v2148, %v3156
        %v3158 = vpop.f32.mrb[0].mxu0
        %v3159 = vpop.f32.mrb[0].mxu0
        %v3160 = vadd.f32 %v2148, %v3159
        %v3161 = vpop.f32.mrb[0].mxu0
        %3162 = vmatprep.mubr.bf16.mxu0 %v1984
        %3163 = vmatmul.mubr.bf16.gmra.mrb[0].mxu0 %v1983
        %v3164 = vpop.f32.mrb[0].mxu0
        %v3165 = vadd.f32 %v2148, %v3164
        %v3166 = vpop.f32.mrb[0].mxu0
        %v3167 = vpop.f32.mrb[0].mxu0
        %v3168 = vadd.f32 %v2148, %v3167
        %v3169 = vpop.f32.mrb[0].mxu0
        %3170 = vmatprep.mubr.bf16.mxu0 %v1988
        %3171 = vmatmul.mubr.bf16.gmra.mrb[0].mxu0 %v1987
        %v3172 = vpop.f32.mrb[0].mxu0
        %v3173 = vadd.f32 %v2148, %v3172
        %v3174 = vpop.f32.mrb[0].mxu0
        %v3175 = vpop.f32.mrb[0].mxu0
        %v3176 = vadd.f32 %v2148, %v3175
        %v3177 = vpop.f32.mrb[0].mxu0
        %3178 = vmatprep.mubr.bf16.mxu0 %v1992
        %3179 = vmatmul.mubr.bf16.gmra.mrb[0].mxu0 %v1991
        %v3180 = vpop.f32.mrb[0].mxu0
        %v3181 = vadd.f32 %v2148, %v3180
        %v3182 = vpop.f32.mrb[0].mxu0
        %v3183 = vpop.f32.mrb[0].mxu0
        %v3184 = vadd.f32 %v2148, %v3183
        %v3185 = vpop.f32.mrb[0].mxu0
        %3186 = vmatprep.mubr.bf16.mxu0 %v1996
        %3187 = vmatmul.mubr.bf16.gmra.mrb[0].mxu0 %v1995
        %v3188 = vpop.f32.mrb[0].mxu0
        %v3189 = vadd.f32 %v2148, %v3188
        %v3190 = vpop.f32.mrb[0].mxu0
        %v3191 = vpop.f32.mrb[0].mxu0
        %v3192 = vadd.f32 %v2148, %v3191
        %v3193 = vpop.f32.mrb[0].mxu0
        %3194 = vmatprep.mubr.bf16.mxu0 %v2000
        %3195 = vmatmul.mubr.bf16.gmra.mrb[0].mxu0 %v1999
        %v3196 = vpop.f32.mrb[0].mxu0
        %v3197 = vadd.f32 %v2148, %v3196
        %v3198 = vpop.f32.mrb[0].mxu0
        %v3199 = vpop.f32.mrb[0].mxu0
        %v3200 = vadd.f32 %v2148, %v3199
        %v3201 = vpop.f32.mrb[0].mxu0
        %3202 = vmatprep.mubr.bf16.mxu0 %v2004
        %3203 = vmatmul.mubr.bf16.gmra.mrb[0].mxu0 %v2003
        %v3204 = vpop.f32.mrb[0].mxu0
        %v3205 = vadd.f32 %v2148, %v3204
        %v3206 = vpop.f32.mrb[0].mxu0
        %v3207 = vpop.f32.mrb[0].mxu0
        %v3208 = vadd.f32 %v2148, %v3207
        %v3209 = vpop.f32.mrb[0].mxu0
        %3210 = vdwg.mxu0
        %3211 = vmatprep.subr.bf16.mxu0 0
        %3212 = vmatpush1.bf16.msra.mxu0 %v2522
        %3213 = vmatprep.subr.bf16.mxu0 0
        %3214 = vmatpush1.bf16.msra.mxu0 %v2525
        %3215 = vmatprep.subr.bf16.mxu0 0
        %3216 = vmatpush1.bf16.msra.mxu0 %v2528
        %3217 = vmatprep.subr.bf16.mxu0 0
        %3218 = vmatpush1.bf16.msra.mxu0 %v2531
        %3219 = vmatprep.subr.bf16.mxu0 0
        %3220 = vmatpush1.bf16.msra.mxu0 %v2534
        %3221 = vmatprep.subr.bf16.mxu0 0
        %3222 = vmatpush1.bf16.msra.mxu0 %v2537
        %3223 = vmatprep.subr.bf16.mxu0 0
        %3224 = vmatpush1.bf16.msra.mxu0 %v2540
        %3225 = vmatprep.subr.bf16.mxu0 0
        %3226 = vmatpush1.bf16.msra.mxu0 %v2543
        %3227 = vmatprep.subr.bf16.mxu0 0
        %3228 = vmatpush1.bf16.msra.mxu0 %v2546
        %3229 = vmatprep.subr.bf16.mxu0 0
        %3230 = vmatpush1.bf16.msra.mxu0 %v2549
        %3231 = vmatprep.subr.bf16.mxu0 0
        %3232 = vmatpush1.bf16.msra.mxu0 %v2552
        %3233 = vmatprep.subr.bf16.mxu0 0
        %3234 = vmatpush1.bf16.msra.mxu0 %v2555
        %3235 = vmatprep.subr.bf16.mxu0 0
        %3236 = vmatpush1.bf16.msra.mxu0 %v2558
        %3237 = vmatprep.subr.bf16.mxu0 0
        %3238 = vmatpush1.bf16.msra.mxu0 %v2561
        %3239 = vmatprep.subr.bf16.mxu0 0
        %3240 = vmatpush1.bf16.msra.mxu0 %v2564
        %3241 = vmatprep.subr.bf16.mxu0 0
        %3242 = vmatpush1.bf16.msra.mxu0 %v2567
        %3243 = vmatprep.mubr.bf16.mxu0 %v1946
        %3244 = vmatmul.mubr.bf16.gmra.mrb[0].mxu0 %v1945
        %v3245 = vpop.f32.mrb[0].mxu0
        %v3246 = vadd.f32 %v3085, %v3245
        %v3247 = vpop.f32.mrb[0].mxu0
        %v3248 = vpop.f32.mrb[0].mxu0
        %v3249 = vadd.f32 %v3088, %v3248
        %v3250 = vpop.f32.mrb[0].mxu0
        %3251 = vmatprep.mubr.bf16.mxu0 %v1950
        %3252 = vmatmul.mubr.bf16.gmra.mrb[0].mxu0 %v1949
        %v3253 = vpop.f32.mrb[0].mxu0
        %v3254 = vadd.f32 %v3093, %v3253
        %v3255 = vpop.f32.mrb[0].mxu0
        %v3256 = vpop.f32.mrb[0].mxu0
        %v3257 = vadd.f32 %v3096, %v3256
        %v3258 = vpop.f32.mrb[0].mxu0
        %3259 = vmatprep.mubr.bf16.mxu0 %v1954
        %3260 = vmatmul.mubr.bf16.gmra.mrb[0].mxu0 %v1953
        %v3261 = vpop.f32.mrb[0].mxu0
        %v3262 = vadd.f32 %v3101, %v3261
        %v3263 = vpop.f32.mrb[0].mxu0
        %v3264 = vpop.f32.mrb[0].mxu0
        %v3265 = vadd.f32 %v3104, %v3264
        %v3266 = vpop.f32.mrb[0].mxu0
        %3267 = vmatprep.mubr.bf16.mxu0 %v1958
        %3268 = vmatmul.mubr.bf16.gmra.mrb[0].mxu0 %v1957
        %v3269 = vpop.f32.mrb[0].mxu0
        %v3270 = vadd.f32 %v3109, %v3269
        %v3271 = vpop.f32.mrb[0].mxu0
        %v3272 = vpop.f32.mrb[0].mxu0
        %v3273 = vadd.f32 %v3112, %v3272
        %v3274 = vpop.f32.mrb[0].mxu0
        %3275 = vmatprep.mubr.bf16.mxu0 %v1962
        %3276 = vmatmul.mubr.bf16.gmra.mrb[0].mxu0 %v1961
        %v3277 = vpop.f32.mrb[0].mxu0
        %v3278 = vadd.f32 %v3117, %v3277
        %v3279 = vpop.f32.mrb[0].mxu0
        %v3280 = vpop.f32.mrb[0].mxu0
        %v3281 = vadd.f32 %v3120, %v3280
        %v3282 = vpop.f32.mrb[0].mxu0
        %3283 = vmatprep.mubr.bf16.mxu0 %v1966
        %3284 = vmatmul.mubr.bf16.gmra.mrb[0].mxu0 %v1965
        %v3285 = vpop.f32.mrb[0].mxu0
        %v3286 = vadd.f32 %v3125, %v3285
        %v3287 = vpop.f32.mrb[0].mxu0
        %v3288 = vpop.f32.mrb[0].mxu0
        %v3289 = vadd.f32 %v3128, %v3288
        %v3290 = vpop.f32.mrb[0].mxu0
        %3291 = vmatprep.mubr.bf16.mxu0 %v1970
        %3292 = vmatmul.mubr.bf16.gmra.mrb[0].mxu0 %v1969
        %v3293 = vpop.f32.mrb[0].mxu0
        %v3294 = vadd.f32 %v3133, %v3293
        %v3295 = vpop.f32.mrb[0].mxu0
        %v3296 = vpop.f32.mrb[0].mxu0
        %v3297 = vadd.f32 %v3136, %v3296
        %v3298 = vpop.f32.mrb[0].mxu0
        %3299 = vmatprep.mubr.bf16.mxu0 %v1974
        %3300 = vmatmul.mubr.bf16.gmra.mrb[0].mxu0 %v1973
        %v3301 = vpop.f32.mrb[0].mxu0
        %v3302 = vadd.f32 %v3141, %v3301
        %v3303 = vpop.f32.mrb[0].mxu0
        %v3304 = vpop.f32.mrb[0].mxu0
        %v3305 = vadd.f32 %v3144, %v3304
        %v3306 = vpop.f32.mrb[0].mxu0
        %3307 = vmatprep.mubr.bf16.mxu0 %v1978
        %3308 = vmatmul.mubr.bf16.gmra.mrb[0].mxu0 %v1977
        %v3309 = vpop.f32.mrb[0].mxu0
        %v3310 = vadd.f32 %v3149, %v3309
        %v3311 = vpop.f32.mrb[0].mxu0
        %v3312 = vpop.f32.mrb[0].mxu0
        %v3313 = vadd.f32 %v3152, %v3312
        %v3314 = vpop.f32.mrb[0].mxu0
        %3315 = vmatprep.mubr.bf16.mxu0 %v1982
        %3316 = vmatmul.mubr.bf16.gmra.mrb[0].mxu0 %v1981
        %v3317 = vpop.f32.mrb[0].mxu0
        %v3318 = vadd.f32 %v3157, %v3317
        %v3319 = vpop.f32.mrb[0].mxu0
        %v3320 = vpop.f32.mrb[0].mxu0
        %v3321 = vadd.f32 %v3160, %v3320
        %v3322 = vpop.f32.mrb[0].mxu0
        %3323 = vmatprep.mubr.bf16.mxu0 %v1986
        %3324 = vmatmul.mubr.bf16.gmra.mrb[0].mxu0 %v1985
        %v3325 = vpop.f32.mrb[0].mxu0
        %v3326 = vadd.f32 %v3165, %v3325
        %v3327 = vpop.f32.mrb[0].mxu0
        %v3328 = vpop.f32.mrb[0].mxu0
        %v3329 = vadd.f32 %v3168, %v3328
        %v3330 = vpop.f32.mrb[0].mxu0
        %3331 = vmatprep.mubr.bf16.mxu0 %v1990
        %3332 = vmatmul.mubr.bf16.gmra.mrb[0].mxu0 %v1989
        %v3333 = vpop.f32.mrb[0].mxu0
        %v3334 = vadd.f32 %v3173, %v3333
        %v3335 = vpop.f32.mrb[0].mxu0
        %v3336 = vpop.f32.mrb[0].mxu0
        %v3337 = vadd.f32 %v3176, %v3336
        %v3338 = vpop.f32.mrb[0].mxu0
        %3339 = vmatprep.mubr.bf16.mxu0 %v1994
        %3340 = vmatmul.mubr.bf16.gmra.mrb[0].mxu0 %v1993
        %v3341 = vpop.f32.mrb[0].mxu0
        %v3342 = vadd.f32 %v3181, %v3341
        %v3343 = vpop.f32.mrb[0].mxu0
        %v3344 = vpop.f32.mrb[0].mxu0
        %v3345 = vadd.f32 %v3184, %v3344
        %v3346 = vpop.f32.mrb[0].mxu0
        %3347 = vmatprep.mubr.bf16.mxu0 %v1998
        %3348 = vmatmul.mubr.bf16.gmra.mrb[0].mxu0 %v1997
        %v3349 = vpop.f32.mrb[0].mxu0
        %v3350 = vadd.f32 %v3189, %v3349
        %v3351 = vpop.f32.mrb[0].mxu0
        %v3352 = vpop.f32.mrb[0].mxu0
        %v3353 = vadd.f32 %v3192, %v3352
        %v3354 = vpop.f32.mrb[0].mxu0
        %3355 = vmatprep.mubr.bf16.mxu0 %v2002
        %3356 = vmatmul.mubr.bf16.gmra.mrb[0].mxu0 %v2001
        %v3357 = vpop.f32.mrb[0].mxu0
        %v3358 = vadd.f32 %v3197, %v3357
        %v3359 = vpop.f32.mrb[0].mxu0
        %v3360 = vpop.f32.mrb[0].mxu0
        %v3361 = vadd.f32 %v3200, %v3360
        %v3362 = vpop.f32.mrb[0].mxu0
        %3363 = vmatprep.mubr.bf16.mxu0 %v2006
        %3364 = vmatmul.mubr.bf16.gmra.mrb[0].mxu0 %v2005
        %v3365 = vpop.f32.mrb[0].mxu0
        %v3366 = vadd.f32 %v3205, %v3365
        %v3367 = vpop.f32.mrb[0].mxu0
        %v3368 = vpop.f32.mrb[0].mxu0
        %v3369 = vadd.f32 %v3208, %v3368
        %v3370 = vpop.f32.mrb[0].mxu0
        %3371 = vdwg.mxu0
        %3372 = vst [vmem:[#allocation2] sm:$0xff] %v2892
        %3373 = vst [vmem:[#allocation2 + $0x8] sm:$0xff] %v2894
        %3374 = vst [vmem:[#allocation2 + $0x10] sm:$0xff] %v3246
        %3375 = vst [vmem:[#allocation2 + $0x18] sm:$0xff] %v2896
        %3376 = vst [vmem:[#allocation2 + $0x20] sm:$0xff] %v2898
        %3377 = vst [vmem:[#allocation2 + $0x28] sm:$0xff] %v3249
        %3378 = vst [vmem:[#allocation2 + $0x30] sm:$0xff] %v2902
        %3379 = vst [vmem:[#allocation2 + $0x38] sm:$0xff] %v2904
        %3380 = vst [vmem:[#allocation2 + $0x40] sm:$0xff] %v3254
        %3381 = vst [vmem:[#allocation2 + $0x48] sm:$0xff] %v2906
        %3382 = vst [vmem:[#allocation2 + $0x50] sm:$0xff] %v2908
        %3383 = vst [vmem:[#allocation2 + $0x58] sm:$0xff] %v3257
        %3384 = vst [vmem:[#allocation2 + $0x60] sm:$0xff] %v2912
        %3385 = vst [vmem:[#allocation2 + $0x68] sm:$0xff] %v2914
        %3386 = vst [vmem:[#allocation2 + $0x70] sm:$0xff] %v3262
        %3387 = vst [vmem:[#allocation2 + $0x78] sm:$0xff] %v2916
        %3388 = vst [vmem:[#allocation2 + $0x80] sm:$0xff] %v2918
        %3389 = vst [vmem:[#allocation2 + $0x88] sm:$0xff] %v3265
        %3390 = vst [vmem:[#allocation2 + $0x90] sm:$0xff] %v2922
        %3391 = vst [vmem:[#allocation2 + $0x98] sm:$0xff] %v2924
        %3392 = vst [vmem:[#allocation2 + $0xa0] sm:$0xff] %v3270
        %3393 = vst [vmem:[#allocation2 + $0xa8] sm:$0xff] %v2926
        %3394 = vst [vmem:[#allocation2 + $0xb0] sm:$0xff] %v2928
        %3395 = vst [vmem:[#allocation2 + $0xb8] sm:$0xff] %v3273
        %3396 = vst [vmem:[#allocation2 + $0xc0] sm:$0xff] %v2932
        %3397 = vst [vmem:[#allocation2 + $0xc8] sm:$0xff] %v2934
        %3398 = vst [vmem:[#allocation2 + $0xd0] sm:$0xff] %v3278
        %3399 = vst [vmem:[#allocation2 + $0xd8] sm:$0xff] %v2936
        %3400 = vst [vmem:[#allocation2 + $0xe0] sm:$0xff] %v2938
        %3401 = vst [vmem:[#allocation2 + $0xe8] sm:$0xff] %v3281
        %3402 = vst [vmem:[#allocation2 + $0xf0] sm:$0xff] %v2942
        %3403 = vst [vmem:[#allocation2 + $0xf8] sm:$0xff] %v2944
        %3404 = vst [vmem:[#allocation2 + $0x100] sm:$0xff] %v3286
        %3405 = vst [vmem:[#allocation2 + $0x108] sm:$0xff] %v2946
        %3406 = vst [vmem:[#allocation2 + $0x110] sm:$0xff] %v2948
        %3407 = vst [vmem:[#allocation2 + $0x118] sm:$0xff] %v3289
        %3408 = vst [vmem:[#allocation2 + $0x120] sm:$0xff] %v2952
        %3409 = vst [vmem:[#allocation2 + $0x128] sm:$0xff] %v2954
        %3410 = vst [vmem:[#allocation2 + $0x130] sm:$0xff] %v3294
        %3411 = vst [vmem:[#allocation2 + $0x138] sm:$0xff] %v2956
        %3412 = vst [vmem:[#allocation2 + $0x140] sm:$0xff] %v2958
        %3413 = vst [vmem:[#allocation2 + $0x148] sm:$0xff] %v3297
        %3414 = vst [vmem:[#allocation2 + $0x150] sm:$0xff] %v2962
        %3415 = vst [vmem:[#allocation2 + $0x158] sm:$0xff] %v2964
        %3416 = vst [vmem:[#allocation2 + $0x160] sm:$0xff] %v3302
        %3417 = vst [vmem:[#allocation2 + $0x168] sm:$0xff] %v2966
        %3418 = vst [vmem:[#allocation2 + $0x170] sm:$0xff] %v2968
        %3419 = vst [vmem:[#allocation2 + $0x178] sm:$0xff] %v3305
        %3420 = vst [vmem:[#allocation2 + $0x180] sm:$0xff] %v2972
        %3421 = vst [vmem:[#allocation2 + $0x188] sm:$0xff] %v2974
        %3422 = vst [vmem:[#allocation2 + $0x190] sm:$0xff] %v3310
        %3423 = vst [vmem:[#allocation2 + $0x198] sm:$0xff] %v2976
        %3424 = vst [vmem:[#allocation2 + $0x1a0] sm:$0xff] %v2978
        %3425 = vst [vmem:[#allocation2 + $0x1a8] sm:$0xff] %v3313
        %3426 = vst [vmem:[#allocation2 + $0x1b0] sm:$0xff] %v2982
        %3427 = vst [vmem:[#allocation2 + $0x1b8] sm:$0xff] %v2984
        %3428 = vst [vmem:[#allocation2 + $0x1c0] sm:$0xff] %v3318
        %3429 = vst [vmem:[#allocation2 + $0x1c8] sm:$0xff] %v2986
        %3430 = vst [vmem:[#allocation2 + $0x1d0] sm:$0xff] %v2988
        %3431 = vst [vmem:[#allocation2 + $0x1d8] sm:$0xff] %v3321
        %3432 = vst [vmem:[#allocation2 + $0x1e0] sm:$0xff] %v2992
        %3433 = vst [vmem:[#allocation2 + $0x1e8] sm:$0xff] %v2994
        %3434 = vst [vmem:[#allocation2 + $0x1f0] sm:$0xff] %v3326
        %3435 = vst [vmem:[#allocation2 + $0x1f8] sm:$0xff] %v2996
        %3436 = vst [vmem:[#allocation2 + $0x200] sm:$0xff] %v2998
        %3437 = vst [vmem:[#allocation2 + $0x208] sm:$0xff] %v3329
        %3438 = vst [vmem:[#allocation2 + $0x210] sm:$0xff] %v3002
        %3439 = vst [vmem:[#allocation2 + $0x218] sm:$0xff] %v3004
        %3440 = vst [vmem:[#allocation2 + $0x220] sm:$0xff] %v3334
        %3441 = vst [vmem:[#allocation2 + $0x228] sm:$0xff] %v3006
        %3442 = vst [vmem:[#allocation2 + $0x230] sm:$0xff] %v3008
        %3443 = vst [vmem:[#allocation2 + $0x238] sm:$0xff] %v3337
        %3444 = vst [vmem:[#allocation2 + $0x240] sm:$0xff] %v3012
        %3445 = vst [vmem:[#allocation2 + $0x248] sm:$0xff] %v3014
        %3446 = vst [vmem:[#allocation2 + $0x250] sm:$0xff] %v3342
        %3447 = vst [vmem:[#allocation2 + $0x258] sm:$0xff] %v3016
        %3448 = vst [vmem:[#allocation2 + $0x260] sm:$0xff] %v3018
        %3449 = vst [vmem:[#allocation2 + $0x268] sm:$0xff] %v3345
        %3450 = vst [vmem:[#allocation2 + $0x270] sm:$0xff] %v3022
        %3451 = vst [vmem:[#allocation2 + $0x278] sm:$0xff] %v3024
        %3452 = vst [vmem:[#allocation2 + $0x280] sm:$0xff] %v3350
        %3453 = vst [vmem:[#allocation2 + $0x288] sm:$0xff] %v3026
        %3454 = vst [vmem:[#allocation2 + $0x290] sm:$0xff] %v3028
        %3455 = vst [vmem:[#allocation2 + $0x298] sm:$0xff] %v3353
        %3456 = vst [vmem:[#allocation2 + $0x2a0] sm:$0xff] %v3032
        %3457 = vst [vmem:[#allocation2 + $0x2a8] sm:$0xff] %v3034
        %3458 = vst [vmem:[#allocation2 + $0x2b0] sm:$0xff] %v3358
        %3459 = vst [vmem:[#allocation2 + $0x2b8] sm:$0xff] %v3036
        %3460 = vst [vmem:[#allocation2 + $0x2c0] sm:$0xff] %v3038
        %3461 = vst [vmem:[#allocation2 + $0x2c8] sm:$0xff] %v3361
        %3462 = vst [vmem:[#allocation2 + $0x2d0] sm:$0xff] %v3042
        %3463 = vst [vmem:[#allocation2 + $0x2d8] sm:$0xff] %v3044
        %3464 = vst [vmem:[#allocation2 + $0x2e0] sm:$0xff] %v3366
        %3465 = vst [vmem:[#allocation2 + $0x2e8] sm:$0xff] %v3046
        %3466 = vst [vmem:[#allocation2 + $0x2f0] sm:$0xff] %v3048
        %3467 = vst [vmem:[#allocation2 + $0x2f8] sm:$0xff] %v3369
        %v3468 = vld [vmem:[#allocation6 + $0x10] sm:$0xff]
        %v3469 = vld [vmem:[#allocation6 + $0x18] sm:$0xff]
        %v3470 = vld [vmem:[#allocation6 + $0x40] sm:$0xff]
        %v3471 = vld [vmem:[#allocation6 + $0x48] sm:$0xff]
        %v3472 = vld [vmem:[#allocation6 + $0x70] sm:$0xff]
        %v3473 = vld [vmem:[#allocation6 + $0x78] sm:$0xff]
        %v3474 = vld [vmem:[#allocation6 + $0xa0] sm:$0xff]
        %v3475 = vld [vmem:[#allocation6 + $0xa8] sm:$0xff]
        %v3476 = vld [vmem:[#allocation6 + $0xd0] sm:$0xff]
        %v3477 = vld [vmem:[#allocation6 + $0xd8] sm:$0xff]
        %v3478 = vld [vmem:[#allocation6 + $0x100] sm:$0xff]
        %v3479 = vld [vmem:[#allocation6 + $0x108] sm:$0xff]
        %v3480 = vld [vmem:[#allocation6 + $0x130] sm:$0xff]
        %v3481 = vld [vmem:[#allocation6 + $0x138] sm:$0xff]
        %v3482 = vld [vmem:[#allocation6 + $0x160] sm:$0xff]
        %v3483 = vld [vmem:[#allocation6 + $0x168] sm:$0xff]
        %v3484 = vld [vmem:[#allocation6 + $0x190] sm:$0xff]
        %v3485 = vld [vmem:[#allocation6 + $0x198] sm:$0xff]
        %v3486 = vld [vmem:[#allocation6 + $0x1c0] sm:$0xff]
        %v3487 = vld [vmem:[#allocation6 + $0x1c8] sm:$0xff]
        %v3488 = vld [vmem:[#allocation6 + $0x1f0] sm:$0xff]
        %v3489 = vld [vmem:[#allocation6 + $0x1f8] sm:$0xff]
        %v3490 = vld [vmem:[#allocation6 + $0x220] sm:$0xff]
        %v3491 = vld [vmem:[#allocation6 + $0x228] sm:$0xff]
        %v3492 = vld [vmem:[#allocation6 + $0x250] sm:$0xff]
        %v3493 = vld [vmem:[#allocation6 + $0x258] sm:$0xff]
        %v3494 = vld [vmem:[#allocation6 + $0x280] sm:$0xff]
        %v3495 = vld [vmem:[#allocation6 + $0x288] sm:$0xff]
        %v3496 = vld [vmem:[#allocation6 + $0x2b0] sm:$0xff]
        %v3497 = vld [vmem:[#allocation6 + $0x2b8] sm:$0xff]
        %v3498 = vld [vmem:[#allocation6 + $0x2e0] sm:$0xff]
        %v3499 = vld [vmem:[#allocation6 + $0x2e8] sm:$0xff]
        %v3500 = vld [vmem:[#allocation6 + $0x310] sm:$0xff]
        %v3501 = vld [vmem:[#allocation6 + $0x318] sm:$0xff]
        %v3502 = vld [vmem:[#allocation6 + $0x340] sm:$0xff]
        %v3503 = vld [vmem:[#allocation6 + $0x348] sm:$0xff]
        %v3504 = vld [vmem:[#allocation6 + $0x370] sm:$0xff]
        %v3505 = vld [vmem:[#allocation6 + $0x378] sm:$0xff]
        %v3506 = vld [vmem:[#allocation6 + $0x3a0] sm:$0xff]
        %v3507 = vld [vmem:[#allocation6 + $0x3a8] sm:$0xff]
        %v3508 = vld [vmem:[#allocation6 + $0x3d0] sm:$0xff]
        %v3509 = vld [vmem:[#allocation6 + $0x3d8] sm:$0xff]
        %v3510 = vld [vmem:[#allocation6 + $0x400] sm:$0xff]
        %v3511 = vld [vmem:[#allocation6 + $0x408] sm:$0xff]
        %v3512 = vld [vmem:[#allocation6 + $0x430] sm:$0xff]
        %v3513 = vld [vmem:[#allocation6 + $0x438] sm:$0xff]
        %v3514 = vld [vmem:[#allocation6 + $0x460] sm:$0xff]
        %v3515 = vld [vmem:[#allocation6 + $0x468] sm:$0xff]
        %v3516 = vld [vmem:[#allocation6 + $0x490] sm:$0xff]
        %v3517 = vld [vmem:[#allocation6 + $0x498] sm:$0xff]
        %v3518 = vld [vmem:[#allocation6 + $0x4c0] sm:$0xff]
        %v3519 = vld [vmem:[#allocation6 + $0x4c8] sm:$0xff]
        %v3520 = vld [vmem:[#allocation6 + $0x4f0] sm:$0xff]
        %v3521 = vld [vmem:[#allocation6 + $0x4f8] sm:$0xff]
        %v3522 = vld [vmem:[#allocation6 + $0x520] sm:$0xff]
        %v3523 = vld [vmem:[#allocation6 + $0x528] sm:$0xff]
        %v3524 = vld [vmem:[#allocation6 + $0x550] sm:$0xff]
        %v3525 = vld [vmem:[#allocation6 + $0x558] sm:$0xff]
        %v3526 = vld [vmem:[#allocation6 + $0x580] sm:$0xff]
        %v3527 = vld [vmem:[#allocation6 + $0x588] sm:$0xff]
        %v3528 = vld [vmem:[#allocation6 + $0x5b0] sm:$0xff]
        %v3529 = vld [vmem:[#allocation6 + $0x5b8] sm:$0xff]
        %v3530 = vld [vmem:[#allocation6 + $0x5e0] sm:$0xff]
        %v3531 = vld [vmem:[#allocation6 + $0x5e8] sm:$0xff]
        %v3532 = vld [vmem:[#allocation6 + $0x610] sm:$0xff]
        %v3533 = vld [vmem:[#allocation6 + $0x618] sm:$0xff]
        %v3534 = vld [vmem:[#allocation6 + $0x640] sm:$0xff]
        %v3535 = vld [vmem:[#allocation6 + $0x648] sm:$0xff]
        %v3536 = vld [vmem:[#allocation6 + $0x670] sm:$0xff]
        %v3537 = vld [vmem:[#allocation6 + $0x678] sm:$0xff]
        %v3538 = vld [vmem:[#allocation6 + $0x6a0] sm:$0xff]
        %v3539 = vld [vmem:[#allocation6 + $0x6a8] sm:$0xff]
        %v3540 = vld [vmem:[#allocation6 + $0x6d0] sm:$0xff]
        %v3541 = vld [vmem:[#allocation6 + $0x6d8] sm:$0xff]
        %v3542 = vld [vmem:[#allocation6 + $0x700] sm:$0xff]
        %v3543 = vld [vmem:[#allocation6 + $0x708] sm:$0xff]
        %v3544 = vld [vmem:[#allocation6 + $0x730] sm:$0xff]
        %v3545 = vld [vmem:[#allocation6 + $0x738] sm:$0xff]
        %v3546 = vld [vmem:[#allocation6 + $0x760] sm:$0xff]
        %v3547 = vld [vmem:[#allocation6 + $0x768] sm:$0xff]
        %v3548 = vld [vmem:[#allocation6 + $0x790] sm:$0xff]
        %v3549 = vld [vmem:[#allocation6 + $0x798] sm:$0xff]
        %v3550 = vld [vmem:[#allocation6 + $0x7c0] sm:$0xff]
        %v3551 = vld [vmem:[#allocation6 + $0x7c8] sm:$0xff]
        %v3552 = vld [vmem:[#allocation6 + $0x7f0] sm:$0xff]
        %v3553 = vld [vmem:[#allocation6 + $0x7f8] sm:$0xff]
        %v3554 = vld [vmem:[#allocation6 + $0x820] sm:$0xff]
        %v3555 = vld [vmem:[#allocation6 + $0x828] sm:$0xff]
        %v3556 = vld [vmem:[#allocation6 + $0x850] sm:$0xff]
        %v3557 = vld [vmem:[#allocation6 + $0x858] sm:$0xff]
        %v3558 = vld [vmem:[#allocation6 + $0x880] sm:$0xff]
        %v3559 = vld [vmem:[#allocation6 + $0x888] sm:$0xff]
        %v3560 = vld [vmem:[#allocation6 + $0x8b0] sm:$0xff]
        %v3561 = vld [vmem:[#allocation6 + $0x8b8] sm:$0xff]
        %v3562 = vld [vmem:[#allocation6 + $0x8e0] sm:$0xff]
        %v3563 = vld [vmem:[#allocation6 + $0x8e8] sm:$0xff]
        %v3564 = vld [vmem:[#allocation8 + $0x4] sm:$0xf]
        %v3566 = vlaneseq
        %v3567 = vshrl.u32 %v3566, 7
        %v3568 = vsub.s32 0, %v3567
        %v3569 = vrot.slane %v3564, %v3568
        %v3570 = vlaneseq
        %v3571 = vshrl.u32 %v3570, 7
        %v3572 = vsub.s32 1, %v3571
        %v3573 = vrot.slane %v3564, %v3572
        %v3574 = vlaneseq
        %v3575 = vshrl.u32 %v3574, 7
        %v3576 = vsub.s32 2, %v3575
        %v3577 = vrot.slane %v3564, %v3576
        %v3578 = vlaneseq
        %v3579 = vshrl.u32 %v3578, 7
        %v3580 = vsub.s32 3, %v3579
        %v3581 = vrot.slane %v3564, %v3580
        %v3682 = vunpack.c.l.b16 %v3468
        %v3683 = vunpack.c.h.b16 %v3468
        %v3684 = vunpack.c.l.b16 %v3469
        %v3685 = vunpack.c.h.b16 %v3469
        %v3686 = vunpack.c.l.b16 %v3470
        %v3687 = vunpack.c.h.b16 %v3470
        %v3688 = vunpack.c.l.b16 %v3471
        %v3689 = vunpack.c.h.b16 %v3471
        %v3690 = vunpack.c.l.b16 %v3472
        %v3691 = vunpack.c.h.b16 %v3472
        %v3692 = vunpack.c.l.b16 %v3473
        %v3693 = vunpack.c.h.b16 %v3473
        %v3694 = vunpack.c.l.b16 %v3474
        %v3695 = vunpack.c.h.b16 %v3474
        %v3696 = vunpack.c.l.b16 %v3475
        %v3697 = vunpack.c.h.b16 %v3475
        %v3698 = vunpack.c.l.b16 %v3476
        %v3699 = vunpack.c.h.b16 %v3476
        %v3700 = vunpack.c.l.b16 %v3477
        %v3701 = vunpack.c.h.b16 %v3477
        %v3702 = vunpack.c.l.b16 %v3478
        %v3703 = vunpack.c.h.b16 %v3478
        %v3704 = vunpack.c.l.b16 %v3479
        %v3705 = vunpack.c.h.b16 %v3479
        %v3706 = vunpack.c.l.b16 %v3480
        %v3707 = vunpack.c.h.b16 %v3480
        %v3708 = vunpack.c.l.b16 %v3481
        %v3709 = vunpack.c.h.b16 %v3481
        %v3710 = vunpack.c.l.b16 %v3482
        %v3711 = vunpack.c.h.b16 %v3482
        %v3712 = vunpack.c.l.b16 %v3483
        %v3713 = vunpack.c.h.b16 %v3483
        %v3714 = vunpack.c.l.b16 %v3484
        %v3715 = vunpack.c.h.b16 %v3484
        %v3716 = vunpack.c.l.b16 %v3485
        %v3717 = vunpack.c.h.b16 %v3485
        %v3718 = vunpack.c.l.b16 %v3486
        %v3719 = vunpack.c.h.b16 %v3486
        %v3720 = vunpack.c.l.b16 %v3487
        %v3721 = vunpack.c.h.b16 %v3487
        %v3722 = vunpack.c.l.b16 %v3488
        %v3723 = vunpack.c.h.b16 %v3488
        %v3724 = vunpack.c.l.b16 %v3489
        %v3725 = vunpack.c.h.b16 %v3489
        %v3726 = vunpack.c.l.b16 %v3490
        %v3727 = vunpack.c.h.b16 %v3490
        %v3728 = vunpack.c.l.b16 %v3491
        %v3729 = vunpack.c.h.b16 %v3491
        %v3730 = vunpack.c.l.b16 %v3492
        %v3731 = vunpack.c.h.b16 %v3492
        %v3732 = vunpack.c.l.b16 %v3493
        %v3733 = vunpack.c.h.b16 %v3493
        %v3734 = vunpack.c.l.b16 %v3494
        %v3735 = vunpack.c.h.b16 %v3494
        %v3736 = vunpack.c.l.b16 %v3495
        %v3737 = vunpack.c.h.b16 %v3495
        %v3738 = vunpack.c.l.b16 %v3496
        %v3739 = vunpack.c.h.b16 %v3496
        %v3740 = vunpack.c.l.b16 %v3497
        %v3741 = vunpack.c.h.b16 %v3497
        %v3742 = vunpack.c.l.b16 %v3498
        %v3743 = vunpack.c.h.b16 %v3498
        %v3744 = vunpack.c.l.b16 %v3499
        %v3745 = vunpack.c.h.b16 %v3499
        %v3746 = vunpack.c.l.b16 %v3500
        %v3747 = vunpack.c.h.b16 %v3500
        %v3748 = vunpack.c.l.b16 %v3501
        %v3749 = vunpack.c.h.b16 %v3501
        %v3750 = vunpack.c.l.b16 %v3502
        %v3751 = vunpack.c.h.b16 %v3502
        %v3752 = vunpack.c.l.b16 %v3503
        %v3753 = vunpack.c.h.b16 %v3503
        %v3754 = vunpack.c.l.b16 %v3504
        %v3755 = vunpack.c.h.b16 %v3504
        %v3756 = vunpack.c.l.b16 %v3505
        %v3757 = vunpack.c.h.b16 %v3505
        %v3758 = vunpack.c.l.b16 %v3506
        %v3759 = vunpack.c.h.b16 %v3506
        %v3760 = vunpack.c.l.b16 %v3507
        %v3761 = vunpack.c.h.b16 %v3507
        %v3762 = vunpack.c.l.b16 %v3508
        %v3763 = vunpack.c.h.b16 %v3508
        %v3764 = vunpack.c.l.b16 %v3509
        %v3765 = vunpack.c.h.b16 %v3509
        %v3766 = vunpack.c.l.b16 %v3510
        %v3767 = vunpack.c.h.b16 %v3510
        %v3768 = vunpack.c.l.b16 %v3511
        %v3769 = vunpack.c.h.b16 %v3511
        %v3770 = vunpack.c.l.b16 %v3512
        %v3771 = vunpack.c.h.b16 %v3512
        %v3772 = vunpack.c.l.b16 %v3513
        %v3773 = vunpack.c.h.b16 %v3513
        %v3774 = vunpack.c.l.b16 %v3514
        %v3775 = vunpack.c.h.b16 %v3514
        %v3776 = vunpack.c.l.b16 %v3515
        %v3777 = vunpack.c.h.b16 %v3515
        %v3778 = vunpack.c.l.b16 %v3516
        %v3779 = vunpack.c.h.b16 %v3516
        %v3780 = vunpack.c.l.b16 %v3517
        %v3781 = vunpack.c.h.b16 %v3517
        %v3782 = vunpack.c.l.b16 %v3518
        %v3783 = vunpack.c.h.b16 %v3518
        %v3784 = vunpack.c.l.b16 %v3519
        %v3785 = vunpack.c.h.b16 %v3519
        %v3786 = vunpack.c.l.b16 %v3520
        %v3787 = vunpack.c.h.b16 %v3520
        %v3788 = vunpack.c.l.b16 %v3521
        %v3789 = vunpack.c.h.b16 %v3521
        %v3790 = vunpack.c.l.b16 %v3522
        %v3791 = vunpack.c.h.b16 %v3522
        %v3792 = vunpack.c.l.b16 %v3523
        %v3793 = vunpack.c.h.b16 %v3523
        %v3794 = vunpack.c.l.b16 %v3524
        %v3795 = vunpack.c.h.b16 %v3524
        %v3796 = vunpack.c.l.b16 %v3525
        %v3797 = vunpack.c.h.b16 %v3525
        %v3798 = vunpack.c.l.b16 %v3526
        %v3799 = vunpack.c.h.b16 %v3526
        %v3800 = vunpack.c.l.b16 %v3527
        %v3801 = vunpack.c.h.b16 %v3527
        %v3802 = vunpack.c.l.b16 %v3528
        %v3803 = vunpack.c.h.b16 %v3528
        %v3804 = vunpack.c.l.b16 %v3529
        %v3805 = vunpack.c.h.b16 %v3529
        %v3806 = vunpack.c.l.b16 %v3530
        %v3807 = vunpack.c.h.b16 %v3530
        %v3808 = vunpack.c.l.b16 %v3531
        %v3809 = vunpack.c.h.b16 %v3531
        %v3810 = vunpack.c.l.b16 %v3532
        %v3811 = vunpack.c.h.b16 %v3532
        %v3812 = vunpack.c.l.b16 %v3533
        %v3813 = vunpack.c.h.b16 %v3533
        %v3814 = vunpack.c.l.b16 %v3534
        %v3815 = vunpack.c.h.b16 %v3534
        %v3816 = vunpack.c.l.b16 %v3535
        %v3817 = vunpack.c.h.b16 %v3535
        %v3818 = vunpack.c.l.b16 %v3536
        %v3819 = vunpack.c.h.b16 %v3536
        %v3820 = vunpack.c.l.b16 %v3537
        %v3821 = vunpack.c.h.b16 %v3537
        %v3822 = vunpack.c.l.b16 %v3538
        %v3823 = vunpack.c.h.b16 %v3538
        %v3824 = vunpack.c.l.b16 %v3539
        %v3825 = vunpack.c.h.b16 %v3539
        %v3826 = vunpack.c.l.b16 %v3540
        %v3827 = vunpack.c.h.b16 %v3540
        %v3828 = vunpack.c.l.b16 %v3541
        %v3829 = vunpack.c.h.b16 %v3541
        %v3830 = vunpack.c.l.b16 %v3542
        %v3831 = vunpack.c.h.b16 %v3542
        %v3832 = vunpack.c.l.b16 %v3543
        %v3833 = vunpack.c.h.b16 %v3543
        %v3834 = vunpack.c.l.b16 %v3544
        %v3835 = vunpack.c.h.b16 %v3544
        %v3836 = vunpack.c.l.b16 %v3545
        %v3837 = vunpack.c.h.b16 %v3545
        %v3838 = vunpack.c.l.b16 %v3546
        %v3839 = vunpack.c.h.b16 %v3546
        %v3840 = vunpack.c.l.b16 %v3547
        %v3841 = vunpack.c.h.b16 %v3547
        %v3842 = vunpack.c.l.b16 %v3548
        %v3843 = vunpack.c.h.b16 %v3548
        %v3844 = vunpack.c.l.b16 %v3549
        %v3845 = vunpack.c.h.b16 %v3549
        %v3846 = vunpack.c.l.b16 %v3550
        %v3847 = vunpack.c.h.b16 %v3550
        %v3848 = vunpack.c.l.b16 %v3551
        %v3849 = vunpack.c.h.b16 %v3551
        %v3850 = vunpack.c.l.b16 %v3552
        %v3851 = vunpack.c.h.b16 %v3552
        %v3852 = vunpack.c.l.b16 %v3553
        %v3853 = vunpack.c.h.b16 %v3553
        %v3854 = vunpack.c.l.b16 %v3554
        %v3855 = vunpack.c.h.b16 %v3554
        %v3856 = vunpack.c.l.b16 %v3555
        %v3857 = vunpack.c.h.b16 %v3555
        %v3858 = vunpack.c.l.b16 %v3556
        %v3859 = vunpack.c.h.b16 %v3556
        %v3860 = vunpack.c.l.b16 %v3557
        %v3861 = vunpack.c.h.b16 %v3557
        %v3862 = vunpack.c.l.b16 %v3558
        %v3863 = vunpack.c.h.b16 %v3558
        %v3864 = vunpack.c.l.b16 %v3559
        %v3865 = vunpack.c.h.b16 %v3559
        %v3866 = vunpack.c.l.b16 %v3560
        %v3867 = vunpack.c.h.b16 %v3560
        %v3868 = vunpack.c.l.b16 %v3561
        %v3869 = vunpack.c.h.b16 %v3561
        %v3870 = vunpack.c.l.b16 %v3562
        %v3871 = vunpack.c.h.b16 %v3562
        %v3872 = vunpack.c.l.b16 %v3563
        %v3873 = vunpack.c.h.b16 %v3563
        %v3874 = vpack.c.b16 %v3686, %v3682
        %v3875 = vpack.c.b16 %v3687, %v3683
        %v3876 = vpack.c.b16 %v3688, %v3684
        %v3877 = vpack.c.b16 %v3689, %v3685
        %v3878 = vpack.c.b16 %v3694, %v3690
        %v3879 = vpack.c.b16 %v3695, %v3691
        %v3880 = vpack.c.b16 %v3696, %v3692
        %v3881 = vpack.c.b16 %v3697, %v3693
        %v3882 = vpack.c.b16 %v3702, %v3698
        %v3883 = vpack.c.b16 %v3703, %v3699
        %v3884 = vpack.c.b16 %v3704, %v3700
        %v3885 = vpack.c.b16 %v3705, %v3701
        %v3886 = vpack.c.b16 %v3710, %v3706
        %v3887 = vpack.c.b16 %v3711, %v3707
        %v3888 = vpack.c.b16 %v3712, %v3708
        %v3889 = vpack.c.b16 %v3713, %v3709
        %v3890 = vpack.c.b16 %v3718, %v3714
        %v3891 = vpack.c.b16 %v3719, %v3715
        %v3892 = vpack.c.b16 %v3720, %v3716
        %v3893 = vpack.c.b16 %v3721, %v3717
        %v3894 = vpack.c.b16 %v3726, %v3722
        %v3895 = vpack.c.b16 %v3727, %v3723
        %v3896 = vpack.c.b16 %v3728, %v3724
        %v3897 = vpack.c.b16 %v3729, %v3725
        %v3898 = vpack.c.b16 %v3734, %v3730
        %v3899 = vpack.c.b16 %v3735, %v3731
        %v3900 = vpack.c.b16 %v3736, %v3732
        %v3901 = vpack.c.b16 %v3737, %v3733
        %v3902 = vpack.c.b16 %v3742, %v3738
        %v3903 = vpack.c.b16 %v3743, %v3739
        %v3904 = vpack.c.b16 %v3744, %v3740
        %v3905 = vpack.c.b16 %v3745, %v3741
        %v3906 = vpack.c.b16 %v3750, %v3746
        %v3907 = vpack.c.b16 %v3751, %v3747
        %v3908 = vpack.c.b16 %v3752, %v3748
        %v3909 = vpack.c.b16 %v3753, %v3749
        %v3910 = vpack.c.b16 %v3758, %v3754
        %v3911 = vpack.c.b16 %v3759, %v3755
        %v3912 = vpack.c.b16 %v3760, %v3756
        %v3913 = vpack.c.b16 %v3761, %v3757
        %v3914 = vpack.c.b16 %v3766, %v3762
        %v3915 = vpack.c.b16 %v3767, %v3763
        %v3916 = vpack.c.b16 %v3768, %v3764
        %v3917 = vpack.c.b16 %v3769, %v3765
        %v3918 = vpack.c.b16 %v3774, %v3770
        %v3919 = vpack.c.b16 %v3775, %v3771
        %v3920 = vpack.c.b16 %v3776, %v3772
        %v3921 = vpack.c.b16 %v3777, %v3773
        %v3922 = vpack.c.b16 %v3782, %v3778
        %v3923 = vpack.c.b16 %v3783, %v3779
        %v3924 = vpack.c.b16 %v3784, %v3780
        %v3925 = vpack.c.b16 %v3785, %v3781
        %v3926 = vpack.c.b16 %v3790, %v3786
        %v3927 = vpack.c.b16 %v3791, %v3787
        %v3928 = vpack.c.b16 %v3792, %v3788
        %v3929 = vpack.c.b16 %v3793, %v3789
        %v3930 = vpack.c.b16 %v3798, %v3794
        %v3931 = vpack.c.b16 %v3799, %v3795
        %v3932 = vpack.c.b16 %v3800, %v3796
        %v3933 = vpack.c.b16 %v3801, %v3797
        %v3934 = vpack.c.b16 %v3806, %v3802
        %v3935 = vpack.c.b16 %v3807, %v3803
        %v3936 = vpack.c.b16 %v3808, %v3804
        %v3937 = vpack.c.b16 %v3809, %v3805
        %v3938 = vpack.c.b16 %v3814, %v3810
        %v3939 = vpack.c.b16 %v3815, %v3811
        %v3940 = vpack.c.b16 %v3816, %v3812
        %v3941 = vpack.c.b16 %v3817, %v3813
        %v3942 = vpack.c.b16 %v3822, %v3818
        %v3943 = vpack.c.b16 %v3823, %v3819
        %v3944 = vpack.c.b16 %v3824, %v3820
        %v3945 = vpack.c.b16 %v3825, %v3821
        %v3946 = vpack.c.b16 %v3830, %v3826
        %v3947 = vpack.c.b16 %v3831, %v3827
        %v3948 = vpack.c.b16 %v3832, %v3828
        %v3949 = vpack.c.b16 %v3833, %v3829
        %v3950 = vpack.c.b16 %v3838, %v3834
        %v3951 = vpack.c.b16 %v3839, %v3835
        %v3952 = vpack.c.b16 %v3840, %v3836
        %v3953 = vpack.c.b16 %v3841, %v3837
        %v3954 = vpack.c.b16 %v3846, %v3842
        %v3955 = vpack.c.b16 %v3847, %v3843
        %v3956 = vpack.c.b16 %v3848, %v3844
        %v3957 = vpack.c.b16 %v3849, %v3845
        %v3958 = vpack.c.b16 %v3854, %v3850
        %v3959 = vpack.c.b16 %v3855, %v3851
        %v3960 = vpack.c.b16 %v3856, %v3852
        %v3961 = vpack.c.b16 %v3857, %v3853
        %v3962 = vpack.c.b16 %v3862, %v3858
        %v3963 = vpack.c.b16 %v3863, %v3859
        %v3964 = vpack.c.b16 %v3864, %v3860
        %v3965 = vpack.c.b16 %v3865, %v3861
        %v3966 = vpack.c.b16 %v3870, %v3866
        %v3967 = vpack.c.b16 %v3871, %v3867
        %v3968 = vpack.c.b16 %v3872, %v3868
        %v3969 = vpack.c.b16 %v3873, %v3869
        %4066 = vmatprep.subr.bf16.mxu0 %v3875
        %4067 = vmatpush1.bf16.msra.mxu0 %v3874
        %4068 = vmatprep.subr.bf16.mxu0 %v3879
        %4069 = vmatpush1.bf16.msra.mxu0 %v3878
        %4070 = vmatprep.subr.bf16.mxu0 %v3883
        %4071 = vmatpush1.bf16.msra.mxu0 %v3882
        %4072 = vmatprep.subr.bf16.mxu0 %v3887
        %4073 = vmatpush1.bf16.msra.mxu0 %v3886
        %4074 = vmatprep.subr.bf16.mxu0 %v3891
        %4075 = vmatpush1.bf16.msra.mxu0 %v3890
        %4076 = vmatprep.subr.bf16.mxu0 %v3895
        %4077 = vmatpush1.bf16.msra.mxu0 %v3894
        %4078 = vmatprep.subr.bf16.mxu0 %v3899
        %4079 = vmatpush1.bf16.msra.mxu0 %v3898
        %4080 = vmatprep.subr.bf16.mxu0 %v3903
        %4081 = vmatpush1.bf16.msra.mxu0 %v3902
        %4082 = vmatprep.subr.bf16.mxu0 %v3907
        %4083 = vmatpush1.bf16.msra.mxu0 %v3906
        %4084 = vmatprep.subr.bf16.mxu0 %v3911
        %4085 = vmatpush1.bf16.msra.mxu0 %v3910
        %4086 = vmatprep.subr.bf16.mxu0 %v3915
        %4087 = vmatpush1.bf16.msra.mxu0 %v3914
        %4088 = vmatprep.subr.bf16.mxu0 %v3919
        %4089 = vmatpush1.bf16.msra.mxu0 %v3918
        %4090 = vmatprep.subr.bf16.mxu0 %v3923
        %4091 = vmatpush1.bf16.msra.mxu0 %v3922
        %4092 = vmatprep.subr.bf16.mxu0 %v3927
        %4093 = vmatpush1.bf16.msra.mxu0 %v3926
        %4094 = vmatprep.subr.bf16.mxu0 %v3931
        %4095 = vmatpush1.bf16.msra.mxu0 %v3930
        %4096 = vmatprep.subr.bf16.mxu0 %v3935
        %4097 = vmatpush1.bf16.msra.mxu0 %v3934
        %4098 = vmatprep.mubr.bf16.mxu0 %v398
        %4099 = vmatmul.mubr.bf16.gmra.mrb[0].mxu0 %v397
        %v4100 = vpop.f32.mrb[0].mxu0
        %v4101 = vadd.f32 %v3569, %v4100
        %v4102 = vpop.f32.mrb[0].mxu0
        %v4103 = vadd.f32 %v3573, %v4102
        %v4104 = vpop.f32.mrb[0].mxu0
        %v4105 = vadd.f32 %v3569, %v4104
        %v4106 = vpop.f32.mrb[0].mxu0
        %v4107 = vadd.f32 %v3573, %v4106
        %4108 = vmatprep.mubr.bf16.mxu0 %v401
        %4109 = vmatmul.mubr.bf16.gmra.mrb[0].mxu0 %v400
        %v4110 = vpop.f32.mrb[0].mxu0
        %v4111 = vadd.f32 %v3569, %v4110
        %v4112 = vpop.f32.mrb[0].mxu0
        %v4113 = vadd.f32 %v3573, %v4112
        %v4114 = vpop.f32.mrb[0].mxu0
        %v4115 = vadd.f32 %v3569, %v4114
        %v4116 = vpop.f32.mrb[0].mxu0
        %v4117 = vadd.f32 %v3573, %v4116
        %4118 = vmatprep.mubr.bf16.mxu0 %v404
        %4119 = vmatmul.mubr.bf16.gmra.mrb[0].mxu0 %v403
        %v4120 = vpop.f32.mrb[0].mxu0
        %v4121 = vadd.f32 %v3569, %v4120
        %v4122 = vpop.f32.mrb[0].mxu0
        %v4123 = vadd.f32 %v3573, %v4122
        %v4124 = vpop.f32.mrb[0].mxu0
        %v4125 = vadd.f32 %v3569, %v4124
        %v4126 = vpop.f32.mrb[0].mxu0
        %v4127 = vadd.f32 %v3573, %v4126
        %4128 = vmatprep.mubr.bf16.mxu0 %v407
        %4129 = vmatmul.mubr.bf16.gmra.mrb[0].mxu0 %v406
        %v4130 = vpop.f32.mrb[0].mxu0
        %v4131 = vadd.f32 %v3569, %v4130
        %v4132 = vpop.f32.mrb[0].mxu0
        %v4133 = vadd.f32 %v3573, %v4132
        %v4134 = vpop.f32.mrb[0].mxu0
        %v4135 = vadd.f32 %v3569, %v4134
        %v4136 = vpop.f32.mrb[0].mxu0
        %v4137 = vadd.f32 %v3573, %v4136
        %4138 = vmatprep.mubr.bf16.mxu0 %v410
        %4139 = vmatmul.mubr.bf16.gmra.mrb[0].mxu0 %v409
        %v4140 = vpop.f32.mrb[0].mxu0
        %v4141 = vadd.f32 %v3569, %v4140
        %v4142 = vpop.f32.mrb[0].mxu0
        %v4143 = vadd.f32 %v3573, %v4142
        %v4144 = vpop.f32.mrb[0].mxu0
        %v4145 = vadd.f32 %v3569, %v4144
        %v4146 = vpop.f32.mrb[0].mxu0
        %v4147 = vadd.f32 %v3573, %v4146
        %4148 = vmatprep.mubr.bf16.mxu0 %v413
        %4149 = vmatmul.mubr.bf16.gmra.mrb[0].mxu0 %v412
        %v4150 = vpop.f32.mrb[0].mxu0
        %v4151 = vadd.f32 %v3569, %v4150
        %v4152 = vpop.f32.mrb[0].mxu0
        %v4153 = vadd.f32 %v3573, %v4152
        %v4154 = vpop.f32.mrb[0].mxu0
        %v4155 = vadd.f32 %v3569, %v4154
        %v4156 = vpop.f32.mrb[0].mxu0
        %v4157 = vadd.f32 %v3573, %v4156
        %4158 = vmatprep.mubr.bf16.mxu0 %v416
        %4159 = vmatmul.mubr.bf16.gmra.mrb[0].mxu0 %v415
        %v4160 = vpop.f32.mrb[0].mxu0
        %v4161 = vadd.f32 %v3569, %v4160
        %v4162 = vpop.f32.mrb[0].mxu0
        %v4163 = vadd.f32 %v3573, %v4162
        %v4164 = vpop.f32.mrb[0].mxu0
        %v4165 = vadd.f32 %v3569, %v4164
        %v4166 = vpop.f32.mrb[0].mxu0
        %v4167 = vadd.f32 %v3573, %v4166
        %4168 = vmatprep.mubr.bf16.mxu0 %v419
        %4169 = vmatmul.mubr.bf16.gmra.mrb[0].mxu0 %v418
        %v4170 = vpop.f32.mrb[0].mxu0
        %v4171 = vadd.f32 %v3569, %v4170
        %v4172 = vpop.f32.mrb[0].mxu0
        %v4173 = vadd.f32 %v3573, %v4172
        %v4174 = vpop.f32.mrb[0].mxu0
        %v4175 = vadd.f32 %v3569, %v4174
        %v4176 = vpop.f32.mrb[0].mxu0
        %v4177 = vadd.f32 %v3573, %v4176
        %4178 = vmatprep.mubr.bf16.mxu0 %v422
        %4179 = vmatmul.mubr.bf16.gmra.mrb[0].mxu0 %v421
        %v4180 = vpop.f32.mrb[0].mxu0
        %v4181 = vadd.f32 %v3569, %v4180
        %v4182 = vpop.f32.mrb[0].mxu0
        %v4183 = vadd.f32 %v3573, %v4182
        %v4184 = vpop.f32.mrb[0].mxu0
        %v4185 = vadd.f32 %v3569, %v4184
        %v4186 = vpop.f32.mrb[0].mxu0
        %v4187 = vadd.f32 %v3573, %v4186
        %4188 = vmatprep.mubr.bf16.mxu0 %v425
        %4189 = vmatmul.mubr.bf16.gmra.mrb[0].mxu0 %v424
        %v4190 = vpop.f32.mrb[0].mxu0
        %v4191 = vadd.f32 %v3569, %v4190
        %v4192 = vpop.f32.mrb[0].mxu0
        %v4193 = vadd.f32 %v3573, %v4192
        %v4194 = vpop.f32.mrb[0].mxu0
        %v4195 = vadd.f32 %v3569, %v4194
        %v4196 = vpop.f32.mrb[0].mxu0
        %v4197 = vadd.f32 %v3573, %v4196
        %4198 = vmatprep.mubr.bf16.mxu0 %v428
        %4199 = vmatmul.mubr.bf16.gmra.mrb[0].mxu0 %v427
        %v4200 = vpop.f32.mrb[0].mxu0
        %v4201 = vadd.f32 %v3569, %v4200
        %v4202 = vpop.f32.mrb[0].mxu0
        %v4203 = vadd.f32 %v3573, %v4202
        %v4204 = vpop.f32.mrb[0].mxu0
        %v4205 = vadd.f32 %v3569, %v4204
        %v4206 = vpop.f32.mrb[0].mxu0
        %v4207 = vadd.f32 %v3573, %v4206
        %4208 = vmatprep.mubr.bf16.mxu0 %v431
        %4209 = vmatmul.mubr.bf16.gmra.mrb[0].mxu0 %v430
        %v4210 = vpop.f32.mrb[0].mxu0
        %v4211 = vadd.f32 %v3569, %v4210
        %v4212 = vpop.f32.mrb[0].mxu0
        %v4213 = vadd.f32 %v3573, %v4212
        %v4214 = vpop.f32.mrb[0].mxu0
        %v4215 = vadd.f32 %v3569, %v4214
        %v4216 = vpop.f32.mrb[0].mxu0
        %v4217 = vadd.f32 %v3573, %v4216
        %4218 = vmatprep.mubr.bf16.mxu0 %v434
        %4219 = vmatmul.mubr.bf16.gmra.mrb[0].mxu0 %v433
        %v4220 = vpop.f32.mrb[0].mxu0
        %v4221 = vadd.f32 %v3569, %v4220
        %v4222 = vpop.f32.mrb[0].mxu0
        %v4223 = vadd.f32 %v3573, %v4222
        %v4224 = vpop.f32.mrb[0].mxu0
        %v4225 = vadd.f32 %v3569, %v4224
        %v4226 = vpop.f32.mrb[0].mxu0
        %v4227 = vadd.f32 %v3573, %v4226
        %4228 = vmatprep.mubr.bf16.mxu0 %v437
        %4229 = vmatmul.mubr.bf16.gmra.mrb[0].mxu0 %v436
        %v4230 = vpop.f32.mrb[0].mxu0
        %v4231 = vadd.f32 %v3569, %v4230
        %v4232 = vpop.f32.mrb[0].mxu0
        %v4233 = vadd.f32 %v3573, %v4232
        %v4234 = vpop.f32.mrb[0].mxu0
        %v4235 = vadd.f32 %v3569, %v4234
        %v4236 = vpop.f32.mrb[0].mxu0
        %v4237 = vadd.f32 %v3573, %v4236
        %4238 = vmatprep.mubr.bf16.mxu0 %v440
        %4239 = vmatmul.mubr.bf16.gmra.mrb[0].mxu0 %v439
        %v4240 = vpop.f32.mrb[0].mxu0
        %v4241 = vadd.f32 %v3569, %v4240
        %v4242 = vpop.f32.mrb[0].mxu0
        %v4243 = vadd.f32 %v3573, %v4242
        %v4244 = vpop.f32.mrb[0].mxu0
        %v4245 = vadd.f32 %v3569, %v4244
        %v4246 = vpop.f32.mrb[0].mxu0
        %v4247 = vadd.f32 %v3573, %v4246
        %4248 = vmatprep.mubr.bf16.mxu0 %v443
        %4249 = vmatmul.mubr.bf16.gmra.mrb[0].mxu0 %v442
        %v4250 = vpop.f32.mrb[0].mxu0
        %v4251 = vadd.f32 %v3569, %v4250
        %v4252 = vpop.f32.mrb[0].mxu0
        %v4253 = vadd.f32 %v3573, %v4252
        %v4254 = vpop.f32.mrb[0].mxu0
        %v4255 = vadd.f32 %v3569, %v4254
        %v4256 = vpop.f32.mrb[0].mxu0
        %v4257 = vadd.f32 %v3573, %v4256
        %4258 = vdwg.mxu0
        %4259 = vmatprep.subr.bf16.mxu0 %v3939
        %4260 = vmatpush1.bf16.msra.mxu0 %v3938
        %4261 = vmatprep.subr.bf16.mxu0 %v3943
        %4262 = vmatpush1.bf16.msra.mxu0 %v3942
        %4263 = vmatprep.subr.bf16.mxu0 %v3947
        %4264 = vmatpush1.bf16.msra.mxu0 %v3946
        %4265 = vmatprep.subr.bf16.mxu0 %v3951
        %4266 = vmatpush1.bf16.msra.mxu0 %v3950
        %4267 = vmatprep.subr.bf16.mxu0 %v3955
        %4268 = vmatpush1.bf16.msra.mxu0 %v3954
        %4269 = vmatprep.subr.bf16.mxu0 %v3959
        %4270 = vmatpush1.bf16.msra.mxu0 %v3958
        %4271 = vmatprep.subr.bf16.mxu0 %v3963
        %4272 = vmatpush1.bf16.msra.mxu0 %v3962
        %4273 = vmatprep.subr.bf16.mxu0 %v3967
        %4274 = vmatpush1.bf16.msra.mxu0 %v3966
        %4275 = vmatprep.subr.bf16.mxu0 0
        %4276 = vmatpush1.bf16.msra.mxu0 0
        %4277 = vmatprep.subr.bf16.mxu0 0
        %4278 = vmatpush1.bf16.msra.mxu0 0
        %4279 = vmatprep.subr.bf16.mxu0 0
        %4280 = vmatpush1.bf16.msra.mxu0 0
        %4281 = vmatprep.subr.bf16.mxu0 0
        %4282 = vmatpush1.bf16.msra.mxu0 0
        %4283 = vmatprep.subr.bf16.mxu0 0
        %4284 = vmatpush1.bf16.msra.mxu0 0
        %4285 = vmatprep.subr.bf16.mxu0 0
        %4286 = vmatpush1.bf16.msra.mxu0 0
        %4287 = vmatprep.subr.bf16.mxu0 0
        %4288 = vmatpush1.bf16.msra.mxu0 0
        %4289 = vmatprep.subr.bf16.mxu0 0
        %4290 = vmatpush1.bf16.msra.mxu0 0
        %4291 = vmatprep.mubr.bf16.mxu0 0
        %4292 = vmatmul.mubr.bf16.gmra.mrb[0].mxu0 %v399
        %v4293 = vpop.f32.mrb[0].mxu0
        %v4294 = vadd.f32 %v4101, %v4293
        %v4295 = vpop.f32.mrb[0].mxu0
        %v4296 = vadd.f32 %v4103, %v4295
        %v4297 = vpop.f32.mrb[0].mxu0
        %v4298 = vadd.f32 %v4105, %v4297
        %v4299 = vpop.f32.mrb[0].mxu0
        %v4300 = vadd.f32 %v4107, %v4299
        %4301 = vmatprep.mubr.bf16.mxu0 0
        %4302 = vmatmul.mubr.bf16.gmra.mrb[0].mxu0 %v402
        %v4303 = vpop.f32.mrb[0].mxu0
        %v4304 = vadd.f32 %v4111, %v4303
        %v4305 = vpop.f32.mrb[0].mxu0
        %v4306 = vadd.f32 %v4113, %v4305
        %v4307 = vpop.f32.mrb[0].mxu0
        %v4308 = vadd.f32 %v4115, %v4307
        %v4309 = vpop.f32.mrb[0].mxu0
        %v4310 = vadd.f32 %v4117, %v4309
        %4311 = vmatprep.mubr.bf16.mxu0 0
        %4312 = vmatmul.mubr.bf16.gmra.mrb[0].mxu0 %v405
        %v4313 = vpop.f32.mrb[0].mxu0
        %v4314 = vadd.f32 %v4121, %v4313
        %v4315 = vpop.f32.mrb[0].mxu0
        %v4316 = vadd.f32 %v4123, %v4315
        %v4317 = vpop.f32.mrb[0].mxu0
        %v4318 = vadd.f32 %v4125, %v4317
        %v4319 = vpop.f32.mrb[0].mxu0
        %v4320 = vadd.f32 %v4127, %v4319
        %4321 = vmatprep.mubr.bf16.mxu0 0
        %4322 = vmatmul.mubr.bf16.gmra.mrb[0].mxu0 %v408
        %v4323 = vpop.f32.mrb[0].mxu0
        %v4324 = vadd.f32 %v4131, %v4323
        %v4325 = vpop.f32.mrb[0].mxu0
        %v4326 = vadd.f32 %v4133, %v4325
        %v4327 = vpop.f32.mrb[0].mxu0
        %v4328 = vadd.f32 %v4135, %v4327
        %v4329 = vpop.f32.mrb[0].mxu0
        %v4330 = vadd.f32 %v4137, %v4329
        %4331 = vmatprep.mubr.bf16.mxu0 0
        %4332 = vmatmul.mubr.bf16.gmra.mrb[0].mxu0 %v411
        %v4333 = vpop.f32.mrb[0].mxu0
        %v4334 = vadd.f32 %v4141, %v4333
        %v4335 = vpop.f32.mrb[0].mxu0
        %v4336 = vadd.f32 %v4143, %v4335
        %v4337 = vpop.f32.mrb[0].mxu0
        %v4338 = vadd.f32 %v4145, %v4337
        %v4339 = vpop.f32.mrb[0].mxu0
        %v4340 = vadd.f32 %v4147, %v4339
        %4341 = vmatprep.mubr.bf16.mxu0 0
        %4342 = vmatmul.mubr.bf16.gmra.mrb[0].mxu0 %v414
        %v4343 = vpop.f32.mrb[0].mxu0
        %v4344 = vadd.f32 %v4151, %v4343
        %v4345 = vpop.f32.mrb[0].mxu0
        %v4346 = vadd.f32 %v4153, %v4345
        %v4347 = vpop.f32.mrb[0].mxu0
        %v4348 = vadd.f32 %v4155, %v4347
        %v4349 = vpop.f32.mrb[0].mxu0
        %v4350 = vadd.f32 %v4157, %v4349
        %4351 = vmatprep.mubr.bf16.mxu0 0
        %4352 = vmatmul.mubr.bf16.gmra.mrb[0].mxu0 %v417
        %v4353 = vpop.f32.mrb[0].mxu0
        %v4354 = vadd.f32 %v4161, %v4353
        %v4355 = vpop.f32.mrb[0].mxu0
        %v4356 = vadd.f32 %v4163, %v4355
        %v4357 = vpop.f32.mrb[0].mxu0
        %v4358 = vadd.f32 %v4165, %v4357
        %v4359 = vpop.f32.mrb[0].mxu0
        %v4360 = vadd.f32 %v4167, %v4359
        %4361 = vmatprep.mubr.bf16.mxu0 0
        %4362 = vmatmul.mubr.bf16.gmra.mrb[0].mxu0 %v420
        %v4363 = vpop.f32.mrb[0].mxu0
        %v4364 = vadd.f32 %v4171, %v4363
        %v4365 = vpop.f32.mrb[0].mxu0
        %v4366 = vadd.f32 %v4173, %v4365
        %v4367 = vpop.f32.mrb[0].mxu0
        %v4368 = vadd.f32 %v4175, %v4367
        %v4369 = vpop.f32.mrb[0].mxu0
        %v4370 = vadd.f32 %v4177, %v4369
        %4371 = vmatprep.mubr.bf16.mxu0 0
        %4372 = vmatmul.mubr.bf16.gmra.mrb[0].mxu0 %v423
        %v4373 = vpop.f32.mrb[0].mxu0
        %v4374 = vadd.f32 %v4181, %v4373
        %v4375 = vpop.f32.mrb[0].mxu0
        %v4376 = vadd.f32 %v4183, %v4375
        %v4377 = vpop.f32.mrb[0].mxu0
        %v4378 = vadd.f32 %v4185, %v4377
        %v4379 = vpop.f32.mrb[0].mxu0
        %v4380 = vadd.f32 %v4187, %v4379
        %4381 = vmatprep.mubr.bf16.mxu0 0
        %4382 = vmatmul.mubr.bf16.gmra.mrb[0].mxu0 %v426
        %v4383 = vpop.f32.mrb[0].mxu0
        %v4384 = vadd.f32 %v4191, %v4383
        %v4385 = vpop.f32.mrb[0].mxu0
        %v4386 = vadd.f32 %v4193, %v4385
        %v4387 = vpop.f32.mrb[0].mxu0
        %v4388 = vadd.f32 %v4195, %v4387
        %v4389 = vpop.f32.mrb[0].mxu0
        %v4390 = vadd.f32 %v4197, %v4389
        %4391 = vmatprep.mubr.bf16.mxu0 0
        %4392 = vmatmul.mubr.bf16.gmra.mrb[0].mxu0 %v429
        %v4393 = vpop.f32.mrb[0].mxu0
        %v4394 = vadd.f32 %v4201, %v4393
        %v4395 = vpop.f32.mrb[0].mxu0
        %v4396 = vadd.f32 %v4203, %v4395
        %v4397 = vpop.f32.mrb[0].mxu0
        %v4398 = vadd.f32 %v4205, %v4397
        %v4399 = vpop.f32.mrb[0].mxu0
        %v4400 = vadd.f32 %v4207, %v4399
        %4401 = vmatprep.mubr.bf16.mxu0 0
        %4402 = vmatmul.mubr.bf16.gmra.mrb[0].mxu0 %v432
        %v4403 = vpop.f32.mrb[0].mxu0
        %v4404 = vadd.f32 %v4211, %v4403
        %v4405 = vpop.f32.mrb[0].mxu0
        %v4406 = vadd.f32 %v4213, %v4405
        %v4407 = vpop.f32.mrb[0].mxu0
        %v4408 = vadd.f32 %v4215, %v4407
        %v4409 = vpop.f32.mrb[0].mxu0
        %v4410 = vadd.f32 %v4217, %v4409
        %4411 = vmatprep.mubr.bf16.mxu0 0
        %4412 = vmatmul.mubr.bf16.gmra.mrb[0].mxu0 %v435
        %v4413 = vpop.f32.mrb[0].mxu0
        %v4414 = vadd.f32 %v4221, %v4413
        %v4415 = vpop.f32.mrb[0].mxu0
        %v4416 = vadd.f32 %v4223, %v4415
        %v4417 = vpop.f32.mrb[0].mxu0
        %v4418 = vadd.f32 %v4225, %v4417
        %v4419 = vpop.f32.mrb[0].mxu0
        %v4420 = vadd.f32 %v4227, %v4419
        %4421 = vmatprep.mubr.bf16.mxu0 0
        %4422 = vmatmul.mubr.bf16.gmra.mrb[0].mxu0 %v438
        %v4423 = vpop.f32.mrb[0].mxu0
        %v4424 = vadd.f32 %v4231, %v4423
        %v4425 = vpop.f32.mrb[0].mxu0
        %v4426 = vadd.f32 %v4233, %v4425
        %v4427 = vpop.f32.mrb[0].mxu0
        %v4428 = vadd.f32 %v4235, %v4427
        %v4429 = vpop.f32.mrb[0].mxu0
        %v4430 = vadd.f32 %v4237, %v4429
        %4431 = vmatprep.mubr.bf16.mxu0 0
        %4432 = vmatmul.mubr.bf16.gmra.mrb[0].mxu0 %v441
        %v4433 = vpop.f32.mrb[0].mxu0
        %v4434 = vadd.f32 %v4241, %v4433
        %v4435 = vpop.f32.mrb[0].mxu0
        %v4436 = vadd.f32 %v4243, %v4435
        %v4437 = vpop.f32.mrb[0].mxu0
        %v4438 = vadd.f32 %v4245, %v4437
        %v4439 = vpop.f32.mrb[0].mxu0
        %v4440 = vadd.f32 %v4247, %v4439
        %4441 = vmatprep.mubr.bf16.mxu0 0
        %4442 = vmatmul.mubr.bf16.gmra.mrb[0].mxu0 %v444
        %v4443 = vpop.f32.mrb[0].mxu0
        %v4444 = vadd.f32 %v4251, %v4443
        %v4445 = vpop.f32.mrb[0].mxu0
        %v4446 = vadd.f32 %v4253, %v4445
        %v4447 = vpop.f32.mrb[0].mxu0
        %v4448 = vadd.f32 %v4255, %v4447
        %v4449 = vpop.f32.mrb[0].mxu0
        %v4450 = vadd.f32 %v4257, %v4449
        %4451 = vdwg.mxu0
        %4452 = vmatprep.subr.bf16.mxu0 %v3877
        %4453 = vmatpush1.bf16.msra.mxu0 %v3876
        %4454 = vmatprep.subr.bf16.mxu0 %v3881
        %4455 = vmatpush1.bf16.msra.mxu0 %v3880
        %4456 = vmatprep.subr.bf16.mxu0 %v3885
        %4457 = vmatpush1.bf16.msra.mxu0 %v3884
        %4458 = vmatprep.subr.bf16.mxu0 %v3889
        %4459 = vmatpush1.bf16.msra.mxu0 %v3888
        %4460 = vmatprep.subr.bf16.mxu0 %v3893
        %4461 = vmatpush1.bf16.msra.mxu0 %v3892
        %4462 = vmatprep.subr.bf16.mxu0 %v3897
        %4463 = vmatpush1.bf16.msra.mxu0 %v3896
        %4464 = vmatprep.subr.bf16.mxu0 %v3901
        %4465 = vmatpush1.bf16.msra.mxu0 %v3900
        %4466 = vmatprep.subr.bf16.mxu0 %v3905
        %4467 = vmatpush1.bf16.msra.mxu0 %v3904
        %4468 = vmatprep.subr.bf16.mxu0 %v3909
        %4469 = vmatpush1.bf16.msra.mxu0 %v3908
        %4470 = vmatprep.subr.bf16.mxu0 %v3913
        %4471 = vmatpush1.bf16.msra.mxu0 %v3912
        %4472 = vmatprep.subr.bf16.mxu0 %v3917
        %4473 = vmatpush1.bf16.msra.mxu0 %v3916
        %4474 = vmatprep.subr.bf16.mxu0 %v3921
        %4475 = vmatpush1.bf16.msra.mxu0 %v3920
        %4476 = vmatprep.subr.bf16.mxu0 %v3925
        %4477 = vmatpush1.bf16.msra.mxu0 %v3924
        %4478 = vmatprep.subr.bf16.mxu0 %v3929
        %4479 = vmatpush1.bf16.msra.mxu0 %v3928
        %4480 = vmatprep.subr.bf16.mxu0 %v3933
        %4481 = vmatpush1.bf16.msra.mxu0 %v3932
        %4482 = vmatprep.subr.bf16.mxu0 %v3937
        %4483 = vmatpush1.bf16.msra.mxu0 %v3936
        %4484 = vmatprep.mubr.bf16.mxu0 %v398
        %4485 = vmatmul.mubr.bf16.gmra.mrb[0].mxu0 %v397
        %v4486 = vpop.f32.mrb[0].mxu0
        %v4487 = vadd.f32 %v3577, %v4486
        %v4488 = vpop.f32.mrb[0].mxu0
        %v4489 = vadd.f32 %v3581, %v4488
        %v4490 = vpop.f32.mrb[0].mxu0
        %v4491 = vadd.f32 %v3577, %v4490
        %v4492 = vpop.f32.mrb[0].mxu0
        %v4493 = vadd.f32 %v3581, %v4492
        %4494 = vmatprep.mubr.bf16.mxu0 %v401
        %4495 = vmatmul.mubr.bf16.gmra.mrb[0].mxu0 %v400
        %v4496 = vpop.f32.mrb[0].mxu0
        %v4497 = vadd.f32 %v3577, %v4496
        %v4498 = vpop.f32.mrb[0].mxu0
        %v4499 = vadd.f32 %v3581, %v4498
        %v4500 = vpop.f32.mrb[0].mxu0
        %v4501 = vadd.f32 %v3577, %v4500
        %v4502 = vpop.f32.mrb[0].mxu0
        %v4503 = vadd.f32 %v3581, %v4502
        %4504 = vmatprep.mubr.bf16.mxu0 %v404
        %4505 = vmatmul.mubr.bf16.gmra.mrb[0].mxu0 %v403
        %v4506 = vpop.f32.mrb[0].mxu0
        %v4507 = vadd.f32 %v3577, %v4506
        %v4508 = vpop.f32.mrb[0].mxu0
        %v4509 = vadd.f32 %v3581, %v4508
        %v4510 = vpop.f32.mrb[0].mxu0
        %v4511 = vadd.f32 %v3577, %v4510
        %v4512 = vpop.f32.mrb[0].mxu0
        %v4513 = vadd.f32 %v3581, %v4512
        %4514 = vmatprep.mubr.bf16.mxu0 %v407
        %4515 = vmatmul.mubr.bf16.gmra.mrb[0].mxu0 %v406
        %v4516 = vpop.f32.mrb[0].mxu0
        %v4517 = vadd.f32 %v3577, %v4516
        %v4518 = vpop.f32.mrb[0].mxu0
        %v4519 = vadd.f32 %v3581, %v4518
        %v4520 = vpop.f32.mrb[0].mxu0
        %v4521 = vadd.f32 %v3577, %v4520
        %v4522 = vpop.f32.mrb[0].mxu0
        %v4523 = vadd.f32 %v3581, %v4522
        %4524 = vmatprep.mubr.bf16.mxu0 %v410
        %4525 = vmatmul.mubr.bf16.gmra.mrb[0].mxu0 %v409
        %v4526 = vpop.f32.mrb[0].mxu0
        %v4527 = vadd.f32 %v3577, %v4526
        %v4528 = vpop.f32.mrb[0].mxu0
        %v4529 = vadd.f32 %v3581, %v4528
        %v4530 = vpop.f32.mrb[0].mxu0
        %v4531 = vadd.f32 %v3577, %v4530
        %v4532 = vpop.f32.mrb[0].mxu0
        %v4533 = vadd.f32 %v3581, %v4532
        %4534 = vmatprep.mubr.bf16.mxu0 %v413
        %4535 = vmatmul.mubr.bf16.gmra.mrb[0].mxu0 %v412
        %v4536 = vpop.f32.mrb[0].mxu0
        %v4537 = vadd.f32 %v3577, %v4536
        %v4538 = vpop.f32.mrb[0].mxu0
        %v4539 = vadd.f32 %v3581, %v4538
        %v4540 = vpop.f32.mrb[0].mxu0
        %v4541 = vadd.f32 %v3577, %v4540
        %v4542 = vpop.f32.mrb[0].mxu0
        %v4543 = vadd.f32 %v3581, %v4542
        %4544 = vmatprep.mubr.bf16.mxu0 %v416
        %4545 = vmatmul.mubr.bf16.gmra.mrb[0].mxu0 %v415
        %v4546 = vpop.f32.mrb[0].mxu0
        %v4547 = vadd.f32 %v3577, %v4546
        %v4548 = vpop.f32.mrb[0].mxu0
        %v4549 = vadd.f32 %v3581, %v4548
        %v4550 = vpop.f32.mrb[0].mxu0
        %v4551 = vadd.f32 %v3577, %v4550
        %v4552 = vpop.f32.mrb[0].mxu0
        %v4553 = vadd.f32 %v3581, %v4552
        %4554 = vmatprep.mubr.bf16.mxu0 %v419
        %4555 = vmatmul.mubr.bf16.gmra.mrb[0].mxu0 %v418
        %v4556 = vpop.f32.mrb[0].mxu0
        %v4557 = vadd.f32 %v3577, %v4556
        %v4558 = vpop.f32.mrb[0].mxu0
        %v4559 = vadd.f32 %v3581, %v4558
        %v4560 = vpop.f32.mrb[0].mxu0
        %v4561 = vadd.f32 %v3577, %v4560
        %v4562 = vpop.f32.mrb[0].mxu0
        %v4563 = vadd.f32 %v3581, %v4562
        %4564 = vmatprep.mubr.bf16.mxu0 %v422
        %4565 = vmatmul.mubr.bf16.gmra.mrb[0].mxu0 %v421
        %v4566 = vpop.f32.mrb[0].mxu0
        %v4567 = vadd.f32 %v3577, %v4566
        %v4568 = vpop.f32.mrb[0].mxu0
        %v4569 = vadd.f32 %v3581, %v4568
        %v4570 = vpop.f32.mrb[0].mxu0
        %v4571 = vadd.f32 %v3577, %v4570
        %v4572 = vpop.f32.mrb[0].mxu0
        %v4573 = vadd.f32 %v3581, %v4572
        %4574 = vmatprep.mubr.bf16.mxu0 %v425
        %4575 = vmatmul.mubr.bf16.gmra.mrb[0].mxu0 %v424
        %v4576 = vpop.f32.mrb[0].mxu0
        %v4577 = vadd.f32 %v3577, %v4576
        %v4578 = vpop.f32.mrb[0].mxu0
        %v4579 = vadd.f32 %v3581, %v4578
        %v4580 = vpop.f32.mrb[0].mxu0
        %v4581 = vadd.f32 %v3577, %v4580
        %v4582 = vpop.f32.mrb[0].mxu0
        %v4583 = vadd.f32 %v3581, %v4582
        %4584 = vmatprep.mubr.bf16.mxu0 %v428
        %4585 = vmatmul.mubr.bf16.gmra.mrb[0].mxu0 %v427
        %v4586 = vpop.f32.mrb[0].mxu0
        %v4587 = vadd.f32 %v3577, %v4586
        %v4588 = vpop.f32.mrb[0].mxu0
        %v4589 = vadd.f32 %v3581, %v4588
        %v4590 = vpop.f32.mrb[0].mxu0
        %v4591 = vadd.f32 %v3577, %v4590
        %v4592 = vpop.f32.mrb[0].mxu0
        %v4593 = vadd.f32 %v3581, %v4592
        %4594 = vmatprep.mubr.bf16.mxu0 %v431
        %4595 = vmatmul.mubr.bf16.gmra.mrb[0].mxu0 %v430
        %v4596 = vpop.f32.mrb[0].mxu0
        %v4597 = vadd.f32 %v3577, %v4596
        %v4598 = vpop.f32.mrb[0].mxu0
        %v4599 = vadd.f32 %v3581, %v4598
        %v4600 = vpop.f32.mrb[0].mxu0
        %v4601 = vadd.f32 %v3577, %v4600
        %v4602 = vpop.f32.mrb[0].mxu0
        %v4603 = vadd.f32 %v3581, %v4602
        %4604 = vmatprep.mubr.bf16.mxu0 %v434
        %4605 = vmatmul.mubr.bf16.gmra.mrb[0].mxu0 %v433
        %v4606 = vpop.f32.mrb[0].mxu0
        %v4607 = vadd.f32 %v3577, %v4606
        %v4608 = vpop.f32.mrb[0].mxu0
        %v4609 = vadd.f32 %v3581, %v4608
        %v4610 = vpop.f32.mrb[0].mxu0
        %v4611 = vadd.f32 %v3577, %v4610
        %v4612 = vpop.f32.mrb[0].mxu0
        %v4613 = vadd.f32 %v3581, %v4612
        %4614 = vmatprep.mubr.bf16.mxu0 %v437
        %4615 = vmatmul.mubr.bf16.gmra.mrb[0].mxu0 %v436
        %v4616 = vpop.f32.mrb[0].mxu0
        %v4617 = vadd.f32 %v3577, %v4616
        %v4618 = vpop.f32.mrb[0].mxu0
        %v4619 = vadd.f32 %v3581, %v4618
        %v4620 = vpop.f32.mrb[0].mxu0
        %v4621 = vadd.f32 %v3577, %v4620
        %v4622 = vpop.f32.mrb[0].mxu0
        %v4623 = vadd.f32 %v3581, %v4622
        %4624 = vmatprep.mubr.bf16.mxu0 %v440
        %4625 = vmatmul.mubr.bf16.gmra.mrb[0].mxu0 %v439
        %v4626 = vpop.f32.mrb[0].mxu0
        %v4627 = vadd.f32 %v3577, %v4626
        %v4628 = vpop.f32.mrb[0].mxu0
        %v4629 = vadd.f32 %v3581, %v4628
        %v4630 = vpop.f32.mrb[0].mxu0
        %v4631 = vadd.f32 %v3577, %v4630
        %v4632 = vpop.f32.mrb[0].mxu0
        %v4633 = vadd.f32 %v3581, %v4632
        %4634 = vmatprep.mubr.bf16.mxu0 %v443
        %4635 = vmatmul.mubr.bf16.gmra.mrb[0].mxu0 %v442
        %v4636 = vpop.f32.mrb[0].mxu0
        %v4637 = vadd.f32 %v3577, %v4636
        %v4638 = vpop.f32.mrb[0].mxu0
        %v4639 = vadd.f32 %v3581, %v4638
        %v4640 = vpop.f32.mrb[0].mxu0
        %v4641 = vadd.f32 %v3577, %v4640
        %v4642 = vpop.f32.mrb[0].mxu0
        %v4643 = vadd.f32 %v3581, %v4642
        %4644 = vdwg.mxu0
        %4645 = vmatprep.subr.bf16.mxu0 %v3941
        %4646 = vmatpush1.bf16.msra.mxu0 %v3940
        %4647 = vmatprep.subr.bf16.mxu0 %v3945
        %4648 = vmatpush1.bf16.msra.mxu0 %v3944
        %4649 = vmatprep.subr.bf16.mxu0 %v3949
        %4650 = vmatpush1.bf16.msra.mxu0 %v3948
        %4651 = vmatprep.subr.bf16.mxu0 %v3953
        %4652 = vmatpush1.bf16.msra.mxu0 %v3952
        %4653 = vmatprep.subr.bf16.mxu0 %v3957
        %4654 = vmatpush1.bf16.msra.mxu0 %v3956
        %4655 = vmatprep.subr.bf16.mxu0 %v3961
        %4656 = vmatpush1.bf16.msra.mxu0 %v3960
        %4657 = vmatprep.subr.bf16.mxu0 %v3965
        %4658 = vmatpush1.bf16.msra.mxu0 %v3964
        %4659 = vmatprep.subr.bf16.mxu0 %v3969
        %4660 = vmatpush1.bf16.msra.mxu0 %v3968
        %4661 = vmatprep.subr.bf16.mxu0 0
        %4662 = vmatpush1.bf16.msra.mxu0 0
        %4663 = vmatprep.subr.bf16.mxu0 0
        %4664 = vmatpush1.bf16.msra.mxu0 0
        %4665 = vmatprep.subr.bf16.mxu0 0
        %4666 = vmatpush1.bf16.msra.mxu0 0
        %4667 = vmatprep.subr.bf16.mxu0 0
        %4668 = vmatpush1.bf16.msra.mxu0 0
        %4669 = vmatprep.subr.bf16.mxu0 0
        %4670 = vmatpush1.bf16.msra.mxu0 0
        %4671 = vmatprep.subr.bf16.mxu0 0
        %4672 = vmatpush1.bf16.msra.mxu0 0
        %4673 = vmatprep.subr.bf16.mxu0 0
        %4674 = vmatpush1.bf16.msra.mxu0 0
        %4675 = vmatprep.subr.bf16.mxu0 0
        %4676 = vmatpush1.bf16.msra.mxu0 0
        %4677 = vmatprep.mubr.bf16.mxu0 0
        %4678 = vmatmul.mubr.bf16.gmra.mrb[0].mxu0 %v399
        %v4679 = vpop.f32.mrb[0].mxu0
        %v4680 = vadd.f32 %v4487, %v4679
        %v4681 = vpop.f32.mrb[0].mxu0
        %v4682 = vadd.f32 %v4489, %v4681
        %v4683 = vpop.f32.mrb[0].mxu0
        %v4684 = vadd.f32 %v4491, %v4683
        %v4685 = vpop.f32.mrb[0].mxu0
        %v4686 = vadd.f32 %v4493, %v4685
        %4687 = vmatprep.mubr.bf16.mxu0 0
        %4688 = vmatmul.mubr.bf16.gmra.mrb[0].mxu0 %v402
        %v4689 = vpop.f32.mrb[0].mxu0
        %v4690 = vadd.f32 %v4497, %v4689
        %v4691 = vpop.f32.mrb[0].mxu0
        %v4692 = vadd.f32 %v4499, %v4691
        %v4693 = vpop.f32.mrb[0].mxu0
        %v4694 = vadd.f32 %v4501, %v4693
        %v4695 = vpop.f32.mrb[0].mxu0
        %v4696 = vadd.f32 %v4503, %v4695
        %4697 = vmatprep.mubr.bf16.mxu0 0
        %4698 = vmatmul.mubr.bf16.gmra.mrb[0].mxu0 %v405
        %v4699 = vpop.f32.mrb[0].mxu0
        %v4700 = vadd.f32 %v4507, %v4699
        %v4701 = vpop.f32.mrb[0].mxu0
        %v4702 = vadd.f32 %v4509, %v4701
        %v4703 = vpop.f32.mrb[0].mxu0
        %v4704 = vadd.f32 %v4511, %v4703
        %v4705 = vpop.f32.mrb[0].mxu0
        %v4706 = vadd.f32 %v4513, %v4705
        %4707 = vmatprep.mubr.bf16.mxu0 0
        %4708 = vmatmul.mubr.bf16.gmra.mrb[0].mxu0 %v408
        %v4709 = vpop.f32.mrb[0].mxu0
        %v4710 = vadd.f32 %v4517, %v4709
        %v4711 = vpop.f32.mrb[0].mxu0
        %v4712 = vadd.f32 %v4519, %v4711
        %v4713 = vpop.f32.mrb[0].mxu0
        %v4714 = vadd.f32 %v4521, %v4713
        %v4715 = vpop.f32.mrb[0].mxu0
        %v4716 = vadd.f32 %v4523, %v4715
        %4717 = vmatprep.mubr.bf16.mxu0 0
        %4718 = vmatmul.mubr.bf16.gmra.mrb[0].mxu0 %v411
        %v4719 = vpop.f32.mrb[0].mxu0
        %v4720 = vadd.f32 %v4527, %v4719
        %v4721 = vpop.f32.mrb[0].mxu0
        %v4722 = vadd.f32 %v4529, %v4721
        %v4723 = vpop.f32.mrb[0].mxu0
        %v4724 = vadd.f32 %v4531, %v4723
        %v4725 = vpop.f32.mrb[0].mxu0
        %v4726 = vadd.f32 %v4533, %v4725
        %4727 = vmatprep.mubr.bf16.mxu0 0
        %4728 = vmatmul.mubr.bf16.gmra.mrb[0].mxu0 %v414
        %v4729 = vpop.f32.mrb[0].mxu0
        %v4730 = vadd.f32 %v4537, %v4729
        %v4731 = vpop.f32.mrb[0].mxu0
        %v4732 = vadd.f32 %v4539, %v4731
        %v4733 = vpop.f32.mrb[0].mxu0
        %v4734 = vadd.f32 %v4541, %v4733
        %v4735 = vpop.f32.mrb[0].mxu0
        %v4736 = vadd.f32 %v4543, %v4735
        %4737 = vmatprep.mubr.bf16.mxu0 0
        %4738 = vmatmul.mubr.bf16.gmra.mrb[0].mxu0 %v417
        %v4739 = vpop.f32.mrb[0].mxu0
        %v4740 = vadd.f32 %v4547, %v4739
        %v4741 = vpop.f32.mrb[0].mxu0
        %v4742 = vadd.f32 %v4549, %v4741
        %v4743 = vpop.f32.mrb[0].mxu0
        %v4744 = vadd.f32 %v4551, %v4743
        %v4745 = vpop.f32.mrb[0].mxu0
        %v4746 = vadd.f32 %v4553, %v4745
        %4747 = vmatprep.mubr.bf16.mxu0 0
        %4748 = vmatmul.mubr.bf16.gmra.mrb[0].mxu0 %v420
        %v4749 = vpop.f32.mrb[0].mxu0
        %v4750 = vadd.f32 %v4557, %v4749
        %v4751 = vpop.f32.mrb[0].mxu0
        %v4752 = vadd.f32 %v4559, %v4751
        %v4753 = vpop.f32.mrb[0].mxu0
        %v4754 = vadd.f32 %v4561, %v4753
        %v4755 = vpop.f32.mrb[0].mxu0
        %v4756 = vadd.f32 %v4563, %v4755
        %4757 = vmatprep.mubr.bf16.mxu0 0
        %4758 = vmatmul.mubr.bf16.gmra.mrb[0].mxu0 %v423
        %v4759 = vpop.f32.mrb[0].mxu0
        %v4760 = vadd.f32 %v4567, %v4759
        %v4761 = vpop.f32.mrb[0].mxu0
        %v4762 = vadd.f32 %v4569, %v4761
        %v4763 = vpop.f32.mrb[0].mxu0
        %v4764 = vadd.f32 %v4571, %v4763
        %v4765 = vpop.f32.mrb[0].mxu0
        %v4766 = vadd.f32 %v4573, %v4765
        %4767 = vmatprep.mubr.bf16.mxu0 0
        %4768 = vmatmul.mubr.bf16.gmra.mrb[0].mxu0 %v426
        %v4769 = vpop.f32.mrb[0].mxu0
        %v4770 = vadd.f32 %v4577, %v4769
        %v4771 = vpop.f32.mrb[0].mxu0
        %v4772 = vadd.f32 %v4579, %v4771
        %v4773 = vpop.f32.mrb[0].mxu0
        %v4774 = vadd.f32 %v4581, %v4773
        %v4775 = vpop.f32.mrb[0].mxu0
        %v4776 = vadd.f32 %v4583, %v4775
        %4777 = vmatprep.mubr.bf16.mxu0 0
        %4778 = vmatmul.mubr.bf16.gmra.mrb[0].mxu0 %v429
        %v4779 = vpop.f32.mrb[0].mxu0
        %v4780 = vadd.f32 %v4587, %v4779
        %v4781 = vpop.f32.mrb[0].mxu0
        %v4782 = vadd.f32 %v4589, %v4781
        %v4783 = vpop.f32.mrb[0].mxu0
        %v4784 = vadd.f32 %v4591, %v4783
        %v4785 = vpop.f32.mrb[0].mxu0
        %v4786 = vadd.f32 %v4593, %v4785
        %4787 = vmatprep.mubr.bf16.mxu0 0
        %4788 = vmatmul.mubr.bf16.gmra.mrb[0].mxu0 %v432
        %v4789 = vpop.f32.mrb[0].mxu0
        %v4790 = vadd.f32 %v4597, %v4789
        %v4791 = vpop.f32.mrb[0].mxu0
        %v4792 = vadd.f32 %v4599, %v4791
        %v4793 = vpop.f32.mrb[0].mxu0
        %v4794 = vadd.f32 %v4601, %v4793
        %v4795 = vpop.f32.mrb[0].mxu0
        %v4796 = vadd.f32 %v4603, %v4795
        %4797 = vmatprep.mubr.bf16.mxu0 0
        %4798 = vmatmul.mubr.bf16.gmra.mrb[0].mxu0 %v435
        %v4799 = vpop.f32.mrb[0].mxu0
        %v4800 = vadd.f32 %v4607, %v4799
        %v4801 = vpop.f32.mrb[0].mxu0
        %v4802 = vadd.f32 %v4609, %v4801
        %v4803 = vpop.f32.mrb[0].mxu0
        %v4804 = vadd.f32 %v4611, %v4803
        %v4805 = vpop.f32.mrb[0].mxu0
        %v4806 = vadd.f32 %v4613, %v4805
        %4807 = vmatprep.mubr.bf16.mxu0 0
        %4808 = vmatmul.mubr.bf16.gmra.mrb[0].mxu0 %v438
        %v4809 = vpop.f32.mrb[0].mxu0
        %v4810 = vadd.f32 %v4617, %v4809
        %v4811 = vpop.f32.mrb[0].mxu0
        %v4812 = vadd.f32 %v4619, %v4811
        %v4813 = vpop.f32.mrb[0].mxu0
        %v4814 = vadd.f32 %v4621, %v4813
        %v4815 = vpop.f32.mrb[0].mxu0
        %v4816 = vadd.f32 %v4623, %v4815
        %4817 = vmatprep.mubr.bf16.mxu0 0
        %4818 = vmatmul.mubr.bf16.gmra.mrb[0].mxu0 %v441
        %v4819 = vpop.f32.mrb[0].mxu0
        %v4820 = vadd.f32 %v4627, %v4819
        %v4821 = vpop.f32.mrb[0].mxu0
        %v4822 = vadd.f32 %v4629, %v4821
        %v4823 = vpop.f32.mrb[0].mxu0
        %v4824 = vadd.f32 %v4631, %v4823
        %v4825 = vpop.f32.mrb[0].mxu0
        %v4826 = vadd.f32 %v4633, %v4825
        %4827 = vmatprep.mubr.bf16.mxu0 0
        %4828 = vmatmul.mubr.bf16.gmra.mrb[0].mxu0 %v444
        %v4829 = vpop.f32.mrb[0].mxu0
        %v4830 = vadd.f32 %v4637, %v4829
        %v4831 = vpop.f32.mrb[0].mxu0
        %v4832 = vadd.f32 %v4639, %v4831
        %v4833 = vpop.f32.mrb[0].mxu0
        %v4834 = vadd.f32 %v4641, %v4833
        %v4835 = vpop.f32.mrb[0].mxu0
        %v4836 = vadd.f32 %v4643, %v4835
        %4837 = vdwg.mxu0
        %v4838 = vmax.f32 %v4294, 0.0
        %v4839 = vmax.f32 %v4296, 0.0
        %v4840 = vmax.f32 %v4680, 0.0
        %v4841 = vmax.f32 %v4682, 0.0
        %v4842 = vmax.f32 %v4298, 0.0
        %v4843 = vmax.f32 %v4300, 0.0
        %v4844 = vmax.f32 %v4684, 0.0
        %v4845 = vmax.f32 %v4686, 0.0
        %v4846 = vmax.f32 %v4304, 0.0
        %v4847 = vmax.f32 %v4306, 0.0
        %v4848 = vmax.f32 %v4690, 0.0
        %v4849 = vmax.f32 %v4692, 0.0
        %v4850 = vmax.f32 %v4308, 0.0
        %v4851 = vmax.f32 %v4310, 0.0
        %v4852 = vmax.f32 %v4694, 0.0
        %v4853 = vmax.f32 %v4696, 0.0
        %v4854 = vmax.f32 %v4314, 0.0
        %v4855 = vmax.f32 %v4316, 0.0
        %v4856 = vmax.f32 %v4700, 0.0
        %v4857 = vmax.f32 %v4702, 0.0
        %v4858 = vmax.f32 %v4318, 0.0
        %v4859 = vmax.f32 %v4320, 0.0
        %v4860 = vmax.f32 %v4704, 0.0
        %v4861 = vmax.f32 %v4706, 0.0
        %v4862 = vmax.f32 %v4324, 0.0
        %v4863 = vmax.f32 %v4326, 0.0
        %v4864 = vmax.f32 %v4710, 0.0
        %v4865 = vmax.f32 %v4712, 0.0
        %v4866 = vmax.f32 %v4328, 0.0
        %v4867 = vmax.f32 %v4330, 0.0
        %v4868 = vmax.f32 %v4714, 0.0
        %v4869 = vmax.f32 %v4716, 0.0
        %v4870 = vmax.f32 %v4334, 0.0
        %v4871 = vmax.f32 %v4336, 0.0
        %v4872 = vmax.f32 %v4720, 0.0
        %v4873 = vmax.f32 %v4722, 0.0
        %v4874 = vmax.f32 %v4338, 0.0
        %v4875 = vmax.f32 %v4340, 0.0
        %v4876 = vmax.f32 %v4724, 0.0
        %v4877 = vmax.f32 %v4726, 0.0
        %v4878 = vmax.f32 %v4344, 0.0
        %v4879 = vmax.f32 %v4346, 0.0
        %v4880 = vmax.f32 %v4730, 0.0
        %v4881 = vmax.f32 %v4732, 0.0
        %v4882 = vmax.f32 %v4348, 0.0
        %v4883 = vmax.f32 %v4350, 0.0
        %v4884 = vmax.f32 %v4734, 0.0
        %v4885 = vmax.f32 %v4736, 0.0
        %v4886 = vmax.f32 %v4354, 0.0
        %v4887 = vmax.f32 %v4356, 0.0
        %v4888 = vmax.f32 %v4740, 0.0
        %v4889 = vmax.f32 %v4742, 0.0
        %v4890 = vmax.f32 %v4358, 0.0
        %v4891 = vmax.f32 %v4360, 0.0
        %v4892 = vmax.f32 %v4744, 0.0
        %v4893 = vmax.f32 %v4746, 0.0
        %v4894 = vmax.f32 %v4364, 0.0
        %v4895 = vmax.f32 %v4366, 0.0
        %v4896 = vmax.f32 %v4750, 0.0
        %v4897 = vmax.f32 %v4752, 0.0
        %v4898 = vmax.f32 %v4368, 0.0
        %v4899 = vmax.f32 %v4370, 0.0
        %v4900 = vmax.f32 %v4754, 0.0
        %v4901 = vmax.f32 %v4756, 0.0
        %v4902 = vmax.f32 %v4374, 0.0
        %v4903 = vmax.f32 %v4376, 0.0
        %v4904 = vmax.f32 %v4760, 0.0
        %v4905 = vmax.f32 %v4762, 0.0
        %v4906 = vmax.f32 %v4378, 0.0
        %v4907 = vmax.f32 %v4380, 0.0
        %v4908 = vmax.f32 %v4764, 0.0
        %v4909 = vmax.f32 %v4766, 0.0
        %v4910 = vmax.f32 %v4384, 0.0
        %v4911 = vmax.f32 %v4386, 0.0
        %v4912 = vmax.f32 %v4770, 0.0
        %v4913 = vmax.f32 %v4772, 0.0
        %v4914 = vmax.f32 %v4388, 0.0
        %v4915 = vmax.f32 %v4390, 0.0
        %v4916 = vmax.f32 %v4774, 0.0
        %v4917 = vmax.f32 %v4776, 0.0
        %v4918 = vmax.f32 %v4394, 0.0
        %v4919 = vmax.f32 %v4396, 0.0
        %v4920 = vmax.f32 %v4780, 0.0
        %v4921 = vmax.f32 %v4782, 0.0
        %v4922 = vmax.f32 %v4398, 0.0
        %v4923 = vmax.f32 %v4400, 0.0
        %v4924 = vmax.f32 %v4784, 0.0
        %v4925 = vmax.f32 %v4786, 0.0
        %v4926 = vmax.f32 %v4404, 0.0
        %v4927 = vmax.f32 %v4406, 0.0
        %v4928 = vmax.f32 %v4790, 0.0
        %v4929 = vmax.f32 %v4792, 0.0
        %v4930 = vmax.f32 %v4408, 0.0
        %v4931 = vmax.f32 %v4410, 0.0
        %v4932 = vmax.f32 %v4794, 0.0
        %v4933 = vmax.f32 %v4796, 0.0
        %v4934 = vmax.f32 %v4414, 0.0
        %v4935 = vmax.f32 %v4416, 0.0
        %v4936 = vmax.f32 %v4800, 0.0
        %v4937 = vmax.f32 %v4802, 0.0
        %v4938 = vmax.f32 %v4418, 0.0
        %v4939 = vmax.f32 %v4420, 0.0
        %v4940 = vmax.f32 %v4804, 0.0
        %v4941 = vmax.f32 %v4806, 0.0
        %v4942 = vmax.f32 %v4424, 0.0
        %v4943 = vmax.f32 %v4426, 0.0
        %v4944 = vmax.f32 %v4810, 0.0
        %v4945 = vmax.f32 %v4812, 0.0
        %v4946 = vmax.f32 %v4428, 0.0
        %v4947 = vmax.f32 %v4430, 0.0
        %v4948 = vmax.f32 %v4814, 0.0
        %v4949 = vmax.f32 %v4816, 0.0
        %v4950 = vmax.f32 %v4434, 0.0
        %v4951 = vmax.f32 %v4436, 0.0
        %v4952 = vmax.f32 %v4820, 0.0
        %v4953 = vmax.f32 %v4822, 0.0
        %v4954 = vmax.f32 %v4438, 0.0
        %v4955 = vmax.f32 %v4440, 0.0
        %v4956 = vmax.f32 %v4824, 0.0
        %v4957 = vmax.f32 %v4826, 0.0
        %v4958 = vmax.f32 %v4444, 0.0
        %v4959 = vmax.f32 %v4446, 0.0
        %v4960 = vmax.f32 %v4830, 0.0
        %v4961 = vmax.f32 %v4832, 0.0
        %v4962 = vmax.f32 %v4448, 0.0
        %v4963 = vmax.f32 %v4450, 0.0
        %v4964 = vmax.f32 %v4834, 0.0
        %v4965 = vmax.f32 %v4836, 0.0
        %v4966 = vpack.c.bf16 %v4842, %v4838
        %v4967 = vpack.c.bf16 %v4843, %v4839
        %v4968 = vpack.c.bf16 %v4844, %v4840
        %v4969 = vpack.c.bf16 %v4845, %v4841
        %v4970 = vpack.c.bf16 %v4850, %v4846
        %v4971 = vpack.c.bf16 %v4851, %v4847
        %v4972 = vpack.c.bf16 %v4852, %v4848
        %v4973 = vpack.c.bf16 %v4853, %v4849
        %v4974 = vpack.c.bf16 %v4858, %v4854
        %v4975 = vpack.c.bf16 %v4859, %v4855
        %v4976 = vpack.c.bf16 %v4860, %v4856
        %v4977 = vpack.c.bf16 %v4861, %v4857
        %v4978 = vpack.c.bf16 %v4866, %v4862
        %v4979 = vpack.c.bf16 %v4867, %v4863
        %v4980 = vpack.c.bf16 %v4868, %v4864
        %v4981 = vpack.c.bf16 %v4869, %v4865
        %v4982 = vpack.c.bf16 %v4874, %v4870
        %v4983 = vpack.c.bf16 %v4875, %v4871
        %v4984 = vpack.c.bf16 %v4876, %v4872
        %v4985 = vpack.c.bf16 %v4877, %v4873
        %v4986 = vpack.c.bf16 %v4882, %v4878
        %v4987 = vpack.c.bf16 %v4883, %v4879
        %v4988 = vpack.c.bf16 %v4884, %v4880
        %v4989 = vpack.c.bf16 %v4885, %v4881
        %v4990 = vpack.c.bf16 %v4890, %v4886
        %v4991 = vpack.c.bf16 %v4891, %v4887
        %v4992 = vpack.c.bf16 %v4892, %v4888
        %v4993 = vpack.c.bf16 %v4893, %v4889
        %v4994 = vpack.c.bf16 %v4898, %v4894
        %v4995 = vpack.c.bf16 %v4899, %v4895
        %v4996 = vpack.c.bf16 %v4900, %v4896
        %v4997 = vpack.c.bf16 %v4901, %v4897
        %v4998 = vpack.c.bf16 %v4906, %v4902
        %v4999 = vpack.c.bf16 %v4907, %v4903
        %v5000 = vpack.c.bf16 %v4908, %v4904
        %v5001 = vpack.c.bf16 %v4909, %v4905
        %v5002 = vpack.c.bf16 %v4914, %v4910
        %v5003 = vpack.c.bf16 %v4915, %v4911
        %v5004 = vpack.c.bf16 %v4916, %v4912
        %v5005 = vpack.c.bf16 %v4917, %v4913
        %v5006 = vpack.c.bf16 %v4922, %v4918
        %v5007 = vpack.c.bf16 %v4923, %v4919
        %v5008 = vpack.c.bf16 %v4924, %v4920
        %v5009 = vpack.c.bf16 %v4925, %v4921
        %v5010 = vpack.c.bf16 %v4930, %v4926
        %v5011 = vpack.c.bf16 %v4931, %v4927
        %v5012 = vpack.c.bf16 %v4932, %v4928
        %v5013 = vpack.c.bf16 %v4933, %v4929
        %v5014 = vpack.c.bf16 %v4938, %v4934
        %v5015 = vpack.c.bf16 %v4939, %v4935
        %v5016 = vpack.c.bf16 %v4940, %v4936
        %v5017 = vpack.c.bf16 %v4941, %v4937
        %v5018 = vpack.c.bf16 %v4946, %v4942
        %v5019 = vpack.c.bf16 %v4947, %v4943
        %v5020 = vpack.c.bf16 %v4948, %v4944
        %v5021 = vpack.c.bf16 %v4949, %v4945
        %v5022 = vpack.c.bf16 %v4954, %v4950
        %v5023 = vpack.c.bf16 %v4955, %v4951
        %v5024 = vpack.c.bf16 %v4956, %v4952
        %v5025 = vpack.c.bf16 %v4957, %v4953
        %v5026 = vpack.c.bf16 %v4962, %v4958
        %v5027 = vpack.c.bf16 %v4963, %v4959
        %v5028 = vpack.c.bf16 %v4964, %v4960
        %v5029 = vpack.c.bf16 %v4965, %v4961
        %v5030 = vld [vmem:[#allocation9 + $0x300] sm:$0xff]
        %v5031 = vld [vmem:[#allocation9 + $0x308] sm:$0xf]
        %v5032 = vld [vmem:[#allocation9 + $0x30c] sm:$0xff]
        %v5033 = vld [vmem:[#allocation9 + $0x314] sm:$0xf]
        %v5034 = vld [vmem:[#allocation9 + $0x318] sm:$0xff]
        %v5035 = vld [vmem:[#allocation9 + $0x320] sm:$0xf]
        %v5036 = vld [vmem:[#allocation9 + $0x324] sm:$0xff]
        %v5037 = vld [vmem:[#allocation9 + $0x32c] sm:$0xf]
        %v5038 = vld [vmem:[#allocation9 + $0x330] sm:$0xff]
        %v5039 = vld [vmem:[#allocation9 + $0x338] sm:$0xf]
        %v5040 = vld [vmem:[#allocation9 + $0x33c] sm:$0xff]
        %v5041 = vld [vmem:[#allocation9 + $0x344] sm:$0xf]
        %v5042 = vld [vmem:[#allocation9 + $0x348] sm:$0xff]
        %v5043 = vld [vmem:[#allocation9 + $0x350] sm:$0xf]
        %v5044 = vld [vmem:[#allocation9 + $0x354] sm:$0xff]
        %v5045 = vld [vmem:[#allocation9 + $0x35c] sm:$0xf]
        %v5046 = vld [vmem:[#allocation9 + $0x360] sm:$0xff]
        %v5047 = vld [vmem:[#allocation9 + $0x368] sm:$0xf]
        %v5048 = vld [vmem:[#allocation9 + $0x36c] sm:$0xff]
        %v5049 = vld [vmem:[#allocation9 + $0x374] sm:$0xf]
        %v5050 = vld [vmem:[#allocation9 + $0x378] sm:$0xff]
        %v5051 = vld [vmem:[#allocation9 + $0x380] sm:$0xf]
        %v5052 = vld [vmem:[#allocation9 + $0x384] sm:$0xff]
        %v5053 = vld [vmem:[#allocation9 + $0x38c] sm:$0xf]
        %v5054 = vld [vmem:[#allocation9 + $0x390] sm:$0xff]
        %v5055 = vld [vmem:[#allocation9 + $0x398] sm:$0xf]
        %v5056 = vld [vmem:[#allocation9 + $0x39c] sm:$0xff]
        %v5057 = vld [vmem:[#allocation9 + $0x3a4] sm:$0xf]
        %v5058 = vld [vmem:[#allocation9 + $0x3a8] sm:$0xff]
        %v5059 = vld [vmem:[#allocation9 + $0x3b0] sm:$0xf]
        %v5060 = vld [vmem:[#allocation9 + $0x3b4] sm:$0xff]
        %v5061 = vld [vmem:[#allocation9 + $0x3bc] sm:$0xf]
        %v5062 = vld [vmem:[#allocation9 + $0x3c0] sm:$0xff]
        %v5063 = vld [vmem:[#allocation9 + $0x3c8] sm:$0xf]
        %v5064 = vld [vmem:[#allocation9 + $0x3cc] sm:$0xff]
        %v5065 = vld [vmem:[#allocation9 + $0x3d4] sm:$0xf]
        %v5066 = vld [vmem:[#allocation9 + $0x3d8] sm:$0xff]
        %v5067 = vld [vmem:[#allocation9 + $0x3e0] sm:$0xf]
        %v5068 = vld [vmem:[#allocation9 + $0x3e4] sm:$0xff]
        %v5069 = vld [vmem:[#allocation9 + $0x3ec] sm:$0xf]
        %v5070 = vld [vmem:[#allocation9 + $0x3f0] sm:$0xff]
        %v5071 = vld [vmem:[#allocation9 + $0x3f8] sm:$0xf]
        %v5072 = vld [vmem:[#allocation9 + $0x3fc] sm:$0xff]
        %v5073 = vld [vmem:[#allocation9 + $0x404] sm:$0xf]
        %v5074 = vld [vmem:[#allocation9 + $0x408] sm:$0xff]
        %v5075 = vld [vmem:[#allocation9 + $0x410] sm:$0xf]
        %v5076 = vld [vmem:[#allocation9 + $0x414] sm:$0xff]
        %v5077 = vld [vmem:[#allocation9 + $0x41c] sm:$0xf]
        %v5078 = vld [vmem:[#allocation9 + $0x420] sm:$0xff]
        %v5079 = vld [vmem:[#allocation9 + $0x428] sm:$0xf]
        %v5080 = vld [vmem:[#allocation9 + $0x42c] sm:$0xff]
        %v5081 = vld [vmem:[#allocation9 + $0x434] sm:$0xf]
        %v5082 = vld [vmem:[#allocation9 + $0x438] sm:$0xff]
        %v5083 = vld [vmem:[#allocation9 + $0x440] sm:$0xf]
        %v5084 = vld [vmem:[#allocation9 + $0x444] sm:$0xff]
        %v5085 = vld [vmem:[#allocation9 + $0x44c] sm:$0xf]
        %v5086 = vld [vmem:[#allocation9 + $0x450] sm:$0xff]
        %v5087 = vld [vmem:[#allocation9 + $0x458] sm:$0xf]
        %v5088 = vld [vmem:[#allocation9 + $0x45c] sm:$0xff]
        %v5089 = vld [vmem:[#allocation9 + $0x464] sm:$0xf]
        %v5090 = vld [vmem:[#allocation9 + $0x468] sm:$0xff]
        %v5091 = vld [vmem:[#allocation9 + $0x470] sm:$0xf]
        %v5092 = vld [vmem:[#allocation9 + $0x474] sm:$0xff]
        %v5093 = vld [vmem:[#allocation9 + $0x47c] sm:$0xf]
        %v5094 = vld [vmem:[#allocation9 + $0x480] sm:$0xff]
        %v5095 = vld [vmem:[#allocation9 + $0x488] sm:$0xf]
        %v5096 = vld [vmem:[#allocation9 + $0x48c] sm:$0xff]
        %v5097 = vld [vmem:[#allocation9 + $0x494] sm:$0xf]
        %v5098 = vld [vmem:[#allocation9 + $0x498] sm:$0xff]
        %v5099 = vld [vmem:[#allocation9 + $0x4a0] sm:$0xf]
        %v5100 = vld [vmem:[#allocation9 + $0x4a4] sm:$0xff]
        %v5101 = vld [vmem:[#allocation9 + $0x4ac] sm:$0xf]
        %v5102 = vld [vmem:[#allocation9 + $0x4b0] sm:$0xff]
        %v5103 = vld [vmem:[#allocation9 + $0x4b8] sm:$0xf]
        %v5104 = vld [vmem:[#allocation9 + $0x4bc] sm:$0xff]
        %v5105 = vld [vmem:[#allocation9 + $0x4c4] sm:$0xf]
        %v5106 = vld [vmem:[#allocation9 + $0x4c8] sm:$0xff]
        %v5107 = vld [vmem:[#allocation9 + $0x4d0] sm:$0xf]
        %v5108 = vld [vmem:[#allocation9 + $0x4d4] sm:$0xff]
        %v5109 = vld [vmem:[#allocation9 + $0x4dc] sm:$0xf]
        %v5110 = vld [vmem:[#allocation9 + $0x4e0] sm:$0xff]
        %v5111 = vld [vmem:[#allocation9 + $0x4e8] sm:$0xf]
        %v5112 = vld [vmem:[#allocation9 + $0x4ec] sm:$0xff]
        %v5113 = vld [vmem:[#allocation9 + $0x4f4] sm:$0xf]
        %v5114 = vld [vmem:[#allocation9 + $0x4f8] sm:$0xff]
        %v5115 = vld [vmem:[#allocation9 + $0x500] sm:$0xf]
        %v5116 = vld [vmem:[#allocation9 + $0x504] sm:$0xff]
        %v5117 = vld [vmem:[#allocation9 + $0x50c] sm:$0xf]
        %v5118 = vld [vmem:[#allocation9 + $0x510] sm:$0xff]
        %v5119 = vld [vmem:[#allocation9 + $0x518] sm:$0xf]
        %v5120 = vld [vmem:[#allocation9 + $0x51c] sm:$0xff]
        %v5121 = vld [vmem:[#allocation9 + $0x524] sm:$0xf]
        %v5122 = vld [vmem:[#allocation9 + $0x528] sm:$0xff]
        %v5123 = vld [vmem:[#allocation9 + $0x530] sm:$0xf]
        %v5124 = vld [vmem:[#allocation9 + $0x534] sm:$0xff]
        %v5125 = vld [vmem:[#allocation9 + $0x53c] sm:$0xf]
        %v5126 = vld [vmem:[#allocation9 + $0x540] sm:$0xff]
        %v5127 = vld [vmem:[#allocation9 + $0x548] sm:$0xf]
        %v5128 = vld [vmem:[#allocation9 + $0x54c] sm:$0xff]
        %v5129 = vld [vmem:[#allocation9 + $0x554] sm:$0xf]
        %v5130 = vld [vmem:[#allocation9 + $0x558] sm:$0xff]
        %v5131 = vld [vmem:[#allocation9 + $0x560] sm:$0xf]
        %v5132 = vld [vmem:[#allocation9 + $0x564] sm:$0xff]
        %v5133 = vld [vmem:[#allocation9 + $0x56c] sm:$0xf]
        %v5134 = vld [vmem:[#allocation9 + $0x570] sm:$0xff]
        %v5135 = vld [vmem:[#allocation9 + $0x578] sm:$0xf]
        %v5136 = vld [vmem:[#allocation9 + $0x57c] sm:$0xff]
        %v5137 = vld [vmem:[#allocation9 + $0x584] sm:$0xf]
        %v5138 = vld [vmem:[#allocation9 + $0x588] sm:$0xff]
        %v5139 = vld [vmem:[#allocation9 + $0x590] sm:$0xf]
        %v5140 = vld [vmem:[#allocation9 + $0x594] sm:$0xff]
        %v5141 = vld [vmem:[#allocation9 + $0x59c] sm:$0xf]
        %v5142 = vld [vmem:[#allocation9 + $0x5a0] sm:$0xff]
        %v5143 = vld [vmem:[#allocation9 + $0x5a8] sm:$0xf]
        %v5144 = vld [vmem:[#allocation9 + $0x5ac] sm:$0xff]
        %v5145 = vld [vmem:[#allocation9 + $0x5b4] sm:$0xf]
        %v5146 = vld [vmem:[#allocation9 + $0x5b8] sm:$0xff]
        %v5147 = vld [vmem:[#allocation9 + $0x5c0] sm:$0xf]
        %v5148 = vld [vmem:[#allocation9 + $0x5c4] sm:$0xff]
        %v5149 = vld [vmem:[#allocation9 + $0x5cc] sm:$0xf]
        %v5150 = vld [vmem:[#allocation9 + $0x5d0] sm:$0xff]
        %v5151 = vld [vmem:[#allocation9 + $0x5d8] sm:$0xf]
        %v5152 = vld [vmem:[#allocation9 + $0x5dc] sm:$0xff]
        %v5153 = vld [vmem:[#allocation9 + $0x5e4] sm:$0xf]
        %v5154 = vld [vmem:[#allocation9 + $0x5e8] sm:$0xff]
        %v5155 = vld [vmem:[#allocation9 + $0x5f0] sm:$0xf]
        %v5156 = vld [vmem:[#allocation9 + $0x5f4] sm:$0xff]
        %v5157 = vld [vmem:[#allocation9 + $0x5fc] sm:$0xf]
        %v5286 = vunpack.c.l.b16 %v5030
        %v5287 = vunpack.c.h.b16 %v5030
        %v5288 = vunpack.c.l.b16 %v5031
        %v5289 = vunpack.c.l.b16 %v5032
        %v5290 = vunpack.c.h.b16 %v5032
        %v5291 = vunpack.c.l.b16 %v5033
        %v5292 = vunpack.c.l.b16 %v5034
        %v5293 = vunpack.c.h.b16 %v5034
        %v5294 = vunpack.c.l.b16 %v5035
        %v5295 = vunpack.c.l.b16 %v5036
        %v5296 = vunpack.c.h.b16 %v5036
        %v5297 = vunpack.c.l.b16 %v5037
        %v5298 = vunpack.c.l.b16 %v5038
        %v5299 = vunpack.c.h.b16 %v5038
        %v5300 = vunpack.c.l.b16 %v5039
        %v5301 = vunpack.c.l.b16 %v5040
        %v5302 = vunpack.c.h.b16 %v5040
        %v5303 = vunpack.c.l.b16 %v5041
        %v5304 = vunpack.c.l.b16 %v5042
        %v5305 = vunpack.c.h.b16 %v5042
        %v5306 = vunpack.c.l.b16 %v5043
        %v5307 = vunpack.c.l.b16 %v5044
        %v5308 = vunpack.c.h.b16 %v5044
        %v5309 = vunpack.c.l.b16 %v5045
        %v5310 = vunpack.c.l.b16 %v5046
        %v5311 = vunpack.c.h.b16 %v5046
        %v5312 = vunpack.c.l.b16 %v5047
        %v5313 = vunpack.c.l.b16 %v5048
        %v5314 = vunpack.c.h.b16 %v5048
        %v5315 = vunpack.c.l.b16 %v5049
        %v5316 = vunpack.c.l.b16 %v5050
        %v5317 = vunpack.c.h.b16 %v5050
        %v5318 = vunpack.c.l.b16 %v5051
        %v5319 = vunpack.c.l.b16 %v5052
        %v5320 = vunpack.c.h.b16 %v5052
        %v5321 = vunpack.c.l.b16 %v5053
        %v5322 = vunpack.c.l.b16 %v5054
        %v5323 = vunpack.c.h.b16 %v5054
        %v5324 = vunpack.c.l.b16 %v5055
        %v5325 = vunpack.c.l.b16 %v5056
        %v5326 = vunpack.c.h.b16 %v5056
        %v5327 = vunpack.c.l.b16 %v5057
        %v5328 = vunpack.c.l.b16 %v5058
        %v5329 = vunpack.c.h.b16 %v5058
        %v5330 = vunpack.c.l.b16 %v5059
        %v5331 = vunpack.c.l.b16 %v5060
        %v5332 = vunpack.c.h.b16 %v5060
        %v5333 = vunpack.c.l.b16 %v5061
        %v5334 = vunpack.c.l.b16 %v5062
        %v5335 = vunpack.c.h.b16 %v5062
        %v5336 = vunpack.c.l.b16 %v5063
        %v5337 = vunpack.c.l.b16 %v5064
        %v5338 = vunpack.c.h.b16 %v5064
        %v5339 = vunpack.c.l.b16 %v5065
        %v5340 = vunpack.c.l.b16 %v5066
        %v5341 = vunpack.c.h.b16 %v5066
        %v5342 = vunpack.c.l.b16 %v5067
        %v5343 = vunpack.c.l.b16 %v5068
        %v5344 = vunpack.c.h.b16 %v5068
        %v5345 = vunpack.c.l.b16 %v5069
        %v5346 = vunpack.c.l.b16 %v5070
        %v5347 = vunpack.c.h.b16 %v5070
        %v5348 = vunpack.c.l.b16 %v5071
        %v5349 = vunpack.c.l.b16 %v5072
        %v5350 = vunpack.c.h.b16 %v5072
        %v5351 = vunpack.c.l.b16 %v5073
        %v5352 = vunpack.c.l.b16 %v5074
        %v5353 = vunpack.c.h.b16 %v5074
        %v5354 = vunpack.c.l.b16 %v5075
        %v5355 = vunpack.c.l.b16 %v5076
        %v5356 = vunpack.c.h.b16 %v5076
        %v5357 = vunpack.c.l.b16 %v5077
        %v5358 = vunpack.c.l.b16 %v5078
        %v5359 = vunpack.c.h.b16 %v5078
        %v5360 = vunpack.c.l.b16 %v5079
        %v5361 = vunpack.c.l.b16 %v5080
        %v5362 = vunpack.c.h.b16 %v5080
        %v5363 = vunpack.c.l.b16 %v5081
        %v5364 = vunpack.c.l.b16 %v5082
        %v5365 = vunpack.c.h.b16 %v5082
        %v5366 = vunpack.c.l.b16 %v5083
        %v5367 = vunpack.c.l.b16 %v5084
        %v5368 = vunpack.c.h.b16 %v5084
        %v5369 = vunpack.c.l.b16 %v5085
        %v5370 = vunpack.c.l.b16 %v5086
        %v5371 = vunpack.c.h.b16 %v5086
        %v5372 = vunpack.c.l.b16 %v5087
        %v5373 = vunpack.c.l.b16 %v5088
        %v5374 = vunpack.c.h.b16 %v5088
        %v5375 = vunpack.c.l.b16 %v5089
        %v5376 = vunpack.c.l.b16 %v5090
        %v5377 = vunpack.c.h.b16 %v5090
        %v5378 = vunpack.c.l.b16 %v5091
        %v5379 = vunpack.c.l.b16 %v5092
        %v5380 = vunpack.c.h.b16 %v5092
        %v5381 = vunpack.c.l.b16 %v5093
        %v5382 = vunpack.c.l.b16 %v5094
        %v5383 = vunpack.c.h.b16 %v5094
        %v5384 = vunpack.c.l.b16 %v5095
        %v5385 = vunpack.c.l.b16 %v5096
        %v5386 = vunpack.c.h.b16 %v5096
        %v5387 = vunpack.c.l.b16 %v5097
        %v5388 = vunpack.c.l.b16 %v5098
        %v5389 = vunpack.c.h.b16 %v5098
        %v5390 = vunpack.c.l.b16 %v5099
        %v5391 = vunpack.c.l.b16 %v5100
        %v5392 = vunpack.c.h.b16 %v5100
        %v5393 = vunpack.c.l.b16 %v5101
        %v5394 = vunpack.c.l.b16 %v5102
        %v5395 = vunpack.c.h.b16 %v5102
        %v5396 = vunpack.c.l.b16 %v5103
        %v5397 = vunpack.c.l.b16 %v5104
        %v5398 = vunpack.c.h.b16 %v5104
        %v5399 = vunpack.c.l.b16 %v5105
        %v5400 = vunpack.c.l.b16 %v5106
        %v5401 = vunpack.c.h.b16 %v5106
        %v5402 = vunpack.c.l.b16 %v5107
        %v5403 = vunpack.c.l.b16 %v5108
        %v5404 = vunpack.c.h.b16 %v5108
        %v5405 = vunpack.c.l.b16 %v5109
        %v5406 = vunpack.c.l.b16 %v5110
        %v5407 = vunpack.c.h.b16 %v5110
        %v5408 = vunpack.c.l.b16 %v5111
        %v5409 = vunpack.c.l.b16 %v5112
        %v5410 = vunpack.c.h.b16 %v5112
        %v5411 = vunpack.c.l.b16 %v5113
        %v5412 = vunpack.c.l.b16 %v5114
        %v5413 = vunpack.c.h.b16 %v5114
        %v5414 = vunpack.c.l.b16 %v5115
        %v5415 = vunpack.c.l.b16 %v5116
        %v5416 = vunpack.c.h.b16 %v5116
        %v5417 = vunpack.c.l.b16 %v5117
        %v5418 = vunpack.c.l.b16 %v5118
        %v5419 = vunpack.c.h.b16 %v5118
        %v5420 = vunpack.c.l.b16 %v5119
        %v5421 = vunpack.c.l.b16 %v5120
        %v5422 = vunpack.c.h.b16 %v5120
        %v5423 = vunpack.c.l.b16 %v5121
        %v5424 = vunpack.c.l.b16 %v5122
        %v5425 = vunpack.c.h.b16 %v5122
        %v5426 = vunpack.c.l.b16 %v5123
        %v5427 = vunpack.c.l.b16 %v5124
        %v5428 = vunpack.c.h.b16 %v5124
        %v5429 = vunpack.c.l.b16 %v5125
        %v5430 = vunpack.c.l.b16 %v5126
        %v5431 = vunpack.c.h.b16 %v5126
        %v5432 = vunpack.c.l.b16 %v5127
        %v5433 = vunpack.c.l.b16 %v5128
        %v5434 = vunpack.c.h.b16 %v5128
        %v5435 = vunpack.c.l.b16 %v5129
        %v5436 = vunpack.c.l.b16 %v5130
        %v5437 = vunpack.c.h.b16 %v5130
        %v5438 = vunpack.c.l.b16 %v5131
        %v5439 = vunpack.c.l.b16 %v5132
        %v5440 = vunpack.c.h.b16 %v5132
        %v5441 = vunpack.c.l.b16 %v5133
        %v5442 = vunpack.c.l.b16 %v5134
        %v5443 = vunpack.c.h.b16 %v5134
        %v5444 = vunpack.c.l.b16 %v5135
        %v5445 = vunpack.c.l.b16 %v5136
        %v5446 = vunpack.c.h.b16 %v5136
        %v5447 = vunpack.c.l.b16 %v5137
        %v5448 = vunpack.c.l.b16 %v5138
        %v5449 = vunpack.c.h.b16 %v5138
        %v5450 = vunpack.c.l.b16 %v5139
        %v5451 = vunpack.c.l.b16 %v5140
        %v5452 = vunpack.c.h.b16 %v5140
        %v5453 = vunpack.c.l.b16 %v5141
        %v5454 = vunpack.c.l.b16 %v5142
        %v5455 = vunpack.c.h.b16 %v5142
        %v5456 = vunpack.c.l.b16 %v5143
        %v5457 = vunpack.c.l.b16 %v5144
        %v5458 = vunpack.c.h.b16 %v5144
        %v5459 = vunpack.c.l.b16 %v5145
        %v5460 = vunpack.c.l.b16 %v5146
        %v5461 = vunpack.c.h.b16 %v5146
        %v5462 = vunpack.c.l.b16 %v5147
        %v5463 = vunpack.c.l.b16 %v5148
        %v5464 = vunpack.c.h.b16 %v5148
        %v5465 = vunpack.c.l.b16 %v5149
        %v5466 = vunpack.c.l.b16 %v5150
        %v5467 = vunpack.c.h.b16 %v5150
        %v5468 = vunpack.c.l.b16 %v5151
        %v5469 = vunpack.c.l.b16 %v5152
        %v5470 = vunpack.c.h.b16 %v5152
        %v5471 = vunpack.c.l.b16 %v5153
        %v5472 = vunpack.c.l.b16 %v5154
        %v5473 = vunpack.c.h.b16 %v5154
        %v5474 = vunpack.c.l.b16 %v5155
        %v5475 = vunpack.c.l.b16 %v5156
        %v5476 = vunpack.c.h.b16 %v5156
        %v5477 = vunpack.c.l.b16 %v5157
        %v5478 = vpack.c.b16 %v5289, %v5286
        %v5479 = vpack.c.b16 %v5290, %v5287
        %v5480 = vpack.c.b16 %v5291, %v5288
        %v5481 = vpack.c.b16 %v5295, %v5292
        %v5482 = vpack.c.b16 %v5296, %v5293
        %v5483 = vpack.c.b16 %v5297, %v5294
        %v5484 = vpack.c.b16 %v5301, %v5298
        %v5485 = vpack.c.b16 %v5302, %v5299
        %v5486 = vpack.c.b16 %v5303, %v5300
        %v5487 = vpack.c.b16 %v5307, %v5304
        %v5488 = vpack.c.b16 %v5308, %v5305
        %v5489 = vpack.c.b16 %v5309, %v5306
        %v5490 = vpack.c.b16 %v5313, %v5310
        %v5491 = vpack.c.b16 %v5314, %v5311
        %v5492 = vpack.c.b16 %v5315, %v5312
        %v5493 = vpack.c.b16 %v5319, %v5316
        %v5494 = vpack.c.b16 %v5320, %v5317
        %v5495 = vpack.c.b16 %v5321, %v5318
        %v5496 = vpack.c.b16 %v5325, %v5322
        %v5497 = vpack.c.b16 %v5326, %v5323
        %v5498 = vpack.c.b16 %v5327, %v5324
        %v5499 = vpack.c.b16 %v5331, %v5328
        %v5500 = vpack.c.b16 %v5332, %v5329
        %v5501 = vpack.c.b16 %v5333, %v5330
        %v5502 = vpack.c.b16 %v5337, %v5334
        %v5503 = vpack.c.b16 %v5338, %v5335
        %v5504 = vpack.c.b16 %v5339, %v5336
        %v5505 = vpack.c.b16 %v5343, %v5340
        %v5506 = vpack.c.b16 %v5344, %v5341
        %v5507 = vpack.c.b16 %v5345, %v5342
        %v5508 = vpack.c.b16 %v5349, %v5346
        %v5509 = vpack.c.b16 %v5350, %v5347
        %v5510 = vpack.c.b16 %v5351, %v5348
        %v5511 = vpack.c.b16 %v5355, %v5352
        %v5512 = vpack.c.b16 %v5356, %v5353
        %v5513 = vpack.c.b16 %v5357, %v5354
        %v5514 = vpack.c.b16 %v5361, %v5358
        %v5515 = vpack.c.b16 %v5362, %v5359
        %v5516 = vpack.c.b16 %v5363, %v5360
        %v5517 = vpack.c.b16 %v5367, %v5364
        %v5518 = vpack.c.b16 %v5368, %v5365
        %v5519 = vpack.c.b16 %v5369, %v5366
        %v5520 = vpack.c.b16 %v5373, %v5370
        %v5521 = vpack.c.b16 %v5374, %v5371
        %v5522 = vpack.c.b16 %v5375, %v5372
        %v5523 = vpack.c.b16 %v5379, %v5376
        %v5524 = vpack.c.b16 %v5380, %v5377
        %v5525 = vpack.c.b16 %v5381, %v5378
        %v5526 = vpack.c.b16 %v5385, %v5382
        %v5527 = vpack.c.b16 %v5386, %v5383
        %v5528 = vpack.c.b16 %v5387, %v5384
        %v5529 = vpack.c.b16 %v5391, %v5388
        %v5530 = vpack.c.b16 %v5392, %v5389
        %v5531 = vpack.c.b16 %v5393, %v5390
        %v5532 = vpack.c.b16 %v5397, %v5394
        %v5533 = vpack.c.b16 %v5398, %v5395
        %v5534 = vpack.c.b16 %v5399, %v5396
        %v5535 = vpack.c.b16 %v5403, %v5400
        %v5536 = vpack.c.b16 %v5404, %v5401
        %v5537 = vpack.c.b16 %v5405, %v5402
        %v5538 = vpack.c.b16 %v5409, %v5406
        %v5539 = vpack.c.b16 %v5410, %v5407
        %v5540 = vpack.c.b16 %v5411, %v5408
        %v5541 = vpack.c.b16 %v5415, %v5412
        %v5542 = vpack.c.b16 %v5416, %v5413
        %v5543 = vpack.c.b16 %v5417, %v5414
        %v5544 = vpack.c.b16 %v5421, %v5418
        %v5545 = vpack.c.b16 %v5422, %v5419
        %v5546 = vpack.c.b16 %v5423, %v5420
        %v5547 = vpack.c.b16 %v5427, %v5424
        %v5548 = vpack.c.b16 %v5428, %v5425
        %v5549 = vpack.c.b16 %v5429, %v5426
        %v5550 = vpack.c.b16 %v5433, %v5430
        %v5551 = vpack.c.b16 %v5434, %v5431
        %v5552 = vpack.c.b16 %v5435, %v5432
        %v5553 = vpack.c.b16 %v5439, %v5436
        %v5554 = vpack.c.b16 %v5440, %v5437
        %v5555 = vpack.c.b16 %v5441, %v5438
        %v5556 = vpack.c.b16 %v5445, %v5442
        %v5557 = vpack.c.b16 %v5446, %v5443
        %v5558 = vpack.c.b16 %v5447, %v5444
        %v5559 = vpack.c.b16 %v5451, %v5448
        %v5560 = vpack.c.b16 %v5452, %v5449
        %v5561 = vpack.c.b16 %v5453, %v5450
        %v5562 = vpack.c.b16 %v5457, %v5454
        %v5563 = vpack.c.b16 %v5458, %v5455
        %v5564 = vpack.c.b16 %v5459, %v5456
        %v5565 = vpack.c.b16 %v5463, %v5460
        %v5566 = vpack.c.b16 %v5464, %v5461
        %v5567 = vpack.c.b16 %v5465, %v5462
        %v5568 = vpack.c.b16 %v5469, %v5466
        %v5569 = vpack.c.b16 %v5470, %v5467
        %v5570 = vpack.c.b16 %v5471, %v5468
        %v5571 = vpack.c.b16 %v5475, %v5472
        %v5572 = vpack.c.b16 %v5476, %v5473
        %v5573 = vpack.c.b16 %v5477, %v5474
        %5670 = vmatprep.subr.bf16.mxu0 %v5479
        %5671 = vmatpush1.bf16.msra.mxu0 %v5478
        %5672 = vmatprep.subr.bf16.mxu0 %v5482
        %5673 = vmatpush1.bf16.msra.mxu0 %v5481
        %5674 = vmatprep.subr.bf16.mxu0 %v5485
        %5675 = vmatpush1.bf16.msra.mxu0 %v5484
        %5676 = vmatprep.subr.bf16.mxu0 %v5488
        %5677 = vmatpush1.bf16.msra.mxu0 %v5487
        %5678 = vmatprep.subr.bf16.mxu0 %v5491
        %5679 = vmatpush1.bf16.msra.mxu0 %v5490
        %5680 = vmatprep.subr.bf16.mxu0 %v5494
        %5681 = vmatpush1.bf16.msra.mxu0 %v5493
        %5682 = vmatprep.subr.bf16.mxu0 %v5497
        %5683 = vmatpush1.bf16.msra.mxu0 %v5496
        %5684 = vmatprep.subr.bf16.mxu0 %v5500
        %5685 = vmatpush1.bf16.msra.mxu0 %v5499
        %5686 = vmatprep.subr.bf16.mxu0 %v5503
        %5687 = vmatpush1.bf16.msra.mxu0 %v5502
        %5688 = vmatprep.subr.bf16.mxu0 %v5506
        %5689 = vmatpush1.bf16.msra.mxu0 %v5505
        %5690 = vmatprep.subr.bf16.mxu0 %v5509
        %5691 = vmatpush1.bf16.msra.mxu0 %v5508
        %5692 = vmatprep.subr.bf16.mxu0 %v5512
        %5693 = vmatpush1.bf16.msra.mxu0 %v5511
        %5694 = vmatprep.subr.bf16.mxu0 %v5515
        %5695 = vmatpush1.bf16.msra.mxu0 %v5514
        %5696 = vmatprep.subr.bf16.mxu0 %v5518
        %5697 = vmatpush1.bf16.msra.mxu0 %v5517
        %5698 = vmatprep.subr.bf16.mxu0 %v5521
        %5699 = vmatpush1.bf16.msra.mxu0 %v5520
        %5700 = vmatprep.subr.bf16.mxu0 %v5524
        %5701 = vmatpush1.bf16.msra.mxu0 %v5523
        %5702 = vmatprep.mubr.bf16.mxu0 %v4967
        %5703 = vmatmul.mubr.bf16.gmra.mrb[0].mxu0 %v4966
        %v5704 = vpop.f32.mrb[0].mxu0
        %v5705 = vadd.f32 0.0, %v5704
        %v5706 = vpop.f32.mrb[0].mxu0
        %v5707 = vadd.f32 0.0, %v5706
        %v5708 = vpop.f32.mrb[0].mxu0
        %v5709 = vadd.f32 0.0, %v5708
        %v5710 = vpop.f32.mrb[0].mxu0
        %v5711 = vadd.f32 0.0, %v5710
        %5712 = vmatprep.mubr.bf16.mxu0 %v4971
        %5713 = vmatmul.mubr.bf16.gmra.mrb[0].mxu0 %v4970
        %v5714 = vpop.f32.mrb[0].mxu0
        %v5715 = vadd.f32 0.0, %v5714
        %v5716 = vpop.f32.mrb[0].mxu0
        %v5717 = vadd.f32 0.0, %v5716
        %v5718 = vpop.f32.mrb[0].mxu0
        %v5719 = vadd.f32 0.0, %v5718
        %v5720 = vpop.f32.mrb[0].mxu0
        %v5721 = vadd.f32 0.0, %v5720
        %5722 = vmatprep.mubr.bf16.mxu0 %v4975
        %5723 = vmatmul.mubr.bf16.gmra.mrb[0].mxu0 %v4974
        %v5724 = vpop.f32.mrb[0].mxu0
        %v5725 = vadd.f32 0.0, %v5724
        %v5726 = vpop.f32.mrb[0].mxu0
        %v5727 = vadd.f32 0.0, %v5726
        %v5728 = vpop.f32.mrb[0].mxu0
        %v5729 = vadd.f32 0.0, %v5728
        %v5730 = vpop.f32.mrb[0].mxu0
        %v5731 = vadd.f32 0.0, %v5730
        %5732 = vmatprep.mubr.bf16.mxu0 %v4979
        %5733 = vmatmul.mubr.bf16.gmra.mrb[0].mxu0 %v4978
        %v5734 = vpop.f32.mrb[0].mxu0
        %v5735 = vadd.f32 0.0, %v5734
        %v5736 = vpop.f32.mrb[0].mxu0
        %v5737 = vadd.f32 0.0, %v5736
        %v5738 = vpop.f32.mrb[0].mxu0
        %v5739 = vadd.f32 0.0, %v5738
        %v5740 = vpop.f32.mrb[0].mxu0
        %v5741 = vadd.f32 0.0, %v5740
        %5742 = vmatprep.mubr.bf16.mxu0 %v4983
        %5743 = vmatmul.mubr.bf16.gmra.mrb[0].mxu0 %v4982
        %v5744 = vpop.f32.mrb[0].mxu0
        %v5745 = vadd.f32 0.0, %v5744
        %v5746 = vpop.f32.mrb[0].mxu0
        %v5747 = vadd.f32 0.0, %v5746
        %v5748 = vpop.f32.mrb[0].mxu0
        %v5749 = vadd.f32 0.0, %v5748
        %v5750 = vpop.f32.mrb[0].mxu0
        %v5751 = vadd.f32 0.0, %v5750
        %5752 = vmatprep.mubr.bf16.mxu0 %v4987
        %5753 = vmatmul.mubr.bf16.gmra.mrb[0].mxu0 %v4986
        %v5754 = vpop.f32.mrb[0].mxu0
        %v5755 = vadd.f32 0.0, %v5754
        %v5756 = vpop.f32.mrb[0].mxu0
        %v5757 = vadd.f32 0.0, %v5756
        %v5758 = vpop.f32.mrb[0].mxu0
        %v5759 = vadd.f32 0.0, %v5758
        %v5760 = vpop.f32.mrb[0].mxu0
        %v5761 = vadd.f32 0.0, %v5760
        %5762 = vmatprep.mubr.bf16.mxu0 %v4991
        %5763 = vmatmul.mubr.bf16.gmra.mrb[0].mxu0 %v4990
        %v5764 = vpop.f32.mrb[0].mxu0
        %v5765 = vadd.f32 0.0, %v5764
        %v5766 = vpop.f32.mrb[0].mxu0
        %v5767 = vadd.f32 0.0, %v5766
        %v5768 = vpop.f32.mrb[0].mxu0
        %v5769 = vadd.f32 0.0, %v5768
        %v5770 = vpop.f32.mrb[0].mxu0
        %v5771 = vadd.f32 0.0, %v5770
        %5772 = vmatprep.mubr.bf16.mxu0 %v4995
        %5773 = vmatmul.mubr.bf16.gmra.mrb[0].mxu0 %v4994
        %v5774 = vpop.f32.mrb[0].mxu0
        %v5775 = vadd.f32 0.0, %v5774
        %v5776 = vpop.f32.mrb[0].mxu0
        %v5777 = vadd.f32 0.0, %v5776
        %v5778 = vpop.f32.mrb[0].mxu0
        %v5779 = vadd.f32 0.0, %v5778
        %v5780 = vpop.f32.mrb[0].mxu0
        %v5781 = vadd.f32 0.0, %v5780
        %5782 = vmatprep.mubr.bf16.mxu0 %v4999
        %5783 = vmatmul.mubr.bf16.gmra.mrb[0].mxu0 %v4998
        %v5784 = vpop.f32.mrb[0].mxu0
        %v5785 = vadd.f32 0.0, %v5784
        %v5786 = vpop.f32.mrb[0].mxu0
        %v5787 = vadd.f32 0.0, %v5786
        %v5788 = vpop.f32.mrb[0].mxu0
        %v5789 = vadd.f32 0.0, %v5788
        %v5790 = vpop.f32.mrb[0].mxu0
        %v5791 = vadd.f32 0.0, %v5790
        %5792 = vmatprep.mubr.bf16.mxu0 %v5003
        %5793 = vmatmul.mubr.bf16.gmra.mrb[0].mxu0 %v5002
        %v5794 = vpop.f32.mrb[0].mxu0
        %v5795 = vadd.f32 0.0, %v5794
        %v5796 = vpop.f32.mrb[0].mxu0
        %v5797 = vadd.f32 0.0, %v5796
        %v5798 = vpop.f32.mrb[0].mxu0
        %v5799 = vadd.f32 0.0, %v5798
        %v5800 = vpop.f32.mrb[0].mxu0
        %v5801 = vadd.f32 0.0, %v5800
        %5802 = vmatprep.mubr.bf16.mxu0 %v5007
        %5803 = vmatmul.mubr.bf16.gmra.mrb[0].mxu0 %v5006
        %v5804 = vpop.f32.mrb[0].mxu0
        %v5805 = vadd.f32 0.0, %v5804
        %v5806 = vpop.f32.mrb[0].mxu0
        %v5807 = vadd.f32 0.0, %v5806
        %v5808 = vpop.f32.mrb[0].mxu0
        %v5809 = vadd.f32 0.0, %v5808
        %v5810 = vpop.f32.mrb[0].mxu0
        %v5811 = vadd.f32 0.0, %v5810
        %5812 = vmatprep.mubr.bf16.mxu0 %v5011
        %5813 = vmatmul.mubr.bf16.gmra.mrb[0].mxu0 %v5010
        %v5814 = vpop.f32.mrb[0].mxu0
        %v5815 = vadd.f32 0.0, %v5814
        %v5816 = vpop.f32.mrb[0].mxu0
        %v5817 = vadd.f32 0.0, %v5816
        %v5818 = vpop.f32.mrb[0].mxu0
        %v5819 = vadd.f32 0.0, %v5818
        %v5820 = vpop.f32.mrb[0].mxu0
        %v5821 = vadd.f32 0.0, %v5820
        %5822 = vmatprep.mubr.bf16.mxu0 %v5015
        %5823 = vmatmul.mubr.bf16.gmra.mrb[0].mxu0 %v5014
        %v5824 = vpop.f32.mrb[0].mxu0
        %v5825 = vadd.f32 0.0, %v5824
        %v5826 = vpop.f32.mrb[0].mxu0
        %v5827 = vadd.f32 0.0, %v5826
        %v5828 = vpop.f32.mrb[0].mxu0
        %v5829 = vadd.f32 0.0, %v5828
        %v5830 = vpop.f32.mrb[0].mxu0
        %v5831 = vadd.f32 0.0, %v5830
        %5832 = vmatprep.mubr.bf16.mxu0 %v5019
        %5833 = vmatmul.mubr.bf16.gmra.mrb[0].mxu0 %v5018
        %v5834 = vpop.f32.mrb[0].mxu0
        %v5835 = vadd.f32 0.0, %v5834
        %v5836 = vpop.f32.mrb[0].mxu0
        %v5837 = vadd.f32 0.0, %v5836
        %v5838 = vpop.f32.mrb[0].mxu0
        %v5839 = vadd.f32 0.0, %v5838
        %v5840 = vpop.f32.mrb[0].mxu0
        %v5841 = vadd.f32 0.0, %v5840
        %5842 = vmatprep.mubr.bf16.mxu0 %v5023
        %5843 = vmatmul.mubr.bf16.gmra.mrb[0].mxu0 %v5022
        %v5844 = vpop.f32.mrb[0].mxu0
        %v5845 = vadd.f32 0.0, %v5844
        %v5846 = vpop.f32.mrb[0].mxu0
        %v5847 = vadd.f32 0.0, %v5846
        %v5848 = vpop.f32.mrb[0].mxu0
        %v5849 = vadd.f32 0.0, %v5848
        %v5850 = vpop.f32.mrb[0].mxu0
        %v5851 = vadd.f32 0.0, %v5850
        %5852 = vmatprep.mubr.bf16.mxu0 %v5027
        %5853 = vmatmul.mubr.bf16.gmra.mrb[0].mxu0 %v5026
        %v5854 = vpop.f32.mrb[0].mxu0
        %v5855 = vadd.f32 0.0, %v5854
        %v5856 = vpop.f32.mrb[0].mxu0
        %v5857 = vadd.f32 0.0, %v5856
        %v5858 = vpop.f32.mrb[0].mxu0
        %v5859 = vadd.f32 0.0, %v5858
        %v5860 = vpop.f32.mrb[0].mxu0
        %v5861 = vadd.f32 0.0, %v5860
        %5862 = vdwg.mxu0
        %5863 = vmatprep.subr.bf16.mxu0 %v5527
        %5864 = vmatpush1.bf16.msra.mxu0 %v5526
        %5865 = vmatprep.subr.bf16.mxu0 %v5530
        %5866 = vmatpush1.bf16.msra.mxu0 %v5529
        %5867 = vmatprep.subr.bf16.mxu0 %v5533
        %5868 = vmatpush1.bf16.msra.mxu0 %v5532
        %5869 = vmatprep.subr.bf16.mxu0 %v5536
        %5870 = vmatpush1.bf16.msra.mxu0 %v5535
        %5871 = vmatprep.subr.bf16.mxu0 %v5539
        %5872 = vmatpush1.bf16.msra.mxu0 %v5538
        %5873 = vmatprep.subr.bf16.mxu0 %v5542
        %5874 = vmatpush1.bf16.msra.mxu0 %v5541
        %5875 = vmatprep.subr.bf16.mxu0 %v5545
        %5876 = vmatpush1.bf16.msra.mxu0 %v5544
        %5877 = vmatprep.subr.bf16.mxu0 %v5548
        %5878 = vmatpush1.bf16.msra.mxu0 %v5547
        %5879 = vmatprep.subr.bf16.mxu0 %v5551
        %5880 = vmatpush1.bf16.msra.mxu0 %v5550
        %5881 = vmatprep.subr.bf16.mxu0 %v5554
        %5882 = vmatpush1.bf16.msra.mxu0 %v5553
        %5883 = vmatprep.subr.bf16.mxu0 %v5557
        %5884 = vmatpush1.bf16.msra.mxu0 %v5556
        %5885 = vmatprep.subr.bf16.mxu0 %v5560
        %5886 = vmatpush1.bf16.msra.mxu0 %v5559
        %5887 = vmatprep.subr.bf16.mxu0 %v5563
        %5888 = vmatpush1.bf16.msra.mxu0 %v5562
        %5889 = vmatprep.subr.bf16.mxu0 %v5566
        %5890 = vmatpush1.bf16.msra.mxu0 %v5565
        %5891 = vmatprep.subr.bf16.mxu0 %v5569
        %5892 = vmatpush1.bf16.msra.mxu0 %v5568
        %5893 = vmatprep.subr.bf16.mxu0 %v5572
        %5894 = vmatpush1.bf16.msra.mxu0 %v5571
        %5895 = vmatprep.mubr.bf16.mxu0 %v4969
        %5896 = vmatmul.mubr.bf16.gmra.mrb[0].mxu0 %v4968
        %v5897 = vpop.f32.mrb[0].mxu0
        %v5898 = vadd.f32 %v5705, %v5897
        %v5899 = vpop.f32.mrb[0].mxu0
        %v5900 = vadd.f32 %v5707, %v5899
        %v5901 = vpop.f32.mrb[0].mxu0
        %v5902 = vadd.f32 %v5709, %v5901
        %v5903 = vpop.f32.mrb[0].mxu0
        %v5904 = vadd.f32 %v5711, %v5903
        %5905 = vmatprep.mubr.bf16.mxu0 %v4973
        %5906 = vmatmul.mubr.bf16.gmra.mrb[0].mxu0 %v4972
        %v5907 = vpop.f32.mrb[0].mxu0
        %v5908 = vadd.f32 %v5715, %v5907
        %v5909 = vpop.f32.mrb[0].mxu0
        %v5910 = vadd.f32 %v5717, %v5909
        %v5911 = vpop.f32.mrb[0].mxu0
        %v5912 = vadd.f32 %v5719, %v5911
        %v5913 = vpop.f32.mrb[0].mxu0
        %v5914 = vadd.f32 %v5721, %v5913
        %5915 = vmatprep.mubr.bf16.mxu0 %v4977
        %5916 = vmatmul.mubr.bf16.gmra.mrb[0].mxu0 %v4976
        %v5917 = vpop.f32.mrb[0].mxu0
        %v5918 = vadd.f32 %v5725, %v5917
        %v5919 = vpop.f32.mrb[0].mxu0
        %v5920 = vadd.f32 %v5727, %v5919
        %v5921 = vpop.f32.mrb[0].mxu0
        %v5922 = vadd.f32 %v5729, %v5921
        %v5923 = vpop.f32.mrb[0].mxu0
        %v5924 = vadd.f32 %v5731, %v5923
        %5925 = vmatprep.mubr.bf16.mxu0 %v4981
        %5926 = vmatmul.mubr.bf16.gmra.mrb[0].mxu0 %v4980
        %v5927 = vpop.f32.mrb[0].mxu0
        %v5928 = vadd.f32 %v5735, %v5927
        %v5929 = vpop.f32.mrb[0].mxu0
        %v5930 = vadd.f32 %v5737, %v5929
        %v5931 = vpop.f32.mrb[0].mxu0
        %v5932 = vadd.f32 %v5739, %v5931
        %v5933 = vpop.f32.mrb[0].mxu0
        %v5934 = vadd.f32 %v5741, %v5933
        %5935 = vmatprep.mubr.bf16.mxu0 %v4985
        %5936 = vmatmul.mubr.bf16.gmra.mrb[0].mxu0 %v4984
        %v5937 = vpop.f32.mrb[0].mxu0
        %v5938 = vadd.f32 %v5745, %v5937
        %v5939 = vpop.f32.mrb[0].mxu0
        %v5940 = vadd.f32 %v5747, %v5939
        %v5941 = vpop.f32.mrb[0].mxu0
        %v5942 = vadd.f32 %v5749, %v5941
        %v5943 = vpop.f32.mrb[0].mxu0
        %v5944 = vadd.f32 %v5751, %v5943
        %5945 = vmatprep.mubr.bf16.mxu0 %v4989
        %5946 = vmatmul.mubr.bf16.gmra.mrb[0].mxu0 %v4988
        %v5947 = vpop.f32.mrb[0].mxu0
        %v5948 = vadd.f32 %v5755, %v5947
        %v5949 = vpop.f32.mrb[0].mxu0
        %v5950 = vadd.f32 %v5757, %v5949
        %v5951 = vpop.f32.mrb[0].mxu0
        %v5952 = vadd.f32 %v5759, %v5951
        %v5953 = vpop.f32.mrb[0].mxu0
        %v5954 = vadd.f32 %v5761, %v5953
        %5955 = vmatprep.mubr.bf16.mxu0 %v4993
        %5956 = vmatmul.mubr.bf16.gmra.mrb[0].mxu0 %v4992
        %v5957 = vpop.f32.mrb[0].mxu0
        %v5958 = vadd.f32 %v5765, %v5957
        %v5959 = vpop.f32.mrb[0].mxu0
        %v5960 = vadd.f32 %v5767, %v5959
        %v5961 = vpop.f32.mrb[0].mxu0
        %v5962 = vadd.f32 %v5769, %v5961
        %v5963 = vpop.f32.mrb[0].mxu0
        %v5964 = vadd.f32 %v5771, %v5963
        %5965 = vmatprep.mubr.bf16.mxu0 %v4997
        %5966 = vmatmul.mubr.bf16.gmra.mrb[0].mxu0 %v4996
        %v5967 = vpop.f32.mrb[0].mxu0
        %v5968 = vadd.f32 %v5775, %v5967
        %v5969 = vpop.f32.mrb[0].mxu0
        %v5970 = vadd.f32 %v5777, %v5969
        %v5971 = vpop.f32.mrb[0].mxu0
        %v5972 = vadd.f32 %v5779, %v5971
        %v5973 = vpop.f32.mrb[0].mxu0
        %v5974 = vadd.f32 %v5781, %v5973
        %5975 = vmatprep.mubr.bf16.mxu0 %v5001
        %5976 = vmatmul.mubr.bf16.gmra.mrb[0].mxu0 %v5000
        %v5977 = vpop.f32.mrb[0].mxu0
        %v5978 = vadd.f32 %v5785, %v5977
        %v5979 = vpop.f32.mrb[0].mxu0
        %v5980 = vadd.f32 %v5787, %v5979
        %v5981 = vpop.f32.mrb[0].mxu0
        %v5982 = vadd.f32 %v5789, %v5981
        %v5983 = vpop.f32.mrb[0].mxu0
        %v5984 = vadd.f32 %v5791, %v5983
        %5985 = vmatprep.mubr.bf16.mxu0 %v5005
        %5986 = vmatmul.mubr.bf16.gmra.mrb[0].mxu0 %v5004
        %v5987 = vpop.f32.mrb[0].mxu0
        %v5988 = vadd.f32 %v5795, %v5987
        %v5989 = vpop.f32.mrb[0].mxu0
        %v5990 = vadd.f32 %v5797, %v5989
        %v5991 = vpop.f32.mrb[0].mxu0
        %v5992 = vadd.f32 %v5799, %v5991
        %v5993 = vpop.f32.mrb[0].mxu0
        %v5994 = vadd.f32 %v5801, %v5993
        %5995 = vmatprep.mubr.bf16.mxu0 %v5009
        %5996 = vmatmul.mubr.bf16.gmra.mrb[0].mxu0 %v5008
        %v5997 = vpop.f32.mrb[0].mxu0
        %v5998 = vadd.f32 %v5805, %v5997
        %v5999 = vpop.f32.mrb[0].mxu0
        %v6000 = vadd.f32 %v5807, %v5999
        %v6001 = vpop.f32.mrb[0].mxu0
        %v6002 = vadd.f32 %v5809, %v6001
        %v6003 = vpop.f32.mrb[0].mxu0
        %v6004 = vadd.f32 %v5811, %v6003
        %6005 = vmatprep.mubr.bf16.mxu0 %v5013
        %6006 = vmatmul.mubr.bf16.gmra.mrb[0].mxu0 %v5012
        %v6007 = vpop.f32.mrb[0].mxu0
        %v6008 = vadd.f32 %v5815, %v6007
        %v6009 = vpop.f32.mrb[0].mxu0
        %v6010 = vadd.f32 %v5817, %v6009
        %v6011 = vpop.f32.mrb[0].mxu0
        %v6012 = vadd.f32 %v5819, %v6011
        %v6013 = vpop.f32.mrb[0].mxu0
        %v6014 = vadd.f32 %v5821, %v6013
        %6015 = vmatprep.mubr.bf16.mxu0 %v5017
        %6016 = vmatmul.mubr.bf16.gmra.mrb[0].mxu0 %v5016
        %v6017 = vpop.f32.mrb[0].mxu0
        %v6018 = vadd.f32 %v5825, %v6017
        %v6019 = vpop.f32.mrb[0].mxu0
        %v6020 = vadd.f32 %v5827, %v6019
        %v6021 = vpop.f32.mrb[0].mxu0
        %v6022 = vadd.f32 %v5829, %v6021
        %v6023 = vpop.f32.mrb[0].mxu0
        %v6024 = vadd.f32 %v5831, %v6023
        %6025 = vmatprep.mubr.bf16.mxu0 %v5021
        %6026 = vmatmul.mubr.bf16.gmra.mrb[0].mxu0 %v5020
        %v6027 = vpop.f32.mrb[0].mxu0
        %v6028 = vadd.f32 %v5835, %v6027
        %v6029 = vpop.f32.mrb[0].mxu0
        %v6030 = vadd.f32 %v5837, %v6029
        %v6031 = vpop.f32.mrb[0].mxu0
        %v6032 = vadd.f32 %v5839, %v6031
        %v6033 = vpop.f32.mrb[0].mxu0
        %v6034 = vadd.f32 %v5841, %v6033
        %6035 = vmatprep.mubr.bf16.mxu0 %v5025
        %6036 = vmatmul.mubr.bf16.gmra.mrb[0].mxu0 %v5024
        %v6037 = vpop.f32.mrb[0].mxu0
        %v6038 = vadd.f32 %v5845, %v6037
        %v6039 = vpop.f32.mrb[0].mxu0
        %v6040 = vadd.f32 %v5847, %v6039
        %v6041 = vpop.f32.mrb[0].mxu0
        %v6042 = vadd.f32 %v5849, %v6041
        %v6043 = vpop.f32.mrb[0].mxu0
        %v6044 = vadd.f32 %v5851, %v6043
        %6045 = vmatprep.mubr.bf16.mxu0 %v5029
        %6046 = vmatmul.mubr.bf16.gmra.mrb[0].mxu0 %v5028
        %v6047 = vpop.f32.mrb[0].mxu0
        %v6048 = vadd.f32 %v5855, %v6047
        %v6049 = vpop.f32.mrb[0].mxu0
        %v6050 = vadd.f32 %v5857, %v6049
        %v6051 = vpop.f32.mrb[0].mxu0
        %v6052 = vadd.f32 %v5859, %v6051
        %v6053 = vpop.f32.mrb[0].mxu0
        %v6054 = vadd.f32 %v5861, %v6053
        %6055 = vdwg.mxu0
        %6056 = vmatprep.subr.bf16.mxu0 0
        %6057 = vmatpush1.bf16.msra.mxu0 %v5480
        %6058 = vmatprep.subr.bf16.mxu0 0
        %6059 = vmatpush1.bf16.msra.mxu0 %v5483
        %6060 = vmatprep.subr.bf16.mxu0 0
        %6061 = vmatpush1.bf16.msra.mxu0 %v5486
        %6062 = vmatprep.subr.bf16.mxu0 0
        %6063 = vmatpush1.bf16.msra.mxu0 %v5489
        %6064 = vmatprep.subr.bf16.mxu0 0
        %6065 = vmatpush1.bf16.msra.mxu0 %v5492
        %6066 = vmatprep.subr.bf16.mxu0 0
        %6067 = vmatpush1.bf16.msra.mxu0 %v5495
        %6068 = vmatprep.subr.bf16.mxu0 0
        %6069 = vmatpush1.bf16.msra.mxu0 %v5498
        %6070 = vmatprep.subr.bf16.mxu0 0
        %6071 = vmatpush1.bf16.msra.mxu0 %v5501
        %6072 = vmatprep.subr.bf16.mxu0 0
        %6073 = vmatpush1.bf16.msra.mxu0 %v5504
        %6074 = vmatprep.subr.bf16.mxu0 0
        %6075 = vmatpush1.bf16.msra.mxu0 %v5507
        %6076 = vmatprep.subr.bf16.mxu0 0
        %6077 = vmatpush1.bf16.msra.mxu0 %v5510
        %6078 = vmatprep.subr.bf16.mxu0 0
        %6079 = vmatpush1.bf16.msra.mxu0 %v5513
        %6080 = vmatprep.subr.bf16.mxu0 0
        %6081 = vmatpush1.bf16.msra.mxu0 %v5516
        %6082 = vmatprep.subr.bf16.mxu0 0
        %6083 = vmatpush1.bf16.msra.mxu0 %v5519
        %6084 = vmatprep.subr.bf16.mxu0 0
        %6085 = vmatpush1.bf16.msra.mxu0 %v5522
        %6086 = vmatprep.subr.bf16.mxu0 0
        %6087 = vmatpush1.bf16.msra.mxu0 %v5525
        %6088 = vmatprep.mubr.bf16.mxu0 %v4967
        %6089 = vmatmul.mubr.bf16.gmra.mrb[0].mxu0 %v4966
        %v6090 = vpop.f32.mrb[0].mxu0
        %v6091 = vadd.f32 0.0, %v6090
        %v6092 = vpop.f32.mrb[0].mxu0
        %v6093 = vpop.f32.mrb[0].mxu0
        %v6094 = vadd.f32 0.0, %v6093
        %v6095 = vpop.f32.mrb[0].mxu0
        %6096 = vmatprep.mubr.bf16.mxu0 %v4971
        %6097 = vmatmul.mubr.bf16.gmra.mrb[0].mxu0 %v4970
        %v6098 = vpop.f32.mrb[0].mxu0
        %v6099 = vadd.f32 0.0, %v6098
        %v6100 = vpop.f32.mrb[0].mxu0
        %v6101 = vpop.f32.mrb[0].mxu0
        %v6102 = vadd.f32 0.0, %v6101
        %v6103 = vpop.f32.mrb[0].mxu0
        %6104 = vmatprep.mubr.bf16.mxu0 %v4975
        %6105 = vmatmul.mubr.bf16.gmra.mrb[0].mxu0 %v4974
        %v6106 = vpop.f32.mrb[0].mxu0
        %v6107 = vadd.f32 0.0, %v6106
        %v6108 = vpop.f32.mrb[0].mxu0
        %v6109 = vpop.f32.mrb[0].mxu0
        %v6110 = vadd.f32 0.0, %v6109
        %v6111 = vpop.f32.mrb[0].mxu0
        %6112 = vmatprep.mubr.bf16.mxu0 %v4979
        %6113 = vmatmul.mubr.bf16.gmra.mrb[0].mxu0 %v4978
        %v6114 = vpop.f32.mrb[0].mxu0
        %v6115 = vadd.f32 0.0, %v6114
        %v6116 = vpop.f32.mrb[0].mxu0
        %v6117 = vpop.f32.mrb[0].mxu0
        %v6118 = vadd.f32 0.0, %v6117
        %v6119 = vpop.f32.mrb[0].mxu0
        %6120 = vmatprep.mubr.bf16.mxu0 %v4983
        %6121 = vmatmul.mubr.bf16.gmra.mrb[0].mxu0 %v4982
        %v6122 = vpop.f32.mrb[0].mxu0
        %v6123 = vadd.f32 0.0, %v6122
        %v6124 = vpop.f32.mrb[0].mxu0
        %v6125 = vpop.f32.mrb[0].mxu0
        %v6126 = vadd.f32 0.0, %v6125
        %v6127 = vpop.f32.mrb[0].mxu0
        %6128 = vmatprep.mubr.bf16.mxu0 %v4987
        %6129 = vmatmul.mubr.bf16.gmra.mrb[0].mxu0 %v4986
        %v6130 = vpop.f32.mrb[0].mxu0
        %v6131 = vadd.f32 0.0, %v6130
        %v6132 = vpop.f32.mrb[0].mxu0
        %v6133 = vpop.f32.mrb[0].mxu0
        %v6134 = vadd.f32 0.0, %v6133
        %v6135 = vpop.f32.mrb[0].mxu0
        %6136 = vmatprep.mubr.bf16.mxu0 %v4991
        %6137 = vmatmul.mubr.bf16.gmra.mrb[0].mxu0 %v4990
        %v6138 = vpop.f32.mrb[0].mxu0
        %v6139 = vadd.f32 0.0, %v6138
        %v6140 = vpop.f32.mrb[0].mxu0
        %v6141 = vpop.f32.mrb[0].mxu0
        %v6142 = vadd.f32 0.0, %v6141
        %v6143 = vpop.f32.mrb[0].mxu0
        %6144 = vmatprep.mubr.bf16.mxu0 %v4995
        %6145 = vmatmul.mubr.bf16.gmra.mrb[0].mxu0 %v4994
        %v6146 = vpop.f32.mrb[0].mxu0
        %v6147 = vadd.f32 0.0, %v6146
        %v6148 = vpop.f32.mrb[0].mxu0
        %v6149 = vpop.f32.mrb[0].mxu0
        %v6150 = vadd.f32 0.0, %v6149
        %v6151 = vpop.f32.mrb[0].mxu0
        %6152 = vmatprep.mubr.bf16.mxu0 %v4999
        %6153 = vmatmul.mubr.bf16.gmra.mrb[0].mxu0 %v4998
        %v6154 = vpop.f32.mrb[0].mxu0
        %v6155 = vadd.f32 0.0, %v6154
        %v6156 = vpop.f32.mrb[0].mxu0
        %v6157 = vpop.f32.mrb[0].mxu0
        %v6158 = vadd.f32 0.0, %v6157
        %v6159 = vpop.f32.mrb[0].mxu0
        %6160 = vmatprep.mubr.bf16.mxu0 %v5003
        %6161 = vmatmul.mubr.bf16.gmra.mrb[0].mxu0 %v5002
        %v6162 = vpop.f32.mrb[0].mxu0
        %v6163 = vadd.f32 0.0, %v6162
        %v6164 = vpop.f32.mrb[0].mxu0
        %v6165 = vpop.f32.mrb[0].mxu0
        %v6166 = vadd.f32 0.0, %v6165
        %v6167 = vpop.f32.mrb[0].mxu0
        %6168 = vmatprep.mubr.bf16.mxu0 %v5007
        %6169 = vmatmul.mubr.bf16.gmra.mrb[0].mxu0 %v5006
        %v6170 = vpop.f32.mrb[0].mxu0
        %v6171 = vadd.f32 0.0, %v6170
        %v6172 = vpop.f32.mrb[0].mxu0
        %v6173 = vpop.f32.mrb[0].mxu0
        %v6174 = vadd.f32 0.0, %v6173
        %v6175 = vpop.f32.mrb[0].mxu0
        %6176 = vmatprep.mubr.bf16.mxu0 %v5011
        %6177 = vmatmul.mubr.bf16.gmra.mrb[0].mxu0 %v5010
        %v6178 = vpop.f32.mrb[0].mxu0
        %v6179 = vadd.f32 0.0, %v6178
        %v6180 = vpop.f32.mrb[0].mxu0
        %v6181 = vpop.f32.mrb[0].mxu0
        %v6182 = vadd.f32 0.0, %v6181
        %v6183 = vpop.f32.mrb[0].mxu0
        %6184 = vmatprep.mubr.bf16.mxu0 %v5015
        %6185 = vmatmul.mubr.bf16.gmra.mrb[0].mxu0 %v5014
        %v6186 = vpop.f32.mrb[0].mxu0
        %v6187 = vadd.f32 0.0, %v6186
        %v6188 = vpop.f32.mrb[0].mxu0
        %v6189 = vpop.f32.mrb[0].mxu0
        %v6190 = vadd.f32 0.0, %v6189
        %v6191 = vpop.f32.mrb[0].mxu0
        %6192 = vmatprep.mubr.bf16.mxu0 %v5019
        %6193 = vmatmul.mubr.bf16.gmra.mrb[0].mxu0 %v5018
        %v6194 = vpop.f32.mrb[0].mxu0
        %v6195 = vadd.f32 0.0, %v6194
        %v6196 = vpop.f32.mrb[0].mxu0
        %v6197 = vpop.f32.mrb[0].mxu0
        %v6198 = vadd.f32 0.0, %v6197
        %v6199 = vpop.f32.mrb[0].mxu0
        %6200 = vmatprep.mubr.bf16.mxu0 %v5023
        %6201 = vmatmul.mubr.bf16.gmra.mrb[0].mxu0 %v5022
        %v6202 = vpop.f32.mrb[0].mxu0
        %v6203 = vadd.f32 0.0, %v6202
        %v6204 = vpop.f32.mrb[0].mxu0
        %v6205 = vpop.f32.mrb[0].mxu0
        %v6206 = vadd.f32 0.0, %v6205
        %v6207 = vpop.f32.mrb[0].mxu0
        %6208 = vmatprep.mubr.bf16.mxu0 %v5027
        %6209 = vmatmul.mubr.bf16.gmra.mrb[0].mxu0 %v5026
        %v6210 = vpop.f32.mrb[0].mxu0
        %v6211 = vadd.f32 0.0, %v6210
        %v6212 = vpop.f32.mrb[0].mxu0
        %v6213 = vpop.f32.mrb[0].mxu0
        %v6214 = vadd.f32 0.0, %v6213
        %v6215 = vpop.f32.mrb[0].mxu0
        %6216 = vdwg.mxu0
        %6217 = vmatprep.subr.bf16.mxu0 0
        %6218 = vmatpush1.bf16.msra.mxu0 %v5528
        %6219 = vmatprep.subr.bf16.mxu0 0
        %6220 = vmatpush1.bf16.msra.mxu0 %v5531
        %6221 = vmatprep.subr.bf16.mxu0 0
        %6222 = vmatpush1.bf16.msra.mxu0 %v5534
        %6223 = vmatprep.subr.bf16.mxu0 0
        %6224 = vmatpush1.bf16.msra.mxu0 %v5537
        %6225 = vmatprep.subr.bf16.mxu0 0
        %6226 = vmatpush1.bf16.msra.mxu0 %v5540
        %6227 = vmatprep.subr.bf16.mxu0 0
        %6228 = vmatpush1.bf16.msra.mxu0 %v5543
        %6229 = vmatprep.subr.bf16.mxu0 0
        %6230 = vmatpush1.bf16.msra.mxu0 %v5546
        %6231 = vmatprep.subr.bf16.mxu0 0
        %6232 = vmatpush1.bf16.msra.mxu0 %v5549
        %6233 = vmatprep.subr.bf16.mxu0 0
        %6234 = vmatpush1.bf16.msra.mxu0 %v5552
        %6235 = vmatprep.subr.bf16.mxu0 0
        %6236 = vmatpush1.bf16.msra.mxu0 %v5555
        %6237 = vmatprep.subr.bf16.mxu0 0
        %6238 = vmatpush1.bf16.msra.mxu0 %v5558
        %6239 = vmatprep.subr.bf16.mxu0 0
        %6240 = vmatpush1.bf16.msra.mxu0 %v5561
        %6241 = vmatprep.subr.bf16.mxu0 0
        %6242 = vmatpush1.bf16.msra.mxu0 %v5564
        %6243 = vmatprep.subr.bf16.mxu0 0
        %6244 = vmatpush1.bf16.msra.mxu0 %v5567
        %6245 = vmatprep.subr.bf16.mxu0 0
        %6246 = vmatpush1.bf16.msra.mxu0 %v5570
        %6247 = vmatprep.subr.bf16.mxu0 0
        %6248 = vmatpush1.bf16.msra.mxu0 %v5573
        %6249 = vmatprep.mubr.bf16.mxu0 %v4969
        %6250 = vmatmul.mubr.bf16.gmra.mrb[0].mxu0 %v4968
        %v6251 = vpop.f32.mrb[0].mxu0
        %v6252 = vadd.f32 %v6091, %v6251
        %v6253 = vpop.f32.mrb[0].mxu0
        %v6254 = vpop.f32.mrb[0].mxu0
        %v6255 = vadd.f32 %v6094, %v6254
        %v6256 = vpop.f32.mrb[0].mxu0
        %6257 = vmatprep.mubr.bf16.mxu0 %v4973
        %6258 = vmatmul.mubr.bf16.gmra.mrb[0].mxu0 %v4972
        %v6259 = vpop.f32.mrb[0].mxu0
        %v6260 = vadd.f32 %v6099, %v6259
        %v6261 = vpop.f32.mrb[0].mxu0
        %v6262 = vpop.f32.mrb[0].mxu0
        %v6263 = vadd.f32 %v6102, %v6262
        %v6264 = vpop.f32.mrb[0].mxu0
        %6265 = vmatprep.mubr.bf16.mxu0 %v4977
        %6266 = vmatmul.mubr.bf16.gmra.mrb[0].mxu0 %v4976
        %v6267 = vpop.f32.mrb[0].mxu0
        %v6268 = vadd.f32 %v6107, %v6267
        %v6269 = vpop.f32.mrb[0].mxu0
        %v6270 = vpop.f32.mrb[0].mxu0
        %v6271 = vadd.f32 %v6110, %v6270
        %v6272 = vpop.f32.mrb[0].mxu0
        %6273 = vmatprep.mubr.bf16.mxu0 %v4981
        %6274 = vmatmul.mubr.bf16.gmra.mrb[0].mxu0 %v4980
        %v6275 = vpop.f32.mrb[0].mxu0
        %v6276 = vadd.f32 %v6115, %v6275
        %v6277 = vpop.f32.mrb[0].mxu0
        %v6278 = vpop.f32.mrb[0].mxu0
        %v6279 = vadd.f32 %v6118, %v6278
        %v6280 = vpop.f32.mrb[0].mxu0
        %6281 = vmatprep.mubr.bf16.mxu0 %v4985
        %6282 = vmatmul.mubr.bf16.gmra.mrb[0].mxu0 %v4984
        %v6283 = vpop.f32.mrb[0].mxu0
        %v6284 = vadd.f32 %v6123, %v6283
        %v6285 = vpop.f32.mrb[0].mxu0
        %v6286 = vpop.f32.mrb[0].mxu0
        %v6287 = vadd.f32 %v6126, %v6286
        %v6288 = vpop.f32.mrb[0].mxu0
        %6289 = vmatprep.mubr.bf16.mxu0 %v4989
        %6290 = vmatmul.mubr.bf16.gmra.mrb[0].mxu0 %v4988
        %v6291 = vpop.f32.mrb[0].mxu0
        %v6292 = vadd.f32 %v6131, %v6291
        %v6293 = vpop.f32.mrb[0].mxu0
        %v6294 = vpop.f32.mrb[0].mxu0
        %v6295 = vadd.f32 %v6134, %v6294
        %v6296 = vpop.f32.mrb[0].mxu0
        %6297 = vmatprep.mubr.bf16.mxu0 %v4993
        %6298 = vmatmul.mubr.bf16.gmra.mrb[0].mxu0 %v4992
        %v6299 = vpop.f32.mrb[0].mxu0
        %v6300 = vadd.f32 %v6139, %v6299
        %v6301 = vpop.f32.mrb[0].mxu0
        %v6302 = vpop.f32.mrb[0].mxu0
        %v6303 = vadd.f32 %v6142, %v6302
        %v6304 = vpop.f32.mrb[0].mxu0
        %6305 = vmatprep.mubr.bf16.mxu0 %v4997
        %6306 = vmatmul.mubr.bf16.gmra.mrb[0].mxu0 %v4996
        %v6307 = vpop.f32.mrb[0].mxu0
        %v6308 = vadd.f32 %v6147, %v6307
        %v6309 = vpop.f32.mrb[0].mxu0
        %v6310 = vpop.f32.mrb[0].mxu0
        %v6311 = vadd.f32 %v6150, %v6310
        %v6312 = vpop.f32.mrb[0].mxu0
        %6313 = vmatprep.mubr.bf16.mxu0 %v5001
        %6314 = vmatmul.mubr.bf16.gmra.mrb[0].mxu0 %v5000
        %v6315 = vpop.f32.mrb[0].mxu0
        %v6316 = vadd.f32 %v6155, %v6315
        %v6317 = vpop.f32.mrb[0].mxu0
        %v6318 = vpop.f32.mrb[0].mxu0
        %v6319 = vadd.f32 %v6158, %v6318
        %v6320 = vpop.f32.mrb[0].mxu0
        %6321 = vmatprep.mubr.bf16.mxu0 %v5005
        %6322 = vmatmul.mubr.bf16.gmra.mrb[0].mxu0 %v5004
        %v6323 = vpop.f32.mrb[0].mxu0
        %v6324 = vadd.f32 %v6163, %v6323
        %v6325 = vpop.f32.mrb[0].mxu0
        %v6326 = vpop.f32.mrb[0].mxu0
        %v6327 = vadd.f32 %v6166, %v6326
        %v6328 = vpop.f32.mrb[0].mxu0
        %6329 = vmatprep.mubr.bf16.mxu0 %v5009
        %6330 = vmatmul.mubr.bf16.gmra.mrb[0].mxu0 %v5008
        %v6331 = vpop.f32.mrb[0].mxu0
        %v6332 = vadd.f32 %v6171, %v6331
        %v6333 = vpop.f32.mrb[0].mxu0
        %v6334 = vpop.f32.mrb[0].mxu0
        %v6335 = vadd.f32 %v6174, %v6334
        %v6336 = vpop.f32.mrb[0].mxu0
        %6337 = vmatprep.mubr.bf16.mxu0 %v5013
        %6338 = vmatmul.mubr.bf16.gmra.mrb[0].mxu0 %v5012
        %v6339 = vpop.f32.mrb[0].mxu0
        %v6340 = vadd.f32 %v6179, %v6339
        %v6341 = vpop.f32.mrb[0].mxu0
        %v6342 = vpop.f32.mrb[0].mxu0
        %v6343 = vadd.f32 %v6182, %v6342
        %v6344 = vpop.f32.mrb[0].mxu0
        %6345 = vmatprep.mubr.bf16.mxu0 %v5017
        %6346 = vmatmul.mubr.bf16.gmra.mrb[0].mxu0 %v5016
        %v6347 = vpop.f32.mrb[0].mxu0
        %v6348 = vadd.f32 %v6187, %v6347
        %v6349 = vpop.f32.mrb[0].mxu0
        %v6350 = vpop.f32.mrb[0].mxu0
        %v6351 = vadd.f32 %v6190, %v6350
        %v6352 = vpop.f32.mrb[0].mxu0
        %6353 = vmatprep.mubr.bf16.mxu0 %v5021
        %6354 = vmatmul.mubr.bf16.gmra.mrb[0].mxu0 %v5020
        %v6355 = vpop.f32.mrb[0].mxu0
        %v6356 = vadd.f32 %v6195, %v6355
        %v6357 = vpop.f32.mrb[0].mxu0
        %v6358 = vpop.f32.mrb[0].mxu0
        %v6359 = vadd.f32 %v6198, %v6358
        %v6360 = vpop.f32.mrb[0].mxu0
        %6361 = vmatprep.mubr.bf16.mxu0 %v5025
        %6362 = vmatmul.mubr.bf16.gmra.mrb[0].mxu0 %v5024
        %v6363 = vpop.f32.mrb[0].mxu0
        %v6364 = vadd.f32 %v6203, %v6363
        %v6365 = vpop.f32.mrb[0].mxu0
        %v6366 = vpop.f32.mrb[0].mxu0
        %v6367 = vadd.f32 %v6206, %v6366
        %v6368 = vpop.f32.mrb[0].mxu0
        %6369 = vmatprep.mubr.bf16.mxu0 %v5029
        %6370 = vmatmul.mubr.bf16.gmra.mrb[0].mxu0 %v5028
        %v6371 = vpop.f32.mrb[0].mxu0
        %v6372 = vadd.f32 %v6211, %v6371
        %v6373 = vpop.f32.mrb[0].mxu0
        %v6374 = vpop.f32.mrb[0].mxu0
        %v6375 = vadd.f32 %v6214, %v6374
        %v6376 = vpop.f32.mrb[0].mxu0
        %6377 = vdwg.mxu0
        %v6378 = vld [vmem:[#allocation2] sm:$0xff]
        %v6379 = vld [vmem:[#allocation2 + $0x8] sm:$0xff]
        %v6380 = vld [vmem:[#allocation2 + $0x10] sm:$0xff]
        %v6381 = vld [vmem:[#allocation2 + $0x18] sm:$0xff]
        %v6382 = vld [vmem:[#allocation2 + $0x20] sm:$0xff]
        %v6383 = vld [vmem:[#allocation2 + $0x28] sm:$0xff]
        %v6384 = vld [vmem:[#allocation2 + $0x30] sm:$0xff]
        %v6385 = vld [vmem:[#allocation2 + $0x38] sm:$0xff]
        %v6386 = vld [vmem:[#allocation2 + $0x40] sm:$0xff]
        %v6387 = vld [vmem:[#allocation2 + $0x48] sm:$0xff]
        %v6388 = vld [vmem:[#allocation2 + $0x50] sm:$0xff]
        %v6389 = vld [vmem:[#allocation2 + $0x58] sm:$0xff]
        %v6390 = vld [vmem:[#allocation2 + $0x60] sm:$0xff]
        %v6391 = vld [vmem:[#allocation2 + $0x68] sm:$0xff]
        %v6392 = vld [vmem:[#allocation2 + $0x70] sm:$0xff]
        %v6393 = vld [vmem:[#allocation2 + $0x78] sm:$0xff]
        %v6394 = vld [vmem:[#allocation2 + $0x80] sm:$0xff]
        %v6395 = vld [vmem:[#allocation2 + $0x88] sm:$0xff]
        %v6396 = vld [vmem:[#allocation2 + $0x90] sm:$0xff]
        %v6397 = vld [vmem:[#allocation2 + $0x98] sm:$0xff]
        %v6398 = vld [vmem:[#allocation2 + $0xa0] sm:$0xff]
        %v6399 = vld [vmem:[#allocation2 + $0xa8] sm:$0xff]
        %v6400 = vld [vmem:[#allocation2 + $0xb0] sm:$0xff]
        %v6401 = vld [vmem:[#allocation2 + $0xb8] sm:$0xff]
        %v6402 = vld [vmem:[#allocation2 + $0xc0] sm:$0xff]
        %v6403 = vld [vmem:[#allocation2 + $0xc8] sm:$0xff]
        %v6404 = vld [vmem:[#allocation2 + $0xd0] sm:$0xff]
        %v6405 = vld [vmem:[#allocation2 + $0xd8] sm:$0xff]
        %v6406 = vld [vmem:[#allocation2 + $0xe0] sm:$0xff]
        %v6407 = vld [vmem:[#allocation2 + $0xe8] sm:$0xff]
        %v6408 = vld [vmem:[#allocation2 + $0xf0] sm:$0xff]
        %v6409 = vld [vmem:[#allocation2 + $0xf8] sm:$0xff]
        %v6410 = vld [vmem:[#allocation2 + $0x100] sm:$0xff]
        %v6411 = vld [vmem:[#allocation2 + $0x108] sm:$0xff]
        %v6412 = vld [vmem:[#allocation2 + $0x110] sm:$0xff]
        %v6413 = vld [vmem:[#allocation2 + $0x118] sm:$0xff]
        %v6414 = vld [vmem:[#allocation2 + $0x120] sm:$0xff]
        %v6415 = vld [vmem:[#allocation2 + $0x128] sm:$0xff]
        %v6416 = vld [vmem:[#allocation2 + $0x130] sm:$0xff]
        %v6417 = vld [vmem:[#allocation2 + $0x138] sm:$0xff]
        %v6418 = vld [vmem:[#allocation2 + $0x140] sm:$0xff]
        %v6419 = vld [vmem:[#allocation2 + $0x148] sm:$0xff]
        %v6420 = vld [vmem:[#allocation2 + $0x150] sm:$0xff]
        %v6421 = vld [vmem:[#allocation2 + $0x158] sm:$0xff]
        %v6422 = vld [vmem:[#allocation2 + $0x160] sm:$0xff]
        %v6423 = vld [vmem:[#allocation2 + $0x168] sm:$0xff]
        %v6424 = vld [vmem:[#allocation2 + $0x170] sm:$0xff]
        %v6425 = vld [vmem:[#allocation2 + $0x178] sm:$0xff]
        %v6426 = vld [vmem:[#allocation2 + $0x180] sm:$0xff]
        %v6427 = vld [vmem:[#allocation2 + $0x188] sm:$0xff]
        %v6428 = vld [vmem:[#allocation2 + $0x190] sm:$0xff]
        %v6429 = vld [vmem:[#allocation2 + $0x198] sm:$0xff]
        %v6430 = vld [vmem:[#allocation2 + $0x1a0] sm:$0xff]
        %v6431 = vld [vmem:[#allocation2 + $0x1a8] sm:$0xff]
        %v6432 = vld [vmem:[#allocation2 + $0x1b0] sm:$0xff]
        %v6433 = vld [vmem:[#allocation2 + $0x1b8] sm:$0xff]
        %v6434 = vld [vmem:[#allocation2 + $0x1c0] sm:$0xff]
        %v6435 = vld [vmem:[#allocation2 + $0x1c8] sm:$0xff]
        %v6436 = vld [vmem:[#allocation2 + $0x1d0] sm:$0xff]
        %v6437 = vld [vmem:[#allocation2 + $0x1d8] sm:$0xff]
        %v6438 = vld [vmem:[#allocation2 + $0x1e0] sm:$0xff]
        %v6439 = vld [vmem:[#allocation2 + $0x1e8] sm:$0xff]
        %v6440 = vld [vmem:[#allocation2 + $0x1f0] sm:$0xff]
        %v6441 = vld [vmem:[#allocation2 + $0x1f8] sm:$0xff]
        %v6442 = vld [vmem:[#allocation2 + $0x200] sm:$0xff]
        %v6443 = vld [vmem:[#allocation2 + $0x208] sm:$0xff]
        %v6444 = vld [vmem:[#allocation2 + $0x210] sm:$0xff]
        %v6445 = vld [vmem:[#allocation2 + $0x218] sm:$0xff]
        %v6446 = vld [vmem:[#allocation2 + $0x220] sm:$0xff]
        %v6447 = vld [vmem:[#allocation2 + $0x228] sm:$0xff]
        %v6448 = vld [vmem:[#allocation2 + $0x230] sm:$0xff]
        %v6449 = vld [vmem:[#allocation2 + $0x238] sm:$0xff]
        %v6450 = vld [vmem:[#allocation2 + $0x240] sm:$0xff]
        %v6451 = vld [vmem:[#allocation2 + $0x248] sm:$0xff]
        %v6452 = vld [vmem:[#allocation2 + $0x250] sm:$0xff]
        %v6453 = vld [vmem:[#allocation2 + $0x258] sm:$0xff]
        %v6454 = vld [vmem:[#allocation2 + $0x260] sm:$0xff]
        %v6455 = vld [vmem:[#allocation2 + $0x268] sm:$0xff]
        %v6456 = vld [vmem:[#allocation2 + $0x270] sm:$0xff]
        %v6457 = vld [vmem:[#allocation2 + $0x278] sm:$0xff]
        %v6458 = vld [vmem:[#allocation2 + $0x280] sm:$0xff]
        %v6459 = vld [vmem:[#allocation2 + $0x288] sm:$0xff]
        %v6460 = vld [vmem:[#allocation2 + $0x290] sm:$0xff]
        %v6461 = vld [vmem:[#allocation2 + $0x298] sm:$0xff]
        %v6462 = vld [vmem:[#allocation2 + $0x2a0] sm:$0xff]
        %v6463 = vld [vmem:[#allocation2 + $0x2a8] sm:$0xff]
        %v6464 = vld [vmem:[#allocation2 + $0x2b0] sm:$0xff]
        %v6465 = vld [vmem:[#allocation2 + $0x2b8] sm:$0xff]
        %v6466 = vld [vmem:[#allocation2 + $0x2c0] sm:$0xff]
        %v6467 = vld [vmem:[#allocation2 + $0x2c8] sm:$0xff]
        %v6468 = vld [vmem:[#allocation2 + $0x2d0] sm:$0xff]
        %v6469 = vld [vmem:[#allocation2 + $0x2d8] sm:$0xff]
        %v6470 = vld [vmem:[#allocation2 + $0x2e0] sm:$0xff]
        %v6471 = vld [vmem:[#allocation2 + $0x2e8] sm:$0xff]
        %v6472 = vld [vmem:[#allocation2 + $0x2f0] sm:$0xff]
        %v6473 = vld [vmem:[#allocation2 + $0x2f8] sm:$0xff]
        %v6474 = vadd.f32 %v6378, %v5898
        %v6475 = vadd.f32 %v6379, %v5900
        %v6476 = vadd.f32 %v6380, %v6252
        %v6477 = vadd.f32 %v6381, %v5902
        %v6478 = vadd.f32 %v6382, %v5904
        %v6479 = vadd.f32 %v6383, %v6255
        %v6480 = vadd.f32 %v6384, %v5908
        %v6481 = vadd.f32 %v6385, %v5910
        %v6482 = vadd.f32 %v6386, %v6260
        %v6483 = vadd.f32 %v6387, %v5912
        %v6484 = vadd.f32 %v6388, %v5914
        %v6485 = vadd.f32 %v6389, %v6263
        %v6486 = vadd.f32 %v6390, %v5918
        %v6487 = vadd.f32 %v6391, %v5920
        %v6488 = vadd.f32 %v6392, %v6268
        %v6489 = vadd.f32 %v6393, %v5922
        %v6490 = vadd.f32 %v6394, %v5924
        %v6491 = vadd.f32 %v6395, %v6271
        %v6492 = vadd.f32 %v6396, %v5928
        %v6493 = vadd.f32 %v6397, %v5930
        %v6494 = vadd.f32 %v6398, %v6276
        %v6495 = vadd.f32 %v6399, %v5932
        %v6496 = vadd.f32 %v6400, %v5934
        %v6497 = vadd.f32 %v6401, %v6279
        %v6498 = vadd.f32 %v6402, %v5938
        %v6499 = vadd.f32 %v6403, %v5940
        %v6500 = vadd.f32 %v6404, %v6284
        %v6501 = vadd.f32 %v6405, %v5942
        %v6502 = vadd.f32 %v6406, %v5944
        %v6503 = vadd.f32 %v6407, %v6287
        %v6504 = vadd.f32 %v6408, %v5948
        %v6505 = vadd.f32 %v6409, %v5950
        %v6506 = vadd.f32 %v6410, %v6292
        %v6507 = vadd.f32 %v6411, %v5952
        %v6508 = vadd.f32 %v6412, %v5954
        %v6509 = vadd.f32 %v6413, %v6295
        %v6510 = vadd.f32 %v6414, %v5958
        %v6511 = vadd.f32 %v6415, %v5960
        %v6512 = vadd.f32 %v6416, %v6300
        %v6513 = vadd.f32 %v6417, %v5962
        %v6514 = vadd.f32 %v6418, %v5964
        %v6515 = vadd.f32 %v6419, %v6303
        %v6516 = vadd.f32 %v6420, %v5968
        %v6517 = vadd.f32 %v6421, %v5970
        %v6518 = vadd.f32 %v6422, %v6308
        %v6519 = vadd.f32 %v6423, %v5972
        %v6520 = vadd.f32 %v6424, %v5974
        %v6521 = vadd.f32 %v6425, %v6311
        %v6522 = vadd.f32 %v6426, %v5978
        %v6523 = vadd.f32 %v6427, %v5980
        %v6524 = vadd.f32 %v6428, %v6316
        %v6525 = vadd.f32 %v6429, %v5982
        %v6526 = vadd.f32 %v6430, %v5984
        %v6527 = vadd.f32 %v6431, %v6319
        %v6528 = vadd.f32 %v6432, %v5988
        %v6529 = vadd.f32 %v6433, %v5990
        %v6530 = vadd.f32 %v6434, %v6324
        %v6531 = vadd.f32 %v6435, %v5992
        %v6532 = vadd.f32 %v6436, %v5994
        %v6533 = vadd.f32 %v6437, %v6327
        %v6534 = vadd.f32 %v6438, %v5998
        %v6535 = vadd.f32 %v6439, %v6000
        %v6536 = vadd.f32 %v6440, %v6332
        %v6537 = vadd.f32 %v6441, %v6002
        %v6538 = vadd.f32 %v6442, %v6004
        %v6539 = vadd.f32 %v6443, %v6335
        %v6540 = vadd.f32 %v6444, %v6008
        %v6541 = vadd.f32 %v6445, %v6010
        %v6542 = vadd.f32 %v6446, %v6340
        %v6543 = vadd.f32 %v6447, %v6012
        %v6544 = vadd.f32 %v6448, %v6014
        %v6545 = vadd.f32 %v6449, %v6343
        %v6546 = vadd.f32 %v6450, %v6018
        %v6547 = vadd.f32 %v6451, %v6020
        %v6548 = vadd.f32 %v6452, %v6348
        %v6549 = vadd.f32 %v6453, %v6022
        %v6550 = vadd.f32 %v6454, %v6024
        %v6551 = vadd.f32 %v6455, %v6351
        %v6552 = vadd.f32 %v6456, %v6028
        %v6553 = vadd.f32 %v6457, %v6030
        %v6554 = vadd.f32 %v6458, %v6356
        %v6555 = vadd.f32 %v6459, %v6032
        %v6556 = vadd.f32 %v6460, %v6034
        %v6557 = vadd.f32 %v6461, %v6359
        %v6558 = vadd.f32 %v6462, %v6038
        %v6559 = vadd.f32 %v6463, %v6040
        %v6560 = vadd.f32 %v6464, %v6364
        %v6561 = vadd.f32 %v6465, %v6042
        %v6562 = vadd.f32 %v6466, %v6044
        %v6563 = vadd.f32 %v6467, %v6367
        %v6564 = vadd.f32 %v6468, %v6048
        %v6565 = vadd.f32 %v6469, %v6050
        %v6566 = vadd.f32 %v6470, %v6372
        %v6567 = vadd.f32 %v6471, %v6052
        %v6568 = vadd.f32 %v6472, %v6054
        %v6569 = vadd.f32 %v6473, %v6375
        %6570 = vst [vmem:[#allocation2] sm:$0xff] %v6474
        %6571 = vst [vmem:[#allocation2 + $0x8] sm:$0xff] %v6475
        %6572 = vst [vmem:[#allocation2 + $0x10] sm:$0xff] %v6476
        %6573 = vst [vmem:[#allocation2 + $0x18] sm:$0xff] %v6477
        %6574 = vst [vmem:[#allocation2 + $0x20] sm:$0xff] %v6478
        %6575 = vst [vmem:[#allocation2 + $0x28] sm:$0xff] %v6479
        %6576 = vst [vmem:[#allocation2 + $0x30] sm:$0xff] %v6480
        %6577 = vst [vmem:[#allocation2 + $0x38] sm:$0xff] %v6481
        %6578 = vst [vmem:[#allocation2 + $0x40] sm:$0xff] %v6482
        %6579 = vst [vmem:[#allocation2 + $0x48] sm:$0xff] %v6483
        %6580 = vst [vmem:[#allocation2 + $0x50] sm:$0xff] %v6484
        %6581 = vst [vmem:[#allocation2 + $0x58] sm:$0xff] %v6485
        %6582 = vst [vmem:[#allocation2 + $0x60] sm:$0xff] %v6486
        %6583 = vst [vmem:[#allocation2 + $0x68] sm:$0xff] %v6487
        %6584 = vst [vmem:[#allocation2 + $0x70] sm:$0xff] %v6488
        %6585 = vst [vmem:[#allocation2 + $0x78] sm:$0xff] %v6489
        %6586 = vst [vmem:[#allocation2 + $0x80] sm:$0xff] %v6490
        %6587 = vst [vmem:[#allocation2 + $0x88] sm:$0xff] %v6491
        %6588 = vst [vmem:[#allocation2 + $0x90] sm:$0xff] %v6492
        %6589 = vst [vmem:[#allocation2 + $0x98] sm:$0xff] %v6493
        %6590 = vst [vmem:[#allocation2 + $0xa0] sm:$0xff] %v6494
        %6591 = vst [vmem:[#allocation2 + $0xa8] sm:$0xff] %v6495
        %6592 = vst [vmem:[#allocation2 + $0xb0] sm:$0xff] %v6496
        %6593 = vst [vmem:[#allocation2 + $0xb8] sm:$0xff] %v6497
        %6594 = vst [vmem:[#allocation2 + $0xc0] sm:$0xff] %v6498
        %6595 = vst [vmem:[#allocation2 + $0xc8] sm:$0xff] %v6499
        %6596 = vst [vmem:[#allocation2 + $0xd0] sm:$0xff] %v6500
        %6597 = vst [vmem:[#allocation2 + $0xd8] sm:$0xff] %v6501
        %6598 = vst [vmem:[#allocation2 + $0xe0] sm:$0xff] %v6502
        %6599 = vst [vmem:[#allocation2 + $0xe8] sm:$0xff] %v6503
        %6600 = vst [vmem:[#allocation2 + $0xf0] sm:$0xff] %v6504
        %6601 = vst [vmem:[#allocation2 + $0xf8] sm:$0xff] %v6505
        %6602 = vst [vmem:[#allocation2 + $0x100] sm:$0xff] %v6506
        %6603 = vst [vmem:[#allocation2 + $0x108] sm:$0xff] %v6507
        %6604 = vst [vmem:[#allocation2 + $0x110] sm:$0xff] %v6508
        %6605 = vst [vmem:[#allocation2 + $0x118] sm:$0xff] %v6509
        %6606 = vst [vmem:[#allocation2 + $0x120] sm:$0xff] %v6510
        %6607 = vst [vmem:[#allocation2 + $0x128] sm:$0xff] %v6511
        %6608 = vst [vmem:[#allocation2 + $0x130] sm:$0xff] %v6512
        %6609 = vst [vmem:[#allocation2 + $0x138] sm:$0xff] %v6513
        %6610 = vst [vmem:[#allocation2 + $0x140] sm:$0xff] %v6514
        %6611 = vst [vmem:[#allocation2 + $0x148] sm:$0xff] %v6515
        %6612 = vst [vmem:[#allocation2 + $0x150] sm:$0xff] %v6516
        %6613 = vst [vmem:[#allocation2 + $0x158] sm:$0xff] %v6517
        %6614 = vst [vmem:[#allocation2 + $0x160] sm:$0xff] %v6518
        %6615 = vst [vmem:[#allocation2 + $0x168] sm:$0xff] %v6519
        %6616 = vst [vmem:[#allocation2 + $0x170] sm:$0xff] %v6520
        %6617 = vst [vmem:[#allocation2 + $0x178] sm:$0xff] %v6521
        %6618 = vst [vmem:[#allocation2 + $0x180] sm:$0xff] %v6522
        %6619 = vst [vmem:[#allocation2 + $0x188] sm:$0xff] %v6523
        %6620 = vst [vmem:[#allocation2 + $0x190] sm:$0xff] %v6524
        %6621 = vst [vmem:[#allocation2 + $0x198] sm:$0xff] %v6525
        %6622 = vst [vmem:[#allocation2 + $0x1a0] sm:$0xff] %v6526
        %6623 = vst [vmem:[#allocation2 + $0x1a8] sm:$0xff] %v6527
        %6624 = vst [vmem:[#allocation2 + $0x1b0] sm:$0xff] %v6528
        %6625 = vst [vmem:[#allocation2 + $0x1b8] sm:$0xff] %v6529
        %6626 = vst [vmem:[#allocation2 + $0x1c0] sm:$0xff] %v6530
        %6627 = vst [vmem:[#allocation2 + $0x1c8] sm:$0xff] %v6531
        %6628 = vst [vmem:[#allocation2 + $0x1d0] sm:$0xff] %v6532
        %6629 = vst [vmem:[#allocation2 + $0x1d8] sm:$0xff] %v6533
        %6630 = vst [vmem:[#allocation2 + $0x1e0] sm:$0xff] %v6534
        %6631 = vst [vmem:[#allocation2 + $0x1e8] sm:$0xff] %v6535
        %6632 = vst [vmem:[#allocation2 + $0x1f0] sm:$0xff] %v6536
        %6633 = vst [vmem:[#allocation2 + $0x1f8] sm:$0xff] %v6537
        %6634 = vst [vmem:[#allocation2 + $0x200] sm:$0xff] %v6538
        %6635 = vst [vmem:[#allocation2 + $0x208] sm:$0xff] %v6539
        %6636 = vst [vmem:[#allocation2 + $0x210] sm:$0xff] %v6540
        %6637 = vst [vmem:[#allocation2 + $0x218] sm:$0xff] %v6541
        %6638 = vst [vmem:[#allocation2 + $0x220] sm:$0xff] %v6542
        %6639 = vst [vmem:[#allocation2 + $0x228] sm:$0xff] %v6543
        %6640 = vst [vmem:[#allocation2 + $0x230] sm:$0xff] %v6544
        %6641 = vst [vmem:[#allocation2 + $0x238] sm:$0xff] %v6545
        %6642 = vst [vmem:[#allocation2 + $0x240] sm:$0xff] %v6546
        %6643 = vst [vmem:[#allocation2 + $0x248] sm:$0xff] %v6547
        %6644 = vst [vmem:[#allocation2 + $0x250] sm:$0xff] %v6548
        %6645 = vst [vmem:[#allocation2 + $0x258] sm:$0xff] %v6549
        %6646 = vst [vmem:[#allocation2 + $0x260] sm:$0xff] %v6550
        %6647 = vst [vmem:[#allocation2 + $0x268] sm:$0xff] %v6551
        %6648 = vst [vmem:[#allocation2 + $0x270] sm:$0xff] %v6552
        %6649 = vst [vmem:[#allocation2 + $0x278] sm:$0xff] %v6553
        %6650 = vst [vmem:[#allocation2 + $0x280] sm:$0xff] %v6554
        %6651 = vst [vmem:[#allocation2 + $0x288] sm:$0xff] %v6555
        %6652 = vst [vmem:[#allocation2 + $0x290] sm:$0xff] %v6556
        %6653 = vst [vmem:[#allocation2 + $0x298] sm:$0xff] %v6557
        %6654 = vst [vmem:[#allocation2 + $0x2a0] sm:$0xff] %v6558
        %6655 = vst [vmem:[#allocation2 + $0x2a8] sm:$0xff] %v6559
        %6656 = vst [vmem:[#allocation2 + $0x2b0] sm:$0xff] %v6560
        %6657 = vst [vmem:[#allocation2 + $0x2b8] sm:$0xff] %v6561
        %6658 = vst [vmem:[#allocation2 + $0x2c0] sm:$0xff] %v6562
        %6659 = vst [vmem:[#allocation2 + $0x2c8] sm:$0xff] %v6563
        %6660 = vst [vmem:[#allocation2 + $0x2d0] sm:$0xff] %v6564
        %6661 = vst [vmem:[#allocation2 + $0x2d8] sm:$0xff] %v6565
        %6662 = vst [vmem:[#allocation2 + $0x2e0] sm:$0xff] %v6566
        %6663 = vst [vmem:[#allocation2 + $0x2e8] sm:$0xff] %v6567
        %6664 = vst [vmem:[#allocation2 + $0x2f0] sm:$0xff] %v6568
        %6665 = vst [vmem:[#allocation2 + $0x2f8] sm:$0xff] %v6569
        %v6666 = vld [vmem:[#allocation6 + $0x20] sm:$0xff]
        %v6667 = vld [vmem:[#allocation6 + $0x28] sm:$0xff]
        %v6668 = vld [vmem:[#allocation6 + $0x50] sm:$0xff]
        %v6669 = vld [vmem:[#allocation6 + $0x58] sm:$0xff]
        %v6670 = vld [vmem:[#allocation6 + $0x80] sm:$0xff]
        %v6671 = vld [vmem:[#allocation6 + $0x88] sm:$0xff]
        %v6672 = vld [vmem:[#allocation6 + $0xb0] sm:$0xff]
        %v6673 = vld [vmem:[#allocation6 + $0xb8] sm:$0xff]
        %v6674 = vld [vmem:[#allocation6 + $0xe0] sm:$0xff]
        %v6675 = vld [vmem:[#allocation6 + $0xe8] sm:$0xff]
        %v6676 = vld [vmem:[#allocation6 + $0x110] sm:$0xff]
        %v6677 = vld [vmem:[#allocation6 + $0x118] sm:$0xff]
        %v6678 = vld [vmem:[#allocation6 + $0x140] sm:$0xff]
        %v6679 = vld [vmem:[#allocation6 + $0x148] sm:$0xff]
        %v6680 = vld [vmem:[#allocation6 + $0x170] sm:$0xff]
        %v6681 = vld [vmem:[#allocation6 + $0x178] sm:$0xff]
        %v6682 = vld [vmem:[#allocation6 + $0x1a0] sm:$0xff]
        %v6683 = vld [vmem:[#allocation6 + $0x1a8] sm:$0xff]
        %v6684 = vld [vmem:[#allocation6 + $0x1d0] sm:$0xff]
        %v6685 = vld [vmem:[#allocation6 + $0x1d8] sm:$0xff]
        %v6686 = vld [vmem:[#allocation6 + $0x200] sm:$0xff]
        %v6687 = vld [vmem:[#allocation6 + $0x208] sm:$0xff]
        %v6688 = vld [vmem:[#allocation6 + $0x230] sm:$0xff]
        %v6689 = vld [vmem:[#allocation6 + $0x238] sm:$0xff]
        %v6690 = vld [vmem:[#allocation6 + $0x260] sm:$0xff]
        %v6691 = vld [vmem:[#allocation6 + $0x268] sm:$0xff]
        %v6692 = vld [vmem:[#allocation6 + $0x290] sm:$0xff]
        %v6693 = vld [vmem:[#allocation6 + $0x298] sm:$0xff]
        %v6694 = vld [vmem:[#allocation6 + $0x2c0] sm:$0xff]
        %v6695 = vld [vmem:[#allocation6 + $0x2c8] sm:$0xff]
        %v6696 = vld [vmem:[#allocation6 + $0x2f0] sm:$0xff]
        %v6697 = vld [vmem:[#allocation6 + $0x2f8] sm:$0xff]
        %v6698 = vld [vmem:[#allocation6 + $0x320] sm:$0xff]
        %v6699 = vld [vmem:[#allocation6 + $0x328] sm:$0xff]
        %v6700 = vld [vmem:[#allocation6 + $0x350] sm:$0xff]
        %v6701 = vld [vmem:[#allocation6 + $0x358] sm:$0xff]
        %v6702 = vld [vmem:[#allocation6 + $0x380] sm:$0xff]
        %v6703 = vld [vmem:[#allocation6 + $0x388] sm:$0xff]
        %v6704 = vld [vmem:[#allocation6 + $0x3b0] sm:$0xff]
        %v6705 = vld [vmem:[#allocation6 + $0x3b8] sm:$0xff]
        %v6706 = vld [vmem:[#allocation6 + $0x3e0] sm:$0xff]
        %v6707 = vld [vmem:[#allocation6 + $0x3e8] sm:$0xff]
        %v6708 = vld [vmem:[#allocation6 + $0x410] sm:$0xff]
        %v6709 = vld [vmem:[#allocation6 + $0x418] sm:$0xff]
        %v6710 = vld [vmem:[#allocation6 + $0x440] sm:$0xff]
        %v6711 = vld [vmem:[#allocation6 + $0x448] sm:$0xff]
        %v6712 = vld [vmem:[#allocation6 + $0x470] sm:$0xff]
        %v6713 = vld [vmem:[#allocation6 + $0x478] sm:$0xff]
        %v6714 = vld [vmem:[#allocation6 + $0x4a0] sm:$0xff]
        %v6715 = vld [vmem:[#allocation6 + $0x4a8] sm:$0xff]
        %v6716 = vld [vmem:[#allocation6 + $0x4d0] sm:$0xff]
        %v6717 = vld [vmem:[#allocation6 + $0x4d8] sm:$0xff]
        %v6718 = vld [vmem:[#allocation6 + $0x500] sm:$0xff]
        %v6719 = vld [vmem:[#allocation6 + $0x508] sm:$0xff]
        %v6720 = vld [vmem:[#allocation6 + $0x530] sm:$0xff]
        %v6721 = vld [vmem:[#allocation6 + $0x538] sm:$0xff]
        %v6722 = vld [vmem:[#allocation6 + $0x560] sm:$0xff]
        %v6723 = vld [vmem:[#allocation6 + $0x568] sm:$0xff]
        %v6724 = vld [vmem:[#allocation6 + $0x590] sm:$0xff]
        %v6725 = vld [vmem:[#allocation6 + $0x598] sm:$0xff]
        %v6726 = vld [vmem:[#allocation6 + $0x5c0] sm:$0xff]
        %v6727 = vld [vmem:[#allocation6 + $0x5c8] sm:$0xff]
        %v6728 = vld [vmem:[#allocation6 + $0x5f0] sm:$0xff]
        %v6729 = vld [vmem:[#allocation6 + $0x5f8] sm:$0xff]
        %v6730 = vld [vmem:[#allocation6 + $0x620] sm:$0xff]
        %v6731 = vld [vmem:[#allocation6 + $0x628] sm:$0xff]
        %v6732 = vld [vmem:[#allocation6 + $0x650] sm:$0xff]
        %v6733 = vld [vmem:[#allocation6 + $0x658] sm:$0xff]
        %v6734 = vld [vmem:[#allocation6 + $0x680] sm:$0xff]
        %v6735 = vld [vmem:[#allocation6 + $0x688] sm:$0xff]
        %v6736 = vld [vmem:[#allocation6 + $0x6b0] sm:$0xff]
        %v6737 = vld [vmem:[#allocation6 + $0x6b8] sm:$0xff]
        %v6738 = vld [vmem:[#allocation6 + $0x6e0] sm:$0xff]
        %v6739 = vld [vmem:[#allocation6 + $0x6e8] sm:$0xff]
        %v6740 = vld [vmem:[#allocation6 + $0x710] sm:$0xff]
        %v6741 = vld [vmem:[#allocation6 + $0x718] sm:$0xff]
        %v6742 = vld [vmem:[#allocation6 + $0x740] sm:$0xff]
        %v6743 = vld [vmem:[#allocation6 + $0x748] sm:$0xff]
        %v6744 = vld [vmem:[#allocation6 + $0x770] sm:$0xff]
        %v6745 = vld [vmem:[#allocation6 + $0x778] sm:$0xff]
        %v6746 = vld [vmem:[#allocation6 + $0x7a0] sm:$0xff]
        %v6747 = vld [vmem:[#allocation6 + $0x7a8] sm:$0xff]
        %v6748 = vld [vmem:[#allocation6 + $0x7d0] sm:$0xff]
        %v6749 = vld [vmem:[#allocation6 + $0x7d8] sm:$0xff]
        %v6750 = vld [vmem:[#allocation6 + $0x800] sm:$0xff]
        %v6751 = vld [vmem:[#allocation6 + $0x808] sm:$0xff]
        %v6752 = vld [vmem:[#allocation6 + $0x830] sm:$0xff]
        %v6753 = vld [vmem:[#allocation6 + $0x838] sm:$0xff]
        %v6754 = vld [vmem:[#allocation6 + $0x860] sm:$0xff]
        %v6755 = vld [vmem:[#allocation6 + $0x868] sm:$0xff]
        %v6756 = vld [vmem:[#allocation6 + $0x890] sm:$0xff]
        %v6757 = vld [vmem:[#allocation6 + $0x898] sm:$0xff]
        %v6758 = vld [vmem:[#allocation6 + $0x8c0] sm:$0xff]
        %v6759 = vld [vmem:[#allocation6 + $0x8c8] sm:$0xff]
        %v6760 = vld [vmem:[#allocation6 + $0x8f0] sm:$0xff]
        %v6761 = vld [vmem:[#allocation6 + $0x8f8] sm:$0xff]
        %v6762 = vld [vmem:[#allocation8 + $0x8] sm:$0xf]
        %v6764 = vlaneseq
        %v6765 = vshrl.u32 %v6764, 7
        %v6766 = vsub.s32 0, %v6765
        %v6767 = vrot.slane %v6762, %v6766
        %v6768 = vlaneseq
        %v6769 = vshrl.u32 %v6768, 7
        %v6770 = vsub.s32 1, %v6769
        %v6771 = vrot.slane %v6762, %v6770
        %v6772 = vlaneseq
        %v6773 = vshrl.u32 %v6772, 7
        %v6774 = vsub.s32 2, %v6773
        %v6775 = vrot.slane %v6762, %v6774
        %v6776 = vlaneseq
        %v6777 = vshrl.u32 %v6776, 7
        %v6778 = vsub.s32 3, %v6777
        %v6779 = vrot.slane %v6762, %v6778
        %v6880 = vunpack.c.l.b16 %v6666
        %v6881 = vunpack.c.h.b16 %v6666
        %v6882 = vunpack.c.l.b16 %v6667
        %v6883 = vunpack.c.h.b16 %v6667
        %v6884 = vunpack.c.l.b16 %v6668
        %v6885 = vunpack.c.h.b16 %v6668
        %v6886 = vunpack.c.l.b16 %v6669
        %v6887 = vunpack.c.h.b16 %v6669
        %v6888 = vunpack.c.l.b16 %v6670
        %v6889 = vunpack.c.h.b16 %v6670
        %v6890 = vunpack.c.l.b16 %v6671
        %v6891 = vunpack.c.h.b16 %v6671
        %v6892 = vunpack.c.l.b16 %v6672
        %v6893 = vunpack.c.h.b16 %v6672
        %v6894 = vunpack.c.l.b16 %v6673
        %v6895 = vunpack.c.h.b16 %v6673
        %v6896 = vunpack.c.l.b16 %v6674
        %v6897 = vunpack.c.h.b16 %v6674
        %v6898 = vunpack.c.l.b16 %v6675
        %v6899 = vunpack.c.h.b16 %v6675
        %v6900 = vunpack.c.l.b16 %v6676
        %v6901 = vunpack.c.h.b16 %v6676
        %v6902 = vunpack.c.l.b16 %v6677
        %v6903 = vunpack.c.h.b16 %v6677
        %v6904 = vunpack.c.l.b16 %v6678
        %v6905 = vunpack.c.h.b16 %v6678
        %v6906 = vunpack.c.l.b16 %v6679
        %v6907 = vunpack.c.h.b16 %v6679
        %v6908 = vunpack.c.l.b16 %v6680
        %v6909 = vunpack.c.h.b16 %v6680
        %v6910 = vunpack.c.l.b16 %v6681
        %v6911 = vunpack.c.h.b16 %v6681
        %v6912 = vunpack.c.l.b16 %v6682
        %v6913 = vunpack.c.h.b16 %v6682
        %v6914 = vunpack.c.l.b16 %v6683
        %v6915 = vunpack.c.h.b16 %v6683
        %v6916 = vunpack.c.l.b16 %v6684
        %v6917 = vunpack.c.h.b16 %v6684
        %v6918 = vunpack.c.l.b16 %v6685
        %v6919 = vunpack.c.h.b16 %v6685
        %v6920 = vunpack.c.l.b16 %v6686
        %v6921 = vunpack.c.h.b16 %v6686
        %v6922 = vunpack.c.l.b16 %v6687
        %v6923 = vunpack.c.h.b16 %v6687
        %v6924 = vunpack.c.l.b16 %v6688
        %v6925 = vunpack.c.h.b16 %v6688
        %v6926 = vunpack.c.l.b16 %v6689
        %v6927 = vunpack.c.h.b16 %v6689
        %v6928 = vunpack.c.l.b16 %v6690
        %v6929 = vunpack.c.h.b16 %v6690
        %v6930 = vunpack.c.l.b16 %v6691
        %v6931 = vunpack.c.h.b16 %v6691
        %v6932 = vunpack.c.l.b16 %v6692
        %v6933 = vunpack.c.h.b16 %v6692
        %v6934 = vunpack.c.l.b16 %v6693
        %v6935 = vunpack.c.h.b16 %v6693
        %v6936 = vunpack.c.l.b16 %v6694
        %v6937 = vunpack.c.h.b16 %v6694
        %v6938 = vunpack.c.l.b16 %v6695
        %v6939 = vunpack.c.h.b16 %v6695
        %v6940 = vunpack.c.l.b16 %v6696
        %v6941 = vunpack.c.h.b16 %v6696
        %v6942 = vunpack.c.l.b16 %v6697
        %v6943 = vunpack.c.h.b16 %v6697
        %v6944 = vunpack.c.l.b16 %v6698
        %v6945 = vunpack.c.h.b16 %v6698
        %v6946 = vunpack.c.l.b16 %v6699
        %v6947 = vunpack.c.h.b16 %v6699
        %v6948 = vunpack.c.l.b16 %v6700
        %v6949 = vunpack.c.h.b16 %v6700
        %v6950 = vunpack.c.l.b16 %v6701
        %v6951 = vunpack.c.h.b16 %v6701
        %v6952 = vunpack.c.l.b16 %v6702
        %v6953 = vunpack.c.h.b16 %v6702
        %v6954 = vunpack.c.l.b16 %v6703
        %v6955 = vunpack.c.h.b16 %v6703
        %v6956 = vunpack.c.l.b16 %v6704
        %v6957 = vunpack.c.h.b16 %v6704
        %v6958 = vunpack.c.l.b16 %v6705
        %v6959 = vunpack.c.h.b16 %v6705
        %v6960 = vunpack.c.l.b16 %v6706
        %v6961 = vunpack.c.h.b16 %v6706
        %v6962 = vunpack.c.l.b16 %v6707
        %v6963 = vunpack.c.h.b16 %v6707
        %v6964 = vunpack.c.l.b16 %v6708
        %v6965 = vunpack.c.h.b16 %v6708
        %v6966 = vunpack.c.l.b16 %v6709
        %v6967 = vunpack.c.h.b16 %v6709
        %v6968 = vunpack.c.l.b16 %v6710
        %v6969 = vunpack.c.h.b16 %v6710
        %v6970 = vunpack.c.l.b16 %v6711
        %v6971 = vunpack.c.h.b16 %v6711
        %v6972 = vunpack.c.l.b16 %v6712
        %v6973 = vunpack.c.h.b16 %v6712
        %v6974 = vunpack.c.l.b16 %v6713
        %v6975 = vunpack.c.h.b16 %v6713
        %v6976 = vunpack.c.l.b16 %v6714
        %v6977 = vunpack.c.h.b16 %v6714
        %v6978 = vunpack.c.l.b16 %v6715
        %v6979 = vunpack.c.h.b16 %v6715
        %v6980 = vunpack.c.l.b16 %v6716
        %v6981 = vunpack.c.h.b16 %v6716
        %v6982 = vunpack.c.l.b16 %v6717
        %v6983 = vunpack.c.h.b16 %v6717
        %v6984 = vunpack.c.l.b16 %v6718
        %v6985 = vunpack.c.h.b16 %v6718
        %v6986 = vunpack.c.l.b16 %v6719
        %v6987 = vunpack.c.h.b16 %v6719
        %v6988 = vunpack.c.l.b16 %v6720
        %v6989 = vunpack.c.h.b16 %v6720
        %v6990 = vunpack.c.l.b16 %v6721
        %v6991 = vunpack.c.h.b16 %v6721
        %v6992 = vunpack.c.l.b16 %v6722
        %v6993 = vunpack.c.h.b16 %v6722
        %v6994 = vunpack.c.l.b16 %v6723
        %v6995 = vunpack.c.h.b16 %v6723
        %v6996 = vunpack.c.l.b16 %v6724
        %v6997 = vunpack.c.h.b16 %v6724
        %v6998 = vunpack.c.l.b16 %v6725
        %v6999 = vunpack.c.h.b16 %v6725
        %v7000 = vunpack.c.l.b16 %v6726
        %v7001 = vunpack.c.h.b16 %v6726
        %v7002 = vunpack.c.l.b16 %v6727
        %v7003 = vunpack.c.h.b16 %v6727
        %v7004 = vunpack.c.l.b16 %v6728
        %v7005 = vunpack.c.h.b16 %v6728
        %v7006 = vunpack.c.l.b16 %v6729
        %v7007 = vunpack.c.h.b16 %v6729
        %v7008 = vunpack.c.l.b16 %v6730
        %v7009 = vunpack.c.h.b16 %v6730
        %v7010 = vunpack.c.l.b16 %v6731
        %v7011 = vunpack.c.h.b16 %v6731
        %v7012 = vunpack.c.l.b16 %v6732
        %v7013 = vunpack.c.h.b16 %v6732
        %v7014 = vunpack.c.l.b16 %v6733
        %v7015 = vunpack.c.h.b16 %v6733
        %v7016 = vunpack.c.l.b16 %v6734
        %v7017 = vunpack.c.h.b16 %v6734
        %v7018 = vunpack.c.l.b16 %v6735
        %v7019 = vunpack.c.h.b16 %v6735
        %v7020 = vunpack.c.l.b16 %v6736
        %v7021 = vunpack.c.h.b16 %v6736
        %v7022 = vunpack.c.l.b16 %v6737
        %v7023 = vunpack.c.h.b16 %v6737
        %v7024 = vunpack.c.l.b16 %v6738
        %v7025 = vunpack.c.h.b16 %v6738
        %v7026 = vunpack.c.l.b16 %v6739
        %v7027 = vunpack.c.h.b16 %v6739
        %v7028 = vunpack.c.l.b16 %v6740
        %v7029 = vunpack.c.h.b16 %v6740
        %v7030 = vunpack.c.l.b16 %v6741
        %v7031 = vunpack.c.h.b16 %v6741
        %v7032 = vunpack.c.l.b16 %v6742
        %v7033 = vunpack.c.h.b16 %v6742
        %v7034 = vunpack.c.l.b16 %v6743
        %v7035 = vunpack.c.h.b16 %v6743
        %v7036 = vunpack.c.l.b16 %v6744
        %v7037 = vunpack.c.h.b16 %v6744
        %v7038 = vunpack.c.l.b16 %v6745
        %v7039 = vunpack.c.h.b16 %v6745
        %v7040 = vunpack.c.l.b16 %v6746
        %v7041 = vunpack.c.h.b16 %v6746
        %v7042 = vunpack.c.l.b16 %v6747
        %v7043 = vunpack.c.h.b16 %v6747
        %v7044 = vunpack.c.l.b16 %v6748
        %v7045 = vunpack.c.h.b16 %v6748
        %v7046 = vunpack.c.l.b16 %v6749
        %v7047 = vunpack.c.h.b16 %v6749
        %v7048 = vunpack.c.l.b16 %v6750
        %v7049 = vunpack.c.h.b16 %v6750
        %v7050 = vunpack.c.l.b16 %v6751
        %v7051 = vunpack.c.h.b16 %v6751
        %v7052 = vunpack.c.l.b16 %v6752
        %v7053 = vunpack.c.h.b16 %v6752
        %v7054 = vunpack.c.l.b16 %v6753
        %v7055 = vunpack.c.h.b16 %v6753
        %v7056 = vunpack.c.l.b16 %v6754
        %v7057 = vunpack.c.h.b16 %v6754
        %v7058 = vunpack.c.l.b16 %v6755
        %v7059 = vunpack.c.h.b16 %v6755
        %v7060 = vunpack.c.l.b16 %v6756
        %v7061 = vunpack.c.h.b16 %v6756
        %v7062 = vunpack.c.l.b16 %v6757
        %v7063 = vunpack.c.h.b16 %v6757
        %v7064 = vunpack.c.l.b16 %v6758
        %v7065 = vunpack.c.h.b16 %v6758
        %v7066 = vunpack.c.l.b16 %v6759
        %v7067 = vunpack.c.h.b16 %v6759
        %v7068 = vunpack.c.l.b16 %v6760
        %v7069 = vunpack.c.h.b16 %v6760
        %v7070 = vunpack.c.l.b16 %v6761
        %v7071 = vunpack.c.h.b16 %v6761
        %v7072 = vpack.c.b16 %v6884, %v6880
        %v7073 = vpack.c.b16 %v6885, %v6881
        %v7074 = vpack.c.b16 %v6886, %v6882
        %v7075 = vpack.c.b16 %v6887, %v6883
        %v7076 = vpack.c.b16 %v6892, %v6888
        %v7077 = vpack.c.b16 %v6893, %v6889
        %v7078 = vpack.c.b16 %v6894, %v6890
        %v7079 = vpack.c.b16 %v6895, %v6891
        %v7080 = vpack.c.b16 %v6900, %v6896
        %v7081 = vpack.c.b16 %v6901, %v6897
        %v7082 = vpack.c.b16 %v6902, %v6898
        %v7083 = vpack.c.b16 %v6903, %v6899
        %v7084 = vpack.c.b16 %v6908, %v6904
        %v7085 = vpack.c.b16 %v6909, %v6905
        %v7086 = vpack.c.b16 %v6910, %v6906
        %v7087 = vpack.c.b16 %v6911, %v6907
        %v7088 = vpack.c.b16 %v6916, %v6912
        %v7089 = vpack.c.b16 %v6917, %v6913
        %v7090 = vpack.c.b16 %v6918, %v6914
        %v7091 = vpack.c.b16 %v6919, %v6915
        %v7092 = vpack.c.b16 %v6924, %v6920
        %v7093 = vpack.c.b16 %v6925, %v6921
        %v7094 = vpack.c.b16 %v6926, %v6922
        %v7095 = vpack.c.b16 %v6927, %v6923
        %v7096 = vpack.c.b16 %v6932, %v6928
        %v7097 = vpack.c.b16 %v6933, %v6929
        %v7098 = vpack.c.b16 %v6934, %v6930
        %v7099 = vpack.c.b16 %v6935, %v6931
        %v7100 = vpack.c.b16 %v6940, %v6936
        %v7101 = vpack.c.b16 %v6941, %v6937
        %v7102 = vpack.c.b16 %v6942, %v6938
        %v7103 = vpack.c.b16 %v6943, %v6939
        %v7104 = vpack.c.b16 %v6948, %v6944
        %v7105 = vpack.c.b16 %v6949, %v6945
        %v7106 = vpack.c.b16 %v6950, %v6946
        %v7107 = vpack.c.b16 %v6951, %v6947
        %v7108 = vpack.c.b16 %v6956, %v6952
        %v7109 = vpack.c.b16 %v6957, %v6953
        %v7110 = vpack.c.b16 %v6958, %v6954
        %v7111 = vpack.c.b16 %v6959, %v6955
        %v7112 = vpack.c.b16 %v6964, %v6960
        %v7113 = vpack.c.b16 %v6965, %v6961
        %v7114 = vpack.c.b16 %v6966, %v6962
        %v7115 = vpack.c.b16 %v6967, %v6963
        %v7116 = vpack.c.b16 %v6972, %v6968
        %v7117 = vpack.c.b16 %v6973, %v6969
        %v7118 = vpack.c.b16 %v6974, %v6970
        %v7119 = vpack.c.b16 %v6975, %v6971
        %v7120 = vpack.c.b16 %v6980, %v6976
        %v7121 = vpack.c.b16 %v6981, %v6977
        %v7122 = vpack.c.b16 %v6982, %v6978
        %v7123 = vpack.c.b16 %v6983, %v6979
        %v7124 = vpack.c.b16 %v6988, %v6984
        %v7125 = vpack.c.b16 %v6989, %v6985
        %v7126 = vpack.c.b16 %v6990, %v6986
        %v7127 = vpack.c.b16 %v6991, %v6987
        %v7128 = vpack.c.b16 %v6996, %v6992
        %v7129 = vpack.c.b16 %v6997, %v6993
        %v7130 = vpack.c.b16 %v6998, %v6994
        %v7131 = vpack.c.b16 %v6999, %v6995
        %v7132 = vpack.c.b16 %v7004, %v7000
        %v7133 = vpack.c.b16 %v7005, %v7001
        %v7134 = vpack.c.b16 %v7006, %v7002
        %v7135 = vpack.c.b16 %v7007, %v7003
        %v7136 = vpack.c.b16 %v7012, %v7008
        %v7137 = vpack.c.b16 %v7013, %v7009
        %v7138 = vpack.c.b16 %v7014, %v7010
        %v7139 = vpack.c.b16 %v7015, %v7011
        %v7140 = vpack.c.b16 %v7020, %v7016
        %v7141 = vpack.c.b16 %v7021, %v7017
        %v7142 = vpack.c.b16 %v7022, %v7018
        %v7143 = vpack.c.b16 %v7023, %v7019
        %v7144 = vpack.c.b16 %v7028, %v7024
        %v7145 = vpack.c.b16 %v7029, %v7025
        %v7146 = vpack.c.b16 %v7030, %v7026
        %v7147 = vpack.c.b16 %v7031, %v7027
        %v7148 = vpack.c.b16 %v7036, %v7032
        %v7149 = vpack.c.b16 %v7037, %v7033
        %v7150 = vpack.c.b16 %v7038, %v7034
        %v7151 = vpack.c.b16 %v7039, %v7035
        %v7152 = vpack.c.b16 %v7044, %v7040
        %v7153 = vpack.c.b16 %v7045, %v7041
        %v7154 = vpack.c.b16 %v7046, %v7042
        %v7155 = vpack.c.b16 %v7047, %v7043
        %v7156 = vpack.c.b16 %v7052, %v7048
        %v7157 = vpack.c.b16 %v7053, %v7049
        %v7158 = vpack.c.b16 %v7054, %v7050
        %v7159 = vpack.c.b16 %v7055, %v7051
        %v7160 = vpack.c.b16 %v7060, %v7056
        %v7161 = vpack.c.b16 %v7061, %v7057
        %v7162 = vpack.c.b16 %v7062, %v7058
        %v7163 = vpack.c.b16 %v7063, %v7059
        %v7164 = vpack.c.b16 %v7068, %v7064
        %v7165 = vpack.c.b16 %v7069, %v7065
        %v7166 = vpack.c.b16 %v7070, %v7066
        %v7167 = vpack.c.b16 %v7071, %v7067
        %7264 = vmatprep.subr.bf16.mxu0 %v7073
        %7265 = vmatpush1.bf16.msra.mxu0 %v7072
        %7266 = vmatprep.subr.bf16.mxu0 %v7077
        %7267 = vmatpush1.bf16.msra.mxu0 %v7076
        %7268 = vmatprep.subr.bf16.mxu0 %v7081
        %7269 = vmatpush1.bf16.msra.mxu0 %v7080
        %7270 = vmatprep.subr.bf16.mxu0 %v7085
        %7271 = vmatpush1.bf16.msra.mxu0 %v7084
        %7272 = vmatprep.subr.bf16.mxu0 %v7089
        %7273 = vmatpush1.bf16.msra.mxu0 %v7088
        %7274 = vmatprep.subr.bf16.mxu0 %v7093
        %7275 = vmatpush1.bf16.msra.mxu0 %v7092
        %7276 = vmatprep.subr.bf16.mxu0 %v7097
        %7277 = vmatpush1.bf16.msra.mxu0 %v7096
        %7278 = vmatprep.subr.bf16.mxu0 %v7101
        %7279 = vmatpush1.bf16.msra.mxu0 %v7100
        %7280 = vmatprep.subr.bf16.mxu0 %v7105
        %7281 = vmatpush1.bf16.msra.mxu0 %v7104
        %7282 = vmatprep.subr.bf16.mxu0 %v7109
        %7283 = vmatpush1.bf16.msra.mxu0 %v7108
        %7284 = vmatprep.subr.bf16.mxu0 %v7113
        %7285 = vmatpush1.bf16.msra.mxu0 %v7112
        %7286 = vmatprep.subr.bf16.mxu0 %v7117
        %7287 = vmatpush1.bf16.msra.mxu0 %v7116
        %7288 = vmatprep.subr.bf16.mxu0 %v7121
        %7289 = vmatpush1.bf16.msra.mxu0 %v7120
        %7290 = vmatprep.subr.bf16.mxu0 %v7125
        %7291 = vmatpush1.bf16.msra.mxu0 %v7124
        %7292 = vmatprep.subr.bf16.mxu0 %v7129
        %7293 = vmatpush1.bf16.msra.mxu0 %v7128
        %7294 = vmatprep.subr.bf16.mxu0 %v7133
        %7295 = vmatpush1.bf16.msra.mxu0 %v7132
        %7296 = vmatprep.mubr.bf16.mxu0 %v398
        %7297 = vmatmul.mubr.bf16.gmra.mrb[0].mxu0 %v397
        %v7298 = vpop.f32.mrb[0].mxu0
        %v7299 = vadd.f32 %v6767, %v7298
        %v7300 = vpop.f32.mrb[0].mxu0
        %v7301 = vadd.f32 %v6771, %v7300
        %v7302 = vpop.f32.mrb[0].mxu0
        %v7303 = vadd.f32 %v6767, %v7302
        %v7304 = vpop.f32.mrb[0].mxu0
        %v7305 = vadd.f32 %v6771, %v7304
        %7306 = vmatprep.mubr.bf16.mxu0 %v401
        %7307 = vmatmul.mubr.bf16.gmra.mrb[0].mxu0 %v400
        %v7308 = vpop.f32.mrb[0].mxu0
        %v7309 = vadd.f32 %v6767, %v7308
        %v7310 = vpop.f32.mrb[0].mxu0
        %v7311 = vadd.f32 %v6771, %v7310
        %v7312 = vpop.f32.mrb[0].mxu0
        %v7313 = vadd.f32 %v6767, %v7312
        %v7314 = vpop.f32.mrb[0].mxu0
        %v7315 = vadd.f32 %v6771, %v7314
        %7316 = vmatprep.mubr.bf16.mxu0 %v404
        %7317 = vmatmul.mubr.bf16.gmra.mrb[0].mxu0 %v403
        %v7318 = vpop.f32.mrb[0].mxu0
        %v7319 = vadd.f32 %v6767, %v7318
        %v7320 = vpop.f32.mrb[0].mxu0
        %v7321 = vadd.f32 %v6771, %v7320
        %v7322 = vpop.f32.mrb[0].mxu0
        %v7323 = vadd.f32 %v6767, %v7322
        %v7324 = vpop.f32.mrb[0].mxu0
        %v7325 = vadd.f32 %v6771, %v7324
        %7326 = vmatprep.mubr.bf16.mxu0 %v407
        %7327 = vmatmul.mubr.bf16.gmra.mrb[0].mxu0 %v406
        %v7328 = vpop.f32.mrb[0].mxu0
        %v7329 = vadd.f32 %v6767, %v7328
        %v7330 = vpop.f32.mrb[0].mxu0
        %v7331 = vadd.f32 %v6771, %v7330
        %v7332 = vpop.f32.mrb[0].mxu0
        %v7333 = vadd.f32 %v6767, %v7332
        %v7334 = vpop.f32.mrb[0].mxu0
        %v7335 = vadd.f32 %v6771, %v7334
        %7336 = vmatprep.mubr.bf16.mxu0 %v410
        %7337 = vmatmul.mubr.bf16.gmra.mrb[0].mxu0 %v409
        %v7338 = vpop.f32.mrb[0].mxu0
        %v7339 = vadd.f32 %v6767, %v7338
        %v7340 = vpop.f32.mrb[0].mxu0
        %v7341 = vadd.f32 %v6771, %v7340
        %v7342 = vpop.f32.mrb[0].mxu0
        %v7343 = vadd.f32 %v6767, %v7342
        %v7344 = vpop.f32.mrb[0].mxu0
        %v7345 = vadd.f32 %v6771, %v7344
        %7346 = vmatprep.mubr.bf16.mxu0 %v413
        %7347 = vmatmul.mubr.bf16.gmra.mrb[0].mxu0 %v412
        %v7348 = vpop.f32.mrb[0].mxu0
        %v7349 = vadd.f32 %v6767, %v7348
        %v7350 = vpop.f32.mrb[0].mxu0
        %v7351 = vadd.f32 %v6771, %v7350
        %v7352 = vpop.f32.mrb[0].mxu0
        %v7353 = vadd.f32 %v6767, %v7352
        %v7354 = vpop.f32.mrb[0].mxu0
        %v7355 = vadd.f32 %v6771, %v7354
        %7356 = vmatprep.mubr.bf16.mxu0 %v416
        %7357 = vmatmul.mubr.bf16.gmra.mrb[0].mxu0 %v415
        %v7358 = vpop.f32.mrb[0].mxu0
        %v7359 = vadd.f32 %v6767, %v7358
        %v7360 = vpop.f32.mrb[0].mxu0
        %v7361 = vadd.f32 %v6771, %v7360
        %v7362 = vpop.f32.mrb[0].mxu0
        %v7363 = vadd.f32 %v6767, %v7362
        %v7364 = vpop.f32.mrb[0].mxu0
        %v7365 = vadd.f32 %v6771, %v7364
        %7366 = vmatprep.mubr.bf16.mxu0 %v419
        %7367 = vmatmul.mubr.bf16.gmra.mrb[0].mxu0 %v418
        %v7368 = vpop.f32.mrb[0].mxu0
        %v7369 = vadd.f32 %v6767, %v7368
        %v7370 = vpop.f32.mrb[0].mxu0
        %v7371 = vadd.f32 %v6771, %v7370
        %v7372 = vpop.f32.mrb[0].mxu0
        %v7373 = vadd.f32 %v6767, %v7372
        %v7374 = vpop.f32.mrb[0].mxu0
        %v7375 = vadd.f32 %v6771, %v7374
        %7376 = vmatprep.mubr.bf16.mxu0 %v422
        %7377 = vmatmul.mubr.bf16.gmra.mrb[0].mxu0 %v421
        %v7378 = vpop.f32.mrb[0].mxu0
        %v7379 = vadd.f32 %v6767, %v7378
        %v7380 = vpop.f32.mrb[0].mxu0
        %v7381 = vadd.f32 %v6771, %v7380
        %v7382 = vpop.f32.mrb[0].mxu0
        %v7383 = vadd.f32 %v6767, %v7382
        %v7384 = vpop.f32.mrb[0].mxu0
        %v7385 = vadd.f32 %v6771, %v7384
        %7386 = vmatprep.mubr.bf16.mxu0 %v425
        %7387 = vmatmul.mubr.bf16.gmra.mrb[0].mxu0 %v424
        %v7388 = vpop.f32.mrb[0].mxu0
        %v7389 = vadd.f32 %v6767, %v7388
        %v7390 = vpop.f32.mrb[0].mxu0
        %v7391 = vadd.f32 %v6771, %v7390
        %v7392 = vpop.f32.mrb[0].mxu0
        %v7393 = vadd.f32 %v6767, %v7392
        %v7394 = vpop.f32.mrb[0].mxu0
        %v7395 = vadd.f32 %v6771, %v7394
        %7396 = vmatprep.mubr.bf16.mxu0 %v428
        %7397 = vmatmul.mubr.bf16.gmra.mrb[0].mxu0 %v427
        %v7398 = vpop.f32.mrb[0].mxu0
        %v7399 = vadd.f32 %v6767, %v7398
        %v7400 = vpop.f32.mrb[0].mxu0
        %v7401 = vadd.f32 %v6771, %v7400
        %v7402 = vpop.f32.mrb[0].mxu0
        %v7403 = vadd.f32 %v6767, %v7402
        %v7404 = vpop.f32.mrb[0].mxu0
        %v7405 = vadd.f32 %v6771, %v7404
        %7406 = vmatprep.mubr.bf16.mxu0 %v431
        %7407 = vmatmul.mubr.bf16.gmra.mrb[0].mxu0 %v430
        %v7408 = vpop.f32.mrb[0].mxu0
        %v7409 = vadd.f32 %v6767, %v7408
        %v7410 = vpop.f32.mrb[0].mxu0
        %v7411 = vadd.f32 %v6771, %v7410
        %v7412 = vpop.f32.mrb[0].mxu0
        %v7413 = vadd.f32 %v6767, %v7412
        %v7414 = vpop.f32.mrb[0].mxu0
        %v7415 = vadd.f32 %v6771, %v7414
        %7416 = vmatprep.mubr.bf16.mxu0 %v434
        %7417 = vmatmul.mubr.bf16.gmra.mrb[0].mxu0 %v433
        %v7418 = vpop.f32.mrb[0].mxu0
        %v7419 = vadd.f32 %v6767, %v7418
        %v7420 = vpop.f32.mrb[0].mxu0
        %v7421 = vadd.f32 %v6771, %v7420
        %v7422 = vpop.f32.mrb[0].mxu0
        %v7423 = vadd.f32 %v6767, %v7422
        %v7424 = vpop.f32.mrb[0].mxu0
        %v7425 = vadd.f32 %v6771, %v7424
        %7426 = vmatprep.mubr.bf16.mxu0 %v437
        %7427 = vmatmul.mubr.bf16.gmra.mrb[0].mxu0 %v436
        %v7428 = vpop.f32.mrb[0].mxu0
        %v7429 = vadd.f32 %v6767, %v7428
        %v7430 = vpop.f32.mrb[0].mxu0
        %v7431 = vadd.f32 %v6771, %v7430
        %v7432 = vpop.f32.mrb[0].mxu0
        %v7433 = vadd.f32 %v6767, %v7432
        %v7434 = vpop.f32.mrb[0].mxu0
        %v7435 = vadd.f32 %v6771, %v7434
        %7436 = vmatprep.mubr.bf16.mxu0 %v440
        %7437 = vmatmul.mubr.bf16.gmra.mrb[0].mxu0 %v439
        %v7438 = vpop.f32.mrb[0].mxu0
        %v7439 = vadd.f32 %v6767, %v7438
        %v7440 = vpop.f32.mrb[0].mxu0
        %v7441 = vadd.f32 %v6771, %v7440
        %v7442 = vpop.f32.mrb[0].mxu0
        %v7443 = vadd.f32 %v6767, %v7442
        %v7444 = vpop.f32.mrb[0].mxu0
        %v7445 = vadd.f32 %v6771, %v7444
        %7446 = vmatprep.mubr.bf16.mxu0 %v443
        %7447 = vmatmul.mubr.bf16.gmra.mrb[0].mxu0 %v442
        %v7448 = vpop.f32.mrb[0].mxu0
        %v7449 = vadd.f32 %v6767, %v7448
        %v7450 = vpop.f32.mrb[0].mxu0
        %v7451 = vadd.f32 %v6771, %v7450
        %v7452 = vpop.f32.mrb[0].mxu0
        %v7453 = vadd.f32 %v6767, %v7452
        %v7454 = vpop.f32.mrb[0].mxu0
        %v7455 = vadd.f32 %v6771, %v7454
        %7456 = vdwg.mxu0
        %7457 = vmatprep.subr.bf16.mxu0 %v7137
        %7458 = vmatpush1.bf16.msra.mxu0 %v7136
        %7459 = vmatprep.subr.bf16.mxu0 %v7141
        %7460 = vmatpush1.bf16.msra.mxu0 %v7140
        %7461 = vmatprep.subr.bf16.mxu0 %v7145
        %7462 = vmatpush1.bf16.msra.mxu0 %v7144
        %7463 = vmatprep.subr.bf16.mxu0 %v7149
        %7464 = vmatpush1.bf16.msra.mxu0 %v7148
        %7465 = vmatprep.subr.bf16.mxu0 %v7153
        %7466 = vmatpush1.bf16.msra.mxu0 %v7152
        %7467 = vmatprep.subr.bf16.mxu0 %v7157
        %7468 = vmatpush1.bf16.msra.mxu0 %v7156
        %7469 = vmatprep.subr.bf16.mxu0 %v7161
        %7470 = vmatpush1.bf16.msra.mxu0 %v7160
        %7471 = vmatprep.subr.bf16.mxu0 %v7165
        %7472 = vmatpush1.bf16.msra.mxu0 %v7164
        %7473 = vmatprep.subr.bf16.mxu0 0
        %7474 = vmatpush1.bf16.msra.mxu0 0
        %7475 = vmatprep.subr.bf16.mxu0 0
        %7476 = vmatpush1.bf16.msra.mxu0 0
        %7477 = vmatprep.subr.bf16.mxu0 0
        %7478 = vmatpush1.bf16.msra.mxu0 0
        %7479 = vmatprep.subr.bf16.mxu0 0
        %7480 = vmatpush1.bf16.msra.mxu0 0
        %7481 = vmatprep.subr.bf16.mxu0 0
        %7482 = vmatpush1.bf16.msra.mxu0 0
        %7483 = vmatprep.subr.bf16.mxu0 0
        %7484 = vmatpush1.bf16.msra.mxu0 0
        %7485 = vmatprep.subr.bf16.mxu0 0
        %7486 = vmatpush1.bf16.msra.mxu0 0
        %7487 = vmatprep.subr.bf16.mxu0 0
        %7488 = vmatpush1.bf16.msra.mxu0 0
        %7489 = vmatprep.mubr.bf16.mxu0 0
        %7490 = vmatmul.mubr.bf16.gmra.mrb[0].mxu0 %v399
        %v7491 = vpop.f32.mrb[0].mxu0
        %v7492 = vadd.f32 %v7299, %v7491
        %v7493 = vpop.f32.mrb[0].mxu0
        %v7494 = vadd.f32 %v7301, %v7493
        %v7495 = vpop.f32.mrb[0].mxu0
        %v7496 = vadd.f32 %v7303, %v7495
        %v7497 = vpop.f32.mrb[0].mxu0
        %v7498 = vadd.f32 %v7305, %v7497
        %7499 = vmatprep.mubr.bf16.mxu0 0
        %7500 = vmatmul.mubr.bf16.gmra.mrb[0].mxu0 %v402
        %v7501 = vpop.f32.mrb[0].mxu0
        %v7502 = vadd.f32 %v7309, %v7501
        %v7503 = vpop.f32.mrb[0].mxu0
        %v7504 = vadd.f32 %v7311, %v7503
        %v7505 = vpop.f32.mrb[0].mxu0
        %v7506 = vadd.f32 %v7313, %v7505
        %v7507 = vpop.f32.mrb[0].mxu0
        %v7508 = vadd.f32 %v7315, %v7507
        %7509 = vmatprep.mubr.bf16.mxu0 0
        %7510 = vmatmul.mubr.bf16.gmra.mrb[0].mxu0 %v405
        %v7511 = vpop.f32.mrb[0].mxu0
        %v7512 = vadd.f32 %v7319, %v7511
        %v7513 = vpop.f32.mrb[0].mxu0
        %v7514 = vadd.f32 %v7321, %v7513
        %v7515 = vpop.f32.mrb[0].mxu0
        %v7516 = vadd.f32 %v7323, %v7515
        %v7517 = vpop.f32.mrb[0].mxu0
        %v7518 = vadd.f32 %v7325, %v7517
        %7519 = vmatprep.mubr.bf16.mxu0 0
        %7520 = vmatmul.mubr.bf16.gmra.mrb[0].mxu0 %v408
        %v7521 = vpop.f32.mrb[0].mxu0
        %v7522 = vadd.f32 %v7329, %v7521
        %v7523 = vpop.f32.mrb[0].mxu0
        %v7524 = vadd.f32 %v7331, %v7523
        %v7525 = vpop.f32.mrb[0].mxu0
        %v7526 = vadd.f32 %v7333, %v7525
        %v7527 = vpop.f32.mrb[0].mxu0
        %v7528 = vadd.f32 %v7335, %v7527
        %7529 = vmatprep.mubr.bf16.mxu0 0
        %7530 = vmatmul.mubr.bf16.gmra.mrb[0].mxu0 %v411
        %v7531 = vpop.f32.mrb[0].mxu0
        %v7532 = vadd.f32 %v7339, %v7531
        %v7533 = vpop.f32.mrb[0].mxu0
        %v7534 = vadd.f32 %v7341, %v7533
        %v7535 = vpop.f32.mrb[0].mxu0
        %v7536 = vadd.f32 %v7343, %v7535
        %v7537 = vpop.f32.mrb[0].mxu0
        %v7538 = vadd.f32 %v7345, %v7537
        %7539 = vmatprep.mubr.bf16.mxu0 0
        %7540 = vmatmul.mubr.bf16.gmra.mrb[0].mxu0 %v414
        %v7541 = vpop.f32.mrb[0].mxu0
        %v7542 = vadd.f32 %v7349, %v7541
        %v7543 = vpop.f32.mrb[0].mxu0
        %v7544 = vadd.f32 %v7351, %v7543
        %v7545 = vpop.f32.mrb[0].mxu0
        %v7546 = vadd.f32 %v7353, %v7545
        %v7547 = vpop.f32.mrb[0].mxu0
        %v7548 = vadd.f32 %v7355, %v7547
        %7549 = vmatprep.mubr.bf16.mxu0 0
        %7550 = vmatmul.mubr.bf16.gmra.mrb[0].mxu0 %v417
        %v7551 = vpop.f32.mrb[0].mxu0
        %v7552 = vadd.f32 %v7359, %v7551
        %v7553 = vpop.f32.mrb[0].mxu0
        %v7554 = vadd.f32 %v7361, %v7553
        %v7555 = vpop.f32.mrb[0].mxu0
        %v7556 = vadd.f32 %v7363, %v7555
        %v7557 = vpop.f32.mrb[0].mxu0
        %v7558 = vadd.f32 %v7365, %v7557
        %7559 = vmatprep.mubr.bf16.mxu0 0
        %7560 = vmatmul.mubr.bf16.gmra.mrb[0].mxu0 %v420
        %v7561 = vpop.f32.mrb[0].mxu0
        %v7562 = vadd.f32 %v7369, %v7561
        %v7563 = vpop.f32.mrb[0].mxu0
        %v7564 = vadd.f32 %v7371, %v7563
        %v7565 = vpop.f32.mrb[0].mxu0
        %v7566 = vadd.f32 %v7373, %v7565
        %v7567 = vpop.f32.mrb[0].mxu0
        %v7568 = vadd.f32 %v7375, %v7567
        %7569 = vmatprep.mubr.bf16.mxu0 0
        %7570 = vmatmul.mubr.bf16.gmra.mrb[0].mxu0 %v423
        %v7571 = vpop.f32.mrb[0].mxu0
        %v7572 = vadd.f32 %v7379, %v7571
        %v7573 = vpop.f32.mrb[0].mxu0
        %v7574 = vadd.f32 %v7381, %v7573
        %v7575 = vpop.f32.mrb[0].mxu0
        %v7576 = vadd.f32 %v7383, %v7575
        %v7577 = vpop.f32.mrb[0].mxu0
        %v7578 = vadd.f32 %v7385, %v7577
        %7579 = vmatprep.mubr.bf16.mxu0 0
        %7580 = vmatmul.mubr.bf16.gmra.mrb[0].mxu0 %v426
        %v7581 = vpop.f32.mrb[0].mxu0
        %v7582 = vadd.f32 %v7389, %v7581
        %v7583 = vpop.f32.mrb[0].mxu0
        %v7584 = vadd.f32 %v7391, %v7583
        %v7585 = vpop.f32.mrb[0].mxu0
        %v7586 = vadd.f32 %v7393, %v7585
        %v7587 = vpop.f32.mrb[0].mxu0
        %v7588 = vadd.f32 %v7395, %v7587
        %7589 = vmatprep.mubr.bf16.mxu0 0
        %7590 = vmatmul.mubr.bf16.gmra.mrb[0].mxu0 %v429
        %v7591 = vpop.f32.mrb[0].mxu0
        %v7592 = vadd.f32 %v7399, %v7591
        %v7593 = vpop.f32.mrb[0].mxu0
        %v7594 = vadd.f32 %v7401, %v7593
        %v7595 = vpop.f32.mrb[0].mxu0
        %v7596 = vadd.f32 %v7403, %v7595
        %v7597 = vpop.f32.mrb[0].mxu0
        %v7598 = vadd.f32 %v7405, %v7597
        %7599 = vmatprep.mubr.bf16.mxu0 0
        %7600 = vmatmul.mubr.bf16.gmra.mrb[0].mxu0 %v432
        %v7601 = vpop.f32.mrb[0].mxu0
        %v7602 = vadd.f32 %v7409, %v7601
        %v7603 = vpop.f32.mrb[0].mxu0
        %v7604 = vadd.f32 %v7411, %v7603
        %v7605 = vpop.f32.mrb[0].mxu0
        %v7606 = vadd.f32 %v7413, %v7605
        %v7607 = vpop.f32.mrb[0].mxu0
        %v7608 = vadd.f32 %v7415, %v7607
        %7609 = vmatprep.mubr.bf16.mxu0 0
        %7610 = vmatmul.mubr.bf16.gmra.mrb[0].mxu0 %v435
        %v7611 = vpop.f32.mrb[0].mxu0
        %v7612 = vadd.f32 %v7419, %v7611
        %v7613 = vpop.f32.mrb[0].mxu0
        %v7614 = vadd.f32 %v7421, %v7613
        %v7615 = vpop.f32.mrb[0].mxu0
        %v7616 = vadd.f32 %v7423, %v7615
        %v7617 = vpop.f32.mrb[0].mxu0
        %v7618 = vadd.f32 %v7425, %v7617
        %7619 = vmatprep.mubr.bf16.mxu0 0
        %7620 = vmatmul.mubr.bf16.gmra.mrb[0].mxu0 %v438
        %v7621 = vpop.f32.mrb[0].mxu0
        %v7622 = vadd.f32 %v7429, %v7621
        %v7623 = vpop.f32.mrb[0].mxu0
        %v7624 = vadd.f32 %v7431, %v7623
        %v7625 = vpop.f32.mrb[0].mxu0
        %v7626 = vadd.f32 %v7433, %v7625
        %v7627 = vpop.f32.mrb[0].mxu0
        %v7628 = vadd.f32 %v7435, %v7627
        %7629 = vmatprep.mubr.bf16.mxu0 0
        %7630 = vmatmul.mubr.bf16.gmra.mrb[0].mxu0 %v441
        %v7631 = vpop.f32.mrb[0].mxu0
        %v7632 = vadd.f32 %v7439, %v7631
        %v7633 = vpop.f32.mrb[0].mxu0
        %v7634 = vadd.f32 %v7441, %v7633
        %v7635 = vpop.f32.mrb[0].mxu0
        %v7636 = vadd.f32 %v7443, %v7635
        %v7637 = vpop.f32.mrb[0].mxu0
        %v7638 = vadd.f32 %v7445, %v7637
        %7639 = vmatprep.mubr.bf16.mxu0 0
        %7640 = vmatmul.mubr.bf16.gmra.mrb[0].mxu0 %v444
        %v7641 = vpop.f32.mrb[0].mxu0
        %v7642 = vadd.f32 %v7449, %v7641
        %v7643 = vpop.f32.mrb[0].mxu0
        %v7644 = vadd.f32 %v7451, %v7643
        %v7645 = vpop.f32.mrb[0].mxu0
        %v7646 = vadd.f32 %v7453, %v7645
        %v7647 = vpop.f32.mrb[0].mxu0
        %v7648 = vadd.f32 %v7455, %v7647
        %7649 = vdwg.mxu0
        %7650 = vmatprep.subr.bf16.mxu0 %v7075
        %7651 = vmatpush1.bf16.msra.mxu0 %v7074
        %7652 = vmatprep.subr.bf16.mxu0 %v7079
        %7653 = vmatpush1.bf16.msra.mxu0 %v7078
        %7654 = vmatprep.subr.bf16.mxu0 %v7083
        %7655 = vmatpush1.bf16.msra.mxu0 %v7082
        %7656 = vmatprep.subr.bf16.mxu0 %v7087
        %7657 = vmatpush1.bf16.msra.mxu0 %v7086
        %7658 = vmatprep.subr.bf16.mxu0 %v7091
        %7659 = vmatpush1.bf16.msra.mxu0 %v7090
        %7660 = vmatprep.subr.bf16.mxu0 %v7095
        %7661 = vmatpush1.bf16.msra.mxu0 %v7094
        %7662 = vmatprep.subr.bf16.mxu0 %v7099
        %7663 = vmatpush1.bf16.msra.mxu0 %v7098
        %7664 = vmatprep.subr.bf16.mxu0 %v7103
        %7665 = vmatpush1.bf16.msra.mxu0 %v7102
        %7666 = vmatprep.subr.bf16.mxu0 %v7107
        %7667 = vmatpush1.bf16.msra.mxu0 %v7106
        %7668 = vmatprep.subr.bf16.mxu0 %v7111
        %7669 = vmatpush1.bf16.msra.mxu0 %v7110
        %7670 = vmatprep.subr.bf16.mxu0 %v7115
        %7671 = vmatpush1.bf16.msra.mxu0 %v7114
        %7672 = vmatprep.subr.bf16.mxu0 %v7119
        %7673 = vmatpush1.bf16.msra.mxu0 %v7118
        %7674 = vmatprep.subr.bf16.mxu0 %v7123
        %7675 = vmatpush1.bf16.msra.mxu0 %v7122
        %7676 = vmatprep.subr.bf16.mxu0 %v7127
        %7677 = vmatpush1.bf16.msra.mxu0 %v7126
        %7678 = vmatprep.subr.bf16.mxu0 %v7131
        %7679 = vmatpush1.bf16.msra.mxu0 %v7130
        %7680 = vmatprep.subr.bf16.mxu0 %v7135
        %7681 = vmatpush1.bf16.msra.mxu0 %v7134
        %7682 = vmatprep.mubr.bf16.mxu0 %v398
        %7683 = vmatmul.mubr.bf16.gmra.mrb[0].mxu0 %v397
        %v7684 = vpop.f32.mrb[0].mxu0
        %v7685 = vadd.f32 %v6775, %v7684
        %v7686 = vpop.f32.mrb[0].mxu0
        %v7687 = vadd.f32 %v6779, %v7686
        %v7688 = vpop.f32.mrb[0].mxu0
        %v7689 = vadd.f32 %v6775, %v7688
        %v7690 = vpop.f32.mrb[0].mxu0
        %v7691 = vadd.f32 %v6779, %v7690
        %7692 = vmatprep.mubr.bf16.mxu0 %v401
        %7693 = vmatmul.mubr.bf16.gmra.mrb[0].mxu0 %v400
        %v7694 = vpop.f32.mrb[0].mxu0
        %v7695 = vadd.f32 %v6775, %v7694
        %v7696 = vpop.f32.mrb[0].mxu0
        %v7697 = vadd.f32 %v6779, %v7696
        %v7698 = vpop.f32.mrb[0].mxu0
        %v7699 = vadd.f32 %v6775, %v7698
        %v7700 = vpop.f32.mrb[0].mxu0
        %v7701 = vadd.f32 %v6779, %v7700
        %7702 = vmatprep.mubr.bf16.mxu0 %v404
        %7703 = vmatmul.mubr.bf16.gmra.mrb[0].mxu0 %v403
        %v7704 = vpop.f32.mrb[0].mxu0
        %v7705 = vadd.f32 %v6775, %v7704
        %v7706 = vpop.f32.mrb[0].mxu0
        %v7707 = vadd.f32 %v6779, %v7706
        %v7708 = vpop.f32.mrb[0].mxu0
        %v7709 = vadd.f32 %v6775, %v7708
        %v7710 = vpop.f32.mrb[0].mxu0
        %v7711 = vadd.f32 %v6779, %v7710
        %7712 = vmatprep.mubr.bf16.mxu0 %v407
        %7713 = vmatmul.mubr.bf16.gmra.mrb[0].mxu0 %v406
        %v7714 = vpop.f32.mrb[0].mxu0
        %v7715 = vadd.f32 %v6775, %v7714
        %v7716 = vpop.f32.mrb[0].mxu0
        %v7717 = vadd.f32 %v6779, %v7716
        %v7718 = vpop.f32.mrb[0].mxu0
        %v7719 = vadd.f32 %v6775, %v7718
        %v7720 = vpop.f32.mrb[0].mxu0
        %v7721 = vadd.f32 %v6779, %v7720
        %7722 = vmatprep.mubr.bf16.mxu0 %v410
        %7723 = vmatmul.mubr.bf16.gmra.mrb[0].mxu0 %v409
        %v7724 = vpop.f32.mrb[0].mxu0
        %v7725 = vadd.f32 %v6775, %v7724
        %v7726 = vpop.f32.mrb[0].mxu0
        %v7727 = vadd.f32 %v6779, %v7726
        %v7728 = vpop.f32.mrb[0].mxu0
        %v7729 = vadd.f32 %v6775, %v7728
        %v7730 = vpop.f32.mrb[0].mxu0
        %v7731 = vadd.f32 %v6779, %v7730
        %7732 = vmatprep.mubr.bf16.mxu0 %v413
        %7733 = vmatmul.mubr.bf16.gmra.mrb[0].mxu0 %v412
        %v7734 = vpop.f32.mrb[0].mxu0
        %v7735 = vadd.f32 %v6775, %v7734
        %v7736 = vpop.f32.mrb[0].mxu0
        %v7737 = vadd.f32 %v6779, %v7736
        %v7738 = vpop.f32.mrb[0].mxu0
        %v7739 = vadd.f32 %v6775, %v7738
        %v7740 = vpop.f32.mrb[0].mxu0
        %v7741 = vadd.f32 %v6779, %v7740
        %7742 = vmatprep.mubr.bf16.mxu0 %v416
        %7743 = vmatmul.mubr.bf16.gmra.mrb[0].mxu0 %v415
        %v7744 = vpop.f32.mrb[0].mxu0
        %v7745 = vadd.f32 %v6775, %v7744
        %v7746 = vpop.f32.mrb[0].mxu0
        %v7747 = vadd.f32 %v6779, %v7746
        %v7748 = vpop.f32.mrb[0].mxu0
        %v7749 = vadd.f32 %v6775, %v7748
        %v7750 = vpop.f32.mrb[0].mxu0
        %v7751 = vadd.f32 %v6779, %v7750
        %7752 = vmatprep.mubr.bf16.mxu0 %v419
        %7753 = vmatmul.mubr.bf16.gmra.mrb[0].mxu0 %v418
        %v7754 = vpop.f32.mrb[0].mxu0
        %v7755 = vadd.f32 %v6775, %v7754
        %v7756 = vpop.f32.mrb[0].mxu0
        %v7757 = vadd.f32 %v6779, %v7756
        %v7758 = vpop.f32.mrb[0].mxu0
        %v7759 = vadd.f32 %v6775, %v7758
        %v7760 = vpop.f32.mrb[0].mxu0
        %v7761 = vadd.f32 %v6779, %v7760
        %7762 = vmatprep.mubr.bf16.mxu0 %v422
        %7763 = vmatmul.mubr.bf16.gmra.mrb[0].mxu0 %v421
        %v7764 = vpop.f32.mrb[0].mxu0
        %v7765 = vadd.f32 %v6775, %v7764
        %v7766 = vpop.f32.mrb[0].mxu0
        %v7767 = vadd.f32 %v6779, %v7766
        %v7768 = vpop.f32.mrb[0].mxu0
        %v7769 = vadd.f32 %v6775, %v7768
        %v7770 = vpop.f32.mrb[0].mxu0
        %v7771 = vadd.f32 %v6779, %v7770
        %7772 = vmatprep.mubr.bf16.mxu0 %v425
        %7773 = vmatmul.mubr.bf16.gmra.mrb[0].mxu0 %v424
        %v7774 = vpop.f32.mrb[0].mxu0
        %v7775 = vadd.f32 %v6775, %v7774
        %v7776 = vpop.f32.mrb[0].mxu0
        %v7777 = vadd.f32 %v6779, %v7776
        %v7778 = vpop.f32.mrb[0].mxu0
        %v7779 = vadd.f32 %v6775, %v7778
        %v7780 = vpop.f32.mrb[0].mxu0
        %v7781 = vadd.f32 %v6779, %v7780
        %7782 = vmatprep.mubr.bf16.mxu0 %v428
        %7783 = vmatmul.mubr.bf16.gmra.mrb[0].mxu0 %v427
        %v7784 = vpop.f32.mrb[0].mxu0
        %v7785 = vadd.f32 %v6775, %v7784
        %v7786 = vpop.f32.mrb[0].mxu0
        %v7787 = vadd.f32 %v6779, %v7786
        %v7788 = vpop.f32.mrb[0].mxu0
        %v7789 = vadd.f32 %v6775, %v7788
        %v7790 = vpop.f32.mrb[0].mxu0
        %v7791 = vadd.f32 %v6779, %v7790
        %7792 = vmatprep.mubr.bf16.mxu0 %v431
        %7793 = vmatmul.mubr.bf16.gmra.mrb[0].mxu0 %v430
        %v7794 = vpop.f32.mrb[0].mxu0
        %v7795 = vadd.f32 %v6775, %v7794
        %v7796 = vpop.f32.mrb[0].mxu0
        %v7797 = vadd.f32 %v6779, %v7796
        %v7798 = vpop.f32.mrb[0].mxu0
        %v7799 = vadd.f32 %v6775, %v7798
        %v7800 = vpop.f32.mrb[0].mxu0
        %v7801 = vadd.f32 %v6779, %v7800
        %7802 = vmatprep.mubr.bf16.mxu0 %v434
        %7803 = vmatmul.mubr.bf16.gmra.mrb[0].mxu0 %v433
        %v7804 = vpop.f32.mrb[0].mxu0
        %v7805 = vadd.f32 %v6775, %v7804
        %v7806 = vpop.f32.mrb[0].mxu0
        %v7807 = vadd.f32 %v6779, %v7806
        %v7808 = vpop.f32.mrb[0].mxu0
        %v7809 = vadd.f32 %v6775, %v7808
        %v7810 = vpop.f32.mrb[0].mxu0
        %v7811 = vadd.f32 %v6779, %v7810
        %7812 = vmatprep.mubr.bf16.mxu0 %v437
        %7813 = vmatmul.mubr.bf16.gmra.mrb[0].mxu0 %v436
        %v7814 = vpop.f32.mrb[0].mxu0
        %v7815 = vadd.f32 %v6775, %v7814
        %v7816 = vpop.f32.mrb[0].mxu0
        %v7817 = vadd.f32 %v6779, %v7816
        %v7818 = vpop.f32.mrb[0].mxu0
        %v7819 = vadd.f32 %v6775, %v7818
        %v7820 = vpop.f32.mrb[0].mxu0
        %v7821 = vadd.f32 %v6779, %v7820
        %7822 = vmatprep.mubr.bf16.mxu0 %v440
        %7823 = vmatmul.mubr.bf16.gmra.mrb[0].mxu0 %v439
        %v7824 = vpop.f32.mrb[0].mxu0
        %v7825 = vadd.f32 %v6775, %v7824
        %v7826 = vpop.f32.mrb[0].mxu0
        %v7827 = vadd.f32 %v6779, %v7826
        %v7828 = vpop.f32.mrb[0].mxu0
        %v7829 = vadd.f32 %v6775, %v7828
        %v7830 = vpop.f32.mrb[0].mxu0
        %v7831 = vadd.f32 %v6779, %v7830
        %7832 = vmatprep.mubr.bf16.mxu0 %v443
        %7833 = vmatmul.mubr.bf16.gmra.mrb[0].mxu0 %v442
        %v7834 = vpop.f32.mrb[0].mxu0
        %v7835 = vadd.f32 %v6775, %v7834
        %v7836 = vpop.f32.mrb[0].mxu0
        %v7837 = vadd.f32 %v6779, %v7836
        %v7838 = vpop.f32.mrb[0].mxu0
        %v7839 = vadd.f32 %v6775, %v7838
        %v7840 = vpop.f32.mrb[0].mxu0
        %v7841 = vadd.f32 %v6779, %v7840
        %7842 = vdwg.mxu0
        %7843 = vmatprep.subr.bf16.mxu0 %v7139
        %7844 = vmatpush1.bf16.msra.mxu0 %v7138
        %7845 = vmatprep.subr.bf16.mxu0 %v7143
        %7846 = vmatpush1.bf16.msra.mxu0 %v7142
        %7847 = vmatprep.subr.bf16.mxu0 %v7147
        %7848 = vmatpush1.bf16.msra.mxu0 %v7146
        %7849 = vmatprep.subr.bf16.mxu0 %v7151
        %7850 = vmatpush1.bf16.msra.mxu0 %v7150
        %7851 = vmatprep.subr.bf16.mxu0 %v7155
        %7852 = vmatpush1.bf16.msra.mxu0 %v7154
        %7853 = vmatprep.subr.bf16.mxu0 %v7159
        %7854 = vmatpush1.bf16.msra.mxu0 %v7158
        %7855 = vmatprep.subr.bf16.mxu0 %v7163
        %7856 = vmatpush1.bf16.msra.mxu0 %v7162
        %7857 = vmatprep.subr.bf16.mxu0 %v7167
        %7858 = vmatpush1.bf16.msra.mxu0 %v7166
        %7859 = vmatprep.subr.bf16.mxu0 0
        %7860 = vmatpush1.bf16.msra.mxu0 0
        %7861 = vmatprep.subr.bf16.mxu0 0
        %7862 = vmatpush1.bf16.msra.mxu0 0
        %7863 = vmatprep.subr.bf16.mxu0 0
        %7864 = vmatpush1.bf16.msra.mxu0 0
        %7865 = vmatprep.subr.bf16.mxu0 0
        %7866 = vmatpush1.bf16.msra.mxu0 0
        %7867 = vmatprep.subr.bf16.mxu0 0
        %7868 = vmatpush1.bf16.msra.mxu0 0
        %7869 = vmatprep.subr.bf16.mxu0 0
        %7870 = vmatpush1.bf16.msra.mxu0 0
        %7871 = vmatprep.subr.bf16.mxu0 0
        %7872 = vmatpush1.bf16.msra.mxu0 0
        %7873 = vmatprep.subr.bf16.mxu0 0
        %7874 = vmatpush1.bf16.msra.mxu0 0
        %7875 = vmatprep.mubr.bf16.mxu0 0
        %7876 = vmatmul.mubr.bf16.gmra.mrb[0].mxu0 %v399
        %v7877 = vpop.f32.mrb[0].mxu0
        %v7878 = vadd.f32 %v7685, %v7877
        %v7879 = vpop.f32.mrb[0].mxu0
        %v7880 = vadd.f32 %v7687, %v7879
        %v7881 = vpop.f32.mrb[0].mxu0
        %v7882 = vadd.f32 %v7689, %v7881
        %v7883 = vpop.f32.mrb[0].mxu0
        %v7884 = vadd.f32 %v7691, %v7883
        %7885 = vmatprep.mubr.bf16.mxu0 0
        %7886 = vmatmul.mubr.bf16.gmra.mrb[0].mxu0 %v402
        %v7887 = vpop.f32.mrb[0].mxu0
        %v7888 = vadd.f32 %v7695, %v7887
        %v7889 = vpop.f32.mrb[0].mxu0
        %v7890 = vadd.f32 %v7697, %v7889
        %v7891 = vpop.f32.mrb[0].mxu0
        %v7892 = vadd.f32 %v7699, %v7891
        %v7893 = vpop.f32.mrb[0].mxu0
        %v7894 = vadd.f32 %v7701, %v7893
        %7895 = vmatprep.mubr.bf16.mxu0 0
        %7896 = vmatmul.mubr.bf16.gmra.mrb[0].mxu0 %v405
        %v7897 = vpop.f32.mrb[0].mxu0
        %v7898 = vadd.f32 %v7705, %v7897
        %v7899 = vpop.f32.mrb[0].mxu0
        %v7900 = vadd.f32 %v7707, %v7899
        %v7901 = vpop.f32.mrb[0].mxu0
        %v7902 = vadd.f32 %v7709, %v7901
        %v7903 = vpop.f32.mrb[0].mxu0
        %v7904 = vadd.f32 %v7711, %v7903
        %7905 = vmatprep.mubr.bf16.mxu0 0
        %7906 = vmatmul.mubr.bf16.gmra.mrb[0].mxu0 %v408
        %v7907 = vpop.f32.mrb[0].mxu0
        %v7908 = vadd.f32 %v7715, %v7907
        %v7909 = vpop.f32.mrb[0].mxu0
        %v7910 = vadd.f32 %v7717, %v7909
        %v7911 = vpop.f32.mrb[0].mxu0
        %v7912 = vadd.f32 %v7719, %v7911
        %v7913 = vpop.f32.mrb[0].mxu0
        %v7914 = vadd.f32 %v7721, %v7913
        %7915 = vmatprep.mubr.bf16.mxu0 0
        %7916 = vmatmul.mubr.bf16.gmra.mrb[0].mxu0 %v411
        %v7917 = vpop.f32.mrb[0].mxu0
        %v7918 = vadd.f32 %v7725, %v7917
        %v7919 = vpop.f32.mrb[0].mxu0
        %v7920 = vadd.f32 %v7727, %v7919
        %v7921 = vpop.f32.mrb[0].mxu0
        %v7922 = vadd.f32 %v7729, %v7921
        %v7923 = vpop.f32.mrb[0].mxu0
        %v7924 = vadd.f32 %v7731, %v7923
        %7925 = vmatprep.mubr.bf16.mxu0 0
        %7926 = vmatmul.mubr.bf16.gmra.mrb[0].mxu0 %v414
        %v7927 = vpop.f32.mrb[0].mxu0
        %v7928 = vadd.f32 %v7735, %v7927
        %v7929 = vpop.f32.mrb[0].mxu0
        %v7930 = vadd.f32 %v7737, %v7929
        %v7931 = vpop.f32.mrb[0].mxu0
        %v7932 = vadd.f32 %v7739, %v7931
        %v7933 = vpop.f32.mrb[0].mxu0
        %v7934 = vadd.f32 %v7741, %v7933
        %7935 = vmatprep.mubr.bf16.mxu0 0
        %7936 = vmatmul.mubr.bf16.gmra.mrb[0].mxu0 %v417
        %v7937 = vpop.f32.mrb[0].mxu0
        %v7938 = vadd.f32 %v7745, %v7937
        %v7939 = vpop.f32.mrb[0].mxu0
        %v7940 = vadd.f32 %v7747, %v7939
        %v7941 = vpop.f32.mrb[0].mxu0
        %v7942 = vadd.f32 %v7749, %v7941
        %v7943 = vpop.f32.mrb[0].mxu0
        %v7944 = vadd.f32 %v7751, %v7943
        %7945 = vmatprep.mubr.bf16.mxu0 0
        %7946 = vmatmul.mubr.bf16.gmra.mrb[0].mxu0 %v420
        %v7947 = vpop.f32.mrb[0].mxu0
        %v7948 = vadd.f32 %v7755, %v7947
        %v7949 = vpop.f32.mrb[0].mxu0
        %v7950 = vadd.f32 %v7757, %v7949
        %v7951 = vpop.f32.mrb[0].mxu0
        %v7952 = vadd.f32 %v7759, %v7951
        %v7953 = vpop.f32.mrb[0].mxu0
        %v7954 = vadd.f32 %v7761, %v7953
        %7955 = vmatprep.mubr.bf16.mxu0 0
        %7956 = vmatmul.mubr.bf16.gmra.mrb[0].mxu0 %v423
        %v7957 = vpop.f32.mrb[0].mxu0
        %v7958 = vadd.f32 %v7765, %v7957
        %v7959 = vpop.f32.mrb[0].mxu0
        %v7960 = vadd.f32 %v7767, %v7959
        %v7961 = vpop.f32.mrb[0].mxu0
        %v7962 = vadd.f32 %v7769, %v7961
        %v7963 = vpop.f32.mrb[0].mxu0
        %v7964 = vadd.f32 %v7771, %v7963
        %7965 = vmatprep.mubr.bf16.mxu0 0
        %7966 = vmatmul.mubr.bf16.gmra.mrb[0].mxu0 %v426
        %v7967 = vpop.f32.mrb[0].mxu0
        %v7968 = vadd.f32 %v7775, %v7967
        %v7969 = vpop.f32.mrb[0].mxu0
        %v7970 = vadd.f32 %v7777, %v7969
        %v7971 = vpop.f32.mrb[0].mxu0
        %v7972 = vadd.f32 %v7779, %v7971
        %v7973 = vpop.f32.mrb[0].mxu0
        %v7974 = vadd.f32 %v7781, %v7973
        %7975 = vmatprep.mubr.bf16.mxu0 0
        %7976 = vmatmul.mubr.bf16.gmra.mrb[0].mxu0 %v429
        %v7977 = vpop.f32.mrb[0].mxu0
        %v7978 = vadd.f32 %v7785, %v7977
        %v7979 = vpop.f32.mrb[0].mxu0
        %v7980 = vadd.f32 %v7787, %v7979
        %v7981 = vpop.f32.mrb[0].mxu0
        %v7982 = vadd.f32 %v7789, %v7981
        %v7983 = vpop.f32.mrb[0].mxu0
        %v7984 = vadd.f32 %v7791, %v7983
        %7985 = vmatprep.mubr.bf16.mxu0 0
        %7986 = vmatmul.mubr.bf16.gmra.mrb[0].mxu0 %v432
        %v7987 = vpop.f32.mrb[0].mxu0
        %v7988 = vadd.f32 %v7795, %v7987
        %v7989 = vpop.f32.mrb[0].mxu0
        %v7990 = vadd.f32 %v7797, %v7989
        %v7991 = vpop.f32.mrb[0].mxu0
        %v7992 = vadd.f32 %v7799, %v7991
        %v7993 = vpop.f32.mrb[0].mxu0
        %v7994 = vadd.f32 %v7801, %v7993
        %7995 = vmatprep.mubr.bf16.mxu0 0
        %7996 = vmatmul.mubr.bf16.gmra.mrb[0].mxu0 %v435
        %v7997 = vpop.f32.mrb[0].mxu0
        %v7998 = vadd.f32 %v7805, %v7997
        %v7999 = vpop.f32.mrb[0].mxu0
        %v8000 = vadd.f32 %v7807, %v7999
        %v8001 = vpop.f32.mrb[0].mxu0
        %v8002 = vadd.f32 %v7809, %v8001
        %v8003 = vpop.f32.mrb[0].mxu0
        %v8004 = vadd.f32 %v7811, %v8003
        %8005 = vmatprep.mubr.bf16.mxu0 0
        %8006 = vmatmul.mubr.bf16.gmra.mrb[0].mxu0 %v438
        %v8007 = vpop.f32.mrb[0].mxu0
        %v8008 = vadd.f32 %v7815, %v8007
        %v8009 = vpop.f32.mrb[0].mxu0
        %v8010 = vadd.f32 %v7817, %v8009
        %v8011 = vpop.f32.mrb[0].mxu0
        %v8012 = vadd.f32 %v7819, %v8011
        %v8013 = vpop.f32.mrb[0].mxu0
        %v8014 = vadd.f32 %v7821, %v8013
        %8015 = vmatprep.mubr.bf16.mxu0 0
        %8016 = vmatmul.mubr.bf16.gmra.mrb[0].mxu0 %v441
        %v8017 = vpop.f32.mrb[0].mxu0
        %v8018 = vadd.f32 %v7825, %v8017
        %v8019 = vpop.f32.mrb[0].mxu0
        %v8020 = vadd.f32 %v7827, %v8019
        %v8021 = vpop.f32.mrb[0].mxu0
        %v8022 = vadd.f32 %v7829, %v8021
        %v8023 = vpop.f32.mrb[0].mxu0
        %v8024 = vadd.f32 %v7831, %v8023
        %8025 = vmatprep.mubr.bf16.mxu0 0
        %8026 = vmatmul.mubr.bf16.gmra.mrb[0].mxu0 %v444
        %v8027 = vpop.f32.mrb[0].mxu0
        %v8028 = vadd.f32 %v7835, %v8027
        %v8029 = vpop.f32.mrb[0].mxu0
        %v8030 = vadd.f32 %v7837, %v8029
        %v8031 = vpop.f32.mrb[0].mxu0
        %v8032 = vadd.f32 %v7839, %v8031
        %v8033 = vpop.f32.mrb[0].mxu0
        %v8034 = vadd.f32 %v7841, %v8033
        %8035 = vdwg.mxu0
        %v8036 = vmax.f32 %v7492, 0.0
        %v8037 = vmax.f32 %v7494, 0.0
        %v8038 = vmax.f32 %v7878, 0.0
        %v8039 = vmax.f32 %v7880, 0.0
        %v8040 = vmax.f32 %v7496, 0.0
        %v8041 = vmax.f32 %v7498, 0.0
        %v8042 = vmax.f32 %v7882, 0.0
        %v8043 = vmax.f32 %v7884, 0.0
        %v8044 = vmax.f32 %v7502, 0.0
        %v8045 = vmax.f32 %v7504, 0.0
        %v8046 = vmax.f32 %v7888, 0.0
        %v8047 = vmax.f32 %v7890, 0.0
        %v8048 = vmax.f32 %v7506, 0.0
        %v8049 = vmax.f32 %v7508, 0.0
        %v8050 = vmax.f32 %v7892, 0.0
        %v8051 = vmax.f32 %v7894, 0.0
        %v8052 = vmax.f32 %v7512, 0.0
        %v8053 = vmax.f32 %v7514, 0.0
        %v8054 = vmax.f32 %v7898, 0.0
        %v8055 = vmax.f32 %v7900, 0.0
        %v8056 = vmax.f32 %v7516, 0.0
        %v8057 = vmax.f32 %v7518, 0.0
        %v8058 = vmax.f32 %v7902, 0.0
        %v8059 = vmax.f32 %v7904, 0.0
        %v8060 = vmax.f32 %v7522, 0.0
        %v8061 = vmax.f32 %v7524, 0.0
        %v8062 = vmax.f32 %v7908, 0.0
        %v8063 = vmax.f32 %v7910, 0.0
        %v8064 = vmax.f32 %v7526, 0.0
        %v8065 = vmax.f32 %v7528, 0.0
        %v8066 = vmax.f32 %v7912, 0.0
        %v8067 = vmax.f32 %v7914, 0.0
        %v8068 = vmax.f32 %v7532, 0.0
        %v8069 = vmax.f32 %v7534, 0.0
        %v8070 = vmax.f32 %v7918, 0.0
        %v8071 = vmax.f32 %v7920, 0.0
        %v8072 = vmax.f32 %v7536, 0.0
        %v8073 = vmax.f32 %v7538, 0.0
        %v8074 = vmax.f32 %v7922, 0.0
        %v8075 = vmax.f32 %v7924, 0.0
        %v8076 = vmax.f32 %v7542, 0.0
        %v8077 = vmax.f32 %v7544, 0.0
        %v8078 = vmax.f32 %v7928, 0.0
        %v8079 = vmax.f32 %v7930, 0.0
        %v8080 = vmax.f32 %v7546, 0.0
        %v8081 = vmax.f32 %v7548, 0.0
        %v8082 = vmax.f32 %v7932, 0.0
        %v8083 = vmax.f32 %v7934, 0.0
        %v8084 = vmax.f32 %v7552, 0.0
        %v8085 = vmax.f32 %v7554, 0.0
        %v8086 = vmax.f32 %v7938, 0.0
        %v8087 = vmax.f32 %v7940, 0.0
        %v8088 = vmax.f32 %v7556, 0.0
        %v8089 = vmax.f32 %v7558, 0.0
        %v8090 = vmax.f32 %v7942, 0.0
        %v8091 = vmax.f32 %v7944, 0.0
        %v8092 = vmax.f32 %v7562, 0.0
        %v8093 = vmax.f32 %v7564, 0.0
        %v8094 = vmax.f32 %v7948, 0.0
        %v8095 = vmax.f32 %v7950, 0.0
        %v8096 = vmax.f32 %v7566, 0.0
        %v8097 = vmax.f32 %v7568, 0.0
        %v8098 = vmax.f32 %v7952, 0.0
        %v8099 = vmax.f32 %v7954, 0.0
        %v8100 = vmax.f32 %v7572, 0.0
        %v8101 = vmax.f32 %v7574, 0.0
        %v8102 = vmax.f32 %v7958, 0.0
        %v8103 = vmax.f32 %v7960, 0.0
        %v8104 = vmax.f32 %v7576, 0.0
        %v8105 = vmax.f32 %v7578, 0.0
        %v8106 = vmax.f32 %v7962, 0.0
        %v8107 = vmax.f32 %v7964, 0.0
        %v8108 = vmax.f32 %v7582, 0.0
        %v8109 = vmax.f32 %v7584, 0.0
        %v8110 = vmax.f32 %v7968, 0.0
        %v8111 = vmax.f32 %v7970, 0.0
        %v8112 = vmax.f32 %v7586, 0.0
        %v8113 = vmax.f32 %v7588, 0.0
        %v8114 = vmax.f32 %v7972, 0.0
        %v8115 = vmax.f32 %v7974, 0.0
        %v8116 = vmax.f32 %v7592, 0.0
        %v8117 = vmax.f32 %v7594, 0.0
        %v8118 = vmax.f32 %v7978, 0.0
        %v8119 = vmax.f32 %v7980, 0.0
        %v8120 = vmax.f32 %v7596, 0.0
        %v8121 = vmax.f32 %v7598, 0.0
        %v8122 = vmax.f32 %v7982, 0.0
        %v8123 = vmax.f32 %v7984, 0.0
        %v8124 = vmax.f32 %v7602, 0.0
        %v8125 = vmax.f32 %v7604, 0.0
        %v8126 = vmax.f32 %v7988, 0.0
        %v8127 = vmax.f32 %v7990, 0.0
        %v8128 = vmax.f32 %v7606, 0.0
        %v8129 = vmax.f32 %v7608, 0.0
        %v8130 = vmax.f32 %v7992, 0.0
        %v8131 = vmax.f32 %v7994, 0.0
        %v8132 = vmax.f32 %v7612, 0.0
        %v8133 = vmax.f32 %v7614, 0.0
        %v8134 = vmax.f32 %v7998, 0.0
        %v8135 = vmax.f32 %v8000, 0.0
        %v8136 = vmax.f32 %v7616, 0.0
        %v8137 = vmax.f32 %v7618, 0.0
        %v8138 = vmax.f32 %v8002, 0.0
        %v8139 = vmax.f32 %v8004, 0.0
        %v8140 = vmax.f32 %v7622, 0.0
        %v8141 = vmax.f32 %v7624, 0.0
        %v8142 = vmax.f32 %v8008, 0.0
        %v8143 = vmax.f32 %v8010, 0.0
        %v8144 = vmax.f32 %v7626, 0.0
        %v8145 = vmax.f32 %v7628, 0.0
        %v8146 = vmax.f32 %v8012, 0.0
        %v8147 = vmax.f32 %v8014, 0.0
        %v8148 = vmax.f32 %v7632, 0.0
        %v8149 = vmax.f32 %v7634, 0.0
        %v8150 = vmax.f32 %v8018, 0.0
        %v8151 = vmax.f32 %v8020, 0.0
        %v8152 = vmax.f32 %v7636, 0.0
        %v8153 = vmax.f32 %v7638, 0.0
        %v8154 = vmax.f32 %v8022, 0.0
        %v8155 = vmax.f32 %v8024, 0.0
        %v8156 = vmax.f32 %v7642, 0.0
        %v8157 = vmax.f32 %v7644, 0.0
        %v8158 = vmax.f32 %v8028, 0.0
        %v8159 = vmax.f32 %v8030, 0.0
        %v8160 = vmax.f32 %v7646, 0.0
        %v8161 = vmax.f32 %v7648, 0.0
        %v8162 = vmax.f32 %v8032, 0.0
        %v8163 = vmax.f32 %v8034, 0.0
        %v8164 = vpack.c.bf16 %v8040, %v8036
        %v8165 = vpack.c.bf16 %v8041, %v8037
        %v8166 = vpack.c.bf16 %v8042, %v8038
        %v8167 = vpack.c.bf16 %v8043, %v8039
        %v8168 = vpack.c.bf16 %v8048, %v8044
        %v8169 = vpack.c.bf16 %v8049, %v8045
        %v8170 = vpack.c.bf16 %v8050, %v8046
        %v8171 = vpack.c.bf16 %v8051, %v8047
        %v8172 = vpack.c.bf16 %v8056, %v8052
        %v8173 = vpack.c.bf16 %v8057, %v8053
        %v8174 = vpack.c.bf16 %v8058, %v8054
        %v8175 = vpack.c.bf16 %v8059, %v8055
        %v8176 = vpack.c.bf16 %v8064, %v8060
        %v8177 = vpack.c.bf16 %v8065, %v8061
        %v8178 = vpack.c.bf16 %v8066, %v8062
        %v8179 = vpack.c.bf16 %v8067, %v8063
        %v8180 = vpack.c.bf16 %v8072, %v8068
        %v8181 = vpack.c.bf16 %v8073, %v8069
        %v8182 = vpack.c.bf16 %v8074, %v8070
        %v8183 = vpack.c.bf16 %v8075, %v8071
        %v8184 = vpack.c.bf16 %v8080, %v8076
        %v8185 = vpack.c.bf16 %v8081, %v8077
        %v8186 = vpack.c.bf16 %v8082, %v8078
        %v8187 = vpack.c.bf16 %v8083, %v8079
        %v8188 = vpack.c.bf16 %v8088, %v8084
        %v8189 = vpack.c.bf16 %v8089, %v8085
        %v8190 = vpack.c.bf16 %v8090, %v8086
        %v8191 = vpack.c.bf16 %v8091, %v8087
        %v8192 = vpack.c.bf16 %v8096, %v8092
        %v8193 = vpack.c.bf16 %v8097, %v8093
        %v8194 = vpack.c.bf16 %v8098, %v8094
        %v8195 = vpack.c.bf16 %v8099, %v8095
        %v8196 = vpack.c.bf16 %v8104, %v8100
        %v8197 = vpack.c.bf16 %v8105, %v8101
        %v8198 = vpack.c.bf16 %v8106, %v8102
        %v8199 = vpack.c.bf16 %v8107, %v8103
        %v8200 = vpack.c.bf16 %v8112, %v8108
        %v8201 = vpack.c.bf16 %v8113, %v8109
        %v8202 = vpack.c.bf16 %v8114, %v8110
        %v8203 = vpack.c.bf16 %v8115, %v8111
        %v8204 = vpack.c.bf16 %v8120, %v8116
        %v8205 = vpack.c.bf16 %v8121, %v8117
        %v8206 = vpack.c.bf16 %v8122, %v8118
        %v8207 = vpack.c.bf16 %v8123, %v8119
        %v8208 = vpack.c.bf16 %v8128, %v8124
        %v8209 = vpack.c.bf16 %v8129, %v8125
        %v8210 = vpack.c.bf16 %v8130, %v8126
        %v8211 = vpack.c.bf16 %v8131, %v8127
        %v8212 = vpack.c.bf16 %v8136, %v8132
        %v8213 = vpack.c.bf16 %v8137, %v8133
        %v8214 = vpack.c.bf16 %v8138, %v8134
        %v8215 = vpack.c.bf16 %v8139, %v8135
        %v8216 = vpack.c.bf16 %v8144, %v8140
        %v8217 = vpack.c.bf16 %v8145, %v8141
        %v8218 = vpack.c.bf16 %v8146, %v8142
        %v8219 = vpack.c.bf16 %v8147, %v8143
        %v8220 = vpack.c.bf16 %v8152, %v8148
        %v8221 = vpack.c.bf16 %v8153, %v8149
        %v8222 = vpack.c.bf16 %v8154, %v8150
        %v8223 = vpack.c.bf16 %v8155, %v8151
        %v8224 = vpack.c.bf16 %v8160, %v8156
        %v8225 = vpack.c.bf16 %v8161, %v8157
        %v8226 = vpack.c.bf16 %v8162, %v8158
        %v8227 = vpack.c.bf16 %v8163, %v8159
        %v8228 = vld [vmem:[#allocation9 + $0x600] sm:$0xff]
        %v8229 = vld [vmem:[#allocation9 + $0x608] sm:$0xf]
        %v8230 = vld [vmem:[#allocation9 + $0x60c] sm:$0xff]
        %v8231 = vld [vmem:[#allocation9 + $0x614] sm:$0xf]
        %v8232 = vld [vmem:[#allocation9 + $0x618] sm:$0xff]
        %v8233 = vld [vmem:[#allocation9 + $0x620] sm:$0xf]
        %v8234 = vld [vmem:[#allocation9 + $0x624] sm:$0xff]
        %v8235 = vld [vmem:[#allocation9 + $0x62c] sm:$0xf]
        %v8236 = vld [vmem:[#allocation9 + $0x630] sm:$0xff]
        %v8237 = vld [vmem:[#allocation9 + $0x638] sm:$0xf]
        %v8238 = vld [vmem:[#allocation9 + $0x63c] sm:$0xff]
        %v8239 = vld [vmem:[#allocation9 + $0x644] sm:$0xf]
        %v8240 = vld [vmem:[#allocation9 + $0x648] sm:$0xff]
        %v8241 = vld [vmem:[#allocation9 + $0x650] sm:$0xf]
        %v8242 = vld [vmem:[#allocation9 + $0x654] sm:$0xff]
        %v8243 = vld [vmem:[#allocation9 + $0x65c] sm:$0xf]
        %v8244 = vld [vmem:[#allocation9 + $0x660] sm:$0xff]
        %v8245 = vld [vmem:[#allocation9 + $0x668] sm:$0xf]
        %v8246 = vld [vmem:[#allocation9 + $0x66c] sm:$0xff]
        %v8247 = vld [vmem:[#allocation9 + $0x674] sm:$0xf]
        %v8248 = vld [vmem:[#allocation9 + $0x678] sm:$0xff]
        %v8249 = vld [vmem:[#allocation9 + $0x680] sm:$0xf]
        %v8250 = vld [vmem:[#allocation9 + $0x684] sm:$0xff]
        %v8251 = vld [vmem:[#allocation9 + $0x68c] sm:$0xf]
        %v8252 = vld [vmem:[#allocation9 + $0x690] sm:$0xff]
        %v8253 = vld [vmem:[#allocation9 + $0x698] sm:$0xf]
        %v8254 = vld [vmem:[#allocation9 + $0x69c] sm:$0xff]
        %v8255 = vld [vmem:[#allocation9 + $0x6a4] sm:$0xf]
        %v8256 = vld [vmem:[#allocation9 + $0x6a8] sm:$0xff]
        %v8257 = vld [vmem:[#allocation9 + $0x6b0] sm:$0xf]
        %v8258 = vld [vmem:[#allocation9 + $0x6b4] sm:$0xff]
        %v8259 = vld [vmem:[#allocation9 + $0x6bc] sm:$0xf]
        %v8260 = vld [vmem:[#allocation9 + $0x6c0] sm:$0xff]
        %v8261 = vld [vmem:[#allocation9 + $0x6c8] sm:$0xf]
        %v8262 = vld [vmem:[#allocation9 + $0x6cc] sm:$0xff]
        %v8263 = vld [vmem:[#allocation9 + $0x6d4] sm:$0xf]
        %v8264 = vld [vmem:[#allocation9 + $0x6d8] sm:$0xff]
        %v8265 = vld [vmem:[#allocation9 + $0x6e0] sm:$0xf]
        %v8266 = vld [vmem:[#allocation9 + $0x6e4] sm:$0xff]
        %v8267 = vld [vmem:[#allocation9 + $0x6ec] sm:$0xf]
        %v8268 = vld [vmem:[#allocation9 + $0x6f0] sm:$0xff]
        %v8269 = vld [vmem:[#allocation9 + $0x6f8] sm:$0xf]
        %v8270 = vld [vmem:[#allocation9 + $0x6fc] sm:$0xff]
        %v8271 = vld [vmem:[#allocation9 + $0x704] sm:$0xf]
        %v8272 = vld [vmem:[#allocation9 + $0x708] sm:$0xff]
        %v8273 = vld [vmem:[#allocation9 + $0x710] sm:$0xf]
        %v8274 = vld [vmem:[#allocation9 + $0x714] sm:$0xff]
        %v8275 = vld [vmem:[#allocation9 + $0x71c] sm:$0xf]
        %v8276 = vld [vmem:[#allocation9 + $0x720] sm:$0xff]
        %v8277 = vld [vmem:[#allocation9 + $0x728] sm:$0xf]
        %v8278 = vld [vmem:[#allocation9 + $0x72c] sm:$0xff]
        %v8279 = vld [vmem:[#allocation9 + $0x734] sm:$0xf]
        %v8280 = vld [vmem:[#allocation9 + $0x738] sm:$0xff]
        %v8281 = vld [vmem:[#allocation9 + $0x740] sm:$0xf]
        %v8282 = vld [vmem:[#allocation9 + $0x744] sm:$0xff]
        %v8283 = vld [vmem:[#allocation9 + $0x74c] sm:$0xf]
        %v8284 = vld [vmem:[#allocation9 + $0x750] sm:$0xff]
        %v8285 = vld [vmem:[#allocation9 + $0x758] sm:$0xf]
        %v8286 = vld [vmem:[#allocation9 + $0x75c] sm:$0xff]
        %v8287 = vld [vmem:[#allocation9 + $0x764] sm:$0xf]
        %v8288 = vld [vmem:[#allocation9 + $0x768] sm:$0xff]
        %v8289 = vld [vmem:[#allocation9 + $0x770] sm:$0xf]
        %v8290 = vld [vmem:[#allocation9 + $0x774] sm:$0xff]
        %v8291 = vld [vmem:[#allocation9 + $0x77c] sm:$0xf]
        %v8292 = vld [vmem:[#allocation9 + $0x780] sm:$0xff]
        %v8293 = vld [vmem:[#allocation9 + $0x788] sm:$0xf]
        %v8294 = vld [vmem:[#allocation9 + $0x78c] sm:$0xff]
        %v8295 = vld [vmem:[#allocation9 + $0x794] sm:$0xf]
        %v8296 = vld [vmem:[#allocation9 + $0x798] sm:$0xff]
        %v8297 = vld [vmem:[#allocation9 + $0x7a0] sm:$0xf]
        %v8298 = vld [vmem:[#allocation9 + $0x7a4] sm:$0xff]
        %v8299 = vld [vmem:[#allocation9 + $0x7ac] sm:$0xf]
        %v8300 = vld [vmem:[#allocation9 + $0x7b0] sm:$0xff]
        %v8301 = vld [vmem:[#allocation9 + $0x7b8] sm:$0xf]
        %v8302 = vld [vmem:[#allocation9 + $0x7bc] sm:$0xff]
        %v8303 = vld [vmem:[#allocation9 + $0x7c4] sm:$0xf]
        %v8304 = vld [vmem:[#allocation9 + $0x7c8] sm:$0xff]
        %v8305 = vld [vmem:[#allocation9 + $0x7d0] sm:$0xf]
        %v8306 = vld [vmem:[#allocation9 + $0x7d4] sm:$0xff]
        %v8307 = vld [vmem:[#allocation9 + $0x7dc] sm:$0xf]
        %v8308 = vld [vmem:[#allocation9 + $0x7e0] sm:$0xff]
        %v8309 = vld [vmem:[#allocation9 + $0x7e8] sm:$0xf]
        %v8310 = vld [vmem:[#allocation9 + $0x7ec] sm:$0xff]
        %v8311 = vld [vmem:[#allocation9 + $0x7f4] sm:$0xf]
        %v8312 = vld [vmem:[#allocation9 + $0x7f8] sm:$0xff]
        %v8313 = vld [vmem:[#allocation9 + $0x800] sm:$0xf]
        %v8314 = vld [vmem:[#allocation9 + $0x804] sm:$0xff]
        %v8315 = vld [vmem:[#allocation9 + $0x80c] sm:$0xf]
        %v8316 = vld [vmem:[#allocation9 + $0x810] sm:$0xff]
        %v8317 = vld [vmem:[#allocation9 + $0x818] sm:$0xf]
        %v8318 = vld [vmem:[#allocation9 + $0x81c] sm:$0xff]
        %v8319 = vld [vmem:[#allocation9 + $0x824] sm:$0xf]
        %v8320 = vld [vmem:[#allocation9 + $0x828] sm:$0xff]
        %v8321 = vld [vmem:[#allocation9 + $0x830] sm:$0xf]
        %v8322 = vld [vmem:[#allocation9 + $0x834] sm:$0xff]
        %v8323 = vld [vmem:[#allocation9 + $0x83c] sm:$0xf]
        %v8324 = vld [vmem:[#allocation9 + $0x840] sm:$0xff]
        %v8325 = vld [vmem:[#allocation9 + $0x848] sm:$0xf]
        %v8326 = vld [vmem:[#allocation9 + $0x84c] sm:$0xff]
        %v8327 = vld [vmem:[#allocation9 + $0x854] sm:$0xf]
        %v8328 = vld [vmem:[#allocation9 + $0x858] sm:$0xff]
        %v8329 = vld [vmem:[#allocation9 + $0x860] sm:$0xf]
        %v8330 = vld [vmem:[#allocation9 + $0x864] sm:$0xff]
        %v8331 = vld [vmem:[#allocation9 + $0x86c] sm:$0xf]
        %v8332 = vld [vmem:[#allocation9 + $0x870] sm:$0xff]
        %v8333 = vld [vmem:[#allocation9 + $0x878] sm:$0xf]
        %v8334 = vld [vmem:[#allocation9 + $0x87c] sm:$0xff]
        %v8335 = vld [vmem:[#allocation9 + $0x884] sm:$0xf]
        %v8336 = vld [vmem:[#allocation9 + $0x888] sm:$0xff]
        %v8337 = vld [vmem:[#allocation9 + $0x890] sm:$0xf]
        %v8338 = vld [vmem:[#allocation9 + $0x894] sm:$0xff]
        %v8339 = vld [vmem:[#allocation9 + $0x89c] sm:$0xf]
        %v8340 = vld [vmem:[#allocation9 + $0x8a0] sm:$0xff]
        %v8341 = vld [vmem:[#allocation9 + $0x8a8] sm:$0xf]
        %v8342 = vld [vmem:[#allocation9 + $0x8ac] sm:$0xff]
        %v8343 = vld [vmem:[#allocation9 + $0x8b4] sm:$0xf]
        %v8344 = vld [vmem:[#allocation9 + $0x8b8] sm:$0xff]
        %v8345 = vld [vmem:[#allocation9 + $0x8c0] sm:$0xf]
        %v8346 = vld [vmem:[#allocation9 + $0x8c4] sm:$0xff]
        %v8347 = vld [vmem:[#allocation9 + $0x8cc] sm:$0xf]
        %v8348 = vld [vmem:[#allocation9 + $0x8d0] sm:$0xff]
        %v8349 = vld [vmem:[#allocation9 + $0x8d8] sm:$0xf]
        %v8350 = vld [vmem:[#allocation9 + $0x8dc] sm:$0xff]
        %v8351 = vld [vmem:[#allocation9 + $0x8e4] sm:$0xf]
        %v8352 = vld [vmem:[#allocation9 + $0x8e8] sm:$0xff]
        %v8353 = vld [vmem:[#allocation9 + $0x8f0] sm:$0xf]
        %v8354 = vld [vmem:[#allocation9 + $0x8f4] sm:$0xff]
        %v8355 = vld [vmem:[#allocation9 + $0x8fc] sm:$0xf]
        %v8484 = vunpack.c.l.b16 %v8228
        %v8485 = vunpack.c.h.b16 %v8228
        %v8486 = vunpack.c.l.b16 %v8229
        %v8487 = vunpack.c.l.b16 %v8230
        %v8488 = vunpack.c.h.b16 %v8230
        %v8489 = vunpack.c.l.b16 %v8231
        %v8490 = vunpack.c.l.b16 %v8232
        %v8491 = vunpack.c.h.b16 %v8232
        %v8492 = vunpack.c.l.b16 %v8233
        %v8493 = vunpack.c.l.b16 %v8234
        %v8494 = vunpack.c.h.b16 %v8234
        %v8495 = vunpack.c.l.b16 %v8235
        %v8496 = vunpack.c.l.b16 %v8236
        %v8497 = vunpack.c.h.b16 %v8236
        %v8498 = vunpack.c.l.b16 %v8237
        %v8499 = vunpack.c.l.b16 %v8238
        %v8500 = vunpack.c.h.b16 %v8238
        %v8501 = vunpack.c.l.b16 %v8239
        %v8502 = vunpack.c.l.b16 %v8240
        %v8503 = vunpack.c.h.b16 %v8240
        %v8504 = vunpack.c.l.b16 %v8241
        %v8505 = vunpack.c.l.b16 %v8242
        %v8506 = vunpack.c.h.b16 %v8242
        %v8507 = vunpack.c.l.b16 %v8243
        %v8508 = vunpack.c.l.b16 %v8244
        %v8509 = vunpack.c.h.b16 %v8244
        %v8510 = vunpack.c.l.b16 %v8245
        %v8511 = vunpack.c.l.b16 %v8246
        %v8512 = vunpack.c.h.b16 %v8246
        %v8513 = vunpack.c.l.b16 %v8247
        %v8514 = vunpack.c.l.b16 %v8248
        %v8515 = vunpack.c.h.b16 %v8248
        %v8516 = vunpack.c.l.b16 %v8249
        %v8517 = vunpack.c.l.b16 %v8250
        %v8518 = vunpack.c.h.b16 %v8250
        %v8519 = vunpack.c.l.b16 %v8251
        %v8520 = vunpack.c.l.b16 %v8252
        %v8521 = vunpack.c.h.b16 %v8252
        %v8522 = vunpack.c.l.b16 %v8253
        %v8523 = vunpack.c.l.b16 %v8254
        %v8524 = vunpack.c.h.b16 %v8254
        %v8525 = vunpack.c.l.b16 %v8255
        %v8526 = vunpack.c.l.b16 %v8256
        %v8527 = vunpack.c.h.b16 %v8256
        %v8528 = vunpack.c.l.b16 %v8257
        %v8529 = vunpack.c.l.b16 %v8258
        %v8530 = vunpack.c.h.b16 %v8258
        %v8531 = vunpack.c.l.b16 %v8259
        %v8532 = vunpack.c.l.b16 %v8260
        %v8533 = vunpack.c.h.b16 %v8260
        %v8534 = vunpack.c.l.b16 %v8261
        %v8535 = vunpack.c.l.b16 %v8262
        %v8536 = vunpack.c.h.b16 %v8262
        %v8537 = vunpack.c.l.b16 %v8263
        %v8538 = vunpack.c.l.b16 %v8264
        %v8539 = vunpack.c.h.b16 %v8264
        %v8540 = vunpack.c.l.b16 %v8265
        %v8541 = vunpack.c.l.b16 %v8266
        %v8542 = vunpack.c.h.b16 %v8266
        %v8543 = vunpack.c.l.b16 %v8267
        %v8544 = vunpack.c.l.b16 %v8268
        %v8545 = vunpack.c.h.b16 %v8268
        %v8546 = vunpack.c.l.b16 %v8269
        %v8547 = vunpack.c.l.b16 %v8270
        %v8548 = vunpack.c.h.b16 %v8270
        %v8549 = vunpack.c.l.b16 %v8271
        %v8550 = vunpack.c.l.b16 %v8272
        %v8551 = vunpack.c.h.b16 %v8272
        %v8552 = vunpack.c.l.b16 %v8273
        %v8553 = vunpack.c.l.b16 %v8274
        %v8554 = vunpack.c.h.b16 %v8274
        %v8555 = vunpack.c.l.b16 %v8275
        %v8556 = vunpack.c.l.b16 %v8276
        %v8557 = vunpack.c.h.b16 %v8276
        %v8558 = vunpack.c.l.b16 %v8277
        %v8559 = vunpack.c.l.b16 %v8278
        %v8560 = vunpack.c.h.b16 %v8278
        %v8561 = vunpack.c.l.b16 %v8279
        %v8562 = vunpack.c.l.b16 %v8280
        %v8563 = vunpack.c.h.b16 %v8280
        %v8564 = vunpack.c.l.b16 %v8281
        %v8565 = vunpack.c.l.b16 %v8282
        %v8566 = vunpack.c.h.b16 %v8282
        %v8567 = vunpack.c.l.b16 %v8283
        %v8568 = vunpack.c.l.b16 %v8284
        %v8569 = vunpack.c.h.b16 %v8284
        %v8570 = vunpack.c.l.b16 %v8285
        %v8571 = vunpack.c.l.b16 %v8286
        %v8572 = vunpack.c.h.b16 %v8286
        %v8573 = vunpack.c.l.b16 %v8287
        %v8574 = vunpack.c.l.b16 %v8288
        %v8575 = vunpack.c.h.b16 %v8288
        %v8576 = vunpack.c.l.b16 %v8289
        %v8577 = vunpack.c.l.b16 %v8290
        %v8578 = vunpack.c.h.b16 %v8290
        %v8579 = vunpack.c.l.b16 %v8291
        %v8580 = vunpack.c.l.b16 %v8292
        %v8581 = vunpack.c.h.b16 %v8292
        %v8582 = vunpack.c.l.b16 %v8293
        %v8583 = vunpack.c.l.b16 %v8294
        %v8584 = vunpack.c.h.b16 %v8294
        %v8585 = vunpack.c.l.b16 %v8295
        %v8586 = vunpack.c.l.b16 %v8296
        %v8587 = vunpack.c.h.b16 %v8296
        %v8588 = vunpack.c.l.b16 %v8297
        %v8589 = vunpack.c.l.b16 %v8298
        %v8590 = vunpack.c.h.b16 %v8298
        %v8591 = vunpack.c.l.b16 %v8299
        %v8592 = vunpack.c.l.b16 %v8300
        %v8593 = vunpack.c.h.b16 %v8300
        %v8594 = vunpack.c.l.b16 %v8301
        %v8595 = vunpack.c.l.b16 %v8302
        %v8596 = vunpack.c.h.b16 %v8302
        %v8597 = vunpack.c.l.b16 %v8303
        %v8598 = vunpack.c.l.b16 %v8304
        %v8599 = vunpack.c.h.b16 %v8304
        %v8600 = vunpack.c.l.b16 %v8305
        %v8601 = vunpack.c.l.b16 %v8306
        %v8602 = vunpack.c.h.b16 %v8306
        %v8603 = vunpack.c.l.b16 %v8307
        %v8604 = vunpack.c.l.b16 %v8308
        %v8605 = vunpack.c.h.b16 %v8308
        %v8606 = vunpack.c.l.b16 %v8309
        %v8607 = vunpack.c.l.b16 %v8310
        %v8608 = vunpack.c.h.b16 %v8310
        %v8609 = vunpack.c.l.b16 %v8311
        %v8610 = vunpack.c.l.b16 %v8312
        %v8611 = vunpack.c.h.b16 %v8312
        %v8612 = vunpack.c.l.b16 %v8313
        %v8613 = vunpack.c.l.b16 %v8314
        %v8614 = vunpack.c.h.b16 %v8314
        %v8615 = vunpack.c.l.b16 %v8315
        %v8616 = vunpack.c.l.b16 %v8316
        %v8617 = vunpack.c.h.b16 %v8316
        %v8618 = vunpack.c.l.b16 %v8317
        %v8619 = vunpack.c.l.b16 %v8318
        %v8620 = vunpack.c.h.b16 %v8318
        %v8621 = vunpack.c.l.b16 %v8319
        %v8622 = vunpack.c.l.b16 %v8320
        %v8623 = vunpack.c.h.b16 %v8320
        %v8624 = vunpack.c.l.b16 %v8321
        %v8625 = vunpack.c.l.b16 %v8322
        %v8626 = vunpack.c.h.b16 %v8322
        %v8627 = vunpack.c.l.b16 %v8323
        %v8628 = vunpack.c.l.b16 %v8324
        %v8629 = vunpack.c.h.b16 %v8324
        %v8630 = vunpack.c.l.b16 %v8325
        %v8631 = vunpack.c.l.b16 %v8326
        %v8632 = vunpack.c.h.b16 %v8326
        %v8633 = vunpack.c.l.b16 %v8327
        %v8634 = vunpack.c.l.b16 %v8328
        %v8635 = vunpack.c.h.b16 %v8328
        %v8636 = vunpack.c.l.b16 %v8329
        %v8637 = vunpack.c.l.b16 %v8330
        %v8638 = vunpack.c.h.b16 %v8330
        %v8639 = vunpack.c.l.b16 %v8331
        %v8640 = vunpack.c.l.b16 %v8332
        %v8641 = vunpack.c.h.b16 %v8332
        %v8642 = vunpack.c.l.b16 %v8333
        %v8643 = vunpack.c.l.b16 %v8334
        %v8644 = vunpack.c.h.b16 %v8334
        %v8645 = vunpack.c.l.b16 %v8335
        %v8646 = vunpack.c.l.b16 %v8336
        %v8647 = vunpack.c.h.b16 %v8336
        %v8648 = vunpack.c.l.b16 %v8337
        %v8649 = vunpack.c.l.b16 %v8338
        %v8650 = vunpack.c.h.b16 %v8338
        %v8651 = vunpack.c.l.b16 %v8339
        %v8652 = vunpack.c.l.b16 %v8340
        %v8653 = vunpack.c.h.b16 %v8340
        %v8654 = vunpack.c.l.b16 %v8341
        %v8655 = vunpack.c.l.b16 %v8342
        %v8656 = vunpack.c.h.b16 %v8342
        %v8657 = vunpack.c.l.b16 %v8343
        %v8658 = vunpack.c.l.b16 %v8344
        %v8659 = vunpack.c.h.b16 %v8344
        %v8660 = vunpack.c.l.b16 %v8345
        %v8661 = vunpack.c.l.b16 %v8346
        %v8662 = vunpack.c.h.b16 %v8346
        %v8663 = vunpack.c.l.b16 %v8347
        %v8664 = vunpack.c.l.b16 %v8348
        %v8665 = vunpack.c.h.b16 %v8348
        %v8666 = vunpack.c.l.b16 %v8349
        %v8667 = vunpack.c.l.b16 %v8350
        %v8668 = vunpack.c.h.b16 %v8350
        %v8669 = vunpack.c.l.b16 %v8351
        %v8670 = vunpack.c.l.b16 %v8352
        %v8671 = vunpack.c.h.b16 %v8352
        %v8672 = vunpack.c.l.b16 %v8353
        %v8673 = vunpack.c.l.b16 %v8354
        %v8674 = vunpack.c.h.b16 %v8354
        %v8675 = vunpack.c.l.b16 %v8355
        %v8676 = vpack.c.b16 %v8487, %v8484
        %v8677 = vpack.c.b16 %v8488, %v8485
        %v8678 = vpack.c.b16 %v8489, %v8486
        %v8679 = vpack.c.b16 %v8493, %v8490
        %v8680 = vpack.c.b16 %v8494, %v8491
        %v8681 = vpack.c.b16 %v8495, %v8492
        %v8682 = vpack.c.b16 %v8499, %v8496
        %v8683 = vpack.c.b16 %v8500, %v8497
        %v8684 = vpack.c.b16 %v8501, %v8498
        %v8685 = vpack.c.b16 %v8505, %v8502
        %v8686 = vpack.c.b16 %v8506, %v8503
        %v8687 = vpack.c.b16 %v8507, %v8504
        %v8688 = vpack.c.b16 %v8511, %v8508
        %v8689 = vpack.c.b16 %v8512, %v8509
        %v8690 = vpack.c.b16 %v8513, %v8510
        %v8691 = vpack.c.b16 %v8517, %v8514
        %v8692 = vpack.c.b16 %v8518, %v8515
        %v8693 = vpack.c.b16 %v8519, %v8516
        %v8694 = vpack.c.b16 %v8523, %v8520
        %v8695 = vpack.c.b16 %v8524, %v8521
        %v8696 = vpack.c.b16 %v8525, %v8522
        %v8697 = vpack.c.b16 %v8529, %v8526
        %v8698 = vpack.c.b16 %v8530, %v8527
        %v8699 = vpack.c.b16 %v8531, %v8528
        %v8700 = vpack.c.b16 %v8535, %v8532
        %v8701 = vpack.c.b16 %v8536, %v8533
        %v8702 = vpack.c.b16 %v8537, %v8534
        %v8703 = vpack.c.b16 %v8541, %v8538
        %v8704 = vpack.c.b16 %v8542, %v8539
        %v8705 = vpack.c.b16 %v8543, %v8540
        %v8706 = vpack.c.b16 %v8547, %v8544
        %v8707 = vpack.c.b16 %v8548, %v8545
        %v8708 = vpack.c.b16 %v8549, %v8546
        %v8709 = vpack.c.b16 %v8553, %v8550
        %v8710 = vpack.c.b16 %v8554, %v8551
        %v8711 = vpack.c.b16 %v8555, %v8552
        %v8712 = vpack.c.b16 %v8559, %v8556
        %v8713 = vpack.c.b16 %v8560, %v8557
        %v8714 = vpack.c.b16 %v8561, %v8558
        %v8715 = vpack.c.b16 %v8565, %v8562
        %v8716 = vpack.c.b16 %v8566, %v8563
        %v8717 = vpack.c.b16 %v8567, %v8564
        %v8718 = vpack.c.b16 %v8571, %v8568
        %v8719 = vpack.c.b16 %v8572, %v8569
        %v8720 = vpack.c.b16 %v8573, %v8570
        %v8721 = vpack.c.b16 %v8577, %v8574
        %v8722 = vpack.c.b16 %v8578, %v8575
        %v8723 = vpack.c.b16 %v8579, %v8576
        %v8724 = vpack.c.b16 %v8583, %v8580
        %v8725 = vpack.c.b16 %v8584, %v8581
        %v8726 = vpack.c.b16 %v8585, %v8582
        %v8727 = vpack.c.b16 %v8589, %v8586
        %v8728 = vpack.c.b16 %v8590, %v8587
        %v8729 = vpack.c.b16 %v8591, %v8588
        %v8730 = vpack.c.b16 %v8595, %v8592
        %v8731 = vpack.c.b16 %v8596, %v8593
        %v8732 = vpack.c.b16 %v8597, %v8594
        %v8733 = vpack.c.b16 %v8601, %v8598
        %v8734 = vpack.c.b16 %v8602, %v8599
        %v8735 = vpack.c.b16 %v8603, %v8600
        %v8736 = vpack.c.b16 %v8607, %v8604
        %v8737 = vpack.c.b16 %v8608, %v8605
        %v8738 = vpack.c.b16 %v8609, %v8606
        %v8739 = vpack.c.b16 %v8613, %v8610
        %v8740 = vpack.c.b16 %v8614, %v8611
        %v8741 = vpack.c.b16 %v8615, %v8612
        %v8742 = vpack.c.b16 %v8619, %v8616
        %v8743 = vpack.c.b16 %v8620, %v8617
        %v8744 = vpack.c.b16 %v8621, %v8618
        %v8745 = vpack.c.b16 %v8625, %v8622
        %v8746 = vpack.c.b16 %v8626, %v8623
        %v8747 = vpack.c.b16 %v8627, %v8624
        %v8748 = vpack.c.b16 %v8631, %v8628
        %v8749 = vpack.c.b16 %v8632, %v8629
        %v8750 = vpack.c.b16 %v8633, %v8630
        %v8751 = vpack.c.b16 %v8637, %v8634
        %v8752 = vpack.c.b16 %v8638, %v8635
        %v8753 = vpack.c.b16 %v8639, %v8636
        %v8754 = vpack.c.b16 %v8643, %v8640
        %v8755 = vpack.c.b16 %v8644, %v8641
        %v8756 = vpack.c.b16 %v8645, %v8642
        %v8757 = vpack.c.b16 %v8649, %v8646
        %v8758 = vpack.c.b16 %v8650, %v8647
        %v8759 = vpack.c.b16 %v8651, %v8648
        %v8760 = vpack.c.b16 %v8655, %v8652
        %v8761 = vpack.c.b16 %v8656, %v8653
        %v8762 = vpack.c.b16 %v8657, %v8654
        %v8763 = vpack.c.b16 %v8661, %v8658
        %v8764 = vpack.c.b16 %v8662, %v8659
        %v8765 = vpack.c.b16 %v8663, %v8660
        %v8766 = vpack.c.b16 %v8667, %v8664
        %v8767 = vpack.c.b16 %v8668, %v8665
        %v8768 = vpack.c.b16 %v8669, %v8666
        %v8769 = vpack.c.b16 %v8673, %v8670
        %v8770 = vpack.c.b16 %v8674, %v8671
        %v8771 = vpack.c.b16 %v8675, %v8672
        %8868 = vmatprep.subr.bf16.mxu0 %v8677
        %8869 = vmatpush1.bf16.msra.mxu0 %v8676
        %8870 = vmatprep.subr.bf16.mxu0 %v8680
        %8871 = vmatpush1.bf16.msra.mxu0 %v8679
        %8872 = vmatprep.subr.bf16.mxu0 %v8683
        %8873 = vmatpush1.bf16.msra.mxu0 %v8682
        %8874 = vmatprep.subr.bf16.mxu0 %v8686
        %8875 = vmatpush1.bf16.msra.mxu0 %v8685
        %8876 = vmatprep.subr.bf16.mxu0 %v8689
        %8877 = vmatpush1.bf16.msra.mxu0 %v8688
        %8878 = vmatprep.subr.bf16.mxu0 %v8692
        %8879 = vmatpush1.bf16.msra.mxu0 %v8691
        %8880 = vmatprep.subr.bf16.mxu0 %v8695
        %8881 = vmatpush1.bf16.msra.mxu0 %v8694
        %8882 = vmatprep.subr.bf16.mxu0 %v8698
        %8883 = vmatpush1.bf16.msra.mxu0 %v8697
        %8884 = vmatprep.subr.bf16.mxu0 %v8701
        %8885 = vmatpush1.bf16.msra.mxu0 %v8700
        %8886 = vmatprep.subr.bf16.mxu0 %v8704
        %8887 = vmatpush1.bf16.msra.mxu0 %v8703
        %8888 = vmatprep.subr.bf16.mxu0 %v8707
        %8889 = vmatpush1.bf16.msra.mxu0 %v8706
        %8890 = vmatprep.subr.bf16.mxu0 %v8710
        %8891 = vmatpush1.bf16.msra.mxu0 %v8709
        %8892 = vmatprep.subr.bf16.mxu0 %v8713
        %8893 = vmatpush1.bf16.msra.mxu0 %v8712
        %8894 = vmatprep.subr.bf16.mxu0 %v8716
        %8895 = vmatpush1.bf16.msra.mxu0 %v8715
        %8896 = vmatprep.subr.bf16.mxu0 %v8719
        %8897 = vmatpush1.bf16.msra.mxu0 %v8718
        %8898 = vmatprep.subr.bf16.mxu0 %v8722
        %8899 = vmatpush1.bf16.msra.mxu0 %v8721
        %8900 = vmatprep.mubr.bf16.mxu0 %v8165
        %8901 = vmatmul.mubr.bf16.gmra.mrb[0].mxu0 %v8164
        %v8902 = vpop.f32.mrb[0].mxu0
        %v8903 = vadd.f32 0.0, %v8902
        %v8904 = vpop.f32.mrb[0].mxu0
        %v8905 = vadd.f32 0.0, %v8904
        %v8906 = vpop.f32.mrb[0].mxu0
        %v8907 = vadd.f32 0.0, %v8906
        %v8908 = vpop.f32.mrb[0].mxu0
        %v8909 = vadd.f32 0.0, %v8908
        %8910 = vmatprep.mubr.bf16.mxu0 %v8169
        %8911 = vmatmul.mubr.bf16.gmra.mrb[0].mxu0 %v8168
        %v8912 = vpop.f32.mrb[0].mxu0
        %v8913 = vadd.f32 0.0, %v8912
        %v8914 = vpop.f32.mrb[0].mxu0
        %v8915 = vadd.f32 0.0, %v8914
        %v8916 = vpop.f32.mrb[0].mxu0
        %v8917 = vadd.f32 0.0, %v8916
        %v8918 = vpop.f32.mrb[0].mxu0
        %v8919 = vadd.f32 0.0, %v8918
        %8920 = vmatprep.mubr.bf16.mxu0 %v8173
        %8921 = vmatmul.mubr.bf16.gmra.mrb[0].mxu0 %v8172
        %v8922 = vpop.f32.mrb[0].mxu0
        %v8923 = vadd.f32 0.0, %v8922
        %v8924 = vpop.f32.mrb[0].mxu0
        %v8925 = vadd.f32 0.0, %v8924
        %v8926 = vpop.f32.mrb[0].mxu0
        %v8927 = vadd.f32 0.0, %v8926
        %v8928 = vpop.f32.mrb[0].mxu0
        %v8929 = vadd.f32 0.0, %v8928
        %8930 = vmatprep.mubr.bf16.mxu0 %v8177
        %8931 = vmatmul.mubr.bf16.gmra.mrb[0].mxu0 %v8176
        %v8932 = vpop.f32.mrb[0].mxu0
        %v8933 = vadd.f32 0.0, %v8932
        %v8934 = vpop.f32.mrb[0].mxu0
        %v8935 = vadd.f32 0.0, %v8934
        %v8936 = vpop.f32.mrb[0].mxu0
        %v8937 = vadd.f32 0.0, %v8936
        %v8938 = vpop.f32.mrb[0].mxu0
        %v8939 = vadd.f32 0.0, %v8938
        %8940 = vmatprep.mubr.bf16.mxu0 %v8181
        %8941 = vmatmul.mubr.bf16.gmra.mrb[0].mxu0 %v8180
        %v8942 = vpop.f32.mrb[0].mxu0
        %v8943 = vadd.f32 0.0, %v8942
        %v8944 = vpop.f32.mrb[0].mxu0
        %v8945 = vadd.f32 0.0, %v8944
        %v8946 = vpop.f32.mrb[0].mxu0
        %v8947 = vadd.f32 0.0, %v8946
        %v8948 = vpop.f32.mrb[0].mxu0
        %v8949 = vadd.f32 0.0, %v8948
        %8950 = vmatprep.mubr.bf16.mxu0 %v8185
        %8951 = vmatmul.mubr.bf16.gmra.mrb[0].mxu0 %v8184
        %v8952 = vpop.f32.mrb[0].mxu0
        %v8953 = vadd.f32 0.0, %v8952
        %v8954 = vpop.f32.mrb[0].mxu0
        %v8955 = vadd.f32 0.0, %v8954
        %v8956 = vpop.f32.mrb[0].mxu0
        %v8957 = vadd.f32 0.0, %v8956
        %v8958 = vpop.f32.mrb[0].mxu0
        %v8959 = vadd.f32 0.0, %v8958
        %8960 = vmatprep.mubr.bf16.mxu0 %v8189
        %8961 = vmatmul.mubr.bf16.gmra.mrb[0].mxu0 %v8188
        %v8962 = vpop.f32.mrb[0].mxu0
        %v8963 = vadd.f32 0.0, %v8962
        %v8964 = vpop.f32.mrb[0].mxu0
        %v8965 = vadd.f32 0.0, %v8964
        %v8966 = vpop.f32.mrb[0].mxu0
        %v8967 = vadd.f32 0.0, %v8966
        %v8968 = vpop.f32.mrb[0].mxu0
        %v8969 = vadd.f32 0.0, %v8968
        %8970 = vmatprep.mubr.bf16.mxu0 %v8193
        %8971 = vmatmul.mubr.bf16.gmra.mrb[0].mxu0 %v8192
        %v8972 = vpop.f32.mrb[0].mxu0
        %v8973 = vadd.f32 0.0, %v8972
        %v8974 = vpop.f32.mrb[0].mxu0
        %v8975 = vadd.f32 0.0, %v8974
        %v8976 = vpop.f32.mrb[0].mxu0
        %v8977 = vadd.f32 0.0, %v8976
        %v8978 = vpop.f32.mrb[0].mxu0
        %v8979 = vadd.f32 0.0, %v8978
        %8980 = vmatprep.mubr.bf16.mxu0 %v8197
        %8981 = vmatmul.mubr.bf16.gmra.mrb[0].mxu0 %v8196
        %v8982 = vpop.f32.mrb[0].mxu0
        %v8983 = vadd.f32 0.0, %v8982
        %v8984 = vpop.f32.mrb[0].mxu0
        %v8985 = vadd.f32 0.0, %v8984
        %v8986 = vpop.f32.mrb[0].mxu0
        %v8987 = vadd.f32 0.0, %v8986
        %v8988 = vpop.f32.mrb[0].mxu0
        %v8989 = vadd.f32 0.0, %v8988
        %8990 = vmatprep.mubr.bf16.mxu0 %v8201
        %8991 = vmatmul.mubr.bf16.gmra.mrb[0].mxu0 %v8200
        %v8992 = vpop.f32.mrb[0].mxu0
        %v8993 = vadd.f32 0.0, %v8992
        %v8994 = vpop.f32.mrb[0].mxu0
        %v8995 = vadd.f32 0.0, %v8994
        %v8996 = vpop.f32.mrb[0].mxu0
        %v8997 = vadd.f32 0.0, %v8996
        %v8998 = vpop.f32.mrb[0].mxu0
        %v8999 = vadd.f32 0.0, %v8998
        %9000 = vmatprep.mubr.bf16.mxu0 %v8205
        %9001 = vmatmul.mubr.bf16.gmra.mrb[0].mxu0 %v8204
        %v9002 = vpop.f32.mrb[0].mxu0
        %v9003 = vadd.f32 0.0, %v9002
        %v9004 = vpop.f32.mrb[0].mxu0
        %v9005 = vadd.f32 0.0, %v9004
        %v9006 = vpop.f32.mrb[0].mxu0
        %v9007 = vadd.f32 0.0, %v9006
        %v9008 = vpop.f32.mrb[0].mxu0
        %v9009 = vadd.f32 0.0, %v9008
        %9010 = vmatprep.mubr.bf16.mxu0 %v8209
        %9011 = vmatmul.mubr.bf16.gmra.mrb[0].mxu0 %v8208
        %v9012 = vpop.f32.mrb[0].mxu0
        %v9013 = vadd.f32 0.0, %v9012
        %v9014 = vpop.f32.mrb[0].mxu0
        %v9015 = vadd.f32 0.0, %v9014
        %v9016 = vpop.f32.mrb[0].mxu0
        %v9017 = vadd.f32 0.0, %v9016
        %v9018 = vpop.f32.mrb[0].mxu0
        %v9019 = vadd.f32 0.0, %v9018
        %9020 = vmatprep.mubr.bf16.mxu0 %v8213
        %9021 = vmatmul.mubr.bf16.gmra.mrb[0].mxu0 %v8212
        %v9022 = vpop.f32.mrb[0].mxu0
        %v9023 = vadd.f32 0.0, %v9022
        %v9024 = vpop.f32.mrb[0].mxu0
        %v9025 = vadd.f32 0.0, %v9024
        %v9026 = vpop.f32.mrb[0].mxu0
        %v9027 = vadd.f32 0.0, %v9026
        %v9028 = vpop.f32.mrb[0].mxu0
        %v9029 = vadd.f32 0.0, %v9028
        %9030 = vmatprep.mubr.bf16.mxu0 %v8217
        %9031 = vmatmul.mubr.bf16.gmra.mrb[0].mxu0 %v8216
        %v9032 = vpop.f32.mrb[0].mxu0
        %v9033 = vadd.f32 0.0, %v9032
        %v9034 = vpop.f32.mrb[0].mxu0
        %v9035 = vadd.f32 0.0, %v9034
        %v9036 = vpop.f32.mrb[0].mxu0
        %v9037 = vadd.f32 0.0, %v9036
        %v9038 = vpop.f32.mrb[0].mxu0
        %v9039 = vadd.f32 0.0, %v9038
        %9040 = vmatprep.mubr.bf16.mxu0 %v8221
        %9041 = vmatmul.mubr.bf16.gmra.mrb[0].mxu0 %v8220
        %v9042 = vpop.f32.mrb[0].mxu0
        %v9043 = vadd.f32 0.0, %v9042
        %v9044 = vpop.f32.mrb[0].mxu0
        %v9045 = vadd.f32 0.0, %v9044
        %v9046 = vpop.f32.mrb[0].mxu0
        %v9047 = vadd.f32 0.0, %v9046
        %v9048 = vpop.f32.mrb[0].mxu0
        %v9049 = vadd.f32 0.0, %v9048
        %9050 = vmatprep.mubr.bf16.mxu0 %v8225
        %9051 = vmatmul.mubr.bf16.gmra.mrb[0].mxu0 %v8224
        %v9052 = vpop.f32.mrb[0].mxu0
        %v9053 = vadd.f32 0.0, %v9052
        %v9054 = vpop.f32.mrb[0].mxu0
        %v9055 = vadd.f32 0.0, %v9054
        %v9056 = vpop.f32.mrb[0].mxu0
        %v9057 = vadd.f32 0.0, %v9056
        %v9058 = vpop.f32.mrb[0].mxu0
        %v9059 = vadd.f32 0.0, %v9058
        %9060 = vdwg.mxu0
        %9061 = vmatprep.subr.bf16.mxu0 %v8725
        %9062 = vmatpush1.bf16.msra.mxu0 %v8724
        %9063 = vmatprep.subr.bf16.mxu0 %v8728
        %9064 = vmatpush1.bf16.msra.mxu0 %v8727
        %9065 = vmatprep.subr.bf16.mxu0 %v8731
        %9066 = vmatpush1.bf16.msra.mxu0 %v8730
        %9067 = vmatprep.subr.bf16.mxu0 %v8734
        %9068 = vmatpush1.bf16.msra.mxu0 %v8733
        %9069 = vmatprep.subr.bf16.mxu0 %v8737
        %9070 = vmatpush1.bf16.msra.mxu0 %v8736
        %9071 = vmatprep.subr.bf16.mxu0 %v8740
        %9072 = vmatpush1.bf16.msra.mxu0 %v8739
        %9073 = vmatprep.subr.bf16.mxu0 %v8743
        %9074 = vmatpush1.bf16.msra.mxu0 %v8742
        %9075 = vmatprep.subr.bf16.mxu0 %v8746
        %9076 = vmatpush1.bf16.msra.mxu0 %v8745
        %9077 = vmatprep.subr.bf16.mxu0 %v8749
        %9078 = vmatpush1.bf16.msra.mxu0 %v8748
        %9079 = vmatprep.subr.bf16.mxu0 %v8752
        %9080 = vmatpush1.bf16.msra.mxu0 %v8751
        %9081 = vmatprep.subr.bf16.mxu0 %v8755
        %9082 = vmatpush1.bf16.msra.mxu0 %v8754
        %9083 = vmatprep.subr.bf16.mxu0 %v8758
        %9084 = vmatpush1.bf16.msra.mxu0 %v8757
        %9085 = vmatprep.subr.bf16.mxu0 %v8761
        %9086 = vmatpush1.bf16.msra.mxu0 %v8760
        %9087 = vmatprep.subr.bf16.mxu0 %v8764
        %9088 = vmatpush1.bf16.msra.mxu0 %v8763
        %9089 = vmatprep.subr.bf16.mxu0 %v8767
        %9090 = vmatpush1.bf16.msra.mxu0 %v8766
        %9091 = vmatprep.subr.bf16.mxu0 %v8770
        %9092 = vmatpush1.bf16.msra.mxu0 %v8769
        %9093 = vmatprep.mubr.bf16.mxu0 %v8167
        %9094 = vmatmul.mubr.bf16.gmra.mrb[0].mxu0 %v8166
        %v9095 = vpop.f32.mrb[0].mxu0
        %v9096 = vadd.f32 %v8903, %v9095
        %v9097 = vpop.f32.mrb[0].mxu0
        %v9098 = vadd.f32 %v8905, %v9097
        %v9099 = vpop.f32.mrb[0].mxu0
        %v9100 = vadd.f32 %v8907, %v9099
        %v9101 = vpop.f32.mrb[0].mxu0
        %v9102 = vadd.f32 %v8909, %v9101
        %9103 = vmatprep.mubr.bf16.mxu0 %v8171
        %9104 = vmatmul.mubr.bf16.gmra.mrb[0].mxu0 %v8170
        %v9105 = vpop.f32.mrb[0].mxu0
        %v9106 = vadd.f32 %v8913, %v9105
        %v9107 = vpop.f32.mrb[0].mxu0
        %v9108 = vadd.f32 %v8915, %v9107
        %v9109 = vpop.f32.mrb[0].mxu0
        %v9110 = vadd.f32 %v8917, %v9109
        %v9111 = vpop.f32.mrb[0].mxu0
        %v9112 = vadd.f32 %v8919, %v9111
        %9113 = vmatprep.mubr.bf16.mxu0 %v8175
        %9114 = vmatmul.mubr.bf16.gmra.mrb[0].mxu0 %v8174
        %v9115 = vpop.f32.mrb[0].mxu0
        %v9116 = vadd.f32 %v8923, %v9115
        %v9117 = vpop.f32.mrb[0].mxu0
        %v9118 = vadd.f32 %v8925, %v9117
        %v9119 = vpop.f32.mrb[0].mxu0
        %v9120 = vadd.f32 %v8927, %v9119
        %v9121 = vpop.f32.mrb[0].mxu0
        %v9122 = vadd.f32 %v8929, %v9121
        %9123 = vmatprep.mubr.bf16.mxu0 %v8179
        %9124 = vmatmul.mubr.bf16.gmra.mrb[0].mxu0 %v8178
        %v9125 = vpop.f32.mrb[0].mxu0
        %v9126 = vadd.f32 %v8933, %v9125
        %v9127 = vpop.f32.mrb[0].mxu0
        %v9128 = vadd.f32 %v8935, %v9127
        %v9129 = vpop.f32.mrb[0].mxu0
        %v9130 = vadd.f32 %v8937, %v9129
        %v9131 = vpop.f32.mrb[0].mxu0
        %v9132 = vadd.f32 %v8939, %v9131
        %9133 = vmatprep.mubr.bf16.mxu0 %v8183
        %9134 = vmatmul.mubr.bf16.gmra.mrb[0].mxu0 %v8182
        %v9135 = vpop.f32.mrb[0].mxu0
        %v9136 = vadd.f32 %v8943, %v9135
        %v9137 = vpop.f32.mrb[0].mxu0
        %v9138 = vadd.f32 %v8945, %v9137
        %v9139 = vpop.f32.mrb[0].mxu0
        %v9140 = vadd.f32 %v8947, %v9139
        %v9141 = vpop.f32.mrb[0].mxu0
        %v9142 = vadd.f32 %v8949, %v9141
        %9143 = vmatprep.mubr.bf16.mxu0 %v8187
        %9144 = vmatmul.mubr.bf16.gmra.mrb[0].mxu0 %v8186
        %v9145 = vpop.f32.mrb[0].mxu0
        %v9146 = vadd.f32 %v8953, %v9145
        %v9147 = vpop.f32.mrb[0].mxu0
        %v9148 = vadd.f32 %v8955, %v9147
        %v9149 = vpop.f32.mrb[0].mxu0
        %v9150 = vadd.f32 %v8957, %v9149
        %v9151 = vpop.f32.mrb[0].mxu0
        %v9152 = vadd.f32 %v8959, %v9151
        %9153 = vmatprep.mubr.bf16.mxu0 %v8191
        %9154 = vmatmul.mubr.bf16.gmra.mrb[0].mxu0 %v8190
        %v9155 = vpop.f32.mrb[0].mxu0
        %v9156 = vadd.f32 %v8963, %v9155
        %v9157 = vpop.f32.mrb[0].mxu0
        %v9158 = vadd.f32 %v8965, %v9157
        %v9159 = vpop.f32.mrb[0].mxu0
        %v9160 = vadd.f32 %v8967, %v9159
        %v9161 = vpop.f32.mrb[0].mxu0
        %v9162 = vadd.f32 %v8969, %v9161
        %9163 = vmatprep.mubr.bf16.mxu0 %v8195
        %9164 = vmatmul.mubr.bf16.gmra.mrb[0].mxu0 %v8194
        %v9165 = vpop.f32.mrb[0].mxu0
        %v9166 = vadd.f32 %v8973, %v9165
        %v9167 = vpop.f32.mrb[0].mxu0
        %v9168 = vadd.f32 %v8975, %v9167
        %v9169 = vpop.f32.mrb[0].mxu0
        %v9170 = vadd.f32 %v8977, %v9169
        %v9171 = vpop.f32.mrb[0].mxu0
        %v9172 = vadd.f32 %v8979, %v9171
        %9173 = vmatprep.mubr.bf16.mxu0 %v8199
        %9174 = vmatmul.mubr.bf16.gmra.mrb[0].mxu0 %v8198
        %v9175 = vpop.f32.mrb[0].mxu0
        %v9176 = vadd.f32 %v8983, %v9175
        %v9177 = vpop.f32.mrb[0].mxu0
        %v9178 = vadd.f32 %v8985, %v9177
        %v9179 = vpop.f32.mrb[0].mxu0
        %v9180 = vadd.f32 %v8987, %v9179
        %v9181 = vpop.f32.mrb[0].mxu0
        %v9182 = vadd.f32 %v8989, %v9181
        %9183 = vmatprep.mubr.bf16.mxu0 %v8203
        %9184 = vmatmul.mubr.bf16.gmra.mrb[0].mxu0 %v8202
        %v9185 = vpop.f32.mrb[0].mxu0
        %v9186 = vadd.f32 %v8993, %v9185
        %v9187 = vpop.f32.mrb[0].mxu0
        %v9188 = vadd.f32 %v8995, %v9187
        %v9189 = vpop.f32.mrb[0].mxu0
        %v9190 = vadd.f32 %v8997, %v9189
        %v9191 = vpop.f32.mrb[0].mxu0
        %v9192 = vadd.f32 %v8999, %v9191
        %9193 = vmatprep.mubr.bf16.mxu0 %v8207
        %9194 = vmatmul.mubr.bf16.gmra.mrb[0].mxu0 %v8206
        %v9195 = vpop.f32.mrb[0].mxu0
        %v9196 = vadd.f32 %v9003, %v9195
        %v9197 = vpop.f32.mrb[0].mxu0
        %v9198 = vadd.f32 %v9005, %v9197
        %v9199 = vpop.f32.mrb[0].mxu0
        %v9200 = vadd.f32 %v9007, %v9199
        %v9201 = vpop.f32.mrb[0].mxu0
        %v9202 = vadd.f32 %v9009, %v9201
        %9203 = vmatprep.mubr.bf16.mxu0 %v8211
        %9204 = vmatmul.mubr.bf16.gmra.mrb[0].mxu0 %v8210
        %v9205 = vpop.f32.mrb[0].mxu0
        %v9206 = vadd.f32 %v9013, %v9205
        %v9207 = vpop.f32.mrb[0].mxu0
        %v9208 = vadd.f32 %v9015, %v9207
        %v9209 = vpop.f32.mrb[0].mxu0
        %v9210 = vadd.f32 %v9017, %v9209
        %v9211 = vpop.f32.mrb[0].mxu0
        %v9212 = vadd.f32 %v9019, %v9211
        %9213 = vmatprep.mubr.bf16.mxu0 %v8215
        %9214 = vmatmul.mubr.bf16.gmra.mrb[0].mxu0 %v8214
        %v9215 = vpop.f32.mrb[0].mxu0
        %v9216 = vadd.f32 %v9023, %v9215
        %v9217 = vpop.f32.mrb[0].mxu0
        %v9218 = vadd.f32 %v9025, %v9217
        %v9219 = vpop.f32.mrb[0].mxu0
        %v9220 = vadd.f32 %v9027, %v9219
        %v9221 = vpop.f32.mrb[0].mxu0
        %v9222 = vadd.f32 %v9029, %v9221
        %9223 = vmatprep.mubr.bf16.mxu0 %v8219
        %9224 = vmatmul.mubr.bf16.gmra.mrb[0].mxu0 %v8218
        %v9225 = vpop.f32.mrb[0].mxu0
        %v9226 = vadd.f32 %v9033, %v9225
        %v9227 = vpop.f32.mrb[0].mxu0
        %v9228 = vadd.f32 %v9035, %v9227
        %v9229 = vpop.f32.mrb[0].mxu0
        %v9230 = vadd.f32 %v9037, %v9229
        %v9231 = vpop.f32.mrb[0].mxu0
        %v9232 = vadd.f32 %v9039, %v9231
        %9233 = vmatprep.mubr.bf16.mxu0 %v8223
        %9234 = vmatmul.mubr.bf16.gmra.mrb[0].mxu0 %v8222
        %v9235 = vpop.f32.mrb[0].mxu0
        %v9236 = vadd.f32 %v9043, %v9235
        %v9237 = vpop.f32.mrb[0].mxu0
        %v9238 = vadd.f32 %v9045, %v9237
        %v9239 = vpop.f32.mrb[0].mxu0
        %v9240 = vadd.f32 %v9047, %v9239
        %v9241 = vpop.f32.mrb[0].mxu0
        %v9242 = vadd.f32 %v9049, %v9241
        %9243 = vmatprep.mubr.bf16.mxu0 %v8227
        %9244 = vmatmul.mubr.bf16.gmra.mrb[0].mxu0 %v8226
        %v9245 = vpop.f32.mrb[0].mxu0
        %v9246 = vadd.f32 %v9053, %v9245
        %v9247 = vpop.f32.mrb[0].mxu0
        %v9248 = vadd.f32 %v9055, %v9247
        %v9249 = vpop.f32.mrb[0].mxu0
        %v9250 = vadd.f32 %v9057, %v9249
        %v9251 = vpop.f32.mrb[0].mxu0
        %v9252 = vadd.f32 %v9059, %v9251
        %9253 = vdwg.mxu0
        %9254 = vmatprep.subr.bf16.mxu0 0
        %9255 = vmatpush1.bf16.msra.mxu0 %v8678
        %9256 = vmatprep.subr.bf16.mxu0 0
        %9257 = vmatpush1.bf16.msra.mxu0 %v8681
        %9258 = vmatprep.subr.bf16.mxu0 0
        %9259 = vmatpush1.bf16.msra.mxu0 %v8684
        %9260 = vmatprep.subr.bf16.mxu0 0
        %9261 = vmatpush1.bf16.msra.mxu0 %v8687
        %9262 = vmatprep.subr.bf16.mxu0 0
        %9263 = vmatpush1.bf16.msra.mxu0 %v8690
        %9264 = vmatprep.subr.bf16.mxu0 0
        %9265 = vmatpush1.bf16.msra.mxu0 %v8693
        %9266 = vmatprep.subr.bf16.mxu0 0
        %9267 = vmatpush1.bf16.msra.mxu0 %v8696
        %9268 = vmatprep.subr.bf16.mxu0 0
        %9269 = vmatpush1.bf16.msra.mxu0 %v8699
        %9270 = vmatprep.subr.bf16.mxu0 0
        %9271 = vmatpush1.bf16.msra.mxu0 %v8702
        %9272 = vmatprep.subr.bf16.mxu0 0
        %9273 = vmatpush1.bf16.msra.mxu0 %v8705
        %9274 = vmatprep.subr.bf16.mxu0 0
        %9275 = vmatpush1.bf16.msra.mxu0 %v8708
        %9276 = vmatprep.subr.bf16.mxu0 0
        %9277 = vmatpush1.bf16.msra.mxu0 %v8711
        %9278 = vmatprep.subr.bf16.mxu0 0
        %9279 = vmatpush1.bf16.msra.mxu0 %v8714
        %9280 = vmatprep.subr.bf16.mxu0 0
        %9281 = vmatpush1.bf16.msra.mxu0 %v8717
        %9282 = vmatprep.subr.bf16.mxu0 0
        %9283 = vmatpush1.bf16.msra.mxu0 %v8720
        %9284 = vmatprep.subr.bf16.mxu0 0
        %9285 = vmatpush1.bf16.msra.mxu0 %v8723
        %9286 = vmatprep.mubr.bf16.mxu0 %v8165
        %9287 = vmatmul.mubr.bf16.gmra.mrb[0].mxu0 %v8164
        %v9288 = vpop.f32.mrb[0].mxu0
        %v9289 = vadd.f32 0.0, %v9288
        %v9290 = vpop.f32.mrb[0].mxu0
        %v9291 = vpop.f32.mrb[0].mxu0
        %v9292 = vadd.f32 0.0, %v9291
        %v9293 = vpop.f32.mrb[0].mxu0
        %9294 = vmatprep.mubr.bf16.mxu0 %v8169
        %9295 = vmatmul.mubr.bf16.gmra.mrb[0].mxu0 %v8168
        %v9296 = vpop.f32.mrb[0].mxu0
        %v9297 = vadd.f32 0.0, %v9296
        %v9298 = vpop.f32.mrb[0].mxu0
        %v9299 = vpop.f32.mrb[0].mxu0
        %v9300 = vadd.f32 0.0, %v9299
        %v9301 = vpop.f32.mrb[0].mxu0
        %9302 = vmatprep.mubr.bf16.mxu0 %v8173
        %9303 = vmatmul.mubr.bf16.gmra.mrb[0].mxu0 %v8172
        %v9304 = vpop.f32.mrb[0].mxu0
        %v9305 = vadd.f32 0.0, %v9304
        %v9306 = vpop.f32.mrb[0].mxu0
        %v9307 = vpop.f32.mrb[0].mxu0
        %v9308 = vadd.f32 0.0, %v9307
        %v9309 = vpop.f32.mrb[0].mxu0
        %9310 = vmatprep.mubr.bf16.mxu0 %v8177
        %9311 = vmatmul.mubr.bf16.gmra.mrb[0].mxu0 %v8176
        %v9312 = vpop.f32.mrb[0].mxu0
        %v9313 = vadd.f32 0.0, %v9312
        %v9314 = vpop.f32.mrb[0].mxu0
        %v9315 = vpop.f32.mrb[0].mxu0
        %v9316 = vadd.f32 0.0, %v9315
        %v9317 = vpop.f32.mrb[0].mxu0
        %9318 = vmatprep.mubr.bf16.mxu0 %v8181
        %9319 = vmatmul.mubr.bf16.gmra.mrb[0].mxu0 %v8180
        %v9320 = vpop.f32.mrb[0].mxu0
        %v9321 = vadd.f32 0.0, %v9320
        %v9322 = vpop.f32.mrb[0].mxu0
        %v9323 = vpop.f32.mrb[0].mxu0
        %v9324 = vadd.f32 0.0, %v9323
        %v9325 = vpop.f32.mrb[0].mxu0
        %9326 = vmatprep.mubr.bf16.mxu0 %v8185
        %9327 = vmatmul.mubr.bf16.gmra.mrb[0].mxu0 %v8184
        %v9328 = vpop.f32.mrb[0].mxu0
        %v9329 = vadd.f32 0.0, %v9328
        %v9330 = vpop.f32.mrb[0].mxu0
        %v9331 = vpop.f32.mrb[0].mxu0
        %v9332 = vadd.f32 0.0, %v9331
        %v9333 = vpop.f32.mrb[0].mxu0
        %9334 = vmatprep.mubr.bf16.mxu0 %v8189
        %9335 = vmatmul.mubr.bf16.gmra.mrb[0].mxu0 %v8188
        %v9336 = vpop.f32.mrb[0].mxu0
        %v9337 = vadd.f32 0.0, %v9336
        %v9338 = vpop.f32.mrb[0].mxu0
        %v9339 = vpop.f32.mrb[0].mxu0
        %v9340 = vadd.f32 0.0, %v9339
        %v9341 = vpop.f32.mrb[0].mxu0
        %9342 = vmatprep.mubr.bf16.mxu0 %v8193
        %9343 = vmatmul.mubr.bf16.gmra.mrb[0].mxu0 %v8192
        %v9344 = vpop.f32.mrb[0].mxu0
        %v9345 = vadd.f32 0.0, %v9344
        %v9346 = vpop.f32.mrb[0].mxu0
        %v9347 = vpop.f32.mrb[0].mxu0
        %v9348 = vadd.f32 0.0, %v9347
        %v9349 = vpop.f32.mrb[0].mxu0
        %9350 = vmatprep.mubr.bf16.mxu0 %v8197
        %9351 = vmatmul.mubr.bf16.gmra.mrb[0].mxu0 %v8196
        %v9352 = vpop.f32.mrb[0].mxu0
        %v9353 = vadd.f32 0.0, %v9352
        %v9354 = vpop.f32.mrb[0].mxu0
        %v9355 = vpop.f32.mrb[0].mxu0
        %v9356 = vadd.f32 0.0, %v9355
        %v9357 = vpop.f32.mrb[0].mxu0
        %9358 = vmatprep.mubr.bf16.mxu0 %v8201
        %9359 = vmatmul.mubr.bf16.gmra.mrb[0].mxu0 %v8200
        %v9360 = vpop.f32.mrb[0].mxu0
        %v9361 = vadd.f32 0.0, %v9360
        %v9362 = vpop.f32.mrb[0].mxu0
        %v9363 = vpop.f32.mrb[0].mxu0
        %v9364 = vadd.f32 0.0, %v9363
        %v9365 = vpop.f32.mrb[0].mxu0
        %9366 = vmatprep.mubr.bf16.mxu0 %v8205
        %9367 = vmatmul.mubr.bf16.gmra.mrb[0].mxu0 %v8204
        %v9368 = vpop.f32.mrb[0].mxu0
        %v9369 = vadd.f32 0.0, %v9368
        %v9370 = vpop.f32.mrb[0].mxu0
        %v9371 = vpop.f32.mrb[0].mxu0
        %v9372 = vadd.f32 0.0, %v9371
        %v9373 = vpop.f32.mrb[0].mxu0
        %9374 = vmatprep.mubr.bf16.mxu0 %v8209
        %9375 = vmatmul.mubr.bf16.gmra.mrb[0].mxu0 %v8208
        %v9376 = vpop.f32.mrb[0].mxu0
        %v9377 = vadd.f32 0.0, %v9376
        %v9378 = vpop.f32.mrb[0].mxu0
        %v9379 = vpop.f32.mrb[0].mxu0
        %v9380 = vadd.f32 0.0, %v9379
        %v9381 = vpop.f32.mrb[0].mxu0
        %9382 = vmatprep.mubr.bf16.mxu0 %v8213
        %9383 = vmatmul.mubr.bf16.gmra.mrb[0].mxu0 %v8212
        %v9384 = vpop.f32.mrb[0].mxu0
        %v9385 = vadd.f32 0.0, %v9384
        %v9386 = vpop.f32.mrb[0].mxu0
        %v9387 = vpop.f32.mrb[0].mxu0
        %v9388 = vadd.f32 0.0, %v9387
        %v9389 = vpop.f32.mrb[0].mxu0
        %9390 = vmatprep.mubr.bf16.mxu0 %v8217
        %9391 = vmatmul.mubr.bf16.gmra.mrb[0].mxu0 %v8216
        %v9392 = vpop.f32.mrb[0].mxu0
        %v9393 = vadd.f32 0.0, %v9392
        %v9394 = vpop.f32.mrb[0].mxu0
        %v9395 = vpop.f32.mrb[0].mxu0
        %v9396 = vadd.f32 0.0, %v9395
        %v9397 = vpop.f32.mrb[0].mxu0
        %9398 = vmatprep.mubr.bf16.mxu0 %v8221
        %9399 = vmatmul.mubr.bf16.gmra.mrb[0].mxu0 %v8220
        %v9400 = vpop.f32.mrb[0].mxu0
        %v9401 = vadd.f32 0.0, %v9400
        %v9402 = vpop.f32.mrb[0].mxu0
        %v9403 = vpop.f32.mrb[0].mxu0
        %v9404 = vadd.f32 0.0, %v9403
        %v9405 = vpop.f32.mrb[0].mxu0
        %9406 = vmatprep.mubr.bf16.mxu0 %v8225
        %9407 = vmatmul.mubr.bf16.gmra.mrb[0].mxu0 %v8224
        %v9408 = vpop.f32.mrb[0].mxu0
        %v9409 = vadd.f32 0.0, %v9408
        %v9410 = vpop.f32.mrb[0].mxu0
        %v9411 = vpop.f32.mrb[0].mxu0
        %v9412 = vadd.f32 0.0, %v9411
        %v9413 = vpop.f32.mrb[0].mxu0
        %9414 = vdwg.mxu0
        %9415 = vmatprep.subr.bf16.mxu0 0
        %9416 = vmatpush1.bf16.msra.mxu0 %v8726
        %9417 = vmatprep.subr.bf16.mxu0 0
        %9418 = vmatpush1.bf16.msra.mxu0 %v8729
        %9419 = vmatprep.subr.bf16.mxu0 0
        %9420 = vmatpush1.bf16.msra.mxu0 %v8732
        %9421 = vmatprep.subr.bf16.mxu0 0
        %9422 = vmatpush1.bf16.msra.mxu0 %v8735
        %9423 = vmatprep.subr.bf16.mxu0 0
        %9424 = vmatpush1.bf16.msra.mxu0 %v8738
        %9425 = vmatprep.subr.bf16.mxu0 0
        %9426 = vmatpush1.bf16.msra.mxu0 %v8741
        %9427 = vmatprep.subr.bf16.mxu0 0
        %9428 = vmatpush1.bf16.msra.mxu0 %v8744
        %9429 = vmatprep.subr.bf16.mxu0 0
        %9430 = vmatpush1.bf16.msra.mxu0 %v8747
        %9431 = vmatprep.subr.bf16.mxu0 0
        %9432 = vmatpush1.bf16.msra.mxu0 %v8750
        %9433 = vmatprep.subr.bf16.mxu0 0
        %9434 = vmatpush1.bf16.msra.mxu0 %v8753
        %9435 = vmatprep.subr.bf16.mxu0 0
        %9436 = vmatpush1.bf16.msra.mxu0 %v8756
        %9437 = vmatprep.subr.bf16.mxu0 0
        %9438 = vmatpush1.bf16.msra.mxu0 %v8759
        %9439 = vmatprep.subr.bf16.mxu0 0
        %9440 = vmatpush1.bf16.msra.mxu0 %v8762
        %9441 = vmatprep.subr.bf16.mxu0 0
        %9442 = vmatpush1.bf16.msra.mxu0 %v8765
        %9443 = vmatprep.subr.bf16.mxu0 0
        %9444 = vmatpush1.bf16.msra.mxu0 %v8768
        %9445 = vmatprep.subr.bf16.mxu0 0
        %9446 = vmatpush1.bf16.msra.mxu0 %v8771
        %9447 = vmatprep.mubr.bf16.mxu0 %v8167
        %9448 = vmatmul.mubr.bf16.gmra.mrb[0].mxu0 %v8166
        %v9449 = vpop.f32.mrb[0].mxu0
        %v9450 = vadd.f32 %v9289, %v9449
        %v9451 = vpop.f32.mrb[0].mxu0
        %v9452 = vpop.f32.mrb[0].mxu0
        %v9453 = vadd.f32 %v9292, %v9452
        %v9454 = vpop.f32.mrb[0].mxu0
        %9455 = vmatprep.mubr.bf16.mxu0 %v8171
        %9456 = vmatmul.mubr.bf16.gmra.mrb[0].mxu0 %v8170
        %v9457 = vpop.f32.mrb[0].mxu0
        %v9458 = vadd.f32 %v9297, %v9457
        %v9459 = vpop.f32.mrb[0].mxu0
        %v9460 = vpop.f32.mrb[0].mxu0
        %v9461 = vadd.f32 %v9300, %v9460
        %v9462 = vpop.f32.mrb[0].mxu0
        %9463 = vmatprep.mubr.bf16.mxu0 %v8175
        %9464 = vmatmul.mubr.bf16.gmra.mrb[0].mxu0 %v8174
        %v9465 = vpop.f32.mrb[0].mxu0
        %v9466 = vadd.f32 %v9305, %v9465
        %v9467 = vpop.f32.mrb[0].mxu0
        %v9468 = vpop.f32.mrb[0].mxu0
        %v9469 = vadd.f32 %v9308, %v9468
        %v9470 = vpop.f32.mrb[0].mxu0
        %9471 = vmatprep.mubr.bf16.mxu0 %v8179
        %9472 = vmatmul.mubr.bf16.gmra.mrb[0].mxu0 %v8178
        %v9473 = vpop.f32.mrb[0].mxu0
        %v9474 = vadd.f32 %v9313, %v9473
        %v9475 = vpop.f32.mrb[0].mxu0
        %v9476 = vpop.f32.mrb[0].mxu0
        %v9477 = vadd.f32 %v9316, %v9476
        %v9478 = vpop.f32.mrb[0].mxu0
        %9479 = vmatprep.mubr.bf16.mxu0 %v8183
        %9480 = vmatmul.mubr.bf16.gmra.mrb[0].mxu0 %v8182
        %v9481 = vpop.f32.mrb[0].mxu0
        %v9482 = vadd.f32 %v9321, %v9481
        %v9483 = vpop.f32.mrb[0].mxu0
        %v9484 = vpop.f32.mrb[0].mxu0
        %v9485 = vadd.f32 %v9324, %v9484
        %v9486 = vpop.f32.mrb[0].mxu0
        %9487 = vmatprep.mubr.bf16.mxu0 %v8187
        %9488 = vmatmul.mubr.bf16.gmra.mrb[0].mxu0 %v8186
        %v9489 = vpop.f32.mrb[0].mxu0
        %v9490 = vadd.f32 %v9329, %v9489
        %v9491 = vpop.f32.mrb[0].mxu0
        %v9492 = vpop.f32.mrb[0].mxu0
        %v9493 = vadd.f32 %v9332, %v9492
        %v9494 = vpop.f32.mrb[0].mxu0
        %9495 = vmatprep.mubr.bf16.mxu0 %v8191
        %9496 = vmatmul.mubr.bf16.gmra.mrb[0].mxu0 %v8190
        %v9497 = vpop.f32.mrb[0].mxu0
        %v9498 = vadd.f32 %v9337, %v9497
        %v9499 = vpop.f32.mrb[0].mxu0
        %v9500 = vpop.f32.mrb[0].mxu0
        %v9501 = vadd.f32 %v9340, %v9500
        %v9502 = vpop.f32.mrb[0].mxu0
        %9503 = vmatprep.mubr.bf16.mxu0 %v8195
        %9504 = vmatmul.mubr.bf16.gmra.mrb[0].mxu0 %v8194
        %v9505 = vpop.f32.mrb[0].mxu0
        %v9506 = vadd.f32 %v9345, %v9505
        %v9507 = vpop.f32.mrb[0].mxu0
        %v9508 = vpop.f32.mrb[0].mxu0
        %v9509 = vadd.f32 %v9348, %v9508
        %v9510 = vpop.f32.mrb[0].mxu0
        %9511 = vmatprep.mubr.bf16.mxu0 %v8199
        %9512 = vmatmul.mubr.bf16.gmra.mrb[0].mxu0 %v8198
        %v9513 = vpop.f32.mrb[0].mxu0
        %v9514 = vadd.f32 %v9353, %v9513
        %v9515 = vpop.f32.mrb[0].mxu0
        %v9516 = vpop.f32.mrb[0].mxu0
        %v9517 = vadd.f32 %v9356, %v9516
        %v9518 = vpop.f32.mrb[0].mxu0
        %9519 = vmatprep.mubr.bf16.mxu0 %v8203
        %9520 = vmatmul.mubr.bf16.gmra.mrb[0].mxu0 %v8202
        %v9521 = vpop.f32.mrb[0].mxu0
        %v9522 = vadd.f32 %v9361, %v9521
        %v9523 = vpop.f32.mrb[0].mxu0
        %v9524 = vpop.f32.mrb[0].mxu0
        %v9525 = vadd.f32 %v9364, %v9524
        %v9526 = vpop.f32.mrb[0].mxu0
        %9527 = vmatprep.mubr.bf16.mxu0 %v8207
        %9528 = vmatmul.mubr.bf16.gmra.mrb[0].mxu0 %v8206
        %v9529 = vpop.f32.mrb[0].mxu0
        %v9530 = vadd.f32 %v9369, %v9529
        %v9531 = vpop.f32.mrb[0].mxu0
        %v9532 = vpop.f32.mrb[0].mxu0
        %v9533 = vadd.f32 %v9372, %v9532
        %v9534 = vpop.f32.mrb[0].mxu0
        %9535 = vmatprep.mubr.bf16.mxu0 %v8211
        %9536 = vmatmul.mubr.bf16.gmra.mrb[0].mxu0 %v8210
        %v9537 = vpop.f32.mrb[0].mxu0
        %v9538 = vadd.f32 %v9377, %v9537
        %v9539 = vpop.f32.mrb[0].mxu0
        %v9540 = vpop.f32.mrb[0].mxu0
        %v9541 = vadd.f32 %v9380, %v9540
        %v9542 = vpop.f32.mrb[0].mxu0
        %9543 = vmatprep.mubr.bf16.mxu0 %v8215
        %9544 = vmatmul.mubr.bf16.gmra.mrb[0].mxu0 %v8214
        %v9545 = vpop.f32.mrb[0].mxu0
        %v9546 = vadd.f32 %v9385, %v9545
        %v9547 = vpop.f32.mrb[0].mxu0
        %v9548 = vpop.f32.mrb[0].mxu0
        %v9549 = vadd.f32 %v9388, %v9548
        %v9550 = vpop.f32.mrb[0].mxu0
        %9551 = vmatprep.mubr.bf16.mxu0 %v8219
        %9552 = vmatmul.mubr.bf16.gmra.mrb[0].mxu0 %v8218
        %v9553 = vpop.f32.mrb[0].mxu0
        %v9554 = vadd.f32 %v9393, %v9553
        %v9555 = vpop.f32.mrb[0].mxu0
        %v9556 = vpop.f32.mrb[0].mxu0
        %v9557 = vadd.f32 %v9396, %v9556
        %v9558 = vpop.f32.mrb[0].mxu0
        %9559 = vmatprep.mubr.bf16.mxu0 %v8223
        %9560 = vmatmul.mubr.bf16.gmra.mrb[0].mxu0 %v8222
        %v9561 = vpop.f32.mrb[0].mxu0
        %v9562 = vadd.f32 %v9401, %v9561
        %v9563 = vpop.f32.mrb[0].mxu0
        %v9564 = vpop.f32.mrb[0].mxu0
        %v9565 = vadd.f32 %v9404, %v9564
        %v9566 = vpop.f32.mrb[0].mxu0
        %9567 = vmatprep.mubr.bf16.mxu0 %v8227
        %9568 = vmatmul.mubr.bf16.gmra.mrb[0].mxu0 %v8226
        %v9569 = vpop.f32.mrb[0].mxu0
        %v9570 = vadd.f32 %v9409, %v9569
        %v9571 = vpop.f32.mrb[0].mxu0
        %v9572 = vpop.f32.mrb[0].mxu0
        %v9573 = vadd.f32 %v9412, %v9572
        %v9574 = vpop.f32.mrb[0].mxu0
        %9575 = vdwg.mxu0
        %v9576 = vld [vmem:[#allocation2] sm:$0xff]
        %v9577 = vld [vmem:[#allocation2 + $0x8] sm:$0xff]
        %v9578 = vld [vmem:[#allocation2 + $0x10] sm:$0xff]
        %v9579 = vld [vmem:[#allocation2 + $0x18] sm:$0xff]
        %v9580 = vld [vmem:[#allocation2 + $0x20] sm:$0xff]
        %v9581 = vld [vmem:[#allocation2 + $0x28] sm:$0xff]
        %v9582 = vld [vmem:[#allocation2 + $0x30] sm:$0xff]
        %v9583 = vld [vmem:[#allocation2 + $0x38] sm:$0xff]
        %v9584 = vld [vmem:[#allocation2 + $0x40] sm:$0xff]
        %v9585 = vld [vmem:[#allocation2 + $0x48] sm:$0xff]
        %v9586 = vld [vmem:[#allocation2 + $0x50] sm:$0xff]
        %v9587 = vld [vmem:[#allocation2 + $0x58] sm:$0xff]
        %v9588 = vld [vmem:[#allocation2 + $0x60] sm:$0xff]
        %v9589 = vld [vmem:[#allocation2 + $0x68] sm:$0xff]
        %v9590 = vld [vmem:[#allocation2 + $0x70] sm:$0xff]
        %v9591 = vld [vmem:[#allocation2 + $0x78] sm:$0xff]
        %v9592 = vld [vmem:[#allocation2 + $0x80] sm:$0xff]
        %v9593 = vld [vmem:[#allocation2 + $0x88] sm:$0xff]
        %v9594 = vld [vmem:[#allocation2 + $0x90] sm:$0xff]
        %v9595 = vld [vmem:[#allocation2 + $0x98] sm:$0xff]
        %v9596 = vld [vmem:[#allocation2 + $0xa0] sm:$0xff]
        %v9597 = vld [vmem:[#allocation2 + $0xa8] sm:$0xff]
        %v9598 = vld [vmem:[#allocation2 + $0xb0] sm:$0xff]
        %v9599 = vld [vmem:[#allocation2 + $0xb8] sm:$0xff]
        %v9600 = vld [vmem:[#allocation2 + $0xc0] sm:$0xff]
        %v9601 = vld [vmem:[#allocation2 + $0xc8] sm:$0xff]
        %v9602 = vld [vmem:[#allocation2 + $0xd0] sm:$0xff]
        %v9603 = vld [vmem:[#allocation2 + $0xd8] sm:$0xff]
        %v9604 = vld [vmem:[#allocation2 + $0xe0] sm:$0xff]
        %v9605 = vld [vmem:[#allocation2 + $0xe8] sm:$0xff]
        %v9606 = vld [vmem:[#allocation2 + $0xf0] sm:$0xff]
        %v9607 = vld [vmem:[#allocation2 + $0xf8] sm:$0xff]
        %v9608 = vld [vmem:[#allocation2 + $0x100] sm:$0xff]
        %v9609 = vld [vmem:[#allocation2 + $0x108] sm:$0xff]
        %v9610 = vld [vmem:[#allocation2 + $0x110] sm:$0xff]
        %v9611 = vld [vmem:[#allocation2 + $0x118] sm:$0xff]
        %v9612 = vld [vmem:[#allocation2 + $0x120] sm:$0xff]
        %v9613 = vld [vmem:[#allocation2 + $0x128] sm:$0xff]
        %v9614 = vld [vmem:[#allocation2 + $0x130] sm:$0xff]
        %v9615 = vld [vmem:[#allocation2 + $0x138] sm:$0xff]
        %v9616 = vld [vmem:[#allocation2 + $0x140] sm:$0xff]
        %v9617 = vld [vmem:[#allocation2 + $0x148] sm:$0xff]
        %v9618 = vld [vmem:[#allocation2 + $0x150] sm:$0xff]
        %v9619 = vld [vmem:[#allocation2 + $0x158] sm:$0xff]
        %v9620 = vld [vmem:[#allocation2 + $0x160] sm:$0xff]
        %v9621 = vld [vmem:[#allocation2 + $0x168] sm:$0xff]
        %v9622 = vld [vmem:[#allocation2 + $0x170] sm:$0xff]
        %v9623 = vld [vmem:[#allocation2 + $0x178] sm:$0xff]
        %v9624 = vld [vmem:[#allocation2 + $0x180] sm:$0xff]
        %v9625 = vld [vmem:[#allocation2 + $0x188] sm:$0xff]
        %v9626 = vld [vmem:[#allocation2 + $0x190] sm:$0xff]
        %v9627 = vld [vmem:[#allocation2 + $0x198] sm:$0xff]
        %v9628 = vld [vmem:[#allocation2 + $0x1a0] sm:$0xff]
        %v9629 = vld [vmem:[#allocation2 + $0x1a8] sm:$0xff]
        %v9630 = vld [vmem:[#allocation2 + $0x1b0] sm:$0xff]
        %v9631 = vld [vmem:[#allocation2 + $0x1b8] sm:$0xff]
        %v9632 = vld [vmem:[#allocation2 + $0x1c0] sm:$0xff]
        %v9633 = vld [vmem:[#allocation2 + $0x1c8] sm:$0xff]
        %v9634 = vld [vmem:[#allocation2 + $0x1d0] sm:$0xff]
        %v9635 = vld [vmem:[#allocation2 + $0x1d8] sm:$0xff]
        %v9636 = vld [vmem:[#allocation2 + $0x1e0] sm:$0xff]
        %v9637 = vld [vmem:[#allocation2 + $0x1e8] sm:$0xff]
        %v9638 = vld [vmem:[#allocation2 + $0x1f0] sm:$0xff]
        %v9639 = vld [vmem:[#allocation2 + $0x1f8] sm:$0xff]
        %v9640 = vld [vmem:[#allocation2 + $0x200] sm:$0xff]
        %v9641 = vld [vmem:[#allocation2 + $0x208] sm:$0xff]
        %v9642 = vld [vmem:[#allocation2 + $0x210] sm:$0xff]
        %v9643 = vld [vmem:[#allocation2 + $0x218] sm:$0xff]
        %v9644 = vld [vmem:[#allocation2 + $0x220] sm:$0xff]
        %v9645 = vld [vmem:[#allocation2 + $0x228] sm:$0xff]
        %v9646 = vld [vmem:[#allocation2 + $0x230] sm:$0xff]
        %v9647 = vld [vmem:[#allocation2 + $0x238] sm:$0xff]
        %v9648 = vld [vmem:[#allocation2 + $0x240] sm:$0xff]
        %v9649 = vld [vmem:[#allocation2 + $0x248] sm:$0xff]
        %v9650 = vld [vmem:[#allocation2 + $0x250] sm:$0xff]
        %v9651 = vld [vmem:[#allocation2 + $0x258] sm:$0xff]
        %v9652 = vld [vmem:[#allocation2 + $0x260] sm:$0xff]
        %v9653 = vld [vmem:[#allocation2 + $0x268] sm:$0xff]
        %v9654 = vld [vmem:[#allocation2 + $0x270] sm:$0xff]
        %v9655 = vld [vmem:[#allocation2 + $0x278] sm:$0xff]
        %v9656 = vld [vmem:[#allocation2 + $0x280] sm:$0xff]
        %v9657 = vld [vmem:[#allocation2 + $0x288] sm:$0xff]
        %v9658 = vld [vmem:[#allocation2 + $0x290] sm:$0xff]
        %v9659 = vld [vmem:[#allocation2 + $0x298] sm:$0xff]
        %v9660 = vld [vmem:[#allocation2 + $0x2a0] sm:$0xff]
        %v9661 = vld [vmem:[#allocation2 + $0x2a8] sm:$0xff]
        %v9662 = vld [vmem:[#allocation2 + $0x2b0] sm:$0xff]
        %v9663 = vld [vmem:[#allocation2 + $0x2b8] sm:$0xff]
        %v9664 = vld [vmem:[#allocation2 + $0x2c0] sm:$0xff]
        %v9665 = vld [vmem:[#allocation2 + $0x2c8] sm:$0xff]
        %v9666 = vld [vmem:[#allocation2 + $0x2d0] sm:$0xff]
        %v9667 = vld [vmem:[#allocation2 + $0x2d8] sm:$0xff]
        %v9668 = vld [vmem:[#allocation2 + $0x2e0] sm:$0xff]
        %v9669 = vld [vmem:[#allocation2 + $0x2e8] sm:$0xff]
        %v9670 = vld [vmem:[#allocation2 + $0x2f0] sm:$0xff]
        %v9671 = vld [vmem:[#allocation2 + $0x2f8] sm:$0xff]
        %v9672 = vadd.f32 %v9576, %v9096
        %v9673 = vadd.f32 %v9577, %v9098
        %v9674 = vadd.f32 %v9578, %v9450
        %v9675 = vadd.f32 %v9579, %v9100
        %v9676 = vadd.f32 %v9580, %v9102
        %v9677 = vadd.f32 %v9581, %v9453
        %v9678 = vadd.f32 %v9582, %v9106
        %v9679 = vadd.f32 %v9583, %v9108
        %v9680 = vadd.f32 %v9584, %v9458
        %v9681 = vadd.f32 %v9585, %v9110
        %v9682 = vadd.f32 %v9586, %v9112
        %v9683 = vadd.f32 %v9587, %v9461
        %v9684 = vadd.f32 %v9588, %v9116
        %v9685 = vadd.f32 %v9589, %v9118
        %v9686 = vadd.f32 %v9590, %v9466
        %v9687 = vadd.f32 %v9591, %v9120
        %v9688 = vadd.f32 %v9592, %v9122
        %v9689 = vadd.f32 %v9593, %v9469
        %v9690 = vadd.f32 %v9594, %v9126
        %v9691 = vadd.f32 %v9595, %v9128
        %v9692 = vadd.f32 %v9596, %v9474
        %v9693 = vadd.f32 %v9597, %v9130
        %v9694 = vadd.f32 %v9598, %v9132
        %v9695 = vadd.f32 %v9599, %v9477
        %v9696 = vadd.f32 %v9600, %v9136
        %v9697 = vadd.f32 %v9601, %v9138
        %v9698 = vadd.f32 %v9602, %v9482
        %v9699 = vadd.f32 %v9603, %v9140
        %v9700 = vadd.f32 %v9604, %v9142
        %v9701 = vadd.f32 %v9605, %v9485
        %v9702 = vadd.f32 %v9606, %v9146
        %v9703 = vadd.f32 %v9607, %v9148
        %v9704 = vadd.f32 %v9608, %v9490
        %v9705 = vadd.f32 %v9609, %v9150
        %v9706 = vadd.f32 %v9610, %v9152
        %v9707 = vadd.f32 %v9611, %v9493
        %v9708 = vadd.f32 %v9612, %v9156
        %v9709 = vadd.f32 %v9613, %v9158
        %v9710 = vadd.f32 %v9614, %v9498
        %v9711 = vadd.f32 %v9615, %v9160
        %v9712 = vadd.f32 %v9616, %v9162
        %v9713 = vadd.f32 %v9617, %v9501
        %v9714 = vadd.f32 %v9618, %v9166
        %v9715 = vadd.f32 %v9619, %v9168
        %v9716 = vadd.f32 %v9620, %v9506
        %v9717 = vadd.f32 %v9621, %v9170
        %v9718 = vadd.f32 %v9622, %v9172
        %v9719 = vadd.f32 %v9623, %v9509
        %v9720 = vadd.f32 %v9624, %v9176
        %v9721 = vadd.f32 %v9625, %v9178
        %v9722 = vadd.f32 %v9626, %v9514
        %v9723 = vadd.f32 %v9627, %v9180
        %v9724 = vadd.f32 %v9628, %v9182
        %v9725 = vadd.f32 %v9629, %v9517
        %v9726 = vadd.f32 %v9630, %v9186
        %v9727 = vadd.f32 %v9631, %v9188
        %v9728 = vadd.f32 %v9632, %v9522
        %v9729 = vadd.f32 %v9633, %v9190
        %v9730 = vadd.f32 %v9634, %v9192
        %v9731 = vadd.f32 %v9635, %v9525
        %v9732 = vadd.f32 %v9636, %v9196
        %v9733 = vadd.f32 %v9637, %v9198
        %v9734 = vadd.f32 %v9638, %v9530
        %v9735 = vadd.f32 %v9639, %v9200
        %v9736 = vadd.f32 %v9640, %v9202
        %v9737 = vadd.f32 %v9641, %v9533
        %v9738 = vadd.f32 %v9642, %v9206
        %v9739 = vadd.f32 %v9643, %v9208
        %v9740 = vadd.f32 %v9644, %v9538
        %v9741 = vadd.f32 %v9645, %v9210
        %v9742 = vadd.f32 %v9646, %v9212
        %v9743 = vadd.f32 %v9647, %v9541
        %v9744 = vadd.f32 %v9648, %v9216
        %v9745 = vadd.f32 %v9649, %v9218
        %v9746 = vadd.f32 %v9650, %v9546
        %v9747 = vadd.f32 %v9651, %v9220
        %v9748 = vadd.f32 %v9652, %v9222
        %v9749 = vadd.f32 %v9653, %v9549
        %v9750 = vadd.f32 %v9654, %v9226
        %v9751 = vadd.f32 %v9655, %v9228
        %v9752 = vadd.f32 %v9656, %v9554
        %v9753 = vadd.f32 %v9657, %v9230
        %v9754 = vadd.f32 %v9658, %v9232
        %v9755 = vadd.f32 %v9659, %v9557
        %v9756 = vadd.f32 %v9660, %v9236
        %v9757 = vadd.f32 %v9661, %v9238
        %v9758 = vadd.f32 %v9662, %v9562
        %v9759 = vadd.f32 %v9663, %v9240
        %v9760 = vadd.f32 %v9664, %v9242
        %v9761 = vadd.f32 %v9665, %v9565
        %v9762 = vadd.f32 %v9666, %v9246
        %v9763 = vadd.f32 %v9667, %v9248
        %v9764 = vadd.f32 %v9668, %v9570
        %v9765 = vadd.f32 %v9669, %v9250
        %v9766 = vadd.f32 %v9670, %v9252
        %v9767 = vadd.f32 %v9671, %v9573
        %9768 = vst [vmem:[#allocation2] sm:$0xff] %v9672
        %9769 = vst [vmem:[#allocation2 + $0x8] sm:$0xff] %v9673
        %9770 = vst [vmem:[#allocation2 + $0x10] sm:$0xff] %v9674
        %9771 = vst [vmem:[#allocation2 + $0x18] sm:$0xff] %v9675
        %9772 = vst [vmem:[#allocation2 + $0x20] sm:$0xff] %v9676
        %9773 = vst [vmem:[#allocation2 + $0x28] sm:$0xff] %v9677
        %9774 = vst [vmem:[#allocation2 + $0x30] sm:$0xff] %v9678
        %9775 = vst [vmem:[#allocation2 + $0x38] sm:$0xff] %v9679
        %9776 = vst [vmem:[#allocation2 + $0x40] sm:$0xff] %v9680
        %9777 = vst [vmem:[#allocation2 + $0x48] sm:$0xff] %v9681
        %9778 = vst [vmem:[#allocation2 + $0x50] sm:$0xff] %v9682
        %9779 = vst [vmem:[#allocation2 + $0x58] sm:$0xff] %v9683
        %9780 = vst [vmem:[#allocation2 + $0x60] sm:$0xff] %v9684
        %9781 = vst [vmem:[#allocation2 + $0x68] sm:$0xff] %v9685
        %9782 = vst [vmem:[#allocation2 + $0x70] sm:$0xff] %v9686
        %9783 = vst [vmem:[#allocation2 + $0x78] sm:$0xff] %v9687
        %9784 = vst [vmem:[#allocation2 + $0x80] sm:$0xff] %v9688
        %9785 = vst [vmem:[#allocation2 + $0x88] sm:$0xff] %v9689
        %9786 = vst [vmem:[#allocation2 + $0x90] sm:$0xff] %v9690
        %9787 = vst [vmem:[#allocation2 + $0x98] sm:$0xff] %v9691
        %9788 = vst [vmem:[#allocation2 + $0xa0] sm:$0xff] %v9692
        %9789 = vst [vmem:[#allocation2 + $0xa8] sm:$0xff] %v9693
        %9790 = vst [vmem:[#allocation2 + $0xb0] sm:$0xff] %v9694
        %9791 = vst [vmem:[#allocation2 + $0xb8] sm:$0xff] %v9695
        %9792 = vst [vmem:[#allocation2 + $0xc0] sm:$0xff] %v9696
        %9793 = vst [vmem:[#allocation2 + $0xc8] sm:$0xff] %v9697
        %9794 = vst [vmem:[#allocation2 + $0xd0] sm:$0xff] %v9698
        %9795 = vst [vmem:[#allocation2 + $0xd8] sm:$0xff] %v9699
        %9796 = vst [vmem:[#allocation2 + $0xe0] sm:$0xff] %v9700
        %9797 = vst [vmem:[#allocation2 + $0xe8] sm:$0xff] %v9701
        %9798 = vst [vmem:[#allocation2 + $0xf0] sm:$0xff] %v9702
        %9799 = vst [vmem:[#allocation2 + $0xf8] sm:$0xff] %v9703
        %9800 = vst [vmem:[#allocation2 + $0x100] sm:$0xff] %v9704
        %9801 = vst [vmem:[#allocation2 + $0x108] sm:$0xff] %v9705
        %9802 = vst [vmem:[#allocation2 + $0x110] sm:$0xff] %v9706
        %9803 = vst [vmem:[#allocation2 + $0x118] sm:$0xff] %v9707
        %9804 = vst [vmem:[#allocation2 + $0x120] sm:$0xff] %v9708
        %9805 = vst [vmem:[#allocation2 + $0x128] sm:$0xff] %v9709
        %9806 = vst [vmem:[#allocation2 + $0x130] sm:$0xff] %v9710
        %9807 = vst [vmem:[#allocation2 + $0x138] sm:$0xff] %v9711
        %9808 = vst [vmem:[#allocation2 + $0x140] sm:$0xff] %v9712
        %9809 = vst [vmem:[#allocation2 + $0x148] sm:$0xff] %v9713
        %9810 = vst [vmem:[#allocation2 + $0x150] sm:$0xff] %v9714
        %9811 = vst [vmem:[#allocation2 + $0x158] sm:$0xff] %v9715
        %9812 = vst [vmem:[#allocation2 + $0x160] sm:$0xff] %v9716
        %9813 = vst [vmem:[#allocation2 + $0x168] sm:$0xff] %v9717
        %9814 = vst [vmem:[#allocation2 + $0x170] sm:$0xff] %v9718
        %9815 = vst [vmem:[#allocation2 + $0x178] sm:$0xff] %v9719
        %9816 = vst [vmem:[#allocation2 + $0x180] sm:$0xff] %v9720
        %9817 = vst [vmem:[#allocation2 + $0x188] sm:$0xff] %v9721
        %9818 = vst [vmem:[#allocation2 + $0x190] sm:$0xff] %v9722
        %9819 = vst [vmem:[#allocation2 + $0x198] sm:$0xff] %v9723
        %9820 = vst [vmem:[#allocation2 + $0x1a0] sm:$0xff] %v9724
        %9821 = vst [vmem:[#allocation2 + $0x1a8] sm:$0xff] %v9725
        %9822 = vst [vmem:[#allocation2 + $0x1b0] sm:$0xff] %v9726
        %9823 = vst [vmem:[#allocation2 + $0x1b8] sm:$0xff] %v9727
        %9824 = vst [vmem:[#allocation2 + $0x1c0] sm:$0xff] %v9728
        %9825 = vst [vmem:[#allocation2 + $0x1c8] sm:$0xff] %v9729
        %9826 = vst [vmem:[#allocation2 + $0x1d0] sm:$0xff] %v9730
        %9827 = vst [vmem:[#allocation2 + $0x1d8] sm:$0xff] %v9731
        %9828 = vst [vmem:[#allocation2 + $0x1e0] sm:$0xff] %v9732
        %9829 = vst [vmem:[#allocation2 + $0x1e8] sm:$0xff] %v9733
        %9830 = vst [vmem:[#allocation2 + $0x1f0] sm:$0xff] %v9734
        %9831 = vst [vmem:[#allocation2 + $0x1f8] sm:$0xff] %v9735
        %9832 = vst [vmem:[#allocation2 + $0x200] sm:$0xff] %v9736
        %9833 = vst [vmem:[#allocation2 + $0x208] sm:$0xff] %v9737
        %9834 = vst [vmem:[#allocation2 + $0x210] sm:$0xff] %v9738
        %9835 = vst [vmem:[#allocation2 + $0x218] sm:$0xff] %v9739
        %9836 = vst [vmem:[#allocation2 + $0x220] sm:$0xff] %v9740
        %9837 = vst [vmem:[#allocation2 + $0x228] sm:$0xff] %v9741
        %9838 = vst [vmem:[#allocation2 + $0x230] sm:$0xff] %v9742
        %9839 = vst [vmem:[#allocation2 + $0x238] sm:$0xff] %v9743
        %9840 = vst [vmem:[#allocation2 + $0x240] sm:$0xff] %v9744
        %9841 = vst [vmem:[#allocation2 + $0x248] sm:$0xff] %v9745
        %9842 = vst [vmem:[#allocation2 + $0x250] sm:$0xff] %v9746
        %9843 = vst [vmem:[#allocation2 + $0x258] sm:$0xff] %v9747
        %9844 = vst [vmem:[#allocation2 + $0x260] sm:$0xff] %v9748
        %9845 = vst [vmem:[#allocation2 + $0x268] sm:$0xff] %v9749
        %9846 = vst [vmem:[#allocation2 + $0x270] sm:$0xff] %v9750
        %9847 = vst [vmem:[#allocation2 + $0x278] sm:$0xff] %v9751
        %9848 = vst [vmem:[#allocation2 + $0x280] sm:$0xff] %v9752
        %9849 = vst [vmem:[#allocation2 + $0x288] sm:$0xff] %v9753
        %9850 = vst [vmem:[#allocation2 + $0x290] sm:$0xff] %v9754
        %9851 = vst [vmem:[#allocation2 + $0x298] sm:$0xff] %v9755
        %9852 = vst [vmem:[#allocation2 + $0x2a0] sm:$0xff] %v9756
        %9853 = vst [vmem:[#allocation2 + $0x2a8] sm:$0xff] %v9757
        %9854 = vst [vmem:[#allocation2 + $0x2b0] sm:$0xff] %v9758
        %9855 = vst [vmem:[#allocation2 + $0x2b8] sm:$0xff] %v9759
        %9856 = vst [vmem:[#allocation2 + $0x2c0] sm:$0xff] %v9760
        %9857 = vst [vmem:[#allocation2 + $0x2c8] sm:$0xff] %v9761
        %9858 = vst [vmem:[#allocation2 + $0x2d0] sm:$0xff] %v9762
        %9859 = vst [vmem:[#allocation2 + $0x2d8] sm:$0xff] %v9763
        %9860 = vst [vmem:[#allocation2 + $0x2e0] sm:$0xff] %v9764
        %9861 = vst [vmem:[#allocation2 + $0x2e8] sm:$0xff] %v9765
        %9862 = vst [vmem:[#allocation2 + $0x2f0] sm:$0xff] %v9766
        %9863 = vst [vmem:[#allocation2 + $0x2f8] sm:$0xff] %v9767
        %v9864 = vld [vmem:[#allocation2] sm:$0xff]
        %v9865 = vld [vmem:[#allocation2 + $0x8] sm:$0xff]
        %v9866 = vld [vmem:[#allocation2 + $0x10] sm:$0xff]
        %v9867 = vld [vmem:[#allocation2 + $0x18] sm:$0xff]
        %v9868 = vld [vmem:[#allocation2 + $0x20] sm:$0xff]
        %v9869 = vld [vmem:[#allocation2 + $0x28] sm:$0xff]
        %v9870 = vld [vmem:[#allocation2 + $0x30] sm:$0xff]
        %v9871 = vld [vmem:[#allocation2 + $0x38] sm:$0xff]
        %v9872 = vld [vmem:[#allocation2 + $0x40] sm:$0xff]
        %v9873 = vld [vmem:[#allocation2 + $0x48] sm:$0xff]
        %v9874 = vld [vmem:[#allocation2 + $0x50] sm:$0xff]
        %v9875 = vld [vmem:[#allocation2 + $0x58] sm:$0xff]
        %v9876 = vld [vmem:[#allocation2 + $0x60] sm:$0xff]
        %v9877 = vld [vmem:[#allocation2 + $0x68] sm:$0xff]
        %v9878 = vld [vmem:[#allocation2 + $0x70] sm:$0xff]
        %v9879 = vld [vmem:[#allocation2 + $0x78] sm:$0xff]
        %v9880 = vld [vmem:[#allocation2 + $0x80] sm:$0xff]
        %v9881 = vld [vmem:[#allocation2 + $0x88] sm:$0xff]
        %v9882 = vld [vmem:[#allocation2 + $0x90] sm:$0xff]
        %v9883 = vld [vmem:[#allocation2 + $0x98] sm:$0xff]
        %v9884 = vld [vmem:[#allocation2 + $0xa0] sm:$0xff]
        %v9885 = vld [vmem:[#allocation2 + $0xa8] sm:$0xff]
        %v9886 = vld [vmem:[#allocation2 + $0xb0] sm:$0xff]
        %v9887 = vld [vmem:[#allocation2 + $0xb8] sm:$0xff]
        %v9888 = vld [vmem:[#allocation2 + $0xc0] sm:$0xff]
        %v9889 = vld [vmem:[#allocation2 + $0xc8] sm:$0xff]
        %v9890 = vld [vmem:[#allocation2 + $0xd0] sm:$0xff]
        %v9891 = vld [vmem:[#allocation2 + $0xd8] sm:$0xff]
        %v9892 = vld [vmem:[#allocation2 + $0xe0] sm:$0xff]
        %v9893 = vld [vmem:[#allocation2 + $0xe8] sm:$0xff]
        %v9894 = vld [vmem:[#allocation2 + $0xf0] sm:$0xff]
        %v9895 = vld [vmem:[#allocation2 + $0xf8] sm:$0xff]
        %v9896 = vld [vmem:[#allocation2 + $0x100] sm:$0xff]
        %v9897 = vld [vmem:[#allocation2 + $0x108] sm:$0xff]
        %v9898 = vld [vmem:[#allocation2 + $0x110] sm:$0xff]
        %v9899 = vld [vmem:[#allocation2 + $0x118] sm:$0xff]
        %v9900 = vld [vmem:[#allocation2 + $0x120] sm:$0xff]
        %v9901 = vld [vmem:[#allocation2 + $0x128] sm:$0xff]
        %v9902 = vld [vmem:[#allocation2 + $0x130] sm:$0xff]
        %v9903 = vld [vmem:[#allocation2 + $0x138] sm:$0xff]
        %v9904 = vld [vmem:[#allocation2 + $0x140] sm:$0xff]
        %v9905 = vld [vmem:[#allocation2 + $0x148] sm:$0xff]
        %v9906 = vld [vmem:[#allocation2 + $0x150] sm:$0xff]
        %v9907 = vld [vmem:[#allocation2 + $0x158] sm:$0xff]
        %v9908 = vld [vmem:[#allocation2 + $0x160] sm:$0xff]
        %v9909 = vld [vmem:[#allocation2 + $0x168] sm:$0xff]
        %v9910 = vld [vmem:[#allocation2 + $0x170] sm:$0xff]
        %v9911 = vld [vmem:[#allocation2 + $0x178] sm:$0xff]
        %v9912 = vld [vmem:[#allocation2 + $0x180] sm:$0xff]
        %v9913 = vld [vmem:[#allocation2 + $0x188] sm:$0xff]
        %v9914 = vld [vmem:[#allocation2 + $0x190] sm:$0xff]
        %v9915 = vld [vmem:[#allocation2 + $0x198] sm:$0xff]
        %v9916 = vld [vmem:[#allocation2 + $0x1a0] sm:$0xff]
        %v9917 = vld [vmem:[#allocation2 + $0x1a8] sm:$0xff]
        %v9918 = vld [vmem:[#allocation2 + $0x1b0] sm:$0xff]
        %v9919 = vld [vmem:[#allocation2 + $0x1b8] sm:$0xff]
        %v9920 = vld [vmem:[#allocation2 + $0x1c0] sm:$0xff]
        %v9921 = vld [vmem:[#allocation2 + $0x1c8] sm:$0xff]
        %v9922 = vld [vmem:[#allocation2 + $0x1d0] sm:$0xff]
        %v9923 = vld [vmem:[#allocation2 + $0x1d8] sm:$0xff]
        %v9924 = vld [vmem:[#allocation2 + $0x1e0] sm:$0xff]
        %v9925 = vld [vmem:[#allocation2 + $0x1e8] sm:$0xff]
        %v9926 = vld [vmem:[#allocation2 + $0x1f0] sm:$0xff]
        %v9927 = vld [vmem:[#allocation2 + $0x1f8] sm:$0xff]
        %v9928 = vld [vmem:[#allocation2 + $0x200] sm:$0xff]
        %v9929 = vld [vmem:[#allocation2 + $0x208] sm:$0xff]
        %v9930 = vld [vmem:[#allocation2 + $0x210] sm:$0xff]
        %v9931 = vld [vmem:[#allocation2 + $0x218] sm:$0xff]
        %v9932 = vld [vmem:[#allocation2 + $0x220] sm:$0xff]
        %v9933 = vld [vmem:[#allocation2 + $0x228] sm:$0xff]
        %v9934 = vld [vmem:[#allocation2 + $0x230] sm:$0xff]
        %v9935 = vld [vmem:[#allocation2 + $0x238] sm:$0xff]
        %v9936 = vld [vmem:[#allocation2 + $0x240] sm:$0xff]
        %v9937 = vld [vmem:[#allocation2 + $0x248] sm:$0xff]
        %v9938 = vld [vmem:[#allocation2 + $0x250] sm:$0xff]
        %v9939 = vld [vmem:[#allocation2 + $0x258] sm:$0xff]
        %v9940 = vld [vmem:[#allocation2 + $0x260] sm:$0xff]
        %v9941 = vld [vmem:[#allocation2 + $0x268] sm:$0xff]
        %v9942 = vld [vmem:[#allocation2 + $0x270] sm:$0xff]
        %v9943 = vld [vmem:[#allocation2 + $0x278] sm:$0xff]
        %v9944 = vld [vmem:[#allocation2 + $0x280] sm:$0xff]
        %v9945 = vld [vmem:[#allocation2 + $0x288] sm:$0xff]
        %v9946 = vld [vmem:[#allocation2 + $0x290] sm:$0xff]
        %v9947 = vld [vmem:[#allocation2 + $0x298] sm:$0xff]
        %v9948 = vld [vmem:[#allocation2 + $0x2a0] sm:$0xff]
        %v9949 = vld [vmem:[#allocation2 + $0x2a8] sm:$0xff]
        %v9950 = vld [vmem:[#allocation2 + $0x2b0] sm:$0xff]
        %v9951 = vld [vmem:[#allocation2 + $0x2b8] sm:$0xff]
        %v9952 = vld [vmem:[#allocation2 + $0x2c0] sm:$0xff]
        %v9953 = vld [vmem:[#allocation2 + $0x2c8] sm:$0xff]
        %v9954 = vld [vmem:[#allocation2 + $0x2d0] sm:$0xff]
        %v9955 = vld [vmem:[#allocation2 + $0x2d8] sm:$0xff]
        %v9956 = vld [vmem:[#allocation2 + $0x2e0] sm:$0xff]
        %v9957 = vld [vmem:[#allocation2 + $0x2e8] sm:$0xff]
        %v9958 = vld [vmem:[#allocation2 + $0x2f0] sm:$0xff]
        %v9959 = vld [vmem:[#allocation2 + $0x2f8] sm:$0xff]
        %9960 = vst [vmem:[%s297] sm:$0xff] %v9864
        %9961 = vst [vmem:[%s297 + $0x8] sm:$0xff] %v9865
        %9962 = vst [vmem:[%s297 + $0x10] sm:$0xff] %v9866
        %9963 = vst [vmem:[%s297 + $0x18] sm:$0xff] %v9867
        %9964 = vst [vmem:[%s297 + $0x20] sm:$0xff] %v9868
        %9965 = vst [vmem:[%s297 + $0x28] sm:$0xff] %v9869
        %9966 = vst [vmem:[%s297 + $0x30] sm:$0xff] %v9870
        %9967 = vst [vmem:[%s297 + $0x38] sm:$0xff] %v9871
        %9968 = vst [vmem:[%s297 + $0x40] sm:$0xff] %v9872
        %9969 = vst [vmem:[%s297 + $0x48] sm:$0xff] %v9873
        %9970 = vst [vmem:[%s297 + $0x50] sm:$0xff] %v9874
        %9971 = vst [vmem:[%s297 + $0x58] sm:$0xff] %v9875
        %9972 = vst [vmem:[%s297 + $0x60] sm:$0xff] %v9876
        %9973 = vst [vmem:[%s297 + $0x68] sm:$0xff] %v9877
        %9974 = vst [vmem:[%s297 + $0x70] sm:$0xff] %v9878
        %9975 = vst [vmem:[%s297 + $0x78] sm:$0xff] %v9879
        %9976 = vst [vmem:[%s297 + $0x80] sm:$0xff] %v9880
        %9977 = vst [vmem:[%s297 + $0x88] sm:$0xff] %v9881
        %9978 = vst [vmem:[%s297 + $0x90] sm:$0xff] %v9882
        %9979 = vst [vmem:[%s297 + $0x98] sm:$0xff] %v9883
        %9980 = vst [vmem:[%s297 + $0xa0] sm:$0xff] %v9884
        %9981 = vst [vmem:[%s297 + $0xa8] sm:$0xff] %v9885
        %9982 = vst [vmem:[%s297 + $0xb0] sm:$0xff] %v9886
        %9983 = vst [vmem:[%s297 + $0xb8] sm:$0xff] %v9887
        %9984 = vst [vmem:[%s297 + $0xc0] sm:$0xff] %v9888
        %9985 = vst [vmem:[%s297 + $0xc8] sm:$0xff] %v9889
        %9986 = vst [vmem:[%s297 + $0xd0] sm:$0xff] %v9890
        %9987 = vst [vmem:[%s297 + $0xd8] sm:$0xff] %v9891
        %9988 = vst [vmem:[%s297 + $0xe0] sm:$0xff] %v9892
        %9989 = vst [vmem:[%s297 + $0xe8] sm:$0xff] %v9893
        %9990 = vst [vmem:[%s297 + $0xf0] sm:$0xff] %v9894
        %9991 = vst [vmem:[%s297 + $0xf8] sm:$0xff] %v9895
        %9992 = vst [vmem:[%s297 + $0x100] sm:$0xff] %v9896
        %9993 = vst [vmem:[%s297 + $0x108] sm:$0xff] %v9897
        %9994 = vst [vmem:[%s297 + $0x110] sm:$0xff] %v9898
        %9995 = vst [vmem:[%s297 + $0x118] sm:$0xff] %v9899
        %9996 = vst [vmem:[%s297 + $0x120] sm:$0xff] %v9900
        %9997 = vst [vmem:[%s297 + $0x128] sm:$0xff] %v9901
        %9998 = vst [vmem:[%s297 + $0x130] sm:$0xff] %v9902
        %9999 = vst [vmem:[%s297 + $0x138] sm:$0xff] %v9903
        %10000 = vst [vmem:[%s297 + $0x140] sm:$0xff] %v9904
        %10001 = vst [vmem:[%s297 + $0x148] sm:$0xff] %v9905
        %10002 = vst [vmem:[%s297 + $0x150] sm:$0xff] %v9906
        %10003 = vst [vmem:[%s297 + $0x158] sm:$0xff] %v9907
        %10004 = vst [vmem:[%s297 + $0x160] sm:$0xff] %v9908
        %10005 = vst [vmem:[%s297 + $0x168] sm:$0xff] %v9909
        %10006 = vst [vmem:[%s297 + $0x170] sm:$0xff] %v9910
        %10007 = vst [vmem:[%s297 + $0x178] sm:$0xff] %v9911
        %10008 = vst [vmem:[%s297 + $0x180] sm:$0xff] %v9912
        %10009 = vst [vmem:[%s297 + $0x188] sm:$0xff] %v9913
        %10010 = vst [vmem:[%s297 + $0x190] sm:$0xff] %v9914
        %10011 = vst [vmem:[%s297 + $0x198] sm:$0xff] %v9915
        %10012 = vst [vmem:[%s297 + $0x1a0] sm:$0xff] %v9916
        %10013 = vst [vmem:[%s297 + $0x1a8] sm:$0xff] %v9917
        %10014 = vst [vmem:[%s297 + $0x1b0] sm:$0xff] %v9918
        %10015 = vst [vmem:[%s297 + $0x1b8] sm:$0xff] %v9919
        %10016 = vst [vmem:[%s297 + $0x1c0] sm:$0xff] %v9920
        %10017 = vst [vmem:[%s297 + $0x1c8] sm:$0xff] %v9921
        %10018 = vst [vmem:[%s297 + $0x1d0] sm:$0xff] %v9922
        %10019 = vst [vmem:[%s297 + $0x1d8] sm:$0xff] %v9923
        %10020 = vst [vmem:[%s297 + $0x1e0] sm:$0xff] %v9924
        %10021 = vst [vmem:[%s297 + $0x1e8] sm:$0xff] %v9925
        %10022 = vst [vmem:[%s297 + $0x1f0] sm:$0xff] %v9926
        %10023 = vst [vmem:[%s297 + $0x1f8] sm:$0xff] %v9927
        %10024 = vst [vmem:[%s297 + $0x200] sm:$0xff] %v9928
        %10025 = vst [vmem:[%s297 + $0x208] sm:$0xff] %v9929
        %10026 = vst [vmem:[%s297 + $0x210] sm:$0xff] %v9930
        %10027 = vst [vmem:[%s297 + $0x218] sm:$0xff] %v9931
        %10028 = vst [vmem:[%s297 + $0x220] sm:$0xff] %v9932
        %10029 = vst [vmem:[%s297 + $0x228] sm:$0xff] %v9933
        %10030 = vst [vmem:[%s297 + $0x230] sm:$0xff] %v9934
        %10031 = vst [vmem:[%s297 + $0x238] sm:$0xff] %v9935
        %10032 = vst [vmem:[%s297 + $0x240] sm:$0xff] %v9936
        %10033 = vst [vmem:[%s297 + $0x248] sm:$0xff] %v9937
        %10034 = vst [vmem:[%s297 + $0x250] sm:$0xff] %v9938
        %10035 = vst [vmem:[%s297 + $0x258] sm:$0xff] %v9939
        %10036 = vst [vmem:[%s297 + $0x260] sm:$0xff] %v9940
        %10037 = vst [vmem:[%s297 + $0x268] sm:$0xff] %v9941
        %10038 = vst [vmem:[%s297 + $0x270] sm:$0xff] %v9942
        %10039 = vst [vmem:[%s297 + $0x278] sm:$0xff] %v9943
        %10040 = vst [vmem:[%s297 + $0x280] sm:$0xff] %v9944
        %10041 = vst [vmem:[%s297 + $0x288] sm:$0xff] %v9945
        %10042 = vst [vmem:[%s297 + $0x290] sm:$0xff] %v9946
        %10043 = vst [vmem:[%s297 + $0x298] sm:$0xff] %v9947
        %10044 = vst [vmem:[%s297 + $0x2a0] sm:$0xff] %v9948
        %10045 = vst [vmem:[%s297 + $0x2a8] sm:$0xff] %v9949
        %10046 = vst [vmem:[%s297 + $0x2b0] sm:$0xff] %v9950
        %10047 = vst [vmem:[%s297 + $0x2b8] sm:$0xff] %v9951
        %10048 = vst [vmem:[%s297 + $0x2c0] sm:$0xff] %v9952
        %10049 = vst [vmem:[%s297 + $0x2c8] sm:$0xff] %v9953
        %10050 = vst [vmem:[%s297 + $0x2d0] sm:$0xff] %v9954
        %10051 = vst [vmem:[%s297 + $0x2d8] sm:$0xff] %v9955
        %10052 = vst [vmem:[%s297 + $0x2e0] sm:$0xff] %v9956
        %10053 = vst [vmem:[%s297 + $0x2e8] sm:$0xff] %v9957
        %10054 = vst [vmem:[%s297 + $0x2f0] sm:$0xff] %v9958
        %10055 = vst [vmem:[%s297 + $0x2f8] sm:$0xff] %v9959
        %s10056 = sand.u32 %s142, 1
        %s10057 = scalar_lea.sflag [#allocation5], %s10056
        %s10058 = sand.u32 %s142, 1
        %s10059 = smul.addr %s10058, 768
        %s10060 = scalar_lea.vmem [#allocation12], %s10059
        // Predicated region
        $region61: #{feedforward.1} parent=39 // pred_check
          %p10061 = pneg %p152
        $region62: #{feedforward.1} parent=39 // pred_check_branch
          %10063 = sbr.rel (%p10061) target = $region64
        $region63: #{feedforward.1} parent=39 // pred_region
          %s10064 = smul.u32 32, %s24
          %s10066 = ssub.s32 12288, 12288
          %10067 = vsyncadd %s10057, %s10066
          %s10068 = smul.addr %s10064, 3
          %s10069 = smul.addr %s10068, 128
          %s10070 = scalar_lea.hbm %s5, %s10069
          %s10071 = sshll.u32 %s10060, 4
          %s10072 = int_to_ptr.vmem [resolvable:$true] %s10071
          %10077 = dma.vmem_to_hbm [thread:$0]  %s10072, 12288, %s10070, %s10057, 384, 384, 24
        $region64: #{feedforward.1} parent=39 // pred_fallthru
          _
      $region40: #{feedforward.1} parent=5 // pred_fallthru
        _
      %p10078 = scmp.le.s32.totalorder 2, %s19
      // Predicated region
      $region65: #{feedforward.1} parent=5 // pred_check
        %p10079 = pneg %p10078
      $region66: #{feedforward.1} parent=5 // pred_check_branch
        %10081 = sbr.rel (%p10079) target = $region68
      $region67: #{feedforward.1} parent=5 // pred_region
        %s10082 = ssub.s32 %s19, 2
        // Predicated region
        $region69: #{feedforward.1} parent=67 // pred_check
          %p10083 = pneg %p158
        $region70: #{feedforward.1} parent=67 // pred_check_branch
          %10085 = sbr.rel (%p10083) target = $region72
        $region71: #{feedforward.1} parent=67 // pred_region
          %s10086 = sand.u32 %s143, 1
          %s10087 = scalar_lea.sflag [#allocation5], %s10086
          %s10088 = sand.u32 %s143, 1
          %s10089 = smul.addr %s10088, 768
          %s10090 = scalar_lea.vmem [#allocation12], %s10089
          %10091 = dma.done %s10087, 12288
        $region72: #{feedforward.1} parent=67 // pred_fallthru
          _
      $region68: #{feedforward.1} parent=5 // pred_fallthru
        _
    $region6: #{feedforward.1} parent=1 // loop_footer
      %s23 = sadd.s32 1, %s19
    $region7: #{feedforward.1} parent=1 // loop_footer_branch
      %18 = sbr.rel target = $region3
    $region8: #{feedforward.1} parent=1 // loop_exit
      _
    %10092 = vsyncpa [#allocation4], 1
    %s10093 = scalar_lea.sflag [#allocation4], 1
    %10094 = vsyncpa %s10093, 1
    %10095 = vsyncpa [#allocation7], 1
    %10096 = vsyncpa [#allocation10], 1
    %10097 = vsyncpa [#allocation5], 1
    %s10098 = scalar_lea.sflag [#allocation5], 1
    %10099 = vsyncpa %s10098, 1

</llo_original>
